<compile_context>
chip_gen: v7x
topology: tpu7x:2x2x1
jax: 0.10.0
libtpu: 0.0.40
codegen_flags: <defaults>
</compile_context>

<pallas_src>
import functools

import jax
import jax.numpy as jnp
from jax.experimental import pallas as pl
from jax.experimental.pallas import tpu as pltpu


def _round_up(x, m):
    return ((x + m - 1) // m) * m


# Single-copy size limit (bytes) for keeping the dense operand M fully
# VMEM-resident.  Pallas double-buffers it, so ~2x this is actually held;
# together with double-buffered 1 MiB A tiles, W, output block and the f32
# accumulator this stays well under the 32 MiB scoped VMEM limit (v7x-safe).
_M_RESIDENT_BYTES = 10 * 1024 * 1024


def _make_graphconv_kernel(apply_w, relu, normalize, eps, true_fout,
                           m_resident, tk):
    def kernel(*refs):
        if apply_w:
            a_ref, m_ref, w_ref, o_ref, acc_ref = refs
        else:
            a_ref, m_ref, o_ref, acc_ref = refs
            w_ref = None

        k = pl.program_id(1)

        @pl.when(k == 0)
        def _():
            acc_ref[...] = jnp.zeros_like(acc_ref)

        if m_resident:
            # M is VMEM-resident (DMA'd once); slice the current k chunk.
            start = pl.multiple_of(k * tk, tk)
            m_blk = m_ref[pl.ds(start, tk), :]
        else:
            m_blk = m_ref[...]

        # bf16 x bf16 -> f32 accumulation on the MXU.
        acc_ref[...] += jnp.dot(
            a_ref[...], m_blk, preferred_element_type=jnp.float32
        )

        @pl.when(k == pl.num_programs(1) - 1)
        def _():
            y = acc_ref[...]
            if apply_w:
                # bf16 x bf16 epilogue matmul (native MXU rate); accuracy is
                # already bounded by the bf16 A/X streams.
                y = jnp.dot(y.astype(jnp.bfloat16), w_ref[...],
                            preferred_element_type=jnp.float32)
            if relu:
                y = jnp.maximum(y, 0.0)
            if normalize:
                # Padded feature columns of y are exactly zero (W pad columns
                # are zero), so sums over the padded width divided by the true
                # width give the exact moments of the un-padded row.
                inv_f = 1.0 / float(true_fout)
                s1 = jnp.sum(y, axis=-1, keepdims=True)
                s2 = jnp.sum(y * y, axis=-1, keepdims=True)
                mean = s1 * inv_f
                var = s2 * inv_f - mean * mean
                y = (y - mean) * jax.lax.rsqrt(var + eps)
            o_ref[...] = y.astype(o_ref.dtype)

    return kernel


def _graphconv_padded(adj_p, m, w_p, *, apply_w, relu, normalize, true_fout,
                      fout_pad, tm, tk, eps=1e-5, out_dtype=jnp.float32):
    """One fused GraphConv layer on pre-padded operands.

    adj_p : (n_pad_m, n_pad_k) bf16   padded, row-normalized adjacency
    m     : (n_pad_k, fm)      bf16   features (apply_w) or X@W (not apply_w)
    w_p   : (fin_pad, fout_pad) bf16  or None (when W was folded into m)
    """
    n_pad_m, n_pad_k = adj_p.shape
    fm = m.shape[1]
    assert m.shape[0] == n_pad_k
    assert n_pad_m % tm == 0 and n_pad_k % tk == 0

    m_resident = (n_pad_k * fm * 2) <= _M_RESIDENT_BYTES

    kernel = _make_graphconv_kernel(
        apply_w, relu, normalize, eps, true_fout, m_resident, tk)

    if m_resident:
        # Constant block index -> DMA'd from HBM exactly once for the grid.
        m_spec = pl.BlockSpec((n_pad_k, fm), lambda i, k: (0, 0))
        m_bytes = n_pad_k * fm * 2
    else:
        # Fallback: streamed per k-step (re-fetched once per row block).
        m_spec = pl.BlockSpec((tk, fm), lambda i, k: (k, 0))
        m_bytes = n_pad_k * fm * 2 * (n_pad_m // tm)

    inputs = [adj_p, m]
    in_specs = [
        pl.BlockSpec((tm, tk), lambda i, k: (i, k)),   # adjacency tile
        m_spec,                                        # features / XW
    ]
    if apply_w:
        inputs.append(w_p)
        in_specs.append(pl.BlockSpec(w_p.shape, lambda i, k: (0, 0)))

    flops = 2 * n_pad_m * n_pad_k * fm
    if apply_w:
        flops += 2 * n_pad_m * fm * fout_pad
    bytes_accessed = (
        n_pad_m * n_pad_k * 2                      # bf16 adjacency stream
        + m_bytes                                  # bf16 features / XW
        + (w_p.size * 2 if apply_w else 0)
        + n_pad_m * fout_pad * jnp.dtype(out_dtype).itemsize
    )

    return pl.pallas_call(
        kernel,
        out_shape=jax.ShapeDtypeStruct((n_pad_m, fout_pad), out_dtype),
        grid_spec=pltpu.PrefetchScalarGridSpec(
            num_scalar_prefetch=0,
            grid=(n_pad_m // tm, n_pad_k // tk),
            in_specs=in_specs,
            out_specs=pl.BlockSpec((tm, fout_pad), lambda i, k: (i, 0)),
            scratch_shapes=[pltpu.VMEM((tm, fm), jnp.float32)],
        ),
        compiler_params=pltpu.CompilerParams(
            dimension_semantics=("parallel", "arbitrary"),
            vmem_limit_bytes=32 * 1024 * 1024,
        ),
        cost_estimate=pl.CostEstimate(
            flops=flops,
            transcendentals=n_pad_m if normalize else 0,
            bytes_accessed=bytes_accessed,
        ),
    )(*inputs)


def _fit2d(x, rows, cols):
    """Slice/zero-pad a 2-D array to exactly (rows, cols)."""
    r, c = x.shape
    x = x[:min(r, rows), :min(c, cols)]
    return jnp.pad(x, ((0, rows - x.shape[0]), (0, cols - x.shape[1])))


def _gcn_forward(adj, feats, weights, *, normalize, tm=512, tk=1024):
    n = feats.shape[0]
    num_layers = len(weights)

    # Clamp tiles to the graph size; independent row/contraction padding.
    # (On v7x, very large tm that leaves a single row block idles one core —
    # for small Cluster-GCN subgraphs that is the lesser cost.)
    tm_e = min(tm, _round_up(n, 8))
    tk_e = min(tk, _round_up(n, 128))
    n_pad_m = _round_up(n, tm_e)
    n_pad_k = _round_up(n, tk_e)

    # Pad + cast the dominant N^2 adjacency ONCE; every layer reuses it.
    adj_p = jnp.pad(
        adj, ((0, n_pad_m - n), (0, n_pad_k - n))
    ).astype(jnp.bfloat16)

    h = feats.astype(jnp.float32)
    for i, w in enumerate(weights):
        last = i == num_layers - 1
        fin, fout = w.shape
        fin_pad = _round_up(fin, 128)
        fout_pad = _round_up(fout, 128)

        w_pad = jnp.pad(w.astype(jnp.float32),
                        ((0, fin_pad - fin), (0, fout_pad - fout)))

        # Re-associate so the N^2 matmul contracts against min(fin, fout).
        apply_w = fin <= fout
        out_dtype = jnp.float32 if last else jnp.bfloat16

        if apply_w:
            # Stream A @ X; fold W into the kernel epilogue.
            m = _fit2d(h, n_pad_k, fin_pad).astype(jnp.bfloat16)
            h = _graphconv_padded(
                adj_p, m, w_pad.astype(jnp.bfloat16),
                apply_w=True, relu=not last,
                normalize=(normalize and not last),
                true_fout=fout, fout_pad=fout_pad,
                tm=tm_e, tk=tk_e, out_dtype=out_dtype)
        else:
            # Compute X @ W once (small) and stream A @ (XW).
            # W's zero-padded rows (>= fin) cancel any nonzero padded feature
            # columns carried over from the previous layer's layernorm.
            xw = jnp.dot(_fit2d(h, n_pad_k, fin_pad).astype(jnp.float32),
                         w_pad, preferred_element_type=jnp.float32)
            m = xw.astype(jnp.bfloat16)
            h = _graphconv_padded(
                adj_p, m, None,
                apply_w=False, relu=not last,
                normalize=(normalize and not last),
                true_fout=fout, fout_pad=fout_pad,
                tm=tm_e, tk=tk_e, out_dtype=out_dtype)
        # h stays padded (n_pad_m, fout_pad) between layers; slice only at end.

    return h[:n, :weights[-1].shape[1]]


class GCNPallas:
    """JAX/Pallas mirror of the PyTorch GCN module (bias=False, eval mode)."""

    def __init__(self, fan_in, fan_out, layers, normalize=True, key=None):
        assert len(fan_in) == layers and len(fan_out) == layers
        self.num_layers = layers
        self.normalize = normalize
        if key is None:
            key = jax.random.PRNGKey(0)
        self.weights = []
        for i in range(layers):
            key, sub = jax.random.split(key)
            limit = (6.0 / (fan_in[i] + fan_out[i])) ** 0.5
            w = jax.random.uniform(
                sub, (fan_in[i], fan_out[i]), jnp.float32, -limit, limit
            )
            self.weights.append(w)
        # Jit the whole stack: pads/casts the adjacency once, keeps padded H
        # on-device in bf16 between layers, removes per-layer dispatch.
        self._forward = jax.jit(
            functools.partial(_gcn_forward, normalize=self.normalize)
        )

    def __call__(self, adj, feats):
        return self._forward(adj, feats, tuple(self.weights))


def _reference(adj, feats, weights, normalize, eps=1e-5):
    h = feats.astype(jnp.float32)
    num_layers = len(weights)
    for i, w in enumerate(weights):
        last = i == num_layers - 1
        h = adj @ h @ w
        if not last:
            h = jnp.maximum(h, 0.0)
            if normalize:
                mean = jnp.mean(h, axis=-1, keepdims=True)
                var = jnp.mean(jnp.square(h - mean), axis=-1, keepdims=True)
                h = (h - mean) * jax.lax.rsqrt(var + eps)
    return h


if __name__ == "__main__":
    key = jax.random.PRNGKey(0)
    k_adj, k_feat, k_model = jax.random.split(key, 3)

    # Small synthetic graph, sized so the grid is multi-step with the larger
    # default tiles (rows padded to 1536 -> 3 row blocks, contraction padded
    # to 2048 -> 2 k blocks) and the resident-M path is exercised.
    N = 1280
    fan_in = [16, 32]
    fan_out = [32, 8]
    layers = 2

    # Dense, row-normalized (random-walk) adjacency with self-loops.
    raw = (jax.random.uniform(k_adj, (N, N)) < 0.05).astype(jnp.float32)
    raw = raw + jnp.eye(N, dtype=jnp.float32)
    adj = raw / jnp.sum(raw, axis=1, keepdims=True)

    feats = jax.random.normal(k_feat, (N, fan_in[0]), jnp.float32)

    model = GCNPallas(fan_in, fan_out, layers, normalize=True, key=k_model)
    out = model(adj, feats)
    out = jax.block_until_ready(out)

    assert out.shape == (N, fan_out[-1])
    assert out.dtype == jnp.float32
    assert bool(jnp.all(jnp.isfinite(out)))

    # Loose tolerance: kernel streams A / X / W in bf16 (f32 accumulation).
    ref = _reference(adj, feats, tuple(model.weights), normalize=True)
    max_err = float(jnp.max(jnp.abs(out - ref)))
    assert jnp.allclose(out, ref, atol=1e-1, rtol=1e-1), f"max abs err {max_err}"

    print("KERNEL_OK")
</pallas_src>

<mosaic_0001>
module attributes {stable_mosaic.version = 11 : i64} {
  func.func @kernel(%arg0: i32, %arg1: i32, %arg2: memref<512x1024xbf16, #tpu.memory_space<vmem>>, %arg3: memref<2048x128xbf16, #tpu.memory_space<vmem>>, %arg4: memref<128x128xbf16, #tpu.memory_space<vmem>>, %arg5: memref<512x128xbf16, #tpu.memory_space<vmem>>, %arg6: memref<512x128xf32, #tpu.memory_space<vmem>>) attributes {dimension_semantics = [#tpu.dimension_semantics<parallel>, #tpu.dimension_semantics<arbitrary>], iteration_bounds = array<i64: 3, 2>, scalar_prefetch = 0 : i64, scratch_operands = 1 : i64, tpu.core_type = #tpu.core_type<tc>, window_params = [{transform_indices = @transform_0, window_bounds = array<i64: 512, 1024>}, {pipeline_mode = #tpu.pipeline_mode<synchronous>, transform_indices = @transform_1, window_bounds = array<i64: 2048, 128>}, {pipeline_mode = #tpu.pipeline_mode<synchronous>, transform_indices = @transform_2, window_bounds = array<i64: 128, 128>}, {transform_indices = @transform_3, window_bounds = array<i64: 512, 128>}]} {
    %c0_i32 = arith.constant 0 : i32
    %0 = arith.cmpi eq, %arg1, %c0_i32 : i32
    %1 = arith.extui %0 : i1 to i32
    %c0_i32_0 = arith.constant 0 : i32
    %2 = arith.cmpi ne, %1, %c0_i32_0 : i32
    scf.if %2 {
      %cst_8 = arith.constant 0.000000e+00 : f32
      %15 = vector.broadcast %cst_8 : f32 to vector<512x128xf32>
      %c0_9 = arith.constant 0 : index
      %c0_10 = arith.constant 0 : index
      %16 = vector.load %arg6[%c0_9, %c0_10] : memref<512x128xf32, #tpu.memory_space<vmem>>, vector<512x128xf32>
      tpu.vector_store %arg6[%c0_9, %c0_10], %15 {strides = array<i32>} : memref<512x128xf32, #tpu.memory_space<vmem>>, vector<512x128xf32>,
    } else {
    }
    %c1024_i32 = arith.constant 1024 : i32
    %3 = arith.muli %arg1, %c1024_i32 : i32
    %4 = tpu.assume_multiple %3, 1024 : i32
    %5 = arith.index_cast %4 : i32 to index
    %c0 = arith.constant 0 : index
    %6 = vector.load %arg3[%5, %c0] : memref<2048x128xbf16, #tpu.memory_space<vmem>>, vector<1024x128xbf16>
    %c0_1 = arith.constant 0 : index
    %c0_2 = arith.constant 0 : index
    %7 = vector.load %arg6[%c0_1, %c0_2] : memref<512x128xf32, #tpu.memory_space<vmem>>, vector<512x128xf32>
    %c0_3 = arith.constant 0 : index
    %c0_4 = arith.constant 0 : index
    %8 = vector.load %arg2[%c0_3, %c0_4] : memref<512x1024xbf16, #tpu.memory_space<vmem>>, vector<512x1024xbf16>
    %cst = arith.constant dense<0.000000e+00> : vector<512x128xf32>
    %9 = tpu.matmul %8, %6, %cst {dimension_numbers = #tpu.dot_dimension_numbers<[1], [0], [0], [1], [0, 0, 1, 1], [], []>} : vector<512x1024xbf16>, vector<1024x128xbf16>, vector<512x128xf32> -> vector<512x128xf32>
    %10 = arith.addf %7, %9 : vector<512x128xf32>
    %c0_5 = arith.constant 0 : index
    %c0_6 = arith.constant 0 : index
    %11 = vector.load %arg6[%c0_5, %c0_6] : memref<512x128xf32, #tpu.memory_space<vmem>>, vector<512x128xf32>
    tpu.vector_store %arg6[%c0_5, %c0_6], %10 {strides = array<i32>} : memref<512x128xf32, #tpu.memory_space<vmem>>, vector<512x128xf32>,
    %c1_i32 = arith.constant 1 : i32
    %12 = arith.cmpi eq, %arg1, %c1_i32 : i32
    %13 = arith.extui %12 : i1 to i32
    %c0_i32_7 = arith.constant 0 : i32
    %14 = arith.cmpi ne, %13, %c0_i32_7 : i32
    scf.if %14 {
      %c0_8 = arith.constant 0 : index
      %c0_9 = arith.constant 0 : index
      %15 = vector.load %arg6[%c0_8, %c0_9] : memref<512x128xf32, #tpu.memory_space<vmem>>, vector<512x128xf32>
      %16 = arith.truncf %15 : vector<512x128xf32> to vector<512x128xbf16>
      %c0_10 = arith.constant 0 : index
      %c0_11 = arith.constant 0 : index
      %17 = vector.load %arg4[%c0_10, %c0_11] : memref<128x128xbf16, #tpu.memory_space<vmem>>, vector<128x128xbf16>
      %cst_12 = arith.constant dense<0.000000e+00> : vector<512x128xf32>
      %18 = tpu.matmul %16, %17, %cst_12 {dimension_numbers = #tpu.dot_dimension_numbers<[1], [0], [0], [1], [0, 0, 1, 1], [], []>} : vector<512x128xbf16>, vector<128x128xbf16>, vector<512x128xf32> -> vector<512x128xf32>
      %cst_13 = arith.constant 0.000000e+00 : f32
      %19 = vector.broadcast %cst_13 : f32 to vector<512x128xf32>
      %20 = arith.maximumf %18, %19 : vector<512x128xf32>
      %cst_14 = arith.constant dense<0.000000e+00> : vector<512xf32>
      %21 = vector.multi_reduction <add>, %20, %cst_14 [1] : vector<512x128xf32> to vector<512xf32>
      %22 = vector.shape_cast %21 : vector<512xf32> to vector<512x1xf32>
      %23 = arith.mulf %20, %20 : vector<512x128xf32>
      %cst_15 = arith.constant dense<0.000000e+00> : vector<512xf32>
      %24 = vector.multi_reduction <add>, %23, %cst_15 [1] : vector<512x128xf32> to vector<512xf32>
      %25 = vector.shape_cast %24 : vector<512xf32> to vector<512x1xf32>
      %cst_16 = arith.constant 3.125000e-02 : f32
      %26 = vector.broadcast %cst_16 : f32 to vector<512x1xf32>
      %27 = arith.mulf %22, %26 : vector<512x1xf32>
      %cst_17 = arith.constant 3.125000e-02 : f32
      %28 = vector.broadcast %cst_17 : f32 to vector<512x1xf32>
      %29 = arith.mulf %25, %28 : vector<512x1xf32>
      %30 = arith.mulf %27, %27 : vector<512x1xf32>
      %31 = arith.subf %29, %30 : vector<512x1xf32>
      %32 = vector.broadcast %27 : vector<512x1xf32> to vector<512x128xf32>
      %33 = arith.subf %20, %32 : vector<512x128xf32>
      %cst_18 = arith.constant 9.99999974E-6 : f32
      %34 = vector.broadcast %cst_18 : f32 to vector<512x1xf32>
      %35 = arith.addf %31, %34 : vector<512x1xf32>
      %36 = math.rsqrt %35 : vector<512x1xf32>
      %37 = vector.broadcast %36 : vector<512x1xf32> to vector<512x128xf32>
      %38 = arith.mulf %33, %37 : vector<512x128xf32>
      %39 = arith.truncf %38 : vector<512x128xf32> to vector<512x128xbf16>
      %c0_19 = arith.constant 0 : index
      %c0_20 = arith.constant 0 : index
      %40 = vector.load %arg5[%c0_19, %c0_20] : memref<512x128xbf16, #tpu.memory_space<vmem>>, vector<512x128xbf16>
      tpu.vector_store %arg5[%c0_19, %c0_20], %39 {strides = array<i32>} : memref<512x128xbf16, #tpu.memory_space<vmem>>, vector<512x128xbf16>,
    } else {
    }
    return
  }
  func.func @transform_0(%arg0: i32, %arg1: i32) -> (i32, i32) {
    %c0_i32 = arith.constant 0 : i32
    return %arg0, %arg1 : i32, i32
  }
  func.func @transform_1(%arg0: i32, %arg1: i32) -> (i32, i32) {
    %c0_i32 = arith.constant 0 : i32
    %c0_i32_0 = arith.constant 0 : i32
    %c0_i32_1 = arith.constant 0 : i32
    return %c0_i32, %c0_i32_0 : i32, i32
  }
  func.func @transform_2(%arg0: i32, %arg1: i32) -> (i32, i32) {
    %c0_i32 = arith.constant 0 : i32
    %c0_i32_0 = arith.constant 0 : i32
    %c0_i32_1 = arith.constant 0 : i32
    return %c0_i32, %c0_i32_0 : i32, i32
  }
  func.func @transform_3(%arg0: i32, %arg1: i32) -> (i32, i32) {
    %c0_i32 = arith.constant 0 : i32
    %c0_i32_0 = arith.constant 0 : i32
    return %arg0, %c0_i32 : i32, i32
  }
}

module attributes {stable_mosaic.version = 11 : i64} {
  func.func @kernel(%arg0: i32, %arg1: i32, %arg2: memref<512x1024xbf16, #tpu.memory_space<vmem>>, %arg3: memref<2048x128xbf16, #tpu.memory_space<vmem>>, %arg4: memref<512x128xf32, #tpu.memory_space<vmem>>, %arg5: memref<512x128xf32, #tpu.memory_space<vmem>>) attributes {dimension_semantics = [#tpu.dimension_semantics<parallel>, #tpu.dimension_semantics<arbitrary>], iteration_bounds = array<i64: 3, 2>, scalar_prefetch = 0 : i64, scratch_operands = 1 : i64, tpu.core_type = #tpu.core_type<tc>, window_params = [{transform_indices = @transform_0, window_bounds = array<i64: 512, 1024>}, {pipeline_mode = #tpu.pipeline_mode<synchronous>, transform_indices = @transform_1, window_bounds = array<i64: 2048, 128>}, {transform_indices = @transform_2, window_bounds = array<i64: 512, 128>}]} {
    %c0_i32 = arith.constant 0 : i32
    %0 = arith.cmpi eq, %arg1, %c0_i32 : i32
    %1 = arith.extui %0 : i1 to i32
    %c0_i32_0 = arith.constant 0 : i32
    %2 = arith.cmpi ne, %1, %c0_i32_0 : i32
    scf.if %2 {
      %cst_8 = arith.constant 0.000000e+00 : f32
      %15 = vector.broadcast %cst_8 : f32 to vector<512x128xf32>
      %c0_9 = arith.constant 0 : index
      %c0_10 = arith.constant 0 : index
      %16 = vector.load %arg5[%c0_9, %c0_10] : memref<512x128xf32, #tpu.memory_space<vmem>>, vector<512x128xf32>
      tpu.vector_store %arg5[%c0_9, %c0_10], %15 {strides = array<i32>} : memref<512x128xf32, #tpu.memory_space<vmem>>, vector<512x128xf32>,
    } else {
    }
    %c1024_i32 = arith.constant 1024 : i32
    %3 = arith.muli %arg1, %c1024_i32 : i32
    %4 = tpu.assume_multiple %3, 1024 : i32
    %5 = arith.index_cast %4 : i32 to index
    %c0 = arith.constant 0 : index
    %6 = vector.load %arg3[%5, %c0] : memref<2048x128xbf16, #tpu.memory_space<vmem>>, vector<1024x128xbf16>
    %c0_1 = arith.constant 0 : index
    %c0_2 = arith.constant 0 : index
    %7 = vector.load %arg5[%c0_1, %c0_2] : memref<512x128xf32, #tpu.memory_space<vmem>>, vector<512x128xf32>
    %c0_3 = arith.constant 0 : index
    %c0_4 = arith.constant 0 : index
    %8 = vector.load %arg2[%c0_3, %c0_4] : memref<512x1024xbf16, #tpu.memory_space<vmem>>, vector<512x1024xbf16>
    %cst = arith.constant dense<0.000000e+00> : vector<512x128xf32>
    %9 = tpu.matmul %8, %6, %cst {dimension_numbers = #tpu.dot_dimension_numbers<[1], [0], [0], [1], [0, 0, 1, 1], [], []>} : vector<512x1024xbf16>, vector<1024x128xbf16>, vector<512x128xf32> -> vector<512x128xf32>
    %10 = arith.addf %7, %9 : vector<512x128xf32>
    %c0_5 = arith.constant 0 : index
    %c0_6 = arith.constant 0 : index
    %11 = vector.load %arg5[%c0_5, %c0_6] : memref<512x128xf32, #tpu.memory_space<vmem>>, vector<512x128xf32>
    tpu.vector_store %arg5[%c0_5, %c0_6], %10 {strides = array<i32>} : memref<512x128xf32, #tpu.memory_space<vmem>>, vector<512x128xf32>,
    %c1_i32 = arith.constant 1 : i32
    %12 = arith.cmpi eq, %arg1, %c1_i32 : i32
    %13 = arith.extui %12 : i1 to i32
    %c0_i32_7 = arith.constant 0 : i32
    %14 = arith.cmpi ne, %13, %c0_i32_7 : i32
    scf.if %14 {
      %c0_8 = arith.constant 0 : index
      %c0_9 = arith.constant 0 : index
      %15 = vector.load %arg5[%c0_8, %c0_9] : memref<512x128xf32, #tpu.memory_space<vmem>>, vector<512x128xf32>
      %c0_10 = arith.constant 0 : index
      %c0_11 = arith.constant 0 : index
      %16 = vector.load %arg4[%c0_10, %c0_11] : memref<512x128xf32, #tpu.memory_space<vmem>>, vector<512x128xf32>
      tpu.vector_store %arg4[%c0_10, %c0_11], %15 {strides = array<i32>} : memref<512x128xf32, #tpu.memory_space<vmem>>, vector<512x128xf32>,
    } else {
    }
    return
  }
  func.func @transform_0(%arg0: i32, %arg1: i32) -> (i32, i32) {
    %c0_i32 = arith.constant 0 : i32
    return %arg0, %arg1 : i32, i32
  }
  func.func @transform_1(%arg0: i32, %arg1: i32) -> (i32, i32) {
    %c0_i32 = arith.constant 0 : i32
    %c0_i32_0 = arith.constant 0 : i32
    %c0_i32_1 = arith.constant 0 : i32
    return %c0_i32, %c0_i32_0 : i32, i32
  }
  func.func @transform_2(%arg0: i32, %arg1: i32) -> (i32, i32) {
    %c0_i32 = arith.constant 0 : i32
    %c0_i32_0 = arith.constant 0 : i32
    return %arg0, %c0_i32 : i32, i32
  }
}

</mosaic_0001>

<llo_original>
// kernel: _gcn_forward.2
$region0: #{_gcn_forward.2}
  #allocation0 [shape = 'u32[]', space=smem, size = 0x4, offset = 0x4, fixed_abs, tag = 'smem constant byte address 0x4 - core index']
  #allocation1 [shape = 'u32[144,128]{1,0:T(1,128)}', space=vmem, size = 0x12000, scoped, tag = 'internal scratch']
  #allocation2 [shape = 'f32[512,128]{1,0:T(8,128)}', space=vmem, size = 0x40000, scoped, tag = 'scratch operand']
  %s0 = inlined_call_operand.vmem [shape: bf16[1536,2048], index: 0, kind: input, shape index: {}]
  %s1 = inlined_call_operand.vmem [shape: bf16[2048,128], index: 1, kind: input, shape index: {}]
  %s2 = inlined_call_operand.vmem [shape: bf16[128,128], index: 2, kind: input, shape index: {}]
  %s3 = inlined_call_operand.vmem [shape: bf16[1536,128], index: 3, kind: output, shape index: {}]
  %s4 = sld [smem:[#allocation0]]
  $region76: #{_gcn_forward.2} parent=0
    _
  %s6 = ssub.s32 1, %s4
  %s7 = scalar_select 0, %s6, %s4
  $region1: #{_gcn_forward.2} parent=0
    #allocation3 [shape = 'u8[2097152]{0}', space=vmem, size = 0x200000, scoped, tag = 'input window, operand 0']
    loop: start=0, step=1, limit=8
    $region2: #{_gcn_forward.2} parent=1 // loop_pre_header
      _
    $region3: #{_gcn_forward.2} parent=1 // loop_header
      %s9 = sphi 0, %s13
      %p10 = scmp.ge.s32.totalorder %s9, 8
      %s16 = sphi 0, %s28
      %s17 = sphi 0, %s24
      %s18 = sphi 0, %s16
      %s19 = sphi 0, %s17
      %s20 = sphi 0, %s18
      %s21 = sphi 0, %s19
      %s33 = sphi 0, %s35
      %s36 = sphi 0, %s33
      %s37 = sphi 0, %s36
      %s53 = sphi 0, %s37
      %s57 = sphi 0, %s57
      %s59 = sphi 0, %s57
      %s60 = sphi 0, %s59
      %s74 = sphi 0, %s60
      %s78 = sphi 0, %s78
      %s80 = sphi 0, %s78
      %s81 = sphi 0, %s80
      %s95 = sphi 0, %s81
      %s101 = sphi 0, %s103
      %s104 = sphi 0, %s101
      %s105 = sphi 0, %s104
      %s121 = sphi 0, %s105
    $region4: #{_gcn_forward.2} parent=1 // loop_header_branch
      %12 = sbr.rel (%p10) target = $region8
    $region5: #{_gcn_forward.2} parent=1 // loop_body
      %s14 = ssub.s32 %s9, 1
      %s15 = ssub.s32 %s9, 2
      %s22 = sadd.s32 1, %s17
      %p23 = scmp.ge.s32.totalorder %s22, 2
      %s24 = scalar_select %p23, 0, %s22
      %s25 = sadd.s32 1, %s16
      %s26 = scalar_select %p23, %s25, %s16
      %p27 = scmp.ge.s32.totalorder %s26, 3
      %s28 = scalar_select %p27, 0, %s26
      %s29 = ssub.s32 %s16, %s28
      %s30 = ssub.s32 %s17, %s24
      %s31 = sor.u32 %s29, %s30
      %p32 = scmp.eq.s32.totalorder %s31, 0
      %s34 = sadd.s32 %s33, 1
      %s35 = scalar_select %p32, %s33, %s34
      %p38 = pneg %p32
      %p39 = scmp.eq.s32.totalorder %s9, 5
      %p40 = por %p38, %p39
      %p41 = scmp.ne.s32.totalorder %s33, %s36
      %p42 = scmp.eq.s32.totalorder %s9, 0
      %p43 = por %p41, %p42
      %p44 = scmp.ne.s32.totalorder %s33, %s36
      %p45 = scmp.eq.s32.totalorder %s14, 5
      %p46 = por %p44, %p45
      %p47 = scmp.ne.s32.totalorder %s36, %s37
      %p48 = scmp.eq.s32.totalorder %s14, 0
      %p49 = por %p47, %p48
      %p50 = scmp.ne.s32.totalorder %s36, %s37
      %p51 = scmp.eq.s32.totalorder %s15, 5
      %p52 = por %p50, %p51
      %p54 = scmp.ne.s32.totalorder %s37, %s53
      %p55 = scmp.eq.s32.totalorder %s15, 0
      %p56 = por %p54, %p55
      %s58 = sadd.s32 %s57, 1
      %p61 = scmp.eq.s32.totalorder %s9, 5
      %p62 = scmp.ne.s32.totalorder %s57, %s59
      %p63 = scmp.eq.s32.totalorder %s9, 0
      %p64 = por %p62, %p63
      %p65 = scmp.ne.s32.totalorder %s57, %s59
      %p66 = scmp.eq.s32.totalorder %s14, 5
      %p67 = por %p65, %p66
      %p68 = scmp.ne.s32.totalorder %s59, %s60
      %p69 = scmp.eq.s32.totalorder %s14, 0
      %p70 = por %p68, %p69
      %p71 = scmp.ne.s32.totalorder %s59, %s60
      %p72 = scmp.eq.s32.totalorder %s15, 5
      %p73 = por %p71, %p72
      %p75 = scmp.ne.s32.totalorder %s60, %s74
      %p76 = scmp.eq.s32.totalorder %s15, 0
      %p77 = por %p75, %p76
      %s79 = sadd.s32 %s78, 1
      %p82 = scmp.eq.s32.totalorder %s9, 5
      %p83 = scmp.ne.s32.totalorder %s78, %s80
      %p84 = scmp.eq.s32.totalorder %s9, 0
      %p85 = por %p83, %p84
      %p86 = scmp.ne.s32.totalorder %s78, %s80
      %p87 = scmp.eq.s32.totalorder %s14, 5
      %p88 = por %p86, %p87
      %p89 = scmp.ne.s32.totalorder %s80, %s81
      %p90 = scmp.eq.s32.totalorder %s14, 0
      %p91 = por %p89, %p90
      %p92 = scmp.ne.s32.totalorder %s80, %s81
      %p93 = scmp.eq.s32.totalorder %s15, 5
      %p94 = por %p92, %p93
      %p96 = scmp.ne.s32.totalorder %s81, %s95
      %p97 = scmp.eq.s32.totalorder %s15, 0
      %p98 = por %p96, %p97
      %s99 = ssub.s32 %s16, %s28
      %p100 = scmp.eq.s32.totalorder %s99, 0
      %s102 = sadd.s32 %s101, 1
      %s103 = scalar_select %p100, %s101, %s102
      %p106 = pneg %p100
      %p107 = scmp.eq.s32.totalorder %s9, 5
      %p108 = por %p106, %p107
      %p109 = scmp.ne.s32.totalorder %s101, %s104
      %p110 = scmp.eq.s32.totalorder %s9, 0
      %p111 = por %p109, %p110
      %p112 = scmp.ne.s32.totalorder %s101, %s104
      %p113 = scmp.eq.s32.totalorder %s14, 5
      %p114 = por %p112, %p113
      %p115 = scmp.ne.s32.totalorder %s104, %s105
      %p116 = scmp.eq.s32.totalorder %s14, 0
      %p117 = por %p115, %p116
      %p118 = scmp.ne.s32.totalorder %s104, %s105
      %p119 = scmp.eq.s32.totalorder %s15, 5
      %p120 = por %p118, %p119
      %p122 = scmp.ne.s32.totalorder %s105, %s121
      %p123 = scmp.eq.s32.totalorder %s15, 0
      %p124 = por %p122, %p123
      %p125 = scmp.le.s32.totalorder 1, %s9
      %p126 = scmp.lt.s32.totalorder %s9, 7
      %p127 = pnand %p125, %p126
      %p128 = pneg %p127
      // Predicated region
      $region9: #{_gcn_forward.2} parent=5 // pred_check
        _
      $region10: #{_gcn_forward.2} parent=5 // pred_check_branch
        %130 = sbr.rel (%p127) target = $region12
      $region11: #{_gcn_forward.2} parent=5 // pred_region
        %s131 = ssub.s32 %s9, 1
        // Predicated region
        $region13: #{_gcn_forward.2} parent=11 // pred_check
          %p132 = pneg %p70
        $region14: #{_gcn_forward.2} parent=11 // pred_check_branch
          %134 = sbr.rel (%p132) target = $region16
        $region15: #{_gcn_forward.2} parent=11 // pred_region
          _
        $region16: #{_gcn_forward.2} parent=11 // pred_fallthru
          _
        // Predicated region
        $region17: #{_gcn_forward.2} parent=11 // pred_check
          %p135 = pneg %p91
        $region18: #{_gcn_forward.2} parent=11 // pred_check_branch
          %137 = sbr.rel (%p135) target = $region20
        $region19: #{_gcn_forward.2} parent=11 // pred_region
          _
        $region20: #{_gcn_forward.2} parent=11 // pred_fallthru
          _
      $region12: #{_gcn_forward.2} parent=5 // pred_fallthru
        _
      %p138 = scmp.lt.s32.totalorder %s9, 6
      // Predicated region
      $region21: #{_gcn_forward.2} parent=5 // pred_check
        %p139 = pneg %p138
      $region22: #{_gcn_forward.2} parent=5 // pred_check_branch
        %141 = sbr.rel (%p139) target = $region24
      $region23: #{_gcn_forward.2} parent=5 // pred_region
        // Predicated region
        $region25: #{_gcn_forward.2} parent=23 // pred_check
          %p142 = pneg %p43
        $region26: #{_gcn_forward.2} parent=23 // pred_check_branch
          %144 = sbr.rel (%p142) target = $region28
        $region27: #{_gcn_forward.2} parent=23 // pred_region
          %s145 = sand.u32 %s33, 1
          %s146 = sand.u32 %s33, 1
          %s147 = smul.addr %s146, 2048
          %s148 = scalar_lea.vmem [#allocation3], %s147
          %s149 = smul.u32 64, %s16
          %s150 = smul.u32 8, %s17
          %s151 = smul.addr %s149, 16
          %s152 = sadd.s32 %s150, %s151
          %s153 = smul.addr %s152, 4
          %s154 = scalar_lea.vmem %s0, %s153
          // Predicated region
          $region29: #{_gcn_forward.2} parent=27 // pred_check
            _
          $region30: #{_gcn_forward.2} parent=27 // pred_check_branch
            %156 = sbr.rel (0) target = $region32
          $region31: #{_gcn_forward.2} parent=27 // pred_region
            // Predicated region
            $region33: #{_gcn_forward.2} parent=31 // pred_check
              _
            $region34: #{_gcn_forward.2} parent=31 // pred_check_branch
              %158 = sbr.rel (0) target = $region36
            $region35: #{_gcn_forward.2} parent=31 // pred_region
              loop: start=0, step=1, limit=1
              $region37: #{_gcn_forward.2} parent=35 // loop_pre_header
                _
              $region38: #{_gcn_forward.2} parent=35 // loop_header
                %s160 = sphi 0, %s164
                %p161 = scmp.ge.s32.totalorder %s160, 1
                %s165 = sphi %s154, %s154
                %s166 = sphi %s148, %s148
              $region39: #{_gcn_forward.2} parent=35 // loop_header_branch
                %163 = sbr.rel (%p161) target = $region43
              $region40: #{_gcn_forward.2} parent=35 // loop_body
                %v167 = vld [vmem:[%s165] sm:$0xff]
                %168 = vst [vmem:[%s166] sm:$0xff] %v167
                %v169 = vld [vmem:[%s165 + $0x8] sm:$0xff]
                %170 = vst [vmem:[%s166 + $0x8] sm:$0xff] %v169
                %v171 = vld [vmem:[%s165 + $0x10] sm:$0xff]
                %172 = vst [vmem:[%s166 + $0x10] sm:$0xff] %v171
                %v173 = vld [vmem:[%s165 + $0x18] sm:$0xff]
                %174 = vst [vmem:[%s166 + $0x18] sm:$0xff] %v173
                %v175 = vld [vmem:[%s165 + $0x40] sm:$0xff]
                %176 = vst [vmem:[%s166 + $0x20] sm:$0xff] %v175
                %v177 = vld [vmem:[%s165 + $0x48] sm:$0xff]
                %178 = vst [vmem:[%s166 + $0x28] sm:$0xff] %v177
                %v179 = vld [vmem:[%s165 + $0x50] sm:$0xff]
                %180 = vst [vmem:[%s166 + $0x30] sm:$0xff] %v179
                %v181 = vld [vmem:[%s165 + $0x58] sm:$0xff]
                %182 = vst [vmem:[%s166 + $0x38] sm:$0xff] %v181
                %v183 = vld [vmem:[%s165 + $0x80] sm:$0xff]
                %184 = vst [vmem:[%s166 + $0x40] sm:$0xff] %v183
                %v185 = vld [vmem:[%s165 + $0x88] sm:$0xff]
                %186 = vst [vmem:[%s166 + $0x48] sm:$0xff] %v185
                %v187 = vld [vmem:[%s165 + $0x90] sm:$0xff]
                %188 = vst [vmem:[%s166 + $0x50] sm:$0xff] %v187
                %v189 = vld [vmem:[%s165 + $0x98] sm:$0xff]
                %190 = vst [vmem:[%s166 + $0x58] sm:$0xff] %v189
                %v191 = vld [vmem:[%s165 + $0xc0] sm:$0xff]
                %192 = vst [vmem:[%s166 + $0x60] sm:$0xff] %v191
                %v193 = vld [vmem:[%s165 + $0xc8] sm:$0xff]
                %194 = vst [vmem:[%s166 + $0x68] sm:$0xff] %v193
                %v195 = vld [vmem:[%s165 + $0xd0] sm:$0xff]
                %196 = vst [vmem:[%s166 + $0x70] sm:$0xff] %v195
                %v197 = vld [vmem:[%s165 + $0xd8] sm:$0xff]
                %198 = vst [vmem:[%s166 + $0x78] sm:$0xff] %v197
                %v199 = vld [vmem:[%s165 + $0x100] sm:$0xff]
                %200 = vst [vmem:[%s166 + $0x80] sm:$0xff] %v199
                %v201 = vld [vmem:[%s165 + $0x108] sm:$0xff]
                %202 = vst [vmem:[%s166 + $0x88] sm:$0xff] %v201
                %v203 = vld [vmem:[%s165 + $0x110] sm:$0xff]
                %204 = vst [vmem:[%s166 + $0x90] sm:$0xff] %v203
                %v205 = vld [vmem:[%s165 + $0x118] sm:$0xff]
                %206 = vst [vmem:[%s166 + $0x98] sm:$0xff] %v205
                %v207 = vld [vmem:[%s165 + $0x140] sm:$0xff]
                %208 = vst [vmem:[%s166 + $0xa0] sm:$0xff] %v207
                %v209 = vld [vmem:[%s165 + $0x148] sm:$0xff]
                %210 = vst [vmem:[%s166 + $0xa8] sm:$0xff] %v209
                %v211 = vld [vmem:[%s165 + $0x150] sm:$0xff]
                %212 = vst [vmem:[%s166 + $0xb0] sm:$0xff] %v211
                %v213 = vld [vmem:[%s165 + $0x158] sm:$0xff]
                %214 = vst [vmem:[%s166 + $0xb8] sm:$0xff] %v213
                %v215 = vld [vmem:[%s165 + $0x180] sm:$0xff]
                %216 = vst [vmem:[%s166 + $0xc0] sm:$0xff] %v215
                %v217 = vld [vmem:[%s165 + $0x188] sm:$0xff]
                %218 = vst [vmem:[%s166 + $0xc8] sm:$0xff] %v217
                %v219 = vld [vmem:[%s165 + $0x190] sm:$0xff]
                %220 = vst [vmem:[%s166 + $0xd0] sm:$0xff] %v219
                %v221 = vld [vmem:[%s165 + $0x198] sm:$0xff]
                %222 = vst [vmem:[%s166 + $0xd8] sm:$0xff] %v221
                %v223 = vld [vmem:[%s165 + $0x1c0] sm:$0xff]
                %224 = vst [vmem:[%s166 + $0xe0] sm:$0xff] %v223
                %v225 = vld [vmem:[%s165 + $0x1c8] sm:$0xff]
                %226 = vst [vmem:[%s166 + $0xe8] sm:$0xff] %v225
                %v227 = vld [vmem:[%s165 + $0x1d0] sm:$0xff]
                %228 = vst [vmem:[%s166 + $0xf0] sm:$0xff] %v227
                %v229 = vld [vmem:[%s165 + $0x1d8] sm:$0xff]
                %230 = vst [vmem:[%s166 + $0xf8] sm:$0xff] %v229
                %v231 = vld [vmem:[%s165 + $0x200] sm:$0xff]
                %232 = vst [vmem:[%s166 + $0x100] sm:$0xff] %v231
                %v233 = vld [vmem:[%s165 + $0x208] sm:$0xff]
                %234 = vst [vmem:[%s166 + $0x108] sm:$0xff] %v233
                %v235 = vld [vmem:[%s165 + $0x210] sm:$0xff]
                %236 = vst [vmem:[%s166 + $0x110] sm:$0xff] %v235
                %v237 = vld [vmem:[%s165 + $0x218] sm:$0xff]
                %238 = vst [vmem:[%s166 + $0x118] sm:$0xff] %v237
                %v239 = vld [vmem:[%s165 + $0x240] sm:$0xff]
                %240 = vst [vmem:[%s166 + $0x120] sm:$0xff] %v239
                %v241 = vld [vmem:[%s165 + $0x248] sm:$0xff]
                %242 = vst [vmem:[%s166 + $0x128] sm:$0xff] %v241
                %v243 = vld [vmem:[%s165 + $0x250] sm:$0xff]
                %244 = vst [vmem:[%s166 + $0x130] sm:$0xff] %v243
                %v245 = vld [vmem:[%s165 + $0x258] sm:$0xff]
                %246 = vst [vmem:[%s166 + $0x138] sm:$0xff] %v245
                %v247 = vld [vmem:[%s165 + $0x280] sm:$0xff]
                %248 = vst [vmem:[%s166 + $0x140] sm:$0xff] %v247
                %v249 = vld [vmem:[%s165 + $0x288] sm:$0xff]
                %250 = vst [vmem:[%s166 + $0x148] sm:$0xff] %v249
                %v251 = vld [vmem:[%s165 + $0x290] sm:$0xff]
                %252 = vst [vmem:[%s166 + $0x150] sm:$0xff] %v251
                %v253 = vld [vmem:[%s165 + $0x298] sm:$0xff]
                %254 = vst [vmem:[%s166 + $0x158] sm:$0xff] %v253
                %v255 = vld [vmem:[%s165 + $0x2c0] sm:$0xff]
                %256 = vst [vmem:[%s166 + $0x160] sm:$0xff] %v255
                %v257 = vld [vmem:[%s165 + $0x2c8] sm:$0xff]
                %258 = vst [vmem:[%s166 + $0x168] sm:$0xff] %v257
                %v259 = vld [vmem:[%s165 + $0x2d0] sm:$0xff]
                %260 = vst [vmem:[%s166 + $0x170] sm:$0xff] %v259
                %v261 = vld [vmem:[%s165 + $0x2d8] sm:$0xff]
                %262 = vst [vmem:[%s166 + $0x178] sm:$0xff] %v261
                %v263 = vld [vmem:[%s165 + $0x300] sm:$0xff]
                %264 = vst [vmem:[%s166 + $0x180] sm:$0xff] %v263
                %v265 = vld [vmem:[%s165 + $0x308] sm:$0xff]
                %266 = vst [vmem:[%s166 + $0x188] sm:$0xff] %v265
                %v267 = vld [vmem:[%s165 + $0x310] sm:$0xff]
                %268 = vst [vmem:[%s166 + $0x190] sm:$0xff] %v267
                %v269 = vld [vmem:[%s165 + $0x318] sm:$0xff]
                %270 = vst [vmem:[%s166 + $0x198] sm:$0xff] %v269
                %v271 = vld [vmem:[%s165 + $0x340] sm:$0xff]
                %272 = vst [vmem:[%s166 + $0x1a0] sm:$0xff] %v271
                %v273 = vld [vmem:[%s165 + $0x348] sm:$0xff]
                %274 = vst [vmem:[%s166 + $0x1a8] sm:$0xff] %v273
                %v275 = vld [vmem:[%s165 + $0x350] sm:$0xff]
                %276 = vst [vmem:[%s166 + $0x1b0] sm:$0xff] %v275
                %v277 = vld [vmem:[%s165 + $0x358] sm:$0xff]
                %278 = vst [vmem:[%s166 + $0x1b8] sm:$0xff] %v277
                %v279 = vld [vmem:[%s165 + $0x380] sm:$0xff]
                %280 = vst [vmem:[%s166 + $0x1c0] sm:$0xff] %v279
                %v281 = vld [vmem:[%s165 + $0x388] sm:$0xff]
                %282 = vst [vmem:[%s166 + $0x1c8] sm:$0xff] %v281
                %v283 = vld [vmem:[%s165 + $0x390] sm:$0xff]
                %284 = vst [vmem:[%s166 + $0x1d0] sm:$0xff] %v283
                %v285 = vld [vmem:[%s165 + $0x398] sm:$0xff]
                %286 = vst [vmem:[%s166 + $0x1d8] sm:$0xff] %v285
                %v287 = vld [vmem:[%s165 + $0x3c0] sm:$0xff]
                %288 = vst [vmem:[%s166 + $0x1e0] sm:$0xff] %v287
                %v289 = vld [vmem:[%s165 + $0x3c8] sm:$0xff]
                %290 = vst [vmem:[%s166 + $0x1e8] sm:$0xff] %v289
                %v291 = vld [vmem:[%s165 + $0x3d0] sm:$0xff]
                %292 = vst [vmem:[%s166 + $0x1f0] sm:$0xff] %v291
                %v293 = vld [vmem:[%s165 + $0x3d8] sm:$0xff]
                %294 = vst [vmem:[%s166 + $0x1f8] sm:$0xff] %v293
                %v295 = vld [vmem:[%s165 + $0x400] sm:$0xff]
                %296 = vst [vmem:[%s166 + $0x200] sm:$0xff] %v295
                %v297 = vld [vmem:[%s165 + $0x408] sm:$0xff]
                %298 = vst [vmem:[%s166 + $0x208] sm:$0xff] %v297
                %v299 = vld [vmem:[%s165 + $0x410] sm:$0xff]
                %300 = vst [vmem:[%s166 + $0x210] sm:$0xff] %v299
                %v301 = vld [vmem:[%s165 + $0x418] sm:$0xff]
                %302 = vst [vmem:[%s166 + $0x218] sm:$0xff] %v301
                %v303 = vld [vmem:[%s165 + $0x440] sm:$0xff]
                %304 = vst [vmem:[%s166 + $0x220] sm:$0xff] %v303
                %v305 = vld [vmem:[%s165 + $0x448] sm:$0xff]
                %306 = vst [vmem:[%s166 + $0x228] sm:$0xff] %v305
                %v307 = vld [vmem:[%s165 + $0x450] sm:$0xff]
                %308 = vst [vmem:[%s166 + $0x230] sm:$0xff] %v307
                %v309 = vld [vmem:[%s165 + $0x458] sm:$0xff]
                %310 = vst [vmem:[%s166 + $0x238] sm:$0xff] %v309
                %v311 = vld [vmem:[%s165 + $0x480] sm:$0xff]
                %312 = vst [vmem:[%s166 + $0x240] sm:$0xff] %v311
                %v313 = vld [vmem:[%s165 + $0x488] sm:$0xff]
                %314 = vst [vmem:[%s166 + $0x248] sm:$0xff] %v313
                %v315 = vld [vmem:[%s165 + $0x490] sm:$0xff]
                %316 = vst [vmem:[%s166 + $0x250] sm:$0xff] %v315
                %v317 = vld [vmem:[%s165 + $0x498] sm:$0xff]
                %318 = vst [vmem:[%s166 + $0x258] sm:$0xff] %v317
                %v319 = vld [vmem:[%s165 + $0x4c0] sm:$0xff]
                %320 = vst [vmem:[%s166 + $0x260] sm:$0xff] %v319
                %v321 = vld [vmem:[%s165 + $0x4c8] sm:$0xff]
                %322 = vst [vmem:[%s166 + $0x268] sm:$0xff] %v321
                %v323 = vld [vmem:[%s165 + $0x4d0] sm:$0xff]
                %324 = vst [vmem:[%s166 + $0x270] sm:$0xff] %v323
                %v325 = vld [vmem:[%s165 + $0x4d8] sm:$0xff]
                %326 = vst [vmem:[%s166 + $0x278] sm:$0xff] %v325
                %v327 = vld [vmem:[%s165 + $0x500] sm:$0xff]
                %328 = vst [vmem:[%s166 + $0x280] sm:$0xff] %v327
                %v329 = vld [vmem:[%s165 + $0x508] sm:$0xff]
                %330 = vst [vmem:[%s166 + $0x288] sm:$0xff] %v329
                %v331 = vld [vmem:[%s165 + $0x510] sm:$0xff]
                %332 = vst [vmem:[%s166 + $0x290] sm:$0xff] %v331
                %v333 = vld [vmem:[%s165 + $0x518] sm:$0xff]
                %334 = vst [vmem:[%s166 + $0x298] sm:$0xff] %v333
                %v335 = vld [vmem:[%s165 + $0x540] sm:$0xff]
                %336 = vst [vmem:[%s166 + $0x2a0] sm:$0xff] %v335
                %v337 = vld [vmem:[%s165 + $0x548] sm:$0xff]
                %338 = vst [vmem:[%s166 + $0x2a8] sm:$0xff] %v337
                %v339 = vld [vmem:[%s165 + $0x550] sm:$0xff]
                %340 = vst [vmem:[%s166 + $0x2b0] sm:$0xff] %v339
                %v341 = vld [vmem:[%s165 + $0x558] sm:$0xff]
                %342 = vst [vmem:[%s166 + $0x2b8] sm:$0xff] %v341
                %v343 = vld [vmem:[%s165 + $0x580] sm:$0xff]
                %344 = vst [vmem:[%s166 + $0x2c0] sm:$0xff] %v343
                %v345 = vld [vmem:[%s165 + $0x588] sm:$0xff]
                %346 = vst [vmem:[%s166 + $0x2c8] sm:$0xff] %v345
                %v347 = vld [vmem:[%s165 + $0x590] sm:$0xff]
                %348 = vst [vmem:[%s166 + $0x2d0] sm:$0xff] %v347
                %v349 = vld [vmem:[%s165 + $0x598] sm:$0xff]
                %350 = vst [vmem:[%s166 + $0x2d8] sm:$0xff] %v349
                %v351 = vld [vmem:[%s165 + $0x5c0] sm:$0xff]
                %352 = vst [vmem:[%s166 + $0x2e0] sm:$0xff] %v351
                %v353 = vld [vmem:[%s165 + $0x5c8] sm:$0xff]
                %354 = vst [vmem:[%s166 + $0x2e8] sm:$0xff] %v353
                %v355 = vld [vmem:[%s165 + $0x5d0] sm:$0xff]
                %356 = vst [vmem:[%s166 + $0x2f0] sm:$0xff] %v355
                %v357 = vld [vmem:[%s165 + $0x5d8] sm:$0xff]
                %358 = vst [vmem:[%s166 + $0x2f8] sm:$0xff] %v357
                %v359 = vld [vmem:[%s165 + $0x600] sm:$0xff]
                %360 = vst [vmem:[%s166 + $0x300] sm:$0xff] %v359
                %v361 = vld [vmem:[%s165 + $0x608] sm:$0xff]
                %362 = vst [vmem:[%s166 + $0x308] sm:$0xff] %v361
                %v363 = vld [vmem:[%s165 + $0x610] sm:$0xff]
                %364 = vst [vmem:[%s166 + $0x310] sm:$0xff] %v363
                %v365 = vld [vmem:[%s165 + $0x618] sm:$0xff]
                %366 = vst [vmem:[%s166 + $0x318] sm:$0xff] %v365
                %v367 = vld [vmem:[%s165 + $0x640] sm:$0xff]
                %368 = vst [vmem:[%s166 + $0x320] sm:$0xff] %v367
                %v369 = vld [vmem:[%s165 + $0x648] sm:$0xff]
                %370 = vst [vmem:[%s166 + $0x328] sm:$0xff] %v369
                %v371 = vld [vmem:[%s165 + $0x650] sm:$0xff]
                %372 = vst [vmem:[%s166 + $0x330] sm:$0xff] %v371
                %v373 = vld [vmem:[%s165 + $0x658] sm:$0xff]
                %374 = vst [vmem:[%s166 + $0x338] sm:$0xff] %v373
                %v375 = vld [vmem:[%s165 + $0x680] sm:$0xff]
                %376 = vst [vmem:[%s166 + $0x340] sm:$0xff] %v375
                %v377 = vld [vmem:[%s165 + $0x688] sm:$0xff]
                %378 = vst [vmem:[%s166 + $0x348] sm:$0xff] %v377
                %v379 = vld [vmem:[%s165 + $0x690] sm:$0xff]
                %380 = vst [vmem:[%s166 + $0x350] sm:$0xff] %v379
                %v381 = vld [vmem:[%s165 + $0x698] sm:$0xff]
                %382 = vst [vmem:[%s166 + $0x358] sm:$0xff] %v381
                %v383 = vld [vmem:[%s165 + $0x6c0] sm:$0xff]
                %384 = vst [vmem:[%s166 + $0x360] sm:$0xff] %v383
                %v385 = vld [vmem:[%s165 + $0x6c8] sm:$0xff]
                %386 = vst [vmem:[%s166 + $0x368] sm:$0xff] %v385
                %v387 = vld [vmem:[%s165 + $0x6d0] sm:$0xff]
                %388 = vst [vmem:[%s166 + $0x370] sm:$0xff] %v387
                %v389 = vld [vmem:[%s165 + $0x6d8] sm:$0xff]
                %390 = vst [vmem:[%s166 + $0x378] sm:$0xff] %v389
                %v391 = vld [vmem:[%s165 + $0x700] sm:$0xff]
                %392 = vst [vmem:[%s166 + $0x380] sm:$0xff] %v391
                %v393 = vld [vmem:[%s165 + $0x708] sm:$0xff]
                %394 = vst [vmem:[%s166 + $0x388] sm:$0xff] %v393
                %v395 = vld [vmem:[%s165 + $0x710] sm:$0xff]
                %396 = vst [vmem:[%s166 + $0x390] sm:$0xff] %v395
                %v397 = vld [vmem:[%s165 + $0x718] sm:$0xff]
                %398 = vst [vmem:[%s166 + $0x398] sm:$0xff] %v397
                %v399 = vld [vmem:[%s165 + $0x740] sm:$0xff]
                %400 = vst [vmem:[%s166 + $0x3a0] sm:$0xff] %v399
                %v401 = vld [vmem:[%s165 + $0x748] sm:$0xff]
                %402 = vst [vmem:[%s166 + $0x3a8] sm:$0xff] %v401
                %v403 = vld [vmem:[%s165 + $0x750] sm:$0xff]
                %404 = vst [vmem:[%s166 + $0x3b0] sm:$0xff] %v403
                %v405 = vld [vmem:[%s165 + $0x758] sm:$0xff]
                %406 = vst [vmem:[%s166 + $0x3b8] sm:$0xff] %v405
                %v407 = vld [vmem:[%s165 + $0x780] sm:$0xff]
                %408 = vst [vmem:[%s166 + $0x3c0] sm:$0xff] %v407
                %v409 = vld [vmem:[%s165 + $0x788] sm:$0xff]
                %410 = vst [vmem:[%s166 + $0x3c8] sm:$0xff] %v409
                %v411 = vld [vmem:[%s165 + $0x790] sm:$0xff]
                %412 = vst [vmem:[%s166 + $0x3d0] sm:$0xff] %v411
                %v413 = vld [vmem:[%s165 + $0x798] sm:$0xff]
                %414 = vst [vmem:[%s166 + $0x3d8] sm:$0xff] %v413
                %v415 = vld [vmem:[%s165 + $0x7c0] sm:$0xff]
                %416 = vst [vmem:[%s166 + $0x3e0] sm:$0xff] %v415
                %v417 = vld [vmem:[%s165 + $0x7c8] sm:$0xff]
                %418 = vst [vmem:[%s166 + $0x3e8] sm:$0xff] %v417
                %v419 = vld [vmem:[%s165 + $0x7d0] sm:$0xff]
                %420 = vst [vmem:[%s166 + $0x3f0] sm:$0xff] %v419
                %v421 = vld [vmem:[%s165 + $0x7d8] sm:$0xff]
                %422 = vst [vmem:[%s166 + $0x3f8] sm:$0xff] %v421
                %v423 = vld [vmem:[%s165 + $0x800] sm:$0xff]
                %424 = vst [vmem:[%s166 + $0x400] sm:$0xff] %v423
                %v425 = vld [vmem:[%s165 + $0x808] sm:$0xff]
                %426 = vst [vmem:[%s166 + $0x408] sm:$0xff] %v425
                %v427 = vld [vmem:[%s165 + $0x810] sm:$0xff]
                %428 = vst [vmem:[%s166 + $0x410] sm:$0xff] %v427
                %v429 = vld [vmem:[%s165 + $0x818] sm:$0xff]
                %430 = vst [vmem:[%s166 + $0x418] sm:$0xff] %v429
                %v431 = vld [vmem:[%s165 + $0x840] sm:$0xff]
                %432 = vst [vmem:[%s166 + $0x420] sm:$0xff] %v431
                %v433 = vld [vmem:[%s165 + $0x848] sm:$0xff]
                %434 = vst [vmem:[%s166 + $0x428] sm:$0xff] %v433
                %v435 = vld [vmem:[%s165 + $0x850] sm:$0xff]
                %436 = vst [vmem:[%s166 + $0x430] sm:$0xff] %v435
                %v437 = vld [vmem:[%s165 + $0x858] sm:$0xff]
                %438 = vst [vmem:[%s166 + $0x438] sm:$0xff] %v437
                %v439 = vld [vmem:[%s165 + $0x880] sm:$0xff]
                %440 = vst [vmem:[%s166 + $0x440] sm:$0xff] %v439
                %v441 = vld [vmem:[%s165 + $0x888] sm:$0xff]
                %442 = vst [vmem:[%s166 + $0x448] sm:$0xff] %v441
                %v443 = vld [vmem:[%s165 + $0x890] sm:$0xff]
                %444 = vst [vmem:[%s166 + $0x450] sm:$0xff] %v443
                %v445 = vld [vmem:[%s165 + $0x898] sm:$0xff]
                %446 = vst [vmem:[%s166 + $0x458] sm:$0xff] %v445
                %v447 = vld [vmem:[%s165 + $0x8c0] sm:$0xff]
                %448 = vst [vmem:[%s166 + $0x460] sm:$0xff] %v447
                %v449 = vld [vmem:[%s165 + $0x8c8] sm:$0xff]
                %450 = vst [vmem:[%s166 + $0x468] sm:$0xff] %v449
                %v451 = vld [vmem:[%s165 + $0x8d0] sm:$0xff]
                %452 = vst [vmem:[%s166 + $0x470] sm:$0xff] %v451
                %v453 = vld [vmem:[%s165 + $0x8d8] sm:$0xff]
                %454 = vst [vmem:[%s166 + $0x478] sm:$0xff] %v453
                %v455 = vld [vmem:[%s165 + $0x900] sm:$0xff]
                %456 = vst [vmem:[%s166 + $0x480] sm:$0xff] %v455
                %v457 = vld [vmem:[%s165 + $0x908] sm:$0xff]
                %458 = vst [vmem:[%s166 + $0x488] sm:$0xff] %v457
                %v459 = vld [vmem:[%s165 + $0x910] sm:$0xff]
                %460 = vst [vmem:[%s166 + $0x490] sm:$0xff] %v459
                %v461 = vld [vmem:[%s165 + $0x918] sm:$0xff]
                %462 = vst [vmem:[%s166 + $0x498] sm:$0xff] %v461
                %v463 = vld [vmem:[%s165 + $0x940] sm:$0xff]
                %464 = vst [vmem:[%s166 + $0x4a0] sm:$0xff] %v463
                %v465 = vld [vmem:[%s165 + $0x948] sm:$0xff]
                %466 = vst [vmem:[%s166 + $0x4a8] sm:$0xff] %v465
                %v467 = vld [vmem:[%s165 + $0x950] sm:$0xff]
                %468 = vst [vmem:[%s166 + $0x4b0] sm:$0xff] %v467
                %v469 = vld [vmem:[%s165 + $0x958] sm:$0xff]
                %470 = vst [vmem:[%s166 + $0x4b8] sm:$0xff] %v469
                %v471 = vld [vmem:[%s165 + $0x980] sm:$0xff]
                %472 = vst [vmem:[%s166 + $0x4c0] sm:$0xff] %v471
                %v473 = vld [vmem:[%s165 + $0x988] sm:$0xff]
                %474 = vst [vmem:[%s166 + $0x4c8] sm:$0xff] %v473
                %v475 = vld [vmem:[%s165 + $0x990] sm:$0xff]
                %476 = vst [vmem:[%s166 + $0x4d0] sm:$0xff] %v475
                %v477 = vld [vmem:[%s165 + $0x998] sm:$0xff]
                %478 = vst [vmem:[%s166 + $0x4d8] sm:$0xff] %v477
                %v479 = vld [vmem:[%s165 + $0x9c0] sm:$0xff]
                %480 = vst [vmem:[%s166 + $0x4e0] sm:$0xff] %v479
                %v481 = vld [vmem:[%s165 + $0x9c8] sm:$0xff]
                %482 = vst [vmem:[%s166 + $0x4e8] sm:$0xff] %v481
                %v483 = vld [vmem:[%s165 + $0x9d0] sm:$0xff]
                %484 = vst [vmem:[%s166 + $0x4f0] sm:$0xff] %v483
                %v485 = vld [vmem:[%s165 + $0x9d8] sm:$0xff]
                %486 = vst [vmem:[%s166 + $0x4f8] sm:$0xff] %v485
                %v487 = vld [vmem:[%s165 + $0xa00] sm:$0xff]
                %488 = vst [vmem:[%s166 + $0x500] sm:$0xff] %v487
                %v489 = vld [vmem:[%s165 + $0xa08] sm:$0xff]
                %490 = vst [vmem:[%s166 + $0x508] sm:$0xff] %v489
                %v491 = vld [vmem:[%s165 + $0xa10] sm:$0xff]
                %492 = vst [vmem:[%s166 + $0x510] sm:$0xff] %v491
                %v493 = vld [vmem:[%s165 + $0xa18] sm:$0xff]
                %494 = vst [vmem:[%s166 + $0x518] sm:$0xff] %v493
                %v495 = vld [vmem:[%s165 + $0xa40] sm:$0xff]
                %496 = vst [vmem:[%s166 + $0x520] sm:$0xff] %v495
                %v497 = vld [vmem:[%s165 + $0xa48] sm:$0xff]
                %498 = vst [vmem:[%s166 + $0x528] sm:$0xff] %v497
                %v499 = vld [vmem:[%s165 + $0xa50] sm:$0xff]
                %500 = vst [vmem:[%s166 + $0x530] sm:$0xff] %v499
                %v501 = vld [vmem:[%s165 + $0xa58] sm:$0xff]
                %502 = vst [vmem:[%s166 + $0x538] sm:$0xff] %v501
                %v503 = vld [vmem:[%s165 + $0xa80] sm:$0xff]
                %504 = vst [vmem:[%s166 + $0x540] sm:$0xff] %v503
                %v505 = vld [vmem:[%s165 + $0xa88] sm:$0xff]
                %506 = vst [vmem:[%s166 + $0x548] sm:$0xff] %v505
                %v507 = vld [vmem:[%s165 + $0xa90] sm:$0xff]
                %508 = vst [vmem:[%s166 + $0x550] sm:$0xff] %v507
                %v509 = vld [vmem:[%s165 + $0xa98] sm:$0xff]
                %510 = vst [vmem:[%s166 + $0x558] sm:$0xff] %v509
                %v511 = vld [vmem:[%s165 + $0xac0] sm:$0xff]
                %512 = vst [vmem:[%s166 + $0x560] sm:$0xff] %v511
                %v513 = vld [vmem:[%s165 + $0xac8] sm:$0xff]
                %514 = vst [vmem:[%s166 + $0x568] sm:$0xff] %v513
                %v515 = vld [vmem:[%s165 + $0xad0] sm:$0xff]
                %516 = vst [vmem:[%s166 + $0x570] sm:$0xff] %v515
                %v517 = vld [vmem:[%s165 + $0xad8] sm:$0xff]
                %518 = vst [vmem:[%s166 + $0x578] sm:$0xff] %v517
                %v519 = vld [vmem:[%s165 + $0xb00] sm:$0xff]
                %520 = vst [vmem:[%s166 + $0x580] sm:$0xff] %v519
                %v521 = vld [vmem:[%s165 + $0xb08] sm:$0xff]
                %522 = vst [vmem:[%s166 + $0x588] sm:$0xff] %v521
                %v523 = vld [vmem:[%s165 + $0xb10] sm:$0xff]
                %524 = vst [vmem:[%s166 + $0x590] sm:$0xff] %v523
                %v525 = vld [vmem:[%s165 + $0xb18] sm:$0xff]
                %526 = vst [vmem:[%s166 + $0x598] sm:$0xff] %v525
                %v527 = vld [vmem:[%s165 + $0xb40] sm:$0xff]
                %528 = vst [vmem:[%s166 + $0x5a0] sm:$0xff] %v527
                %v529 = vld [vmem:[%s165 + $0xb48] sm:$0xff]
                %530 = vst [vmem:[%s166 + $0x5a8] sm:$0xff] %v529
                %v531 = vld [vmem:[%s165 + $0xb50] sm:$0xff]
                %532 = vst [vmem:[%s166 + $0x5b0] sm:$0xff] %v531
                %v533 = vld [vmem:[%s165 + $0xb58] sm:$0xff]
                %534 = vst [vmem:[%s166 + $0x5b8] sm:$0xff] %v533
                %v535 = vld [vmem:[%s165 + $0xb80] sm:$0xff]
                %536 = vst [vmem:[%s166 + $0x5c0] sm:$0xff] %v535
                %v537 = vld [vmem:[%s165 + $0xb88] sm:$0xff]
                %538 = vst [vmem:[%s166 + $0x5c8] sm:$0xff] %v537
                %v539 = vld [vmem:[%s165 + $0xb90] sm:$0xff]
                %540 = vst [vmem:[%s166 + $0x5d0] sm:$0xff] %v539
                %v541 = vld [vmem:[%s165 + $0xb98] sm:$0xff]
                %542 = vst [vmem:[%s166 + $0x5d8] sm:$0xff] %v541
                %v543 = vld [vmem:[%s165 + $0xbc0] sm:$0xff]
                %544 = vst [vmem:[%s166 + $0x5e0] sm:$0xff] %v543
                %v545 = vld [vmem:[%s165 + $0xbc8] sm:$0xff]
                %546 = vst [vmem:[%s166 + $0x5e8] sm:$0xff] %v545
                %v547 = vld [vmem:[%s165 + $0xbd0] sm:$0xff]
                %548 = vst [vmem:[%s166 + $0x5f0] sm:$0xff] %v547
                %v549 = vld [vmem:[%s165 + $0xbd8] sm:$0xff]
                %550 = vst [vmem:[%s166 + $0x5f8] sm:$0xff] %v549
                %v551 = vld [vmem:[%s165 + $0xc00] sm:$0xff]
                %552 = vst [vmem:[%s166 + $0x600] sm:$0xff] %v551
                %v553 = vld [vmem:[%s165 + $0xc08] sm:$0xff]
                %554 = vst [vmem:[%s166 + $0x608] sm:$0xff] %v553
                %v555 = vld [vmem:[%s165 + $0xc10] sm:$0xff]
                %556 = vst [vmem:[%s166 + $0x610] sm:$0xff] %v555
                %v557 = vld [vmem:[%s165 + $0xc18] sm:$0xff]
                %558 = vst [vmem:[%s166 + $0x618] sm:$0xff] %v557
                %v559 = vld [vmem:[%s165 + $0xc40] sm:$0xff]
                %560 = vst [vmem:[%s166 + $0x620] sm:$0xff] %v559
                %v561 = vld [vmem:[%s165 + $0xc48] sm:$0xff]
                %562 = vst [vmem:[%s166 + $0x628] sm:$0xff] %v561
                %v563 = vld [vmem:[%s165 + $0xc50] sm:$0xff]
                %564 = vst [vmem:[%s166 + $0x630] sm:$0xff] %v563
                %v565 = vld [vmem:[%s165 + $0xc58] sm:$0xff]
                %566 = vst [vmem:[%s166 + $0x638] sm:$0xff] %v565
                %v567 = vld [vmem:[%s165 + $0xc80] sm:$0xff]
                %568 = vst [vmem:[%s166 + $0x640] sm:$0xff] %v567
                %v569 = vld [vmem:[%s165 + $0xc88] sm:$0xff]
                %570 = vst [vmem:[%s166 + $0x648] sm:$0xff] %v569
                %v571 = vld [vmem:[%s165 + $0xc90] sm:$0xff]
                %572 = vst [vmem:[%s166 + $0x650] sm:$0xff] %v571
                %v573 = vld [vmem:[%s165 + $0xc98] sm:$0xff]
                %574 = vst [vmem:[%s166 + $0x658] sm:$0xff] %v573
                %v575 = vld [vmem:[%s165 + $0xcc0] sm:$0xff]
                %576 = vst [vmem:[%s166 + $0x660] sm:$0xff] %v575
                %v577 = vld [vmem:[%s165 + $0xcc8] sm:$0xff]
                %578 = vst [vmem:[%s166 + $0x668] sm:$0xff] %v577
                %v579 = vld [vmem:[%s165 + $0xcd0] sm:$0xff]
                %580 = vst [vmem:[%s166 + $0x670] sm:$0xff] %v579
                %v581 = vld [vmem:[%s165 + $0xcd8] sm:$0xff]
                %582 = vst [vmem:[%s166 + $0x678] sm:$0xff] %v581
                %v583 = vld [vmem:[%s165 + $0xd00] sm:$0xff]
                %584 = vst [vmem:[%s166 + $0x680] sm:$0xff] %v583
                %v585 = vld [vmem:[%s165 + $0xd08] sm:$0xff]
                %586 = vst [vmem:[%s166 + $0x688] sm:$0xff] %v585
                %v587 = vld [vmem:[%s165 + $0xd10] sm:$0xff]
                %588 = vst [vmem:[%s166 + $0x690] sm:$0xff] %v587
                %v589 = vld [vmem:[%s165 + $0xd18] sm:$0xff]
                %590 = vst [vmem:[%s166 + $0x698] sm:$0xff] %v589
                %v591 = vld [vmem:[%s165 + $0xd40] sm:$0xff]
                %592 = vst [vmem:[%s166 + $0x6a0] sm:$0xff] %v591
                %v593 = vld [vmem:[%s165 + $0xd48] sm:$0xff]
                %594 = vst [vmem:[%s166 + $0x6a8] sm:$0xff] %v593
                %v595 = vld [vmem:[%s165 + $0xd50] sm:$0xff]
                %596 = vst [vmem:[%s166 + $0x6b0] sm:$0xff] %v595
                %v597 = vld [vmem:[%s165 + $0xd58] sm:$0xff]
                %598 = vst [vmem:[%s166 + $0x6b8] sm:$0xff] %v597
                %v599 = vld [vmem:[%s165 + $0xd80] sm:$0xff]
                %600 = vst [vmem:[%s166 + $0x6c0] sm:$0xff] %v599
                %v601 = vld [vmem:[%s165 + $0xd88] sm:$0xff]
                %602 = vst [vmem:[%s166 + $0x6c8] sm:$0xff] %v601
                %v603 = vld [vmem:[%s165 + $0xd90] sm:$0xff]
                %604 = vst [vmem:[%s166 + $0x6d0] sm:$0xff] %v603
                %v605 = vld [vmem:[%s165 + $0xd98] sm:$0xff]
                %606 = vst [vmem:[%s166 + $0x6d8] sm:$0xff] %v605
                %v607 = vld [vmem:[%s165 + $0xdc0] sm:$0xff]
                %608 = vst [vmem:[%s166 + $0x6e0] sm:$0xff] %v607
                %v609 = vld [vmem:[%s165 + $0xdc8] sm:$0xff]
                %610 = vst [vmem:[%s166 + $0x6e8] sm:$0xff] %v609
                %v611 = vld [vmem:[%s165 + $0xdd0] sm:$0xff]
                %612 = vst [vmem:[%s166 + $0x6f0] sm:$0xff] %v611
                %v613 = vld [vmem:[%s165 + $0xdd8] sm:$0xff]
                %614 = vst [vmem:[%s166 + $0x6f8] sm:$0xff] %v613
                %v615 = vld [vmem:[%s165 + $0xe00] sm:$0xff]
                %616 = vst [vmem:[%s166 + $0x700] sm:$0xff] %v615
                %v617 = vld [vmem:[%s165 + $0xe08] sm:$0xff]
                %618 = vst [vmem:[%s166 + $0x708] sm:$0xff] %v617
                %v619 = vld [vmem:[%s165 + $0xe10] sm:$0xff]
                %620 = vst [vmem:[%s166 + $0x710] sm:$0xff] %v619
                %v621 = vld [vmem:[%s165 + $0xe18] sm:$0xff]
                %622 = vst [vmem:[%s166 + $0x718] sm:$0xff] %v621
                %v623 = vld [vmem:[%s165 + $0xe40] sm:$0xff]
                %624 = vst [vmem:[%s166 + $0x720] sm:$0xff] %v623
                %v625 = vld [vmem:[%s165 + $0xe48] sm:$0xff]
                %626 = vst [vmem:[%s166 + $0x728] sm:$0xff] %v625
                %v627 = vld [vmem:[%s165 + $0xe50] sm:$0xff]
                %628 = vst [vmem:[%s166 + $0x730] sm:$0xff] %v627
                %v629 = vld [vmem:[%s165 + $0xe58] sm:$0xff]
                %630 = vst [vmem:[%s166 + $0x738] sm:$0xff] %v629
                %v631 = vld [vmem:[%s165 + $0xe80] sm:$0xff]
                %632 = vst [vmem:[%s166 + $0x740] sm:$0xff] %v631
                %v633 = vld [vmem:[%s165 + $0xe88] sm:$0xff]
                %634 = vst [vmem:[%s166 + $0x748] sm:$0xff] %v633
                %v635 = vld [vmem:[%s165 + $0xe90] sm:$0xff]
                %636 = vst [vmem:[%s166 + $0x750] sm:$0xff] %v635
                %v637 = vld [vmem:[%s165 + $0xe98] sm:$0xff]
                %638 = vst [vmem:[%s166 + $0x758] sm:$0xff] %v637
                %v639 = vld [vmem:[%s165 + $0xec0] sm:$0xff]
                %640 = vst [vmem:[%s166 + $0x760] sm:$0xff] %v639
                %v641 = vld [vmem:[%s165 + $0xec8] sm:$0xff]
                %642 = vst [vmem:[%s166 + $0x768] sm:$0xff] %v641
                %v643 = vld [vmem:[%s165 + $0xed0] sm:$0xff]
                %644 = vst [vmem:[%s166 + $0x770] sm:$0xff] %v643
                %v645 = vld [vmem:[%s165 + $0xed8] sm:$0xff]
                %646 = vst [vmem:[%s166 + $0x778] sm:$0xff] %v645
                %v647 = vld [vmem:[%s165 + $0xf00] sm:$0xff]
                %648 = vst [vmem:[%s166 + $0x780] sm:$0xff] %v647
                %v649 = vld [vmem:[%s165 + $0xf08] sm:$0xff]
                %650 = vst [vmem:[%s166 + $0x788] sm:$0xff] %v649
                %v651 = vld [vmem:[%s165 + $0xf10] sm:$0xff]
                %652 = vst [vmem:[%s166 + $0x790] sm:$0xff] %v651
                %v653 = vld [vmem:[%s165 + $0xf18] sm:$0xff]
                %654 = vst [vmem:[%s166 + $0x798] sm:$0xff] %v653
                %v655 = vld [vmem:[%s165 + $0xf40] sm:$0xff]
                %656 = vst [vmem:[%s166 + $0x7a0] sm:$0xff] %v655
                %v657 = vld [vmem:[%s165 + $0xf48] sm:$0xff]
                %658 = vst [vmem:[%s166 + $0x7a8] sm:$0xff] %v657
                %v659 = vld [vmem:[%s165 + $0xf50] sm:$0xff]
                %660 = vst [vmem:[%s166 + $0x7b0] sm:$0xff] %v659
                %v661 = vld [vmem:[%s165 + $0xf58] sm:$0xff]
                %662 = vst [vmem:[%s166 + $0x7b8] sm:$0xff] %v661
                %v663 = vld [vmem:[%s165 + $0xf80] sm:$0xff]
                %664 = vst [vmem:[%s166 + $0x7c0] sm:$0xff] %v663
                %v665 = vld [vmem:[%s165 + $0xf88] sm:$0xff]
                %666 = vst [vmem:[%s166 + $0x7c8] sm:$0xff] %v665
                %v667 = vld [vmem:[%s165 + $0xf90] sm:$0xff]
                %668 = vst [vmem:[%s166 + $0x7d0] sm:$0xff] %v667
                %v669 = vld [vmem:[%s165 + $0xf98] sm:$0xff]
                %670 = vst [vmem:[%s166 + $0x7d8] sm:$0xff] %v669
                %v671 = vld [vmem:[%s165 + $0xfc0] sm:$0xff]
                %672 = vst [vmem:[%s166 + $0x7e0] sm:$0xff] %v671
                %v673 = vld [vmem:[%s165 + $0xfc8] sm:$0xff]
                %674 = vst [vmem:[%s166 + $0x7e8] sm:$0xff] %v673
                %v675 = vld [vmem:[%s165 + $0xfd0] sm:$0xff]
                %676 = vst [vmem:[%s166 + $0x7f0] sm:$0xff] %v675
                %v677 = vld [vmem:[%s165 + $0xfd8] sm:$0xff]
                %678 = vst [vmem:[%s166 + $0x7f8] sm:$0xff] %v677
              $region41: #{_gcn_forward.2} parent=35 // loop_footer
                %s164 = sadd.s32 1, %s160
              $region42: #{_gcn_forward.2} parent=35 // loop_footer_branch
                %159 = sbr.rel target = $region38
              $region43: #{_gcn_forward.2} parent=35 // loop_exit
                _
            $region36: #{_gcn_forward.2} parent=31 // pred_fallthru
              _
            // Predicated region
            $region44: #{_gcn_forward.2} parent=31 // pred_check
              _
            $region45: #{_gcn_forward.2} parent=31 // pred_check_branch
              %680 = sbr.rel target = $region47
            $region46: #{_gcn_forward.2} parent=31 // pred_region
              _
            $region47: #{_gcn_forward.2} parent=31 // pred_fallthru
              _
          $region32: #{_gcn_forward.2} parent=27 // pred_fallthru
            _
          %681 = vnop
        $region28: #{_gcn_forward.2} parent=23 // pred_fallthru
          _
      $region24: #{_gcn_forward.2} parent=5 // pred_fallthru
        _
      %p682 = scmp.le.s32.totalorder 1, %s9
      %p683 = scmp.lt.s32.totalorder %s9, 7
      %p684 = pnand %p682, %p683
      %p685 = pneg %p684
      // Predicated region
      $region48: #{_gcn_forward.2} parent=5 // pred_check
        _
      $region49: #{_gcn_forward.2} parent=5 // pred_check_branch
        %687 = sbr.rel (%p684) target = $region51
      $region50: #{_gcn_forward.2} parent=5 // pred_region
        %s688 = ssub.s32 %s9, 1
        %s689 = sand.u32 %s36, 1
        %s690 = sand.u32 %s36, 1
        %s691 = smul.addr %s690, 2048
        %s692 = scalar_lea.vmem [#allocation3], %s691
        // Predicated region
        $region52: #{_gcn_forward.2} parent=50 // pred_check
          %p693 = pneg %p49
        $region53: #{_gcn_forward.2} parent=50 // pred_check_branch
          %695 = sbr.rel (%p693) target = $region55
        $region54: #{_gcn_forward.2} parent=50 // pred_region
          _
        $region55: #{_gcn_forward.2} parent=50 // pred_fallthru
          _
        %s696 = sand.u32 %s36, 1
        %s697 = sand.u32 %s36, 1
        %s698 = smul.addr %s697, 2048
        %s699 = scalar_lea.vmem [#allocation3], %s698
        %p700 = pneg %p49
        %p701 = pneg %p46
        %p702 = pneg %p70
        %p703 = pneg %p67
        %p704 = pneg %p91
        %p705 = pneg %p88
        %p706 = pneg %p117
        %p707 = pneg %p114
        %s708 = smul.u32 32, %s18
        %p709 = scmp.lt.s32.totalorder %s708, 95
        %s710 = scalar_select %p709, %s708, 95
        %s711 = smul.addr %s710, 8
        %s712 = scalar_lea.vmem %s3, %s711
        %s713 = smul.u32 64, %s18
        %s714 = smul.u32 8, %s19
        %s715 = smul.u32 32, %s18
        %p716 = scmp.lt.s32.totalorder %s715, 95
        %s717 = scalar_select %p716, %s715, 95
        %s718 = smul.addr %s717, 8
        %s719 = scalar_lea.vmem %s3, %s718
        %s720 = smul.u32 32, %s18
        %p722 = scmp.eq.s32.totalorder %s19, 0
        // Predicated region
        $region56: #{_gcn_forward.2} parent=50 // pred_check
          %p723 = pneg %p722
        $region57: #{_gcn_forward.2} parent=50 // pred_check_branch
          %725 = sbr.rel (%p723) target = $region59
        $region58: #{_gcn_forward.2} parent=50 // pred_region
          %726 = vst [vmem:[#allocation2] sm:$0xff] 0.0
          %727 = vst [vmem:[#allocation2 + $0x8] sm:$0xff] 0.0
          %728 = vst [vmem:[#allocation2 + $0x10] sm:$0xff] 0.0
          %729 = vst [vmem:[#allocation2 + $0x18] sm:$0xff] 0.0
          %730 = vst [vmem:[#allocation2 + $0x20] sm:$0xff] 0.0
          %731 = vst [vmem:[#allocation2 + $0x28] sm:$0xff] 0.0
          %732 = vst [vmem:[#allocation2 + $0x30] sm:$0xff] 0.0
          %733 = vst [vmem:[#allocation2 + $0x38] sm:$0xff] 0.0
          %734 = vst [vmem:[#allocation2 + $0x40] sm:$0xff] 0.0
          %735 = vst [vmem:[#allocation2 + $0x48] sm:$0xff] 0.0
          %736 = vst [vmem:[#allocation2 + $0x50] sm:$0xff] 0.0
          %737 = vst [vmem:[#allocation2 + $0x58] sm:$0xff] 0.0
          %738 = vst [vmem:[#allocation2 + $0x60] sm:$0xff] 0.0
          %739 = vst [vmem:[#allocation2 + $0x68] sm:$0xff] 0.0
          %740 = vst [vmem:[#allocation2 + $0x70] sm:$0xff] 0.0
          %741 = vst [vmem:[#allocation2 + $0x78] sm:$0xff] 0.0
          %742 = vst [vmem:[#allocation2 + $0x80] sm:$0xff] 0.0
          %743 = vst [vmem:[#allocation2 + $0x88] sm:$0xff] 0.0
          %744 = vst [vmem:[#allocation2 + $0x90] sm:$0xff] 0.0
          %745 = vst [vmem:[#allocation2 + $0x98] sm:$0xff] 0.0
          %746 = vst [vmem:[#allocation2 + $0xa0] sm:$0xff] 0.0
          %747 = vst [vmem:[#allocation2 + $0xa8] sm:$0xff] 0.0
          %748 = vst [vmem:[#allocation2 + $0xb0] sm:$0xff] 0.0
          %749 = vst [vmem:[#allocation2 + $0xb8] sm:$0xff] 0.0
          %750 = vst [vmem:[#allocation2 + $0xc0] sm:$0xff] 0.0
          %751 = vst [vmem:[#allocation2 + $0xc8] sm:$0xff] 0.0
          %752 = vst [vmem:[#allocation2 + $0xd0] sm:$0xff] 0.0
          %753 = vst [vmem:[#allocation2 + $0xd8] sm:$0xff] 0.0
          %754 = vst [vmem:[#allocation2 + $0xe0] sm:$0xff] 0.0
          %755 = vst [vmem:[#allocation2 + $0xe8] sm:$0xff] 0.0
          %756 = vst [vmem:[#allocation2 + $0xf0] sm:$0xff] 0.0
          %757 = vst [vmem:[#allocation2 + $0xf8] sm:$0xff] 0.0
          %758 = vst [vmem:[#allocation2 + $0x100] sm:$0xff] 0.0
          %759 = vst [vmem:[#allocation2 + $0x108] sm:$0xff] 0.0
          %760 = vst [vmem:[#allocation2 + $0x110] sm:$0xff] 0.0
          %761 = vst [vmem:[#allocation2 + $0x118] sm:$0xff] 0.0
          %762 = vst [vmem:[#allocation2 + $0x120] sm:$0xff] 0.0
          %763 = vst [vmem:[#allocation2 + $0x128] sm:$0xff] 0.0
          %764 = vst [vmem:[#allocation2 + $0x130] sm:$0xff] 0.0
          %765 = vst [vmem:[#allocation2 + $0x138] sm:$0xff] 0.0
          %766 = vst [vmem:[#allocation2 + $0x140] sm:$0xff] 0.0
          %767 = vst [vmem:[#allocation2 + $0x148] sm:$0xff] 0.0
          %768 = vst [vmem:[#allocation2 + $0x150] sm:$0xff] 0.0
          %769 = vst [vmem:[#allocation2 + $0x158] sm:$0xff] 0.0
          %770 = vst [vmem:[#allocation2 + $0x160] sm:$0xff] 0.0
          %771 = vst [vmem:[#allocation2 + $0x168] sm:$0xff] 0.0
          %772 = vst [vmem:[#allocation2 + $0x170] sm:$0xff] 0.0
          %773 = vst [vmem:[#allocation2 + $0x178] sm:$0xff] 0.0
          %774 = vst [vmem:[#allocation2 + $0x180] sm:$0xff] 0.0
          %775 = vst [vmem:[#allocation2 + $0x188] sm:$0xff] 0.0
          %776 = vst [vmem:[#allocation2 + $0x190] sm:$0xff] 0.0
          %777 = vst [vmem:[#allocation2 + $0x198] sm:$0xff] 0.0
          %778 = vst [vmem:[#allocation2 + $0x1a0] sm:$0xff] 0.0
          %779 = vst [vmem:[#allocation2 + $0x1a8] sm:$0xff] 0.0
          %780 = vst [vmem:[#allocation2 + $0x1b0] sm:$0xff] 0.0
          %781 = vst [vmem:[#allocation2 + $0x1b8] sm:$0xff] 0.0
          %782 = vst [vmem:[#allocation2 + $0x1c0] sm:$0xff] 0.0
          %783 = vst [vmem:[#allocation2 + $0x1c8] sm:$0xff] 0.0
          %784 = vst [vmem:[#allocation2 + $0x1d0] sm:$0xff] 0.0
          %785 = vst [vmem:[#allocation2 + $0x1d8] sm:$0xff] 0.0
          %786 = vst [vmem:[#allocation2 + $0x1e0] sm:$0xff] 0.0
          %787 = vst [vmem:[#allocation2 + $0x1e8] sm:$0xff] 0.0
          %788 = vst [vmem:[#allocation2 + $0x1f0] sm:$0xff] 0.0
          %789 = vst [vmem:[#allocation2 + $0x1f8] sm:$0xff] 0.0
        $region59: #{_gcn_forward.2} parent=50 // pred_fallthru
          _
        %s790 = smul.u32 %s19, 1024
        %s791 = sshra.s32 %s790, 3
        %s792 = sand.u32 %s790, 7
        %s793 = smul.addr %s791, 4
        %s794 = scalar_lea.vmem %s1, %s793
        %v795 = vld [vmem:[%s794] sm:$0xf]
        %v796 = vld [vmem:[%s794 + $0x4] sm:$0xf]
        %v797 = vld [vmem:[%s794 + $0x8] sm:$0xf]
        %v798 = vld [vmem:[%s794 + $0xc] sm:$0xf]
        %v799 = vld [vmem:[%s794 + $0x10] sm:$0xf]
        %v800 = vld [vmem:[%s794 + $0x14] sm:$0xf]
        %v801 = vld [vmem:[%s794 + $0x18] sm:$0xf]
        %v802 = vld [vmem:[%s794 + $0x1c] sm:$0xf]
        %v803 = vld [vmem:[%s794 + $0x20] sm:$0xf]
        %v804 = vld [vmem:[%s794 + $0x24] sm:$0xf]
        %v805 = vld [vmem:[%s794 + $0x28] sm:$0xf]
        %v806 = vld [vmem:[%s794 + $0x2c] sm:$0xf]
        %v807 = vld [vmem:[%s794 + $0x30] sm:$0xf]
        %v808 = vld [vmem:[%s794 + $0x34] sm:$0xf]
        %v809 = vld [vmem:[%s794 + $0x38] sm:$0xf]
        %v810 = vld [vmem:[%s794 + $0x3c] sm:$0xf]
        %v811 = vld [vmem:[%s794 + $0x40] sm:$0xf]
        %v812 = vld [vmem:[%s794 + $0x44] sm:$0xf]
        %v813 = vld [vmem:[%s794 + $0x48] sm:$0xf]
        %v814 = vld [vmem:[%s794 + $0x4c] sm:$0xf]
        %v815 = vld [vmem:[%s794 + $0x50] sm:$0xf]
        %v816 = vld [vmem:[%s794 + $0x54] sm:$0xf]
        %v817 = vld [vmem:[%s794 + $0x58] sm:$0xf]
        %v818 = vld [vmem:[%s794 + $0x5c] sm:$0xf]
        %v819 = vld [vmem:[%s794 + $0x60] sm:$0xf]
        %v820 = vld [vmem:[%s794 + $0x64] sm:$0xf]
        %v821 = vld [vmem:[%s794 + $0x68] sm:$0xf]
        %v822 = vld [vmem:[%s794 + $0x6c] sm:$0xf]
        %v823 = vld [vmem:[%s794 + $0x70] sm:$0xf]
        %v824 = vld [vmem:[%s794 + $0x74] sm:$0xf]
        %v825 = vld [vmem:[%s794 + $0x78] sm:$0xf]
        %v826 = vld [vmem:[%s794 + $0x7c] sm:$0xf]
        %v827 = vld [vmem:[%s794 + $0x80] sm:$0xf]
        %v828 = vld [vmem:[%s794 + $0x84] sm:$0xf]
        %v829 = vld [vmem:[%s794 + $0x88] sm:$0xf]
        %v830 = vld [vmem:[%s794 + $0x8c] sm:$0xf]
        %v831 = vld [vmem:[%s794 + $0x90] sm:$0xf]
        %v832 = vld [vmem:[%s794 + $0x94] sm:$0xf]
        %v833 = vld [vmem:[%s794 + $0x98] sm:$0xf]
        %v834 = vld [vmem:[%s794 + $0x9c] sm:$0xf]
        %v835 = vld [vmem:[%s794 + $0xa0] sm:$0xf]
        %v836 = vld [vmem:[%s794 + $0xa4] sm:$0xf]
        %v837 = vld [vmem:[%s794 + $0xa8] sm:$0xf]
        %v838 = vld [vmem:[%s794 + $0xac] sm:$0xf]
        %v839 = vld [vmem:[%s794 + $0xb0] sm:$0xf]
        %v840 = vld [vmem:[%s794 + $0xb4] sm:$0xf]
        %v841 = vld [vmem:[%s794 + $0xb8] sm:$0xf]
        %v842 = vld [vmem:[%s794 + $0xbc] sm:$0xf]
        %v843 = vld [vmem:[%s794 + $0xc0] sm:$0xf]
        %v844 = vld [vmem:[%s794 + $0xc4] sm:$0xf]
        %v845 = vld [vmem:[%s794 + $0xc8] sm:$0xf]
        %v846 = vld [vmem:[%s794 + $0xcc] sm:$0xf]
        %v847 = vld [vmem:[%s794 + $0xd0] sm:$0xf]
        %v848 = vld [vmem:[%s794 + $0xd4] sm:$0xf]
        %v849 = vld [vmem:[%s794 + $0xd8] sm:$0xf]
        %v850 = vld [vmem:[%s794 + $0xdc] sm:$0xf]
        %v851 = vld [vmem:[%s794 + $0xe0] sm:$0xf]
        %v852 = vld [vmem:[%s794 + $0xe4] sm:$0xf]
        %v853 = vld [vmem:[%s794 + $0xe8] sm:$0xf]
        %v854 = vld [vmem:[%s794 + $0xec] sm:$0xf]
        %v855 = vld [vmem:[%s794 + $0xf0] sm:$0xf]
        %v856 = vld [vmem:[%s794 + $0xf4] sm:$0xf]
        %v857 = vld [vmem:[%s794 + $0xf8] sm:$0xf]
        %v858 = vld [vmem:[%s794 + $0xfc] sm:$0xf]
        %v859 = vld [vmem:[%s794 + $0x100] sm:$0xf]
        %v860 = vld [vmem:[%s794 + $0x104] sm:$0xf]
        %v861 = vld [vmem:[%s794 + $0x108] sm:$0xf]
        %v862 = vld [vmem:[%s794 + $0x10c] sm:$0xf]
        %v863 = vld [vmem:[%s794 + $0x110] sm:$0xf]
        %v864 = vld [vmem:[%s794 + $0x114] sm:$0xf]
        %v865 = vld [vmem:[%s794 + $0x118] sm:$0xf]
        %v866 = vld [vmem:[%s794 + $0x11c] sm:$0xf]
        %v867 = vld [vmem:[%s794 + $0x120] sm:$0xf]
        %v868 = vld [vmem:[%s794 + $0x124] sm:$0xf]
        %v869 = vld [vmem:[%s794 + $0x128] sm:$0xf]
        %v870 = vld [vmem:[%s794 + $0x12c] sm:$0xf]
        %v871 = vld [vmem:[%s794 + $0x130] sm:$0xf]
        %v872 = vld [vmem:[%s794 + $0x134] sm:$0xf]
        %v873 = vld [vmem:[%s794 + $0x138] sm:$0xf]
        %v874 = vld [vmem:[%s794 + $0x13c] sm:$0xf]
        %v875 = vld [vmem:[%s794 + $0x140] sm:$0xf]
        %v876 = vld [vmem:[%s794 + $0x144] sm:$0xf]
        %v877 = vld [vmem:[%s794 + $0x148] sm:$0xf]
        %v878 = vld [vmem:[%s794 + $0x14c] sm:$0xf]
        %v879 = vld [vmem:[%s794 + $0x150] sm:$0xf]
        %v880 = vld [vmem:[%s794 + $0x154] sm:$0xf]
        %v881 = vld [vmem:[%s794 + $0x158] sm:$0xf]
        %v882 = vld [vmem:[%s794 + $0x15c] sm:$0xf]
        %v883 = vld [vmem:[%s794 + $0x160] sm:$0xf]
        %v884 = vld [vmem:[%s794 + $0x164] sm:$0xf]
        %v885 = vld [vmem:[%s794 + $0x168] sm:$0xf]
        %v886 = vld [vmem:[%s794 + $0x16c] sm:$0xf]
        %v887 = vld [vmem:[%s794 + $0x170] sm:$0xf]
        %v888 = vld [vmem:[%s794 + $0x174] sm:$0xf]
        %v889 = vld [vmem:[%s794 + $0x178] sm:$0xf]
        %v890 = vld [vmem:[%s794 + $0x17c] sm:$0xf]
        %v891 = vld [vmem:[%s794 + $0x180] sm:$0xf]
        %v892 = vld [vmem:[%s794 + $0x184] sm:$0xf]
        %v893 = vld [vmem:[%s794 + $0x188] sm:$0xf]
        %v894 = vld [vmem:[%s794 + $0x18c] sm:$0xf]
        %v895 = vld [vmem:[%s794 + $0x190] sm:$0xf]
        %v896 = vld [vmem:[%s794 + $0x194] sm:$0xf]
        %v897 = vld [vmem:[%s794 + $0x198] sm:$0xf]
        %v898 = vld [vmem:[%s794 + $0x19c] sm:$0xf]
        %v899 = vld [vmem:[%s794 + $0x1a0] sm:$0xf]
        %v900 = vld [vmem:[%s794 + $0x1a4] sm:$0xf]
        %v901 = vld [vmem:[%s794 + $0x1a8] sm:$0xf]
        %v902 = vld [vmem:[%s794 + $0x1ac] sm:$0xf]
        %v903 = vld [vmem:[%s794 + $0x1b0] sm:$0xf]
        %v904 = vld [vmem:[%s794 + $0x1b4] sm:$0xf]
        %v905 = vld [vmem:[%s794 + $0x1b8] sm:$0xf]
        %v906 = vld [vmem:[%s794 + $0x1bc] sm:$0xf]
        %v907 = vld [vmem:[%s794 + $0x1c0] sm:$0xf]
        %v908 = vld [vmem:[%s794 + $0x1c4] sm:$0xf]
        %v909 = vld [vmem:[%s794 + $0x1c8] sm:$0xf]
        %v910 = vld [vmem:[%s794 + $0x1cc] sm:$0xf]
        %v911 = vld [vmem:[%s794 + $0x1d0] sm:$0xf]
        %v912 = vld [vmem:[%s794 + $0x1d4] sm:$0xf]
        %v913 = vld [vmem:[%s794 + $0x1d8] sm:$0xf]
        %v914 = vld [vmem:[%s794 + $0x1dc] sm:$0xf]
        %v915 = vld [vmem:[%s794 + $0x1e0] sm:$0xf]
        %v916 = vld [vmem:[%s794 + $0x1e4] sm:$0xf]
        %v917 = vld [vmem:[%s794 + $0x1e8] sm:$0xf]
        %v918 = vld [vmem:[%s794 + $0x1ec] sm:$0xf]
        %v919 = vld [vmem:[%s794 + $0x1f0] sm:$0xf]
        %v920 = vld [vmem:[%s794 + $0x1f4] sm:$0xf]
        %v921 = vld [vmem:[%s794 + $0x1f8] sm:$0xf]
        %v922 = vld [vmem:[%s794 + $0x1fc] sm:$0xf]
        %v923 = vld [vmem:[#allocation2] sm:$0xff]
        %v924 = vld [vmem:[#allocation2 + $0x8] sm:$0xff]
        %v925 = vld [vmem:[#allocation2 + $0x10] sm:$0xff]
        %v926 = vld [vmem:[#allocation2 + $0x18] sm:$0xff]
        %v927 = vld [vmem:[#allocation2 + $0x20] sm:$0xff]
        %v928 = vld [vmem:[#allocation2 + $0x28] sm:$0xff]
        %v929 = vld [vmem:[#allocation2 + $0x30] sm:$0xff]
        %v930 = vld [vmem:[#allocation2 + $0x38] sm:$0xff]
        %v931 = vld [vmem:[#allocation2 + $0x40] sm:$0xff]
        %v932 = vld [vmem:[#allocation2 + $0x48] sm:$0xff]
        %v933 = vld [vmem:[#allocation2 + $0x50] sm:$0xff]
        %v934 = vld [vmem:[#allocation2 + $0x58] sm:$0xff]
        %v935 = vld [vmem:[#allocation2 + $0x60] sm:$0xff]
        %v936 = vld [vmem:[#allocation2 + $0x68] sm:$0xff]
        %v937 = vld [vmem:[#allocation2 + $0x70] sm:$0xff]
        %v938 = vld [vmem:[#allocation2 + $0x78] sm:$0xff]
        %v939 = vld [vmem:[#allocation2 + $0x80] sm:$0xff]
        %v940 = vld [vmem:[#allocation2 + $0x88] sm:$0xff]
        %v941 = vld [vmem:[#allocation2 + $0x90] sm:$0xff]
        %v942 = vld [vmem:[#allocation2 + $0x98] sm:$0xff]
        %v943 = vld [vmem:[#allocation2 + $0xa0] sm:$0xff]
        %v944 = vld [vmem:[#allocation2 + $0xa8] sm:$0xff]
        %v945 = vld [vmem:[#allocation2 + $0xb0] sm:$0xff]
        %v946 = vld [vmem:[#allocation2 + $0xb8] sm:$0xff]
        %v947 = vld [vmem:[#allocation2 + $0xc0] sm:$0xff]
        %v948 = vld [vmem:[#allocation2 + $0xc8] sm:$0xff]
        %v949 = vld [vmem:[#allocation2 + $0xd0] sm:$0xff]
        %v950 = vld [vmem:[#allocation2 + $0xd8] sm:$0xff]
        %v951 = vld [vmem:[#allocation2 + $0xe0] sm:$0xff]
        %v952 = vld [vmem:[#allocation2 + $0xe8] sm:$0xff]
        %v953 = vld [vmem:[#allocation2 + $0xf0] sm:$0xff]
        %v954 = vld [vmem:[#allocation2 + $0xf8] sm:$0xff]
        %v955 = vld [vmem:[#allocation2 + $0x100] sm:$0xff]
        %v956 = vld [vmem:[#allocation2 + $0x108] sm:$0xff]
        %v957 = vld [vmem:[#allocation2 + $0x110] sm:$0xff]
        %v958 = vld [vmem:[#allocation2 + $0x118] sm:$0xff]
        %v959 = vld [vmem:[#allocation2 + $0x120] sm:$0xff]
        %v960 = vld [vmem:[#allocation2 + $0x128] sm:$0xff]
        %v961 = vld [vmem:[#allocation2 + $0x130] sm:$0xff]
        %v962 = vld [vmem:[#allocation2 + $0x138] sm:$0xff]
        %v963 = vld [vmem:[#allocation2 + $0x140] sm:$0xff]
        %v964 = vld [vmem:[#allocation2 + $0x148] sm:$0xff]
        %v965 = vld [vmem:[#allocation2 + $0x150] sm:$0xff]
        %v966 = vld [vmem:[#allocation2 + $0x158] sm:$0xff]
        %v967 = vld [vmem:[#allocation2 + $0x160] sm:$0xff]
        %v968 = vld [vmem:[#allocation2 + $0x168] sm:$0xff]
        %v969 = vld [vmem:[#allocation2 + $0x170] sm:$0xff]
        %v970 = vld [vmem:[#allocation2 + $0x178] sm:$0xff]
        %v971 = vld [vmem:[#allocation2 + $0x180] sm:$0xff]
        %v972 = vld [vmem:[#allocation2 + $0x188] sm:$0xff]
        %v973 = vld [vmem:[#allocation2 + $0x190] sm:$0xff]
        %v974 = vld [vmem:[#allocation2 + $0x198] sm:$0xff]
        %v975 = vld [vmem:[#allocation2 + $0x1a0] sm:$0xff]
        %v976 = vld [vmem:[#allocation2 + $0x1a8] sm:$0xff]
        %v977 = vld [vmem:[#allocation2 + $0x1b0] sm:$0xff]
        %v978 = vld [vmem:[#allocation2 + $0x1b8] sm:$0xff]
        %v979 = vld [vmem:[#allocation2 + $0x1c0] sm:$0xff]
        %v980 = vld [vmem:[#allocation2 + $0x1c8] sm:$0xff]
        %v981 = vld [vmem:[#allocation2 + $0x1d0] sm:$0xff]
        %v982 = vld [vmem:[#allocation2 + $0x1d8] sm:$0xff]
        %v983 = vld [vmem:[#allocation2 + $0x1e0] sm:$0xff]
        %v984 = vld [vmem:[#allocation2 + $0x1e8] sm:$0xff]
        %v985 = vld [vmem:[#allocation2 + $0x1f0] sm:$0xff]
        %v986 = vld [vmem:[#allocation2 + $0x1f8] sm:$0xff]
        %v987 = vld [vmem:[%s692] sm:$0xff]
        %v988 = vld [vmem:[%s692 + $0x8] sm:$0xff]
        %v989 = vld [vmem:[%s692 + $0x10] sm:$0xff]
        %v990 = vld [vmem:[%s692 + $0x18] sm:$0xff]
        %v991 = vld [vmem:[%s692 + $0x20] sm:$0xff]
        %v992 = vld [vmem:[%s692 + $0x28] sm:$0xff]
        %v993 = vld [vmem:[%s692 + $0x30] sm:$0xff]
        %v994 = vld [vmem:[%s692 + $0x38] sm:$0xff]
        %v995 = vld [vmem:[%s692 + $0x40] sm:$0xff]
        %v996 = vld [vmem:[%s692 + $0x48] sm:$0xff]
        %v997 = vld [vmem:[%s692 + $0x50] sm:$0xff]
        %v998 = vld [vmem:[%s692 + $0x58] sm:$0xff]
        %v999 = vld [vmem:[%s692 + $0x60] sm:$0xff]
        %v1000 = vld [vmem:[%s692 + $0x68] sm:$0xff]
        %v1001 = vld [vmem:[%s692 + $0x70] sm:$0xff]
        %v1002 = vld [vmem:[%s692 + $0x78] sm:$0xff]
        %v1003 = vld [vmem:[%s692 + $0x80] sm:$0xff]
        %v1004 = vld [vmem:[%s692 + $0x88] sm:$0xff]
        %v1005 = vld [vmem:[%s692 + $0x90] sm:$0xff]
        %v1006 = vld [vmem:[%s692 + $0x98] sm:$0xff]
        %v1007 = vld [vmem:[%s692 + $0xa0] sm:$0xff]
        %v1008 = vld [vmem:[%s692 + $0xa8] sm:$0xff]
        %v1009 = vld [vmem:[%s692 + $0xb0] sm:$0xff]
        %v1010 = vld [vmem:[%s692 + $0xb8] sm:$0xff]
        %v1011 = vld [vmem:[%s692 + $0xc0] sm:$0xff]
        %v1012 = vld [vmem:[%s692 + $0xc8] sm:$0xff]
        %v1013 = vld [vmem:[%s692 + $0xd0] sm:$0xff]
        %v1014 = vld [vmem:[%s692 + $0xd8] sm:$0xff]
        %v1015 = vld [vmem:[%s692 + $0xe0] sm:$0xff]
        %v1016 = vld [vmem:[%s692 + $0xe8] sm:$0xff]
        %v1017 = vld [vmem:[%s692 + $0xf0] sm:$0xff]
        %v1018 = vld [vmem:[%s692 + $0xf8] sm:$0xff]
        %v1019 = vld [vmem:[%s692 + $0x100] sm:$0xff]
        %v1020 = vld [vmem:[%s692 + $0x108] sm:$0xff]
        %v1021 = vld [vmem:[%s692 + $0x110] sm:$0xff]
        %v1022 = vld [vmem:[%s692 + $0x118] sm:$0xff]
        %v1023 = vld [vmem:[%s692 + $0x120] sm:$0xff]
        %v1024 = vld [vmem:[%s692 + $0x128] sm:$0xff]
        %v1025 = vld [vmem:[%s692 + $0x130] sm:$0xff]
        %v1026 = vld [vmem:[%s692 + $0x138] sm:$0xff]
        %v1027 = vld [vmem:[%s692 + $0x140] sm:$0xff]
        %v1028 = vld [vmem:[%s692 + $0x148] sm:$0xff]
        %v1029 = vld [vmem:[%s692 + $0x150] sm:$0xff]
        %v1030 = vld [vmem:[%s692 + $0x158] sm:$0xff]
        %v1031 = vld [vmem:[%s692 + $0x160] sm:$0xff]
        %v1032 = vld [vmem:[%s692 + $0x168] sm:$0xff]
        %v1033 = vld [vmem:[%s692 + $0x170] sm:$0xff]
        %v1034 = vld [vmem:[%s692 + $0x178] sm:$0xff]
        %v1035 = vld [vmem:[%s692 + $0x180] sm:$0xff]
        %v1036 = vld [vmem:[%s692 + $0x188] sm:$0xff]
        %v1037 = vld [vmem:[%s692 + $0x190] sm:$0xff]
        %v1038 = vld [vmem:[%s692 + $0x198] sm:$0xff]
        %v1039 = vld [vmem:[%s692 + $0x1a0] sm:$0xff]
        %v1040 = vld [vmem:[%s692 + $0x1a8] sm:$0xff]
        %v1041 = vld [vmem:[%s692 + $0x1b0] sm:$0xff]
        %v1042 = vld [vmem:[%s692 + $0x1b8] sm:$0xff]
        %v1043 = vld [vmem:[%s692 + $0x1c0] sm:$0xff]
        %v1044 = vld [vmem:[%s692 + $0x1c8] sm:$0xff]
        %v1045 = vld [vmem:[%s692 + $0x1d0] sm:$0xff]
        %v1046 = vld [vmem:[%s692 + $0x1d8] sm:$0xff]
        %v1047 = vld [vmem:[%s692 + $0x1e0] sm:$0xff]
        %v1048 = vld [vmem:[%s692 + $0x1e8] sm:$0xff]
        %v1049 = vld [vmem:[%s692 + $0x1f0] sm:$0xff]
        %v1050 = vld [vmem:[%s692 + $0x1f8] sm:$0xff]
        %v1051 = vld [vmem:[%s692 + $0x200] sm:$0xff]
        %v1052 = vld [vmem:[%s692 + $0x208] sm:$0xff]
        %v1053 = vld [vmem:[%s692 + $0x210] sm:$0xff]
        %v1054 = vld [vmem:[%s692 + $0x218] sm:$0xff]
        %v1055 = vld [vmem:[%s692 + $0x220] sm:$0xff]
        %v1056 = vld [vmem:[%s692 + $0x228] sm:$0xff]
        %v1057 = vld [vmem:[%s692 + $0x230] sm:$0xff]
        %v1058 = vld [vmem:[%s692 + $0x238] sm:$0xff]
        %v1059 = vld [vmem:[%s692 + $0x240] sm:$0xff]
        %v1060 = vld [vmem:[%s692 + $0x248] sm:$0xff]
        %v1061 = vld [vmem:[%s692 + $0x250] sm:$0xff]
        %v1062 = vld [vmem:[%s692 + $0x258] sm:$0xff]
        %v1063 = vld [vmem:[%s692 + $0x260] sm:$0xff]
        %v1064 = vld [vmem:[%s692 + $0x268] sm:$0xff]
        %v1065 = vld [vmem:[%s692 + $0x270] sm:$0xff]
        %v1066 = vld [vmem:[%s692 + $0x278] sm:$0xff]
        %v1067 = vld [vmem:[%s692 + $0x280] sm:$0xff]
        %v1068 = vld [vmem:[%s692 + $0x288] sm:$0xff]
        %v1069 = vld [vmem:[%s692 + $0x290] sm:$0xff]
        %v1070 = vld [vmem:[%s692 + $0x298] sm:$0xff]
        %v1071 = vld [vmem:[%s692 + $0x2a0] sm:$0xff]
        %v1072 = vld [vmem:[%s692 + $0x2a8] sm:$0xff]
        %v1073 = vld [vmem:[%s692 + $0x2b0] sm:$0xff]
        %v1074 = vld [vmem:[%s692 + $0x2b8] sm:$0xff]
        %v1075 = vld [vmem:[%s692 + $0x2c0] sm:$0xff]
        %v1076 = vld [vmem:[%s692 + $0x2c8] sm:$0xff]
        %v1077 = vld [vmem:[%s692 + $0x2d0] sm:$0xff]
        %v1078 = vld [vmem:[%s692 + $0x2d8] sm:$0xff]
        %v1079 = vld [vmem:[%s692 + $0x2e0] sm:$0xff]
        %v1080 = vld [vmem:[%s692 + $0x2e8] sm:$0xff]
        %v1081 = vld [vmem:[%s692 + $0x2f0] sm:$0xff]
        %v1082 = vld [vmem:[%s692 + $0x2f8] sm:$0xff]
        %v1083 = vld [vmem:[%s692 + $0x300] sm:$0xff]
        %v1084 = vld [vmem:[%s692 + $0x308] sm:$0xff]
        %v1085 = vld [vmem:[%s692 + $0x310] sm:$0xff]
        %v1086 = vld [vmem:[%s692 + $0x318] sm:$0xff]
        %v1087 = vld [vmem:[%s692 + $0x320] sm:$0xff]
        %v1088 = vld [vmem:[%s692 + $0x328] sm:$0xff]
        %v1089 = vld [vmem:[%s692 + $0x330] sm:$0xff]
        %v1090 = vld [vmem:[%s692 + $0x338] sm:$0xff]
        %v1091 = vld [vmem:[%s692 + $0x340] sm:$0xff]
        %v1092 = vld [vmem:[%s692 + $0x348] sm:$0xff]
        %v1093 = vld [vmem:[%s692 + $0x350] sm:$0xff]
        %v1094 = vld [vmem:[%s692 + $0x358] sm:$0xff]
        %v1095 = vld [vmem:[%s692 + $0x360] sm:$0xff]
        %v1096 = vld [vmem:[%s692 + $0x368] sm:$0xff]
        %v1097 = vld [vmem:[%s692 + $0x370] sm:$0xff]
        %v1098 = vld [vmem:[%s692 + $0x378] sm:$0xff]
        %v1099 = vld [vmem:[%s692 + $0x380] sm:$0xff]
        %v1100 = vld [vmem:[%s692 + $0x388] sm:$0xff]
        %v1101 = vld [vmem:[%s692 + $0x390] sm:$0xff]
        %v1102 = vld [vmem:[%s692 + $0x398] sm:$0xff]
        %v1103 = vld [vmem:[%s692 + $0x3a0] sm:$0xff]
        %v1104 = vld [vmem:[%s692 + $0x3a8] sm:$0xff]
        %v1105 = vld [vmem:[%s692 + $0x3b0] sm:$0xff]
        %v1106 = vld [vmem:[%s692 + $0x3b8] sm:$0xff]
        %v1107 = vld [vmem:[%s692 + $0x3c0] sm:$0xff]
        %v1108 = vld [vmem:[%s692 + $0x3c8] sm:$0xff]
        %v1109 = vld [vmem:[%s692 + $0x3d0] sm:$0xff]
        %v1110 = vld [vmem:[%s692 + $0x3d8] sm:$0xff]
        %v1111 = vld [vmem:[%s692 + $0x3e0] sm:$0xff]
        %v1112 = vld [vmem:[%s692 + $0x3e8] sm:$0xff]
        %v1113 = vld [vmem:[%s692 + $0x3f0] sm:$0xff]
        %v1114 = vld [vmem:[%s692 + $0x3f8] sm:$0xff]
        %v1115 = vld [vmem:[%s692 + $0x400] sm:$0xff]
        %v1116 = vld [vmem:[%s692 + $0x408] sm:$0xff]
        %v1117 = vld [vmem:[%s692 + $0x410] sm:$0xff]
        %v1118 = vld [vmem:[%s692 + $0x418] sm:$0xff]
        %v1119 = vld [vmem:[%s692 + $0x420] sm:$0xff]
        %v1120 = vld [vmem:[%s692 + $0x428] sm:$0xff]
        %v1121 = vld [vmem:[%s692 + $0x430] sm:$0xff]
        %v1122 = vld [vmem:[%s692 + $0x438] sm:$0xff]
        %v1123 = vld [vmem:[%s692 + $0x440] sm:$0xff]
        %v1124 = vld [vmem:[%s692 + $0x448] sm:$0xff]
        %v1125 = vld [vmem:[%s692 + $0x450] sm:$0xff]
        %v1126 = vld [vmem:[%s692 + $0x458] sm:$0xff]
        %v1127 = vld [vmem:[%s692 + $0x460] sm:$0xff]
        %v1128 = vld [vmem:[%s692 + $0x468] sm:$0xff]
        %v1129 = vld [vmem:[%s692 + $0x470] sm:$0xff]
        %v1130 = vld [vmem:[%s692 + $0x478] sm:$0xff]
        %v1131 = vld [vmem:[%s692 + $0x480] sm:$0xff]
        %v1132 = vld [vmem:[%s692 + $0x488] sm:$0xff]
        %v1133 = vld [vmem:[%s692 + $0x490] sm:$0xff]
        %v1134 = vld [vmem:[%s692 + $0x498] sm:$0xff]
        %v1135 = vld [vmem:[%s692 + $0x4a0] sm:$0xff]
        %v1136 = vld [vmem:[%s692 + $0x4a8] sm:$0xff]
        %v1137 = vld [vmem:[%s692 + $0x4b0] sm:$0xff]
        %v1138 = vld [vmem:[%s692 + $0x4b8] sm:$0xff]
        %v1139 = vld [vmem:[%s692 + $0x4c0] sm:$0xff]
        %v1140 = vld [vmem:[%s692 + $0x4c8] sm:$0xff]
        %v1141 = vld [vmem:[%s692 + $0x4d0] sm:$0xff]
        %v1142 = vld [vmem:[%s692 + $0x4d8] sm:$0xff]
        %v1143 = vld [vmem:[%s692 + $0x4e0] sm:$0xff]
        %v1144 = vld [vmem:[%s692 + $0x4e8] sm:$0xff]
        %v1145 = vld [vmem:[%s692 + $0x4f0] sm:$0xff]
        %v1146 = vld [vmem:[%s692 + $0x4f8] sm:$0xff]
        %v1147 = vld [vmem:[%s692 + $0x500] sm:$0xff]
        %v1148 = vld [vmem:[%s692 + $0x508] sm:$0xff]
        %v1149 = vld [vmem:[%s692 + $0x510] sm:$0xff]
        %v1150 = vld [vmem:[%s692 + $0x518] sm:$0xff]
        %v1151 = vld [vmem:[%s692 + $0x520] sm:$0xff]
        %v1152 = vld [vmem:[%s692 + $0x528] sm:$0xff]
        %v1153 = vld [vmem:[%s692 + $0x530] sm:$0xff]
        %v1154 = vld [vmem:[%s692 + $0x538] sm:$0xff]
        %v1155 = vld [vmem:[%s692 + $0x540] sm:$0xff]
        %v1156 = vld [vmem:[%s692 + $0x548] sm:$0xff]
        %v1157 = vld [vmem:[%s692 + $0x550] sm:$0xff]
        %v1158 = vld [vmem:[%s692 + $0x558] sm:$0xff]
        %v1159 = vld [vmem:[%s692 + $0x560] sm:$0xff]
        %v1160 = vld [vmem:[%s692 + $0x568] sm:$0xff]
        %v1161 = vld [vmem:[%s692 + $0x570] sm:$0xff]
        %v1162 = vld [vmem:[%s692 + $0x578] sm:$0xff]
        %v1163 = vld [vmem:[%s692 + $0x580] sm:$0xff]
        %v1164 = vld [vmem:[%s692 + $0x588] sm:$0xff]
        %v1165 = vld [vmem:[%s692 + $0x590] sm:$0xff]
        %v1166 = vld [vmem:[%s692 + $0x598] sm:$0xff]
        %v1167 = vld [vmem:[%s692 + $0x5a0] sm:$0xff]
        %v1168 = vld [vmem:[%s692 + $0x5a8] sm:$0xff]
        %v1169 = vld [vmem:[%s692 + $0x5b0] sm:$0xff]
        %v1170 = vld [vmem:[%s692 + $0x5b8] sm:$0xff]
        %v1171 = vld [vmem:[%s692 + $0x5c0] sm:$0xff]
        %v1172 = vld [vmem:[%s692 + $0x5c8] sm:$0xff]
        %v1173 = vld [vmem:[%s692 + $0x5d0] sm:$0xff]
        %v1174 = vld [vmem:[%s692 + $0x5d8] sm:$0xff]
        %v1175 = vld [vmem:[%s692 + $0x5e0] sm:$0xff]
        %v1176 = vld [vmem:[%s692 + $0x5e8] sm:$0xff]
        %v1177 = vld [vmem:[%s692 + $0x5f0] sm:$0xff]
        %v1178 = vld [vmem:[%s692 + $0x5f8] sm:$0xff]
        %v1179 = vld [vmem:[%s692 + $0x600] sm:$0xff]
        %v1180 = vld [vmem:[%s692 + $0x608] sm:$0xff]
        %v1181 = vld [vmem:[%s692 + $0x610] sm:$0xff]
        %v1182 = vld [vmem:[%s692 + $0x618] sm:$0xff]
        %v1183 = vld [vmem:[%s692 + $0x620] sm:$0xff]
        %v1184 = vld [vmem:[%s692 + $0x628] sm:$0xff]
        %v1185 = vld [vmem:[%s692 + $0x630] sm:$0xff]
        %v1186 = vld [vmem:[%s692 + $0x638] sm:$0xff]
        %v1187 = vld [vmem:[%s692 + $0x640] sm:$0xff]
        %v1188 = vld [vmem:[%s692 + $0x648] sm:$0xff]
        %v1189 = vld [vmem:[%s692 + $0x650] sm:$0xff]
        %v1190 = vld [vmem:[%s692 + $0x658] sm:$0xff]
        %v1191 = vld [vmem:[%s692 + $0x660] sm:$0xff]
        %v1192 = vld [vmem:[%s692 + $0x668] sm:$0xff]
        %v1193 = vld [vmem:[%s692 + $0x670] sm:$0xff]
        %v1194 = vld [vmem:[%s692 + $0x678] sm:$0xff]
        %v1195 = vld [vmem:[%s692 + $0x680] sm:$0xff]
        %v1196 = vld [vmem:[%s692 + $0x688] sm:$0xff]
        %v1197 = vld [vmem:[%s692 + $0x690] sm:$0xff]
        %v1198 = vld [vmem:[%s692 + $0x698] sm:$0xff]
        %v1199 = vld [vmem:[%s692 + $0x6a0] sm:$0xff]
        %v1200 = vld [vmem:[%s692 + $0x6a8] sm:$0xff]
        %v1201 = vld [vmem:[%s692 + $0x6b0] sm:$0xff]
        %v1202 = vld [vmem:[%s692 + $0x6b8] sm:$0xff]
        %v1203 = vld [vmem:[%s692 + $0x6c0] sm:$0xff]
        %v1204 = vld [vmem:[%s692 + $0x6c8] sm:$0xff]
        %v1205 = vld [vmem:[%s692 + $0x6d0] sm:$0xff]
        %v1206 = vld [vmem:[%s692 + $0x6d8] sm:$0xff]
        %v1207 = vld [vmem:[%s692 + $0x6e0] sm:$0xff]
        %v1208 = vld [vmem:[%s692 + $0x6e8] sm:$0xff]
        %v1209 = vld [vmem:[%s692 + $0x6f0] sm:$0xff]
        %v1210 = vld [vmem:[%s692 + $0x6f8] sm:$0xff]
        %v1211 = vld [vmem:[%s692 + $0x700] sm:$0xff]
        %v1212 = vld [vmem:[%s692 + $0x708] sm:$0xff]
        %v1213 = vld [vmem:[%s692 + $0x710] sm:$0xff]
        %v1214 = vld [vmem:[%s692 + $0x718] sm:$0xff]
        %v1215 = vld [vmem:[%s692 + $0x720] sm:$0xff]
        %v1216 = vld [vmem:[%s692 + $0x728] sm:$0xff]
        %v1217 = vld [vmem:[%s692 + $0x730] sm:$0xff]
        %v1218 = vld [vmem:[%s692 + $0x738] sm:$0xff]
        %v1219 = vld [vmem:[%s692 + $0x740] sm:$0xff]
        %v1220 = vld [vmem:[%s692 + $0x748] sm:$0xff]
        %v1221 = vld [vmem:[%s692 + $0x750] sm:$0xff]
        %v1222 = vld [vmem:[%s692 + $0x758] sm:$0xff]
        %v1223 = vld [vmem:[%s692 + $0x760] sm:$0xff]
        %v1224 = vld [vmem:[%s692 + $0x768] sm:$0xff]
        %v1225 = vld [vmem:[%s692 + $0x770] sm:$0xff]
        %v1226 = vld [vmem:[%s692 + $0x778] sm:$0xff]
        %v1227 = vld [vmem:[%s692 + $0x780] sm:$0xff]
        %v1228 = vld [vmem:[%s692 + $0x788] sm:$0xff]
        %v1229 = vld [vmem:[%s692 + $0x790] sm:$0xff]
        %v1230 = vld [vmem:[%s692 + $0x798] sm:$0xff]
        %v1231 = vld [vmem:[%s692 + $0x7a0] sm:$0xff]
        %v1232 = vld [vmem:[%s692 + $0x7a8] sm:$0xff]
        %v1233 = vld [vmem:[%s692 + $0x7b0] sm:$0xff]
        %v1234 = vld [vmem:[%s692 + $0x7b8] sm:$0xff]
        %v1235 = vld [vmem:[%s692 + $0x7c0] sm:$0xff]
        %v1236 = vld [vmem:[%s692 + $0x7c8] sm:$0xff]
        %v1237 = vld [vmem:[%s692 + $0x7d0] sm:$0xff]
        %v1238 = vld [vmem:[%s692 + $0x7d8] sm:$0xff]
        %v1239 = vld [vmem:[%s692 + $0x7e0] sm:$0xff]
        %v1240 = vld [vmem:[%s692 + $0x7e8] sm:$0xff]
        %v1241 = vld [vmem:[%s692 + $0x7f0] sm:$0xff]
        %v1242 = vld [vmem:[%s692 + $0x7f8] sm:$0xff]
        %v1499 = vunpack.c.l.b16 %v987
        %v1500 = vunpack.c.h.b16 %v987
        %v1501 = vunpack.c.l.b16 %v988
        %v1502 = vunpack.c.h.b16 %v988
        %v1503 = vunpack.c.l.b16 %v989
        %v1504 = vunpack.c.h.b16 %v989
        %v1505 = vunpack.c.l.b16 %v990
        %v1506 = vunpack.c.h.b16 %v990
        %v1507 = vunpack.c.l.b16 %v991
        %v1508 = vunpack.c.h.b16 %v991
        %v1509 = vunpack.c.l.b16 %v992
        %v1510 = vunpack.c.h.b16 %v992
        %v1511 = vunpack.c.l.b16 %v993
        %v1512 = vunpack.c.h.b16 %v993
        %v1513 = vunpack.c.l.b16 %v994
        %v1514 = vunpack.c.h.b16 %v994
        %v1515 = vunpack.c.l.b16 %v995
        %v1516 = vunpack.c.h.b16 %v995
        %v1517 = vunpack.c.l.b16 %v996
        %v1518 = vunpack.c.h.b16 %v996
        %v1519 = vunpack.c.l.b16 %v997
        %v1520 = vunpack.c.h.b16 %v997
        %v1521 = vunpack.c.l.b16 %v998
        %v1522 = vunpack.c.h.b16 %v998
        %v1523 = vunpack.c.l.b16 %v999
        %v1524 = vunpack.c.h.b16 %v999
        %v1525 = vunpack.c.l.b16 %v1000
        %v1526 = vunpack.c.h.b16 %v1000
        %v1527 = vunpack.c.l.b16 %v1001
        %v1528 = vunpack.c.h.b16 %v1001
        %v1529 = vunpack.c.l.b16 %v1002
        %v1530 = vunpack.c.h.b16 %v1002
        %v1531 = vunpack.c.l.b16 %v1003
        %v1532 = vunpack.c.h.b16 %v1003
        %v1533 = vunpack.c.l.b16 %v1004
        %v1534 = vunpack.c.h.b16 %v1004
        %v1535 = vunpack.c.l.b16 %v1005
        %v1536 = vunpack.c.h.b16 %v1005
        %v1537 = vunpack.c.l.b16 %v1006
        %v1538 = vunpack.c.h.b16 %v1006
        %v1539 = vunpack.c.l.b16 %v1007
        %v1540 = vunpack.c.h.b16 %v1007
        %v1541 = vunpack.c.l.b16 %v1008
        %v1542 = vunpack.c.h.b16 %v1008
        %v1543 = vunpack.c.l.b16 %v1009
        %v1544 = vunpack.c.h.b16 %v1009
        %v1545 = vunpack.c.l.b16 %v1010
        %v1546 = vunpack.c.h.b16 %v1010
        %v1547 = vunpack.c.l.b16 %v1011
        %v1548 = vunpack.c.h.b16 %v1011
        %v1549 = vunpack.c.l.b16 %v1012
        %v1550 = vunpack.c.h.b16 %v1012
        %v1551 = vunpack.c.l.b16 %v1013
        %v1552 = vunpack.c.h.b16 %v1013
        %v1553 = vunpack.c.l.b16 %v1014
        %v1554 = vunpack.c.h.b16 %v1014
        %v1555 = vunpack.c.l.b16 %v1015
        %v1556 = vunpack.c.h.b16 %v1015
        %v1557 = vunpack.c.l.b16 %v1016
        %v1558 = vunpack.c.h.b16 %v1016
        %v1559 = vunpack.c.l.b16 %v1017
        %v1560 = vunpack.c.h.b16 %v1017
        %v1561 = vunpack.c.l.b16 %v1018
        %v1562 = vunpack.c.h.b16 %v1018
        %v1563 = vunpack.c.l.b16 %v1019
        %v1564 = vunpack.c.h.b16 %v1019
        %v1565 = vunpack.c.l.b16 %v1020
        %v1566 = vunpack.c.h.b16 %v1020
        %v1567 = vunpack.c.l.b16 %v1021
        %v1568 = vunpack.c.h.b16 %v1021
        %v1569 = vunpack.c.l.b16 %v1022
        %v1570 = vunpack.c.h.b16 %v1022
        %v1571 = vunpack.c.l.b16 %v1023
        %v1572 = vunpack.c.h.b16 %v1023
        %v1573 = vunpack.c.l.b16 %v1024
        %v1574 = vunpack.c.h.b16 %v1024
        %v1575 = vunpack.c.l.b16 %v1025
        %v1576 = vunpack.c.h.b16 %v1025
        %v1577 = vunpack.c.l.b16 %v1026
        %v1578 = vunpack.c.h.b16 %v1026
        %v1579 = vunpack.c.l.b16 %v1027
        %v1580 = vunpack.c.h.b16 %v1027
        %v1581 = vunpack.c.l.b16 %v1028
        %v1582 = vunpack.c.h.b16 %v1028
        %v1583 = vunpack.c.l.b16 %v1029
        %v1584 = vunpack.c.h.b16 %v1029
        %v1585 = vunpack.c.l.b16 %v1030
        %v1586 = vunpack.c.h.b16 %v1030
        %v1587 = vunpack.c.l.b16 %v1031
        %v1588 = vunpack.c.h.b16 %v1031
        %v1589 = vunpack.c.l.b16 %v1032
        %v1590 = vunpack.c.h.b16 %v1032
        %v1591 = vunpack.c.l.b16 %v1033
        %v1592 = vunpack.c.h.b16 %v1033
        %v1593 = vunpack.c.l.b16 %v1034
        %v1594 = vunpack.c.h.b16 %v1034
        %v1595 = vunpack.c.l.b16 %v1035
        %v1596 = vunpack.c.h.b16 %v1035
        %v1597 = vunpack.c.l.b16 %v1036
        %v1598 = vunpack.c.h.b16 %v1036
        %v1599 = vunpack.c.l.b16 %v1037
        %v1600 = vunpack.c.h.b16 %v1037
        %v1601 = vunpack.c.l.b16 %v1038
        %v1602 = vunpack.c.h.b16 %v1038
        %v1603 = vunpack.c.l.b16 %v1039
        %v1604 = vunpack.c.h.b16 %v1039
        %v1605 = vunpack.c.l.b16 %v1040
        %v1606 = vunpack.c.h.b16 %v1040
        %v1607 = vunpack.c.l.b16 %v1041
        %v1608 = vunpack.c.h.b16 %v1041
        %v1609 = vunpack.c.l.b16 %v1042
        %v1610 = vunpack.c.h.b16 %v1042
        %v1611 = vunpack.c.l.b16 %v1043
        %v1612 = vunpack.c.h.b16 %v1043
        %v1613 = vunpack.c.l.b16 %v1044
        %v1614 = vunpack.c.h.b16 %v1044
        %v1615 = vunpack.c.l.b16 %v1045
        %v1616 = vunpack.c.h.b16 %v1045
        %v1617 = vunpack.c.l.b16 %v1046
        %v1618 = vunpack.c.h.b16 %v1046
        %v1619 = vunpack.c.l.b16 %v1047
        %v1620 = vunpack.c.h.b16 %v1047
        %v1621 = vunpack.c.l.b16 %v1048
        %v1622 = vunpack.c.h.b16 %v1048
        %v1623 = vunpack.c.l.b16 %v1049
        %v1624 = vunpack.c.h.b16 %v1049
        %v1625 = vunpack.c.l.b16 %v1050
        %v1626 = vunpack.c.h.b16 %v1050
        %v1627 = vunpack.c.l.b16 %v1051
        %v1628 = vunpack.c.h.b16 %v1051
        %v1629 = vunpack.c.l.b16 %v1052
        %v1630 = vunpack.c.h.b16 %v1052
        %v1631 = vunpack.c.l.b16 %v1053
        %v1632 = vunpack.c.h.b16 %v1053
        %v1633 = vunpack.c.l.b16 %v1054
        %v1634 = vunpack.c.h.b16 %v1054
        %v1635 = vunpack.c.l.b16 %v1055
        %v1636 = vunpack.c.h.b16 %v1055
        %v1637 = vunpack.c.l.b16 %v1056
        %v1638 = vunpack.c.h.b16 %v1056
        %v1639 = vunpack.c.l.b16 %v1057
        %v1640 = vunpack.c.h.b16 %v1057
        %v1641 = vunpack.c.l.b16 %v1058
        %v1642 = vunpack.c.h.b16 %v1058
        %v1643 = vunpack.c.l.b16 %v1059
        %v1644 = vunpack.c.h.b16 %v1059
        %v1645 = vunpack.c.l.b16 %v1060
        %v1646 = vunpack.c.h.b16 %v1060
        %v1647 = vunpack.c.l.b16 %v1061
        %v1648 = vunpack.c.h.b16 %v1061
        %v1649 = vunpack.c.l.b16 %v1062
        %v1650 = vunpack.c.h.b16 %v1062
        %v1651 = vunpack.c.l.b16 %v1063
        %v1652 = vunpack.c.h.b16 %v1063
        %v1653 = vunpack.c.l.b16 %v1064
        %v1654 = vunpack.c.h.b16 %v1064
        %v1655 = vunpack.c.l.b16 %v1065
        %v1656 = vunpack.c.h.b16 %v1065
        %v1657 = vunpack.c.l.b16 %v1066
        %v1658 = vunpack.c.h.b16 %v1066
        %v1659 = vunpack.c.l.b16 %v1067
        %v1660 = vunpack.c.h.b16 %v1067
        %v1661 = vunpack.c.l.b16 %v1068
        %v1662 = vunpack.c.h.b16 %v1068
        %v1663 = vunpack.c.l.b16 %v1069
        %v1664 = vunpack.c.h.b16 %v1069
        %v1665 = vunpack.c.l.b16 %v1070
        %v1666 = vunpack.c.h.b16 %v1070
        %v1667 = vunpack.c.l.b16 %v1071
        %v1668 = vunpack.c.h.b16 %v1071
        %v1669 = vunpack.c.l.b16 %v1072
        %v1670 = vunpack.c.h.b16 %v1072
        %v1671 = vunpack.c.l.b16 %v1073
        %v1672 = vunpack.c.h.b16 %v1073
        %v1673 = vunpack.c.l.b16 %v1074
        %v1674 = vunpack.c.h.b16 %v1074
        %v1675 = vunpack.c.l.b16 %v1075
        %v1676 = vunpack.c.h.b16 %v1075
        %v1677 = vunpack.c.l.b16 %v1076
        %v1678 = vunpack.c.h.b16 %v1076
        %v1679 = vunpack.c.l.b16 %v1077
        %v1680 = vunpack.c.h.b16 %v1077
        %v1681 = vunpack.c.l.b16 %v1078
        %v1682 = vunpack.c.h.b16 %v1078
        %v1683 = vunpack.c.l.b16 %v1079
        %v1684 = vunpack.c.h.b16 %v1079
        %v1685 = vunpack.c.l.b16 %v1080
        %v1686 = vunpack.c.h.b16 %v1080
        %v1687 = vunpack.c.l.b16 %v1081
        %v1688 = vunpack.c.h.b16 %v1081
        %v1689 = vunpack.c.l.b16 %v1082
        %v1690 = vunpack.c.h.b16 %v1082
        %v1691 = vunpack.c.l.b16 %v1083
        %v1692 = vunpack.c.h.b16 %v1083
        %v1693 = vunpack.c.l.b16 %v1084
        %v1694 = vunpack.c.h.b16 %v1084
        %v1695 = vunpack.c.l.b16 %v1085
        %v1696 = vunpack.c.h.b16 %v1085
        %v1697 = vunpack.c.l.b16 %v1086
        %v1698 = vunpack.c.h.b16 %v1086
        %v1699 = vunpack.c.l.b16 %v1087
        %v1700 = vunpack.c.h.b16 %v1087
        %v1701 = vunpack.c.l.b16 %v1088
        %v1702 = vunpack.c.h.b16 %v1088
        %v1703 = vunpack.c.l.b16 %v1089
        %v1704 = vunpack.c.h.b16 %v1089
        %v1705 = vunpack.c.l.b16 %v1090
        %v1706 = vunpack.c.h.b16 %v1090
        %v1707 = vunpack.c.l.b16 %v1091
        %v1708 = vunpack.c.h.b16 %v1091
        %v1709 = vunpack.c.l.b16 %v1092
        %v1710 = vunpack.c.h.b16 %v1092
        %v1711 = vunpack.c.l.b16 %v1093
        %v1712 = vunpack.c.h.b16 %v1093
        %v1713 = vunpack.c.l.b16 %v1094
        %v1714 = vunpack.c.h.b16 %v1094
        %v1715 = vunpack.c.l.b16 %v1095
        %v1716 = vunpack.c.h.b16 %v1095
        %v1717 = vunpack.c.l.b16 %v1096
        %v1718 = vunpack.c.h.b16 %v1096
        %v1719 = vunpack.c.l.b16 %v1097
        %v1720 = vunpack.c.h.b16 %v1097
        %v1721 = vunpack.c.l.b16 %v1098
        %v1722 = vunpack.c.h.b16 %v1098
        %v1723 = vunpack.c.l.b16 %v1099
        %v1724 = vunpack.c.h.b16 %v1099
        %v1725 = vunpack.c.l.b16 %v1100
        %v1726 = vunpack.c.h.b16 %v1100
        %v1727 = vunpack.c.l.b16 %v1101
        %v1728 = vunpack.c.h.b16 %v1101
        %v1729 = vunpack.c.l.b16 %v1102
        %v1730 = vunpack.c.h.b16 %v1102
        %v1731 = vunpack.c.l.b16 %v1103
        %v1732 = vunpack.c.h.b16 %v1103
        %v1733 = vunpack.c.l.b16 %v1104
        %v1734 = vunpack.c.h.b16 %v1104
        %v1735 = vunpack.c.l.b16 %v1105
        %v1736 = vunpack.c.h.b16 %v1105
        %v1737 = vunpack.c.l.b16 %v1106
        %v1738 = vunpack.c.h.b16 %v1106
        %v1739 = vunpack.c.l.b16 %v1107
        %v1740 = vunpack.c.h.b16 %v1107
        %v1741 = vunpack.c.l.b16 %v1108
        %v1742 = vunpack.c.h.b16 %v1108
        %v1743 = vunpack.c.l.b16 %v1109
        %v1744 = vunpack.c.h.b16 %v1109
        %v1745 = vunpack.c.l.b16 %v1110
        %v1746 = vunpack.c.h.b16 %v1110
        %v1747 = vunpack.c.l.b16 %v1111
        %v1748 = vunpack.c.h.b16 %v1111
        %v1749 = vunpack.c.l.b16 %v1112
        %v1750 = vunpack.c.h.b16 %v1112
        %v1751 = vunpack.c.l.b16 %v1113
        %v1752 = vunpack.c.h.b16 %v1113
        %v1753 = vunpack.c.l.b16 %v1114
        %v1754 = vunpack.c.h.b16 %v1114
        %v1755 = vunpack.c.l.b16 %v1115
        %v1756 = vunpack.c.h.b16 %v1115
        %v1757 = vunpack.c.l.b16 %v1116
        %v1758 = vunpack.c.h.b16 %v1116
        %v1759 = vunpack.c.l.b16 %v1117
        %v1760 = vunpack.c.h.b16 %v1117
        %v1761 = vunpack.c.l.b16 %v1118
        %v1762 = vunpack.c.h.b16 %v1118
        %v1763 = vunpack.c.l.b16 %v1119
        %v1764 = vunpack.c.h.b16 %v1119
        %v1765 = vunpack.c.l.b16 %v1120
        %v1766 = vunpack.c.h.b16 %v1120
        %v1767 = vunpack.c.l.b16 %v1121
        %v1768 = vunpack.c.h.b16 %v1121
        %v1769 = vunpack.c.l.b16 %v1122
        %v1770 = vunpack.c.h.b16 %v1122
        %v1771 = vunpack.c.l.b16 %v1123
        %v1772 = vunpack.c.h.b16 %v1123
        %v1773 = vunpack.c.l.b16 %v1124
        %v1774 = vunpack.c.h.b16 %v1124
        %v1775 = vunpack.c.l.b16 %v1125
        %v1776 = vunpack.c.h.b16 %v1125
        %v1777 = vunpack.c.l.b16 %v1126
        %v1778 = vunpack.c.h.b16 %v1126
        %v1779 = vunpack.c.l.b16 %v1127
        %v1780 = vunpack.c.h.b16 %v1127
        %v1781 = vunpack.c.l.b16 %v1128
        %v1782 = vunpack.c.h.b16 %v1128
        %v1783 = vunpack.c.l.b16 %v1129
        %v1784 = vunpack.c.h.b16 %v1129
        %v1785 = vunpack.c.l.b16 %v1130
        %v1786 = vunpack.c.h.b16 %v1130
        %v1787 = vunpack.c.l.b16 %v1131
        %v1788 = vunpack.c.h.b16 %v1131
        %v1789 = vunpack.c.l.b16 %v1132
        %v1790 = vunpack.c.h.b16 %v1132
        %v1791 = vunpack.c.l.b16 %v1133
        %v1792 = vunpack.c.h.b16 %v1133
        %v1793 = vunpack.c.l.b16 %v1134
        %v1794 = vunpack.c.h.b16 %v1134
        %v1795 = vunpack.c.l.b16 %v1135
        %v1796 = vunpack.c.h.b16 %v1135
        %v1797 = vunpack.c.l.b16 %v1136
        %v1798 = vunpack.c.h.b16 %v1136
        %v1799 = vunpack.c.l.b16 %v1137
        %v1800 = vunpack.c.h.b16 %v1137
        %v1801 = vunpack.c.l.b16 %v1138
        %v1802 = vunpack.c.h.b16 %v1138
        %v1803 = vunpack.c.l.b16 %v1139
        %v1804 = vunpack.c.h.b16 %v1139
        %v1805 = vunpack.c.l.b16 %v1140
        %v1806 = vunpack.c.h.b16 %v1140
        %v1807 = vunpack.c.l.b16 %v1141
        %v1808 = vunpack.c.h.b16 %v1141
        %v1809 = vunpack.c.l.b16 %v1142
        %v1810 = vunpack.c.h.b16 %v1142
        %v1811 = vunpack.c.l.b16 %v1143
        %v1812 = vunpack.c.h.b16 %v1143
        %v1813 = vunpack.c.l.b16 %v1144
        %v1814 = vunpack.c.h.b16 %v1144
        %v1815 = vunpack.c.l.b16 %v1145
        %v1816 = vunpack.c.h.b16 %v1145
        %v1817 = vunpack.c.l.b16 %v1146
        %v1818 = vunpack.c.h.b16 %v1146
        %v1819 = vunpack.c.l.b16 %v1147
        %v1820 = vunpack.c.h.b16 %v1147
        %v1821 = vunpack.c.l.b16 %v1148
        %v1822 = vunpack.c.h.b16 %v1148
        %v1823 = vunpack.c.l.b16 %v1149
        %v1824 = vunpack.c.h.b16 %v1149
        %v1825 = vunpack.c.l.b16 %v1150
        %v1826 = vunpack.c.h.b16 %v1150
        %v1827 = vunpack.c.l.b16 %v1151
        %v1828 = vunpack.c.h.b16 %v1151
        %v1829 = vunpack.c.l.b16 %v1152
        %v1830 = vunpack.c.h.b16 %v1152
        %v1831 = vunpack.c.l.b16 %v1153
        %v1832 = vunpack.c.h.b16 %v1153
        %v1833 = vunpack.c.l.b16 %v1154
        %v1834 = vunpack.c.h.b16 %v1154
        %v1835 = vunpack.c.l.b16 %v1155
        %v1836 = vunpack.c.h.b16 %v1155
        %v1837 = vunpack.c.l.b16 %v1156
        %v1838 = vunpack.c.h.b16 %v1156
        %v1839 = vunpack.c.l.b16 %v1157
        %v1840 = vunpack.c.h.b16 %v1157
        %v1841 = vunpack.c.l.b16 %v1158
        %v1842 = vunpack.c.h.b16 %v1158
        %v1843 = vunpack.c.l.b16 %v1159
        %v1844 = vunpack.c.h.b16 %v1159
        %v1845 = vunpack.c.l.b16 %v1160
        %v1846 = vunpack.c.h.b16 %v1160
        %v1847 = vunpack.c.l.b16 %v1161
        %v1848 = vunpack.c.h.b16 %v1161
        %v1849 = vunpack.c.l.b16 %v1162
        %v1850 = vunpack.c.h.b16 %v1162
        %v1851 = vunpack.c.l.b16 %v1163
        %v1852 = vunpack.c.h.b16 %v1163
        %v1853 = vunpack.c.l.b16 %v1164
        %v1854 = vunpack.c.h.b16 %v1164
        %v1855 = vunpack.c.l.b16 %v1165
        %v1856 = vunpack.c.h.b16 %v1165
        %v1857 = vunpack.c.l.b16 %v1166
        %v1858 = vunpack.c.h.b16 %v1166
        %v1859 = vunpack.c.l.b16 %v1167
        %v1860 = vunpack.c.h.b16 %v1167
        %v1861 = vunpack.c.l.b16 %v1168
        %v1862 = vunpack.c.h.b16 %v1168
        %v1863 = vunpack.c.l.b16 %v1169
        %v1864 = vunpack.c.h.b16 %v1169
        %v1865 = vunpack.c.l.b16 %v1170
        %v1866 = vunpack.c.h.b16 %v1170
        %v1867 = vunpack.c.l.b16 %v1171
        %v1868 = vunpack.c.h.b16 %v1171
        %v1869 = vunpack.c.l.b16 %v1172
        %v1870 = vunpack.c.h.b16 %v1172
        %v1871 = vunpack.c.l.b16 %v1173
        %v1872 = vunpack.c.h.b16 %v1173
        %v1873 = vunpack.c.l.b16 %v1174
        %v1874 = vunpack.c.h.b16 %v1174
        %v1875 = vunpack.c.l.b16 %v1175
        %v1876 = vunpack.c.h.b16 %v1175
        %v1877 = vunpack.c.l.b16 %v1176
        %v1878 = vunpack.c.h.b16 %v1176
        %v1879 = vunpack.c.l.b16 %v1177
        %v1880 = vunpack.c.h.b16 %v1177
        %v1881 = vunpack.c.l.b16 %v1178
        %v1882 = vunpack.c.h.b16 %v1178
        %v1883 = vunpack.c.l.b16 %v1179
        %v1884 = vunpack.c.h.b16 %v1179
        %v1885 = vunpack.c.l.b16 %v1180
        %v1886 = vunpack.c.h.b16 %v1180
        %v1887 = vunpack.c.l.b16 %v1181
        %v1888 = vunpack.c.h.b16 %v1181
        %v1889 = vunpack.c.l.b16 %v1182
        %v1890 = vunpack.c.h.b16 %v1182
        %v1891 = vunpack.c.l.b16 %v1183
        %v1892 = vunpack.c.h.b16 %v1183
        %v1893 = vunpack.c.l.b16 %v1184
        %v1894 = vunpack.c.h.b16 %v1184
        %v1895 = vunpack.c.l.b16 %v1185
        %v1896 = vunpack.c.h.b16 %v1185
        %v1897 = vunpack.c.l.b16 %v1186
        %v1898 = vunpack.c.h.b16 %v1186
        %v1899 = vunpack.c.l.b16 %v1187
        %v1900 = vunpack.c.h.b16 %v1187
        %v1901 = vunpack.c.l.b16 %v1188
        %v1902 = vunpack.c.h.b16 %v1188
        %v1903 = vunpack.c.l.b16 %v1189
        %v1904 = vunpack.c.h.b16 %v1189
        %v1905 = vunpack.c.l.b16 %v1190
        %v1906 = vunpack.c.h.b16 %v1190
        %v1907 = vunpack.c.l.b16 %v1191
        %v1908 = vunpack.c.h.b16 %v1191
        %v1909 = vunpack.c.l.b16 %v1192
        %v1910 = vunpack.c.h.b16 %v1192
        %v1911 = vunpack.c.l.b16 %v1193
        %v1912 = vunpack.c.h.b16 %v1193
        %v1913 = vunpack.c.l.b16 %v1194
        %v1914 = vunpack.c.h.b16 %v1194
        %v1915 = vunpack.c.l.b16 %v1195
        %v1916 = vunpack.c.h.b16 %v1195
        %v1917 = vunpack.c.l.b16 %v1196
        %v1918 = vunpack.c.h.b16 %v1196
        %v1919 = vunpack.c.l.b16 %v1197
        %v1920 = vunpack.c.h.b16 %v1197
        %v1921 = vunpack.c.l.b16 %v1198
        %v1922 = vunpack.c.h.b16 %v1198
        %v1923 = vunpack.c.l.b16 %v1199
        %v1924 = vunpack.c.h.b16 %v1199
        %v1925 = vunpack.c.l.b16 %v1200
        %v1926 = vunpack.c.h.b16 %v1200
        %v1927 = vunpack.c.l.b16 %v1201
        %v1928 = vunpack.c.h.b16 %v1201
        %v1929 = vunpack.c.l.b16 %v1202
        %v1930 = vunpack.c.h.b16 %v1202
        %v1931 = vunpack.c.l.b16 %v1203
        %v1932 = vunpack.c.h.b16 %v1203
        %v1933 = vunpack.c.l.b16 %v1204
        %v1934 = vunpack.c.h.b16 %v1204
        %v1935 = vunpack.c.l.b16 %v1205
        %v1936 = vunpack.c.h.b16 %v1205
        %v1937 = vunpack.c.l.b16 %v1206
        %v1938 = vunpack.c.h.b16 %v1206
        %v1939 = vunpack.c.l.b16 %v1207
        %v1940 = vunpack.c.h.b16 %v1207
        %v1941 = vunpack.c.l.b16 %v1208
        %v1942 = vunpack.c.h.b16 %v1208
        %v1943 = vunpack.c.l.b16 %v1209
        %v1944 = vunpack.c.h.b16 %v1209
        %v1945 = vunpack.c.l.b16 %v1210
        %v1946 = vunpack.c.h.b16 %v1210
        %v1947 = vunpack.c.l.b16 %v1211
        %v1948 = vunpack.c.h.b16 %v1211
        %v1949 = vunpack.c.l.b16 %v1212
        %v1950 = vunpack.c.h.b16 %v1212
        %v1951 = vunpack.c.l.b16 %v1213
        %v1952 = vunpack.c.h.b16 %v1213
        %v1953 = vunpack.c.l.b16 %v1214
        %v1954 = vunpack.c.h.b16 %v1214
        %v1955 = vunpack.c.l.b16 %v1215
        %v1956 = vunpack.c.h.b16 %v1215
        %v1957 = vunpack.c.l.b16 %v1216
        %v1958 = vunpack.c.h.b16 %v1216
        %v1959 = vunpack.c.l.b16 %v1217
        %v1960 = vunpack.c.h.b16 %v1217
        %v1961 = vunpack.c.l.b16 %v1218
        %v1962 = vunpack.c.h.b16 %v1218
        %v1963 = vunpack.c.l.b16 %v1219
        %v1964 = vunpack.c.h.b16 %v1219
        %v1965 = vunpack.c.l.b16 %v1220
        %v1966 = vunpack.c.h.b16 %v1220
        %v1967 = vunpack.c.l.b16 %v1221
        %v1968 = vunpack.c.h.b16 %v1221
        %v1969 = vunpack.c.l.b16 %v1222
        %v1970 = vunpack.c.h.b16 %v1222
        %v1971 = vunpack.c.l.b16 %v1223
        %v1972 = vunpack.c.h.b16 %v1223
        %v1973 = vunpack.c.l.b16 %v1224
        %v1974 = vunpack.c.h.b16 %v1224
        %v1975 = vunpack.c.l.b16 %v1225
        %v1976 = vunpack.c.h.b16 %v1225
        %v1977 = vunpack.c.l.b16 %v1226
        %v1978 = vunpack.c.h.b16 %v1226
        %v1979 = vunpack.c.l.b16 %v1227
        %v1980 = vunpack.c.h.b16 %v1227
        %v1981 = vunpack.c.l.b16 %v1228
        %v1982 = vunpack.c.h.b16 %v1228
        %v1983 = vunpack.c.l.b16 %v1229
        %v1984 = vunpack.c.h.b16 %v1229
        %v1985 = vunpack.c.l.b16 %v1230
        %v1986 = vunpack.c.h.b16 %v1230
        %v1987 = vunpack.c.l.b16 %v1231
        %v1988 = vunpack.c.h.b16 %v1231
        %v1989 = vunpack.c.l.b16 %v1232
        %v1990 = vunpack.c.h.b16 %v1232
        %v1991 = vunpack.c.l.b16 %v1233
        %v1992 = vunpack.c.h.b16 %v1233
        %v1993 = vunpack.c.l.b16 %v1234
        %v1994 = vunpack.c.h.b16 %v1234
        %v1995 = vunpack.c.l.b16 %v1235
        %v1996 = vunpack.c.h.b16 %v1235
        %v1997 = vunpack.c.l.b16 %v1236
        %v1998 = vunpack.c.h.b16 %v1236
        %v1999 = vunpack.c.l.b16 %v1237
        %v2000 = vunpack.c.h.b16 %v1237
        %v2001 = vunpack.c.l.b16 %v1238
        %v2002 = vunpack.c.h.b16 %v1238
        %v2003 = vunpack.c.l.b16 %v1239
        %v2004 = vunpack.c.h.b16 %v1239
        %v2005 = vunpack.c.l.b16 %v1240
        %v2006 = vunpack.c.h.b16 %v1240
        %v2007 = vunpack.c.l.b16 %v1241
        %v2008 = vunpack.c.h.b16 %v1241
        %v2009 = vunpack.c.l.b16 %v1242
        %v2010 = vunpack.c.h.b16 %v1242
        %v2011 = vpack.c.b16 %v1507, %v1499
        %v2012 = vpack.c.b16 %v1508, %v1500
        %v2013 = vpack.c.b16 %v1509, %v1501
        %v2014 = vpack.c.b16 %v1510, %v1502
        %v2015 = vpack.c.b16 %v1511, %v1503
        %v2016 = vpack.c.b16 %v1512, %v1504
        %v2017 = vpack.c.b16 %v1513, %v1505
        %v2018 = vpack.c.b16 %v1514, %v1506
        %v2019 = vpack.c.b16 %v1523, %v1515
        %v2020 = vpack.c.b16 %v1524, %v1516
        %v2021 = vpack.c.b16 %v1525, %v1517
        %v2022 = vpack.c.b16 %v1526, %v1518
        %v2023 = vpack.c.b16 %v1527, %v1519
        %v2024 = vpack.c.b16 %v1528, %v1520
        %v2025 = vpack.c.b16 %v1529, %v1521
        %v2026 = vpack.c.b16 %v1530, %v1522
        %v2027 = vpack.c.b16 %v1539, %v1531
        %v2028 = vpack.c.b16 %v1540, %v1532
        %v2029 = vpack.c.b16 %v1541, %v1533
        %v2030 = vpack.c.b16 %v1542, %v1534
        %v2031 = vpack.c.b16 %v1543, %v1535
        %v2032 = vpack.c.b16 %v1544, %v1536
        %v2033 = vpack.c.b16 %v1545, %v1537
        %v2034 = vpack.c.b16 %v1546, %v1538
        %v2035 = vpack.c.b16 %v1555, %v1547
        %v2036 = vpack.c.b16 %v1556, %v1548
        %v2037 = vpack.c.b16 %v1557, %v1549
        %v2038 = vpack.c.b16 %v1558, %v1550
        %v2039 = vpack.c.b16 %v1559, %v1551
        %v2040 = vpack.c.b16 %v1560, %v1552
        %v2041 = vpack.c.b16 %v1561, %v1553
        %v2042 = vpack.c.b16 %v1562, %v1554
        %v2043 = vpack.c.b16 %v1571, %v1563
        %v2044 = vpack.c.b16 %v1572, %v1564
        %v2045 = vpack.c.b16 %v1573, %v1565
        %v2046 = vpack.c.b16 %v1574, %v1566
        %v2047 = vpack.c.b16 %v1575, %v1567
        %v2048 = vpack.c.b16 %v1576, %v1568
        %v2049 = vpack.c.b16 %v1577, %v1569
        %v2050 = vpack.c.b16 %v1578, %v1570
        %v2051 = vpack.c.b16 %v1587, %v1579
        %v2052 = vpack.c.b16 %v1588, %v1580
        %v2053 = vpack.c.b16 %v1589, %v1581
        %v2054 = vpack.c.b16 %v1590, %v1582
        %v2055 = vpack.c.b16 %v1591, %v1583
        %v2056 = vpack.c.b16 %v1592, %v1584
        %v2057 = vpack.c.b16 %v1593, %v1585
        %v2058 = vpack.c.b16 %v1594, %v1586
        %v2059 = vpack.c.b16 %v1603, %v1595
        %v2060 = vpack.c.b16 %v1604, %v1596
        %v2061 = vpack.c.b16 %v1605, %v1597
        %v2062 = vpack.c.b16 %v1606, %v1598
        %v2063 = vpack.c.b16 %v1607, %v1599
        %v2064 = vpack.c.b16 %v1608, %v1600
        %v2065 = vpack.c.b16 %v1609, %v1601
        %v2066 = vpack.c.b16 %v1610, %v1602
        %v2067 = vpack.c.b16 %v1619, %v1611
        %v2068 = vpack.c.b16 %v1620, %v1612
        %v2069 = vpack.c.b16 %v1621, %v1613
        %v2070 = vpack.c.b16 %v1622, %v1614
        %v2071 = vpack.c.b16 %v1623, %v1615
        %v2072 = vpack.c.b16 %v1624, %v1616
        %v2073 = vpack.c.b16 %v1625, %v1617
        %v2074 = vpack.c.b16 %v1626, %v1618
        %v2075 = vpack.c.b16 %v1635, %v1627
        %v2076 = vpack.c.b16 %v1636, %v1628
        %v2077 = vpack.c.b16 %v1637, %v1629
        %v2078 = vpack.c.b16 %v1638, %v1630
        %v2079 = vpack.c.b16 %v1639, %v1631
        %v2080 = vpack.c.b16 %v1640, %v1632
        %v2081 = vpack.c.b16 %v1641, %v1633
        %v2082 = vpack.c.b16 %v1642, %v1634
        %v2083 = vpack.c.b16 %v1651, %v1643
        %v2084 = vpack.c.b16 %v1652, %v1644
        %v2085 = vpack.c.b16 %v1653, %v1645
        %v2086 = vpack.c.b16 %v1654, %v1646
        %v2087 = vpack.c.b16 %v1655, %v1647
        %v2088 = vpack.c.b16 %v1656, %v1648
        %v2089 = vpack.c.b16 %v1657, %v1649
        %v2090 = vpack.c.b16 %v1658, %v1650
        %v2091 = vpack.c.b16 %v1667, %v1659
        %v2092 = vpack.c.b16 %v1668, %v1660
        %v2093 = vpack.c.b16 %v1669, %v1661
        %v2094 = vpack.c.b16 %v1670, %v1662
        %v2095 = vpack.c.b16 %v1671, %v1663
        %v2096 = vpack.c.b16 %v1672, %v1664
        %v2097 = vpack.c.b16 %v1673, %v1665
        %v2098 = vpack.c.b16 %v1674, %v1666
        %v2099 = vpack.c.b16 %v1683, %v1675
        %v2100 = vpack.c.b16 %v1684, %v1676
        %v2101 = vpack.c.b16 %v1685, %v1677
        %v2102 = vpack.c.b16 %v1686, %v1678
        %v2103 = vpack.c.b16 %v1687, %v1679
        %v2104 = vpack.c.b16 %v1688, %v1680
        %v2105 = vpack.c.b16 %v1689, %v1681
        %v2106 = vpack.c.b16 %v1690, %v1682
        %v2107 = vpack.c.b16 %v1699, %v1691
        %v2108 = vpack.c.b16 %v1700, %v1692
        %v2109 = vpack.c.b16 %v1701, %v1693
        %v2110 = vpack.c.b16 %v1702, %v1694
        %v2111 = vpack.c.b16 %v1703, %v1695
        %v2112 = vpack.c.b16 %v1704, %v1696
        %v2113 = vpack.c.b16 %v1705, %v1697
        %v2114 = vpack.c.b16 %v1706, %v1698
        %v2115 = vpack.c.b16 %v1715, %v1707
        %v2116 = vpack.c.b16 %v1716, %v1708
        %v2117 = vpack.c.b16 %v1717, %v1709
        %v2118 = vpack.c.b16 %v1718, %v1710
        %v2119 = vpack.c.b16 %v1719, %v1711
        %v2120 = vpack.c.b16 %v1720, %v1712
        %v2121 = vpack.c.b16 %v1721, %v1713
        %v2122 = vpack.c.b16 %v1722, %v1714
        %v2123 = vpack.c.b16 %v1731, %v1723
        %v2124 = vpack.c.b16 %v1732, %v1724
        %v2125 = vpack.c.b16 %v1733, %v1725
        %v2126 = vpack.c.b16 %v1734, %v1726
        %v2127 = vpack.c.b16 %v1735, %v1727
        %v2128 = vpack.c.b16 %v1736, %v1728
        %v2129 = vpack.c.b16 %v1737, %v1729
        %v2130 = vpack.c.b16 %v1738, %v1730
        %v2131 = vpack.c.b16 %v1747, %v1739
        %v2132 = vpack.c.b16 %v1748, %v1740
        %v2133 = vpack.c.b16 %v1749, %v1741
        %v2134 = vpack.c.b16 %v1750, %v1742
        %v2135 = vpack.c.b16 %v1751, %v1743
        %v2136 = vpack.c.b16 %v1752, %v1744
        %v2137 = vpack.c.b16 %v1753, %v1745
        %v2138 = vpack.c.b16 %v1754, %v1746
        %v2139 = vpack.c.b16 %v1763, %v1755
        %v2140 = vpack.c.b16 %v1764, %v1756
        %v2141 = vpack.c.b16 %v1765, %v1757
        %v2142 = vpack.c.b16 %v1766, %v1758
        %v2143 = vpack.c.b16 %v1767, %v1759
        %v2144 = vpack.c.b16 %v1768, %v1760
        %v2145 = vpack.c.b16 %v1769, %v1761
        %v2146 = vpack.c.b16 %v1770, %v1762
        %v2147 = vpack.c.b16 %v1779, %v1771
        %v2148 = vpack.c.b16 %v1780, %v1772
        %v2149 = vpack.c.b16 %v1781, %v1773
        %v2150 = vpack.c.b16 %v1782, %v1774
        %v2151 = vpack.c.b16 %v1783, %v1775
        %v2152 = vpack.c.b16 %v1784, %v1776
        %v2153 = vpack.c.b16 %v1785, %v1777
        %v2154 = vpack.c.b16 %v1786, %v1778
        %v2155 = vpack.c.b16 %v1795, %v1787
        %v2156 = vpack.c.b16 %v1796, %v1788
        %v2157 = vpack.c.b16 %v1797, %v1789
        %v2158 = vpack.c.b16 %v1798, %v1790
        %v2159 = vpack.c.b16 %v1799, %v1791
        %v2160 = vpack.c.b16 %v1800, %v1792
        %v2161 = vpack.c.b16 %v1801, %v1793
        %v2162 = vpack.c.b16 %v1802, %v1794
        %v2163 = vpack.c.b16 %v1811, %v1803
        %v2164 = vpack.c.b16 %v1812, %v1804
        %v2165 = vpack.c.b16 %v1813, %v1805
        %v2166 = vpack.c.b16 %v1814, %v1806
        %v2167 = vpack.c.b16 %v1815, %v1807
        %v2168 = vpack.c.b16 %v1816, %v1808
        %v2169 = vpack.c.b16 %v1817, %v1809
        %v2170 = vpack.c.b16 %v1818, %v1810
        %v2171 = vpack.c.b16 %v1827, %v1819
        %v2172 = vpack.c.b16 %v1828, %v1820
        %v2173 = vpack.c.b16 %v1829, %v1821
        %v2174 = vpack.c.b16 %v1830, %v1822
        %v2175 = vpack.c.b16 %v1831, %v1823
        %v2176 = vpack.c.b16 %v1832, %v1824
        %v2177 = vpack.c.b16 %v1833, %v1825
        %v2178 = vpack.c.b16 %v1834, %v1826
        %v2179 = vpack.c.b16 %v1843, %v1835
        %v2180 = vpack.c.b16 %v1844, %v1836
        %v2181 = vpack.c.b16 %v1845, %v1837
        %v2182 = vpack.c.b16 %v1846, %v1838
        %v2183 = vpack.c.b16 %v1847, %v1839
        %v2184 = vpack.c.b16 %v1848, %v1840
        %v2185 = vpack.c.b16 %v1849, %v1841
        %v2186 = vpack.c.b16 %v1850, %v1842
        %v2187 = vpack.c.b16 %v1859, %v1851
        %v2188 = vpack.c.b16 %v1860, %v1852
        %v2189 = vpack.c.b16 %v1861, %v1853
        %v2190 = vpack.c.b16 %v1862, %v1854
        %v2191 = vpack.c.b16 %v1863, %v1855
        %v2192 = vpack.c.b16 %v1864, %v1856
        %v2193 = vpack.c.b16 %v1865, %v1857
        %v2194 = vpack.c.b16 %v1866, %v1858
        %v2195 = vpack.c.b16 %v1875, %v1867
        %v2196 = vpack.c.b16 %v1876, %v1868
        %v2197 = vpack.c.b16 %v1877, %v1869
        %v2198 = vpack.c.b16 %v1878, %v1870
        %v2199 = vpack.c.b16 %v1879, %v1871
        %v2200 = vpack.c.b16 %v1880, %v1872
        %v2201 = vpack.c.b16 %v1881, %v1873
        %v2202 = vpack.c.b16 %v1882, %v1874
        %v2203 = vpack.c.b16 %v1891, %v1883
        %v2204 = vpack.c.b16 %v1892, %v1884
        %v2205 = vpack.c.b16 %v1893, %v1885
        %v2206 = vpack.c.b16 %v1894, %v1886
        %v2207 = vpack.c.b16 %v1895, %v1887
        %v2208 = vpack.c.b16 %v1896, %v1888
        %v2209 = vpack.c.b16 %v1897, %v1889
        %v2210 = vpack.c.b16 %v1898, %v1890
        %v2211 = vpack.c.b16 %v1907, %v1899
        %v2212 = vpack.c.b16 %v1908, %v1900
        %v2213 = vpack.c.b16 %v1909, %v1901
        %v2214 = vpack.c.b16 %v1910, %v1902
        %v2215 = vpack.c.b16 %v1911, %v1903
        %v2216 = vpack.c.b16 %v1912, %v1904
        %v2217 = vpack.c.b16 %v1913, %v1905
        %v2218 = vpack.c.b16 %v1914, %v1906
        %v2219 = vpack.c.b16 %v1923, %v1915
        %v2220 = vpack.c.b16 %v1924, %v1916
        %v2221 = vpack.c.b16 %v1925, %v1917
        %v2222 = vpack.c.b16 %v1926, %v1918
        %v2223 = vpack.c.b16 %v1927, %v1919
        %v2224 = vpack.c.b16 %v1928, %v1920
        %v2225 = vpack.c.b16 %v1929, %v1921
        %v2226 = vpack.c.b16 %v1930, %v1922
        %v2227 = vpack.c.b16 %v1939, %v1931
        %v2228 = vpack.c.b16 %v1940, %v1932
        %v2229 = vpack.c.b16 %v1941, %v1933
        %v2230 = vpack.c.b16 %v1942, %v1934
        %v2231 = vpack.c.b16 %v1943, %v1935
        %v2232 = vpack.c.b16 %v1944, %v1936
        %v2233 = vpack.c.b16 %v1945, %v1937
        %v2234 = vpack.c.b16 %v1946, %v1938
        %v2235 = vpack.c.b16 %v1955, %v1947
        %v2236 = vpack.c.b16 %v1956, %v1948
        %v2237 = vpack.c.b16 %v1957, %v1949
        %v2238 = vpack.c.b16 %v1958, %v1950
        %v2239 = vpack.c.b16 %v1959, %v1951
        %v2240 = vpack.c.b16 %v1960, %v1952
        %v2241 = vpack.c.b16 %v1961, %v1953
        %v2242 = vpack.c.b16 %v1962, %v1954
        %v2243 = vpack.c.b16 %v1971, %v1963
        %v2244 = vpack.c.b16 %v1972, %v1964
        %v2245 = vpack.c.b16 %v1973, %v1965
        %v2246 = vpack.c.b16 %v1974, %v1966
        %v2247 = vpack.c.b16 %v1975, %v1967
        %v2248 = vpack.c.b16 %v1976, %v1968
        %v2249 = vpack.c.b16 %v1977, %v1969
        %v2250 = vpack.c.b16 %v1978, %v1970
        %v2251 = vpack.c.b16 %v1987, %v1979
        %v2252 = vpack.c.b16 %v1988, %v1980
        %v2253 = vpack.c.b16 %v1989, %v1981
        %v2254 = vpack.c.b16 %v1990, %v1982
        %v2255 = vpack.c.b16 %v1991, %v1983
        %v2256 = vpack.c.b16 %v1992, %v1984
        %v2257 = vpack.c.b16 %v1993, %v1985
        %v2258 = vpack.c.b16 %v1994, %v1986
        %v2259 = vpack.c.b16 %v2003, %v1995
        %v2260 = vpack.c.b16 %v2004, %v1996
        %v2261 = vpack.c.b16 %v2005, %v1997
        %v2262 = vpack.c.b16 %v2006, %v1998
        %v2263 = vpack.c.b16 %v2007, %v1999
        %v2264 = vpack.c.b16 %v2008, %v2000
        %v2265 = vpack.c.b16 %v2009, %v2001
        %v2266 = vpack.c.b16 %v2010, %v2002
        %v2651 = vunpack.c.l.b16 %v795
        %v2652 = vunpack.c.l.b16 %v796
        %v2653 = vunpack.c.l.b16 %v797
        %v2654 = vunpack.c.l.b16 %v798
        %v2655 = vunpack.c.l.b16 %v799
        %v2656 = vunpack.c.l.b16 %v800
        %v2657 = vunpack.c.l.b16 %v801
        %v2658 = vunpack.c.l.b16 %v802
        %v2659 = vunpack.c.l.b16 %v803
        %v2660 = vunpack.c.l.b16 %v804
        %v2661 = vunpack.c.l.b16 %v805
        %v2662 = vunpack.c.l.b16 %v806
        %v2663 = vunpack.c.l.b16 %v807
        %v2664 = vunpack.c.l.b16 %v808
        %v2665 = vunpack.c.l.b16 %v809
        %v2666 = vunpack.c.l.b16 %v810
        %v2667 = vunpack.c.l.b16 %v811
        %v2668 = vunpack.c.l.b16 %v812
        %v2669 = vunpack.c.l.b16 %v813
        %v2670 = vunpack.c.l.b16 %v814
        %v2671 = vunpack.c.l.b16 %v815
        %v2672 = vunpack.c.l.b16 %v816
        %v2673 = vunpack.c.l.b16 %v817
        %v2674 = vunpack.c.l.b16 %v818
        %v2675 = vunpack.c.l.b16 %v819
        %v2676 = vunpack.c.l.b16 %v820
        %v2677 = vunpack.c.l.b16 %v821
        %v2678 = vunpack.c.l.b16 %v822
        %v2679 = vunpack.c.l.b16 %v823
        %v2680 = vunpack.c.l.b16 %v824
        %v2681 = vunpack.c.l.b16 %v825
        %v2682 = vunpack.c.l.b16 %v826
        %v2683 = vunpack.c.l.b16 %v827
        %v2684 = vunpack.c.l.b16 %v828
        %v2685 = vunpack.c.l.b16 %v829
        %v2686 = vunpack.c.l.b16 %v830
        %v2687 = vunpack.c.l.b16 %v831
        %v2688 = vunpack.c.l.b16 %v832
        %v2689 = vunpack.c.l.b16 %v833
        %v2690 = vunpack.c.l.b16 %v834
        %v2691 = vunpack.c.l.b16 %v835
        %v2692 = vunpack.c.l.b16 %v836
        %v2693 = vunpack.c.l.b16 %v837
        %v2694 = vunpack.c.l.b16 %v838
        %v2695 = vunpack.c.l.b16 %v839
        %v2696 = vunpack.c.l.b16 %v840
        %v2697 = vunpack.c.l.b16 %v841
        %v2698 = vunpack.c.l.b16 %v842
        %v2699 = vunpack.c.l.b16 %v843
        %v2700 = vunpack.c.l.b16 %v844
        %v2701 = vunpack.c.l.b16 %v845
        %v2702 = vunpack.c.l.b16 %v846
        %v2703 = vunpack.c.l.b16 %v847
        %v2704 = vunpack.c.l.b16 %v848
        %v2705 = vunpack.c.l.b16 %v849
        %v2706 = vunpack.c.l.b16 %v850
        %v2707 = vunpack.c.l.b16 %v851
        %v2708 = vunpack.c.l.b16 %v852
        %v2709 = vunpack.c.l.b16 %v853
        %v2710 = vunpack.c.l.b16 %v854
        %v2711 = vunpack.c.l.b16 %v855
        %v2712 = vunpack.c.l.b16 %v856
        %v2713 = vunpack.c.l.b16 %v857
        %v2714 = vunpack.c.l.b16 %v858
        %v2715 = vunpack.c.l.b16 %v859
        %v2716 = vunpack.c.l.b16 %v860
        %v2717 = vunpack.c.l.b16 %v861
        %v2718 = vunpack.c.l.b16 %v862
        %v2719 = vunpack.c.l.b16 %v863
        %v2720 = vunpack.c.l.b16 %v864
        %v2721 = vunpack.c.l.b16 %v865
        %v2722 = vunpack.c.l.b16 %v866
        %v2723 = vunpack.c.l.b16 %v867
        %v2724 = vunpack.c.l.b16 %v868
        %v2725 = vunpack.c.l.b16 %v869
        %v2726 = vunpack.c.l.b16 %v870
        %v2727 = vunpack.c.l.b16 %v871
        %v2728 = vunpack.c.l.b16 %v872
        %v2729 = vunpack.c.l.b16 %v873
        %v2730 = vunpack.c.l.b16 %v874
        %v2731 = vunpack.c.l.b16 %v875
        %v2732 = vunpack.c.l.b16 %v876
        %v2733 = vunpack.c.l.b16 %v877
        %v2734 = vunpack.c.l.b16 %v878
        %v2735 = vunpack.c.l.b16 %v879
        %v2736 = vunpack.c.l.b16 %v880
        %v2737 = vunpack.c.l.b16 %v881
        %v2738 = vunpack.c.l.b16 %v882
        %v2739 = vunpack.c.l.b16 %v883
        %v2740 = vunpack.c.l.b16 %v884
        %v2741 = vunpack.c.l.b16 %v885
        %v2742 = vunpack.c.l.b16 %v886
        %v2743 = vunpack.c.l.b16 %v887
        %v2744 = vunpack.c.l.b16 %v888
        %v2745 = vunpack.c.l.b16 %v889
        %v2746 = vunpack.c.l.b16 %v890
        %v2747 = vunpack.c.l.b16 %v891
        %v2748 = vunpack.c.l.b16 %v892
        %v2749 = vunpack.c.l.b16 %v893
        %v2750 = vunpack.c.l.b16 %v894
        %v2751 = vunpack.c.l.b16 %v895
        %v2752 = vunpack.c.l.b16 %v896
        %v2753 = vunpack.c.l.b16 %v897
        %v2754 = vunpack.c.l.b16 %v898
        %v2755 = vunpack.c.l.b16 %v899
        %v2756 = vunpack.c.l.b16 %v900
        %v2757 = vunpack.c.l.b16 %v901
        %v2758 = vunpack.c.l.b16 %v902
        %v2759 = vunpack.c.l.b16 %v903
        %v2760 = vunpack.c.l.b16 %v904
        %v2761 = vunpack.c.l.b16 %v905
        %v2762 = vunpack.c.l.b16 %v906
        %v2763 = vunpack.c.l.b16 %v907
        %v2764 = vunpack.c.l.b16 %v908
        %v2765 = vunpack.c.l.b16 %v909
        %v2766 = vunpack.c.l.b16 %v910
        %v2767 = vunpack.c.l.b16 %v911
        %v2768 = vunpack.c.l.b16 %v912
        %v2769 = vunpack.c.l.b16 %v913
        %v2770 = vunpack.c.l.b16 %v914
        %v2771 = vunpack.c.l.b16 %v915
        %v2772 = vunpack.c.l.b16 %v916
        %v2773 = vunpack.c.l.b16 %v917
        %v2774 = vunpack.c.l.b16 %v918
        %v2775 = vunpack.c.l.b16 %v919
        %v2776 = vunpack.c.l.b16 %v920
        %v2777 = vunpack.c.l.b16 %v921
        %v2778 = vunpack.c.l.b16 %v922
        %v2779 = vpack.c.b16 %v2652, %v2651
        %v2780 = vpack.c.b16 %v2654, %v2653
        %v2781 = vpack.c.b16 %v2656, %v2655
        %v2782 = vpack.c.b16 %v2658, %v2657
        %v2783 = vpack.c.b16 %v2660, %v2659
        %v2784 = vpack.c.b16 %v2662, %v2661
        %v2785 = vpack.c.b16 %v2664, %v2663
        %v2786 = vpack.c.b16 %v2666, %v2665
        %v2787 = vpack.c.b16 %v2668, %v2667
        %v2788 = vpack.c.b16 %v2670, %v2669
        %v2789 = vpack.c.b16 %v2672, %v2671
        %v2790 = vpack.c.b16 %v2674, %v2673
        %v2791 = vpack.c.b16 %v2676, %v2675
        %v2792 = vpack.c.b16 %v2678, %v2677
        %v2793 = vpack.c.b16 %v2680, %v2679
        %v2794 = vpack.c.b16 %v2682, %v2681
        %v2795 = vpack.c.b16 %v2684, %v2683
        %v2796 = vpack.c.b16 %v2686, %v2685
        %v2797 = vpack.c.b16 %v2688, %v2687
        %v2798 = vpack.c.b16 %v2690, %v2689
        %v2799 = vpack.c.b16 %v2692, %v2691
        %v2800 = vpack.c.b16 %v2694, %v2693
        %v2801 = vpack.c.b16 %v2696, %v2695
        %v2802 = vpack.c.b16 %v2698, %v2697
        %v2803 = vpack.c.b16 %v2700, %v2699
        %v2804 = vpack.c.b16 %v2702, %v2701
        %v2805 = vpack.c.b16 %v2704, %v2703
        %v2806 = vpack.c.b16 %v2706, %v2705
        %v2807 = vpack.c.b16 %v2708, %v2707
        %v2808 = vpack.c.b16 %v2710, %v2709
        %v2809 = vpack.c.b16 %v2712, %v2711
        %v2810 = vpack.c.b16 %v2714, %v2713
        %v2811 = vpack.c.b16 %v2716, %v2715
        %v2812 = vpack.c.b16 %v2718, %v2717
        %v2813 = vpack.c.b16 %v2720, %v2719
        %v2814 = vpack.c.b16 %v2722, %v2721
        %v2815 = vpack.c.b16 %v2724, %v2723
        %v2816 = vpack.c.b16 %v2726, %v2725
        %v2817 = vpack.c.b16 %v2728, %v2727
        %v2818 = vpack.c.b16 %v2730, %v2729
        %v2819 = vpack.c.b16 %v2732, %v2731
        %v2820 = vpack.c.b16 %v2734, %v2733
        %v2821 = vpack.c.b16 %v2736, %v2735
        %v2822 = vpack.c.b16 %v2738, %v2737
        %v2823 = vpack.c.b16 %v2740, %v2739
        %v2824 = vpack.c.b16 %v2742, %v2741
        %v2825 = vpack.c.b16 %v2744, %v2743
        %v2826 = vpack.c.b16 %v2746, %v2745
        %v2827 = vpack.c.b16 %v2748, %v2747
        %v2828 = vpack.c.b16 %v2750, %v2749
        %v2829 = vpack.c.b16 %v2752, %v2751
        %v2830 = vpack.c.b16 %v2754, %v2753
        %v2831 = vpack.c.b16 %v2756, %v2755
        %v2832 = vpack.c.b16 %v2758, %v2757
        %v2833 = vpack.c.b16 %v2760, %v2759
        %v2834 = vpack.c.b16 %v2762, %v2761
        %v2835 = vpack.c.b16 %v2764, %v2763
        %v2836 = vpack.c.b16 %v2766, %v2765
        %v2837 = vpack.c.b16 %v2768, %v2767
        %v2838 = vpack.c.b16 %v2770, %v2769
        %v2839 = vpack.c.b16 %v2772, %v2771
        %v2840 = vpack.c.b16 %v2774, %v2773
        %v2841 = vpack.c.b16 %v2776, %v2775
        %v2842 = vpack.c.b16 %v2778, %v2777
        %2907 = vmatprep.subr.bf16.mxu0 0
        %2908 = vmatpush1.bf16.msra.mxu0 %v2779
        %2909 = vmatprep.subr.bf16.mxu0 0
        %2910 = vmatpush1.bf16.msra.mxu0 %v2780
        %2911 = vmatprep.subr.bf16.mxu0 0
        %2912 = vmatpush1.bf16.msra.mxu0 %v2781
        %2913 = vmatprep.subr.bf16.mxu0 0
        %2914 = vmatpush1.bf16.msra.mxu0 %v2782
        %2915 = vmatprep.subr.bf16.mxu0 0
        %2916 = vmatpush1.bf16.msra.mxu0 %v2783
        %2917 = vmatprep.subr.bf16.mxu0 0
        %2918 = vmatpush1.bf16.msra.mxu0 %v2784
        %2919 = vmatprep.subr.bf16.mxu0 0
        %2920 = vmatpush1.bf16.msra.mxu0 %v2785
        %2921 = vmatprep.subr.bf16.mxu0 0
        %2922 = vmatpush1.bf16.msra.mxu0 %v2786
        %2923 = vmatprep.subr.bf16.mxu0 0
        %2924 = vmatpush1.bf16.msra.mxu0 %v2787
        %2925 = vmatprep.subr.bf16.mxu0 0
        %2926 = vmatpush1.bf16.msra.mxu0 %v2788
        %2927 = vmatprep.subr.bf16.mxu0 0
        %2928 = vmatpush1.bf16.msra.mxu0 %v2789
        %2929 = vmatprep.subr.bf16.mxu0 0
        %2930 = vmatpush1.bf16.msra.mxu0 %v2790
        %2931 = vmatprep.subr.bf16.mxu0 0
        %2932 = vmatpush1.bf16.msra.mxu0 %v2791
        %2933 = vmatprep.subr.bf16.mxu0 0
        %2934 = vmatpush1.bf16.msra.mxu0 %v2792
        %2935 = vmatprep.subr.bf16.mxu0 0
        %2936 = vmatpush1.bf16.msra.mxu0 %v2793
        %2937 = vmatprep.subr.bf16.mxu0 0
        %2938 = vmatpush1.bf16.msra.mxu0 %v2794
        %2939 = vmatprep.mubr.bf16.mxu0 %v2012
        %2940 = vmatmul.mubr.bf16.gmra.mrb[0].mxu0 %v2011
        %v2941 = vpop.f32.mrb[0].mxu0
        %v2942 = vadd.f32 0.0, %v2941
        %v2943 = vpop.f32.mrb[0].mxu0
        %v2944 = vpop.f32.mrb[0].mxu0
        %v2945 = vadd.f32 0.0, %v2944
        %v2946 = vpop.f32.mrb[0].mxu0
        %2947 = vmatprep.mubr.bf16.mxu0 %v2020
        %2948 = vmatmul.mubr.bf16.gmra.mrb[0].mxu0 %v2019
        %v2949 = vpop.f32.mrb[0].mxu0
        %v2950 = vadd.f32 0.0, %v2949
        %v2951 = vpop.f32.mrb[0].mxu0
        %v2952 = vpop.f32.mrb[0].mxu0
        %v2953 = vadd.f32 0.0, %v2952
        %v2954 = vpop.f32.mrb[0].mxu0
        %2955 = vmatprep.mubr.bf16.mxu0 %v2028
        %2956 = vmatmul.mubr.bf16.gmra.mrb[0].mxu0 %v2027
        %v2957 = vpop.f32.mrb[0].mxu0
        %v2958 = vadd.f32 0.0, %v2957
        %v2959 = vpop.f32.mrb[0].mxu0
        %v2960 = vpop.f32.mrb[0].mxu0
        %v2961 = vadd.f32 0.0, %v2960
        %v2962 = vpop.f32.mrb[0].mxu0
        %2963 = vmatprep.mubr.bf16.mxu0 %v2036
        %2964 = vmatmul.mubr.bf16.gmra.mrb[0].mxu0 %v2035
        %v2965 = vpop.f32.mrb[0].mxu0
        %v2966 = vadd.f32 0.0, %v2965
        %v2967 = vpop.f32.mrb[0].mxu0
        %v2968 = vpop.f32.mrb[0].mxu0
        %v2969 = vadd.f32 0.0, %v2968
        %v2970 = vpop.f32.mrb[0].mxu0
        %2971 = vmatprep.mubr.bf16.mxu0 %v2044
        %2972 = vmatmul.mubr.bf16.gmra.mrb[0].mxu0 %v2043
        %v2973 = vpop.f32.mrb[0].mxu0
        %v2974 = vadd.f32 0.0, %v2973
        %v2975 = vpop.f32.mrb[0].mxu0
        %v2976 = vpop.f32.mrb[0].mxu0
        %v2977 = vadd.f32 0.0, %v2976
        %v2978 = vpop.f32.mrb[0].mxu0
        %2979 = vmatprep.mubr.bf16.mxu0 %v2052
        %2980 = vmatmul.mubr.bf16.gmra.mrb[0].mxu0 %v2051
        %v2981 = vpop.f32.mrb[0].mxu0
        %v2982 = vadd.f32 0.0, %v2981
        %v2983 = vpop.f32.mrb[0].mxu0
        %v2984 = vpop.f32.mrb[0].mxu0
        %v2985 = vadd.f32 0.0, %v2984
        %v2986 = vpop.f32.mrb[0].mxu0
        %2987 = vmatprep.mubr.bf16.mxu0 %v2060
        %2988 = vmatmul.mubr.bf16.gmra.mrb[0].mxu0 %v2059
        %v2989 = vpop.f32.mrb[0].mxu0
        %v2990 = vadd.f32 0.0, %v2989
        %v2991 = vpop.f32.mrb[0].mxu0
        %v2992 = vpop.f32.mrb[0].mxu0
        %v2993 = vadd.f32 0.0, %v2992
        %v2994 = vpop.f32.mrb[0].mxu0
        %2995 = vmatprep.mubr.bf16.mxu0 %v2068
        %2996 = vmatmul.mubr.bf16.gmra.mrb[0].mxu0 %v2067
        %v2997 = vpop.f32.mrb[0].mxu0
        %v2998 = vadd.f32 0.0, %v2997
        %v2999 = vpop.f32.mrb[0].mxu0
        %v3000 = vpop.f32.mrb[0].mxu0
        %v3001 = vadd.f32 0.0, %v3000
        %v3002 = vpop.f32.mrb[0].mxu0
        %3003 = vmatprep.mubr.bf16.mxu0 %v2076
        %3004 = vmatmul.mubr.bf16.gmra.mrb[0].mxu0 %v2075
        %v3005 = vpop.f32.mrb[0].mxu0
        %v3006 = vadd.f32 0.0, %v3005
        %v3007 = vpop.f32.mrb[0].mxu0
        %v3008 = vpop.f32.mrb[0].mxu0
        %v3009 = vadd.f32 0.0, %v3008
        %v3010 = vpop.f32.mrb[0].mxu0
        %3011 = vmatprep.mubr.bf16.mxu0 %v2084
        %3012 = vmatmul.mubr.bf16.gmra.mrb[0].mxu0 %v2083
        %v3013 = vpop.f32.mrb[0].mxu0
        %v3014 = vadd.f32 0.0, %v3013
        %v3015 = vpop.f32.mrb[0].mxu0
        %v3016 = vpop.f32.mrb[0].mxu0
        %v3017 = vadd.f32 0.0, %v3016
        %v3018 = vpop.f32.mrb[0].mxu0
        %3019 = vmatprep.mubr.bf16.mxu0 %v2092
        %3020 = vmatmul.mubr.bf16.gmra.mrb[0].mxu0 %v2091
        %v3021 = vpop.f32.mrb[0].mxu0
        %v3022 = vadd.f32 0.0, %v3021
        %v3023 = vpop.f32.mrb[0].mxu0
        %v3024 = vpop.f32.mrb[0].mxu0
        %v3025 = vadd.f32 0.0, %v3024
        %v3026 = vpop.f32.mrb[0].mxu0
        %3027 = vmatprep.mubr.bf16.mxu0 %v2100
        %3028 = vmatmul.mubr.bf16.gmra.mrb[0].mxu0 %v2099
        %v3029 = vpop.f32.mrb[0].mxu0
        %v3030 = vadd.f32 0.0, %v3029
        %v3031 = vpop.f32.mrb[0].mxu0
        %v3032 = vpop.f32.mrb[0].mxu0
        %v3033 = vadd.f32 0.0, %v3032
        %v3034 = vpop.f32.mrb[0].mxu0
        %3035 = vmatprep.mubr.bf16.mxu0 %v2108
        %3036 = vmatmul.mubr.bf16.gmra.mrb[0].mxu0 %v2107
        %v3037 = vpop.f32.mrb[0].mxu0
        %v3038 = vadd.f32 0.0, %v3037
        %v3039 = vpop.f32.mrb[0].mxu0
        %v3040 = vpop.f32.mrb[0].mxu0
        %v3041 = vadd.f32 0.0, %v3040
        %v3042 = vpop.f32.mrb[0].mxu0
        %3043 = vmatprep.mubr.bf16.mxu0 %v2116
        %3044 = vmatmul.mubr.bf16.gmra.mrb[0].mxu0 %v2115
        %v3045 = vpop.f32.mrb[0].mxu0
        %v3046 = vadd.f32 0.0, %v3045
        %v3047 = vpop.f32.mrb[0].mxu0
        %v3048 = vpop.f32.mrb[0].mxu0
        %v3049 = vadd.f32 0.0, %v3048
        %v3050 = vpop.f32.mrb[0].mxu0
        %3051 = vmatprep.mubr.bf16.mxu0 %v2124
        %3052 = vmatmul.mubr.bf16.gmra.mrb[0].mxu0 %v2123
        %v3053 = vpop.f32.mrb[0].mxu0
        %v3054 = vadd.f32 0.0, %v3053
        %v3055 = vpop.f32.mrb[0].mxu0
        %v3056 = vpop.f32.mrb[0].mxu0
        %v3057 = vadd.f32 0.0, %v3056
        %v3058 = vpop.f32.mrb[0].mxu0
        %3059 = vmatprep.mubr.bf16.mxu0 %v2132
        %3060 = vmatmul.mubr.bf16.gmra.mrb[0].mxu0 %v2131
        %v3061 = vpop.f32.mrb[0].mxu0
        %v3062 = vadd.f32 0.0, %v3061
        %v3063 = vpop.f32.mrb[0].mxu0
        %v3064 = vpop.f32.mrb[0].mxu0
        %v3065 = vadd.f32 0.0, %v3064
        %v3066 = vpop.f32.mrb[0].mxu0
        %3067 = vmatprep.mubr.bf16.mxu0 %v2140
        %3068 = vmatmul.mubr.bf16.gmra.mrb[0].mxu0 %v2139
        %v3069 = vpop.f32.mrb[0].mxu0
        %v3070 = vadd.f32 0.0, %v3069
        %v3071 = vpop.f32.mrb[0].mxu0
        %v3072 = vpop.f32.mrb[0].mxu0
        %v3073 = vadd.f32 0.0, %v3072
        %v3074 = vpop.f32.mrb[0].mxu0
        %3075 = vmatprep.mubr.bf16.mxu0 %v2148
        %3076 = vmatmul.mubr.bf16.gmra.mrb[0].mxu0 %v2147
        %v3077 = vpop.f32.mrb[0].mxu0
        %v3078 = vadd.f32 0.0, %v3077
        %v3079 = vpop.f32.mrb[0].mxu0
        %v3080 = vpop.f32.mrb[0].mxu0
        %v3081 = vadd.f32 0.0, %v3080
        %v3082 = vpop.f32.mrb[0].mxu0
        %3083 = vmatprep.mubr.bf16.mxu0 %v2156
        %3084 = vmatmul.mubr.bf16.gmra.mrb[0].mxu0 %v2155
        %v3085 = vpop.f32.mrb[0].mxu0
        %v3086 = vadd.f32 0.0, %v3085
        %v3087 = vpop.f32.mrb[0].mxu0
        %v3088 = vpop.f32.mrb[0].mxu0
        %v3089 = vadd.f32 0.0, %v3088
        %v3090 = vpop.f32.mrb[0].mxu0
        %3091 = vmatprep.mubr.bf16.mxu0 %v2164
        %3092 = vmatmul.mubr.bf16.gmra.mrb[0].mxu0 %v2163
        %v3093 = vpop.f32.mrb[0].mxu0
        %v3094 = vadd.f32 0.0, %v3093
        %v3095 = vpop.f32.mrb[0].mxu0
        %v3096 = vpop.f32.mrb[0].mxu0
        %v3097 = vadd.f32 0.0, %v3096
        %v3098 = vpop.f32.mrb[0].mxu0
        %3099 = vmatprep.mubr.bf16.mxu0 %v2172
        %3100 = vmatmul.mubr.bf16.gmra.mrb[0].mxu0 %v2171
        %v3101 = vpop.f32.mrb[0].mxu0
        %v3102 = vadd.f32 0.0, %v3101
        %v3103 = vpop.f32.mrb[0].mxu0
        %v3104 = vpop.f32.mrb[0].mxu0
        %v3105 = vadd.f32 0.0, %v3104
        %v3106 = vpop.f32.mrb[0].mxu0
        %3107 = vmatprep.mubr.bf16.mxu0 %v2180
        %3108 = vmatmul.mubr.bf16.gmra.mrb[0].mxu0 %v2179
        %v3109 = vpop.f32.mrb[0].mxu0
        %v3110 = vadd.f32 0.0, %v3109
        %v3111 = vpop.f32.mrb[0].mxu0
        %v3112 = vpop.f32.mrb[0].mxu0
        %v3113 = vadd.f32 0.0, %v3112
        %v3114 = vpop.f32.mrb[0].mxu0
        %3115 = vmatprep.mubr.bf16.mxu0 %v2188
        %3116 = vmatmul.mubr.bf16.gmra.mrb[0].mxu0 %v2187
        %v3117 = vpop.f32.mrb[0].mxu0
        %v3118 = vadd.f32 0.0, %v3117
        %v3119 = vpop.f32.mrb[0].mxu0
        %v3120 = vpop.f32.mrb[0].mxu0
        %v3121 = vadd.f32 0.0, %v3120
        %v3122 = vpop.f32.mrb[0].mxu0
        %3123 = vmatprep.mubr.bf16.mxu0 %v2196
        %3124 = vmatmul.mubr.bf16.gmra.mrb[0].mxu0 %v2195
        %v3125 = vpop.f32.mrb[0].mxu0
        %v3126 = vadd.f32 0.0, %v3125
        %v3127 = vpop.f32.mrb[0].mxu0
        %v3128 = vpop.f32.mrb[0].mxu0
        %v3129 = vadd.f32 0.0, %v3128
        %v3130 = vpop.f32.mrb[0].mxu0
        %3131 = vmatprep.mubr.bf16.mxu0 %v2204
        %3132 = vmatmul.mubr.bf16.gmra.mrb[0].mxu0 %v2203
        %v3133 = vpop.f32.mrb[0].mxu0
        %v3134 = vadd.f32 0.0, %v3133
        %v3135 = vpop.f32.mrb[0].mxu0
        %v3136 = vpop.f32.mrb[0].mxu0
        %v3137 = vadd.f32 0.0, %v3136
        %v3138 = vpop.f32.mrb[0].mxu0
        %3139 = vmatprep.mubr.bf16.mxu0 %v2212
        %3140 = vmatmul.mubr.bf16.gmra.mrb[0].mxu0 %v2211
        %v3141 = vpop.f32.mrb[0].mxu0
        %v3142 = vadd.f32 0.0, %v3141
        %v3143 = vpop.f32.mrb[0].mxu0
        %v3144 = vpop.f32.mrb[0].mxu0
        %v3145 = vadd.f32 0.0, %v3144
        %v3146 = vpop.f32.mrb[0].mxu0
        %3147 = vmatprep.mubr.bf16.mxu0 %v2220
        %3148 = vmatmul.mubr.bf16.gmra.mrb[0].mxu0 %v2219
        %v3149 = vpop.f32.mrb[0].mxu0
        %v3150 = vadd.f32 0.0, %v3149
        %v3151 = vpop.f32.mrb[0].mxu0
        %v3152 = vpop.f32.mrb[0].mxu0
        %v3153 = vadd.f32 0.0, %v3152
        %v3154 = vpop.f32.mrb[0].mxu0
        %3155 = vmatprep.mubr.bf16.mxu0 %v2228
        %3156 = vmatmul.mubr.bf16.gmra.mrb[0].mxu0 %v2227
        %v3157 = vpop.f32.mrb[0].mxu0
        %v3158 = vadd.f32 0.0, %v3157
        %v3159 = vpop.f32.mrb[0].mxu0
        %v3160 = vpop.f32.mrb[0].mxu0
        %v3161 = vadd.f32 0.0, %v3160
        %v3162 = vpop.f32.mrb[0].mxu0
        %3163 = vmatprep.mubr.bf16.mxu0 %v2236
        %3164 = vmatmul.mubr.bf16.gmra.mrb[0].mxu0 %v2235
        %v3165 = vpop.f32.mrb[0].mxu0
        %v3166 = vadd.f32 0.0, %v3165
        %v3167 = vpop.f32.mrb[0].mxu0
        %v3168 = vpop.f32.mrb[0].mxu0
        %v3169 = vadd.f32 0.0, %v3168
        %v3170 = vpop.f32.mrb[0].mxu0
        %3171 = vmatprep.mubr.bf16.mxu0 %v2244
        %3172 = vmatmul.mubr.bf16.gmra.mrb[0].mxu0 %v2243
        %v3173 = vpop.f32.mrb[0].mxu0
        %v3174 = vadd.f32 0.0, %v3173
        %v3175 = vpop.f32.mrb[0].mxu0
        %v3176 = vpop.f32.mrb[0].mxu0
        %v3177 = vadd.f32 0.0, %v3176
        %v3178 = vpop.f32.mrb[0].mxu0
        %3179 = vmatprep.mubr.bf16.mxu0 %v2252
        %3180 = vmatmul.mubr.bf16.gmra.mrb[0].mxu0 %v2251
        %v3181 = vpop.f32.mrb[0].mxu0
        %v3182 = vadd.f32 0.0, %v3181
        %v3183 = vpop.f32.mrb[0].mxu0
        %v3184 = vpop.f32.mrb[0].mxu0
        %v3185 = vadd.f32 0.0, %v3184
        %v3186 = vpop.f32.mrb[0].mxu0
        %3187 = vmatprep.mubr.bf16.mxu0 %v2260
        %3188 = vmatmul.mubr.bf16.gmra.mrb[0].mxu0 %v2259
        %v3189 = vpop.f32.mrb[0].mxu0
        %v3190 = vadd.f32 0.0, %v3189
        %v3191 = vpop.f32.mrb[0].mxu0
        %v3192 = vpop.f32.mrb[0].mxu0
        %v3193 = vadd.f32 0.0, %v3192
        %v3194 = vpop.f32.mrb[0].mxu0
        %3195 = vdwg.mxu0
        %3196 = vmatprep.subr.bf16.mxu0 0
        %3197 = vmatpush1.bf16.msra.mxu0 %v2795
        %3198 = vmatprep.subr.bf16.mxu0 0
        %3199 = vmatpush1.bf16.msra.mxu0 %v2796
        %3200 = vmatprep.subr.bf16.mxu0 0
        %3201 = vmatpush1.bf16.msra.mxu0 %v2797
        %3202 = vmatprep.subr.bf16.mxu0 0
        %3203 = vmatpush1.bf16.msra.mxu0 %v2798
        %3204 = vmatprep.subr.bf16.mxu0 0
        %3205 = vmatpush1.bf16.msra.mxu0 %v2799
        %3206 = vmatprep.subr.bf16.mxu0 0
        %3207 = vmatpush1.bf16.msra.mxu0 %v2800
        %3208 = vmatprep.subr.bf16.mxu0 0
        %3209 = vmatpush1.bf16.msra.mxu0 %v2801
        %3210 = vmatprep.subr.bf16.mxu0 0
        %3211 = vmatpush1.bf16.msra.mxu0 %v2802
        %3212 = vmatprep.subr.bf16.mxu0 0
        %3213 = vmatpush1.bf16.msra.mxu0 %v2803
        %3214 = vmatprep.subr.bf16.mxu0 0
        %3215 = vmatpush1.bf16.msra.mxu0 %v2804
        %3216 = vmatprep.subr.bf16.mxu0 0
        %3217 = vmatpush1.bf16.msra.mxu0 %v2805
        %3218 = vmatprep.subr.bf16.mxu0 0
        %3219 = vmatpush1.bf16.msra.mxu0 %v2806
        %3220 = vmatprep.subr.bf16.mxu0 0
        %3221 = vmatpush1.bf16.msra.mxu0 %v2807
        %3222 = vmatprep.subr.bf16.mxu0 0
        %3223 = vmatpush1.bf16.msra.mxu0 %v2808
        %3224 = vmatprep.subr.bf16.mxu0 0
        %3225 = vmatpush1.bf16.msra.mxu0 %v2809
        %3226 = vmatprep.subr.bf16.mxu0 0
        %3227 = vmatpush1.bf16.msra.mxu0 %v2810
        %3228 = vmatprep.mubr.bf16.mxu0 %v2014
        %3229 = vmatmul.mubr.bf16.gmra.mrb[0].mxu0 %v2013
        %v3230 = vpop.f32.mrb[0].mxu0
        %v3231 = vadd.f32 %v2942, %v3230
        %v3232 = vpop.f32.mrb[0].mxu0
        %v3233 = vpop.f32.mrb[0].mxu0
        %v3234 = vadd.f32 %v2945, %v3233
        %v3235 = vpop.f32.mrb[0].mxu0
        %3236 = vmatprep.mubr.bf16.mxu0 %v2022
        %3237 = vmatmul.mubr.bf16.gmra.mrb[0].mxu0 %v2021
        %v3238 = vpop.f32.mrb[0].mxu0
        %v3239 = vadd.f32 %v2950, %v3238
        %v3240 = vpop.f32.mrb[0].mxu0
        %v3241 = vpop.f32.mrb[0].mxu0
        %v3242 = vadd.f32 %v2953, %v3241
        %v3243 = vpop.f32.mrb[0].mxu0
        %3244 = vmatprep.mubr.bf16.mxu0 %v2030
        %3245 = vmatmul.mubr.bf16.gmra.mrb[0].mxu0 %v2029
        %v3246 = vpop.f32.mrb[0].mxu0
        %v3247 = vadd.f32 %v2958, %v3246
        %v3248 = vpop.f32.mrb[0].mxu0
        %v3249 = vpop.f32.mrb[0].mxu0
        %v3250 = vadd.f32 %v2961, %v3249
        %v3251 = vpop.f32.mrb[0].mxu0
        %3252 = vmatprep.mubr.bf16.mxu0 %v2038
        %3253 = vmatmul.mubr.bf16.gmra.mrb[0].mxu0 %v2037
        %v3254 = vpop.f32.mrb[0].mxu0
        %v3255 = vadd.f32 %v2966, %v3254
        %v3256 = vpop.f32.mrb[0].mxu0
        %v3257 = vpop.f32.mrb[0].mxu0
        %v3258 = vadd.f32 %v2969, %v3257
        %v3259 = vpop.f32.mrb[0].mxu0
        %3260 = vmatprep.mubr.bf16.mxu0 %v2046
        %3261 = vmatmul.mubr.bf16.gmra.mrb[0].mxu0 %v2045
        %v3262 = vpop.f32.mrb[0].mxu0
        %v3263 = vadd.f32 %v2974, %v3262
        %v3264 = vpop.f32.mrb[0].mxu0
        %v3265 = vpop.f32.mrb[0].mxu0
        %v3266 = vadd.f32 %v2977, %v3265
        %v3267 = vpop.f32.mrb[0].mxu0
        %3268 = vmatprep.mubr.bf16.mxu0 %v2054
        %3269 = vmatmul.mubr.bf16.gmra.mrb[0].mxu0 %v2053
        %v3270 = vpop.f32.mrb[0].mxu0
        %v3271 = vadd.f32 %v2982, %v3270
        %v3272 = vpop.f32.mrb[0].mxu0
        %v3273 = vpop.f32.mrb[0].mxu0
        %v3274 = vadd.f32 %v2985, %v3273
        %v3275 = vpop.f32.mrb[0].mxu0
        %3276 = vmatprep.mubr.bf16.mxu0 %v2062
        %3277 = vmatmul.mubr.bf16.gmra.mrb[0].mxu0 %v2061
        %v3278 = vpop.f32.mrb[0].mxu0
        %v3279 = vadd.f32 %v2990, %v3278
        %v3280 = vpop.f32.mrb[0].mxu0
        %v3281 = vpop.f32.mrb[0].mxu0
        %v3282 = vadd.f32 %v2993, %v3281
        %v3283 = vpop.f32.mrb[0].mxu0
        %3284 = vmatprep.mubr.bf16.mxu0 %v2070
        %3285 = vmatmul.mubr.bf16.gmra.mrb[0].mxu0 %v2069
        %v3286 = vpop.f32.mrb[0].mxu0
        %v3287 = vadd.f32 %v2998, %v3286
        %v3288 = vpop.f32.mrb[0].mxu0
        %v3289 = vpop.f32.mrb[0].mxu0
        %v3290 = vadd.f32 %v3001, %v3289
        %v3291 = vpop.f32.mrb[0].mxu0
        %3292 = vmatprep.mubr.bf16.mxu0 %v2078
        %3293 = vmatmul.mubr.bf16.gmra.mrb[0].mxu0 %v2077
        %v3294 = vpop.f32.mrb[0].mxu0
        %v3295 = vadd.f32 %v3006, %v3294
        %v3296 = vpop.f32.mrb[0].mxu0
        %v3297 = vpop.f32.mrb[0].mxu0
        %v3298 = vadd.f32 %v3009, %v3297
        %v3299 = vpop.f32.mrb[0].mxu0
        %3300 = vmatprep.mubr.bf16.mxu0 %v2086
        %3301 = vmatmul.mubr.bf16.gmra.mrb[0].mxu0 %v2085
        %v3302 = vpop.f32.mrb[0].mxu0
        %v3303 = vadd.f32 %v3014, %v3302
        %v3304 = vpop.f32.mrb[0].mxu0
        %v3305 = vpop.f32.mrb[0].mxu0
        %v3306 = vadd.f32 %v3017, %v3305
        %v3307 = vpop.f32.mrb[0].mxu0
        %3308 = vmatprep.mubr.bf16.mxu0 %v2094
        %3309 = vmatmul.mubr.bf16.gmra.mrb[0].mxu0 %v2093
        %v3310 = vpop.f32.mrb[0].mxu0
        %v3311 = vadd.f32 %v3022, %v3310
        %v3312 = vpop.f32.mrb[0].mxu0
        %v3313 = vpop.f32.mrb[0].mxu0
        %v3314 = vadd.f32 %v3025, %v3313
        %v3315 = vpop.f32.mrb[0].mxu0
        %3316 = vmatprep.mubr.bf16.mxu0 %v2102
        %3317 = vmatmul.mubr.bf16.gmra.mrb[0].mxu0 %v2101
        %v3318 = vpop.f32.mrb[0].mxu0
        %v3319 = vadd.f32 %v3030, %v3318
        %v3320 = vpop.f32.mrb[0].mxu0
        %v3321 = vpop.f32.mrb[0].mxu0
        %v3322 = vadd.f32 %v3033, %v3321
        %v3323 = vpop.f32.mrb[0].mxu0
        %3324 = vmatprep.mubr.bf16.mxu0 %v2110
        %3325 = vmatmul.mubr.bf16.gmra.mrb[0].mxu0 %v2109
        %v3326 = vpop.f32.mrb[0].mxu0
        %v3327 = vadd.f32 %v3038, %v3326
        %v3328 = vpop.f32.mrb[0].mxu0
        %v3329 = vpop.f32.mrb[0].mxu0
        %v3330 = vadd.f32 %v3041, %v3329
        %v3331 = vpop.f32.mrb[0].mxu0
        %3332 = vmatprep.mubr.bf16.mxu0 %v2118
        %3333 = vmatmul.mubr.bf16.gmra.mrb[0].mxu0 %v2117
        %v3334 = vpop.f32.mrb[0].mxu0
        %v3335 = vadd.f32 %v3046, %v3334
        %v3336 = vpop.f32.mrb[0].mxu0
        %v3337 = vpop.f32.mrb[0].mxu0
        %v3338 = vadd.f32 %v3049, %v3337
        %v3339 = vpop.f32.mrb[0].mxu0
        %3340 = vmatprep.mubr.bf16.mxu0 %v2126
        %3341 = vmatmul.mubr.bf16.gmra.mrb[0].mxu0 %v2125
        %v3342 = vpop.f32.mrb[0].mxu0
        %v3343 = vadd.f32 %v3054, %v3342
        %v3344 = vpop.f32.mrb[0].mxu0
        %v3345 = vpop.f32.mrb[0].mxu0
        %v3346 = vadd.f32 %v3057, %v3345
        %v3347 = vpop.f32.mrb[0].mxu0
        %3348 = vmatprep.mubr.bf16.mxu0 %v2134
        %3349 = vmatmul.mubr.bf16.gmra.mrb[0].mxu0 %v2133
        %v3350 = vpop.f32.mrb[0].mxu0
        %v3351 = vadd.f32 %v3062, %v3350
        %v3352 = vpop.f32.mrb[0].mxu0
        %v3353 = vpop.f32.mrb[0].mxu0
        %v3354 = vadd.f32 %v3065, %v3353
        %v3355 = vpop.f32.mrb[0].mxu0
        %3356 = vmatprep.mubr.bf16.mxu0 %v2142
        %3357 = vmatmul.mubr.bf16.gmra.mrb[0].mxu0 %v2141
        %v3358 = vpop.f32.mrb[0].mxu0
        %v3359 = vadd.f32 %v3070, %v3358
        %v3360 = vpop.f32.mrb[0].mxu0
        %v3361 = vpop.f32.mrb[0].mxu0
        %v3362 = vadd.f32 %v3073, %v3361
        %v3363 = vpop.f32.mrb[0].mxu0
        %3364 = vmatprep.mubr.bf16.mxu0 %v2150
        %3365 = vmatmul.mubr.bf16.gmra.mrb[0].mxu0 %v2149
        %v3366 = vpop.f32.mrb[0].mxu0
        %v3367 = vadd.f32 %v3078, %v3366
        %v3368 = vpop.f32.mrb[0].mxu0
        %v3369 = vpop.f32.mrb[0].mxu0
        %v3370 = vadd.f32 %v3081, %v3369
        %v3371 = vpop.f32.mrb[0].mxu0
        %3372 = vmatprep.mubr.bf16.mxu0 %v2158
        %3373 = vmatmul.mubr.bf16.gmra.mrb[0].mxu0 %v2157
        %v3374 = vpop.f32.mrb[0].mxu0
        %v3375 = vadd.f32 %v3086, %v3374
        %v3376 = vpop.f32.mrb[0].mxu0
        %v3377 = vpop.f32.mrb[0].mxu0
        %v3378 = vadd.f32 %v3089, %v3377
        %v3379 = vpop.f32.mrb[0].mxu0
        %3380 = vmatprep.mubr.bf16.mxu0 %v2166
        %3381 = vmatmul.mubr.bf16.gmra.mrb[0].mxu0 %v2165
        %v3382 = vpop.f32.mrb[0].mxu0
        %v3383 = vadd.f32 %v3094, %v3382
        %v3384 = vpop.f32.mrb[0].mxu0
        %v3385 = vpop.f32.mrb[0].mxu0
        %v3386 = vadd.f32 %v3097, %v3385
        %v3387 = vpop.f32.mrb[0].mxu0
        %3388 = vmatprep.mubr.bf16.mxu0 %v2174
        %3389 = vmatmul.mubr.bf16.gmra.mrb[0].mxu0 %v2173
        %v3390 = vpop.f32.mrb[0].mxu0
        %v3391 = vadd.f32 %v3102, %v3390
        %v3392 = vpop.f32.mrb[0].mxu0
        %v3393 = vpop.f32.mrb[0].mxu0
        %v3394 = vadd.f32 %v3105, %v3393
        %v3395 = vpop.f32.mrb[0].mxu0
        %3396 = vmatprep.mubr.bf16.mxu0 %v2182
        %3397 = vmatmul.mubr.bf16.gmra.mrb[0].mxu0 %v2181
        %v3398 = vpop.f32.mrb[0].mxu0
        %v3399 = vadd.f32 %v3110, %v3398
        %v3400 = vpop.f32.mrb[0].mxu0
        %v3401 = vpop.f32.mrb[0].mxu0
        %v3402 = vadd.f32 %v3113, %v3401
        %v3403 = vpop.f32.mrb[0].mxu0
        %3404 = vmatprep.mubr.bf16.mxu0 %v2190
        %3405 = vmatmul.mubr.bf16.gmra.mrb[0].mxu0 %v2189
        %v3406 = vpop.f32.mrb[0].mxu0
        %v3407 = vadd.f32 %v3118, %v3406
        %v3408 = vpop.f32.mrb[0].mxu0
        %v3409 = vpop.f32.mrb[0].mxu0
        %v3410 = vadd.f32 %v3121, %v3409
        %v3411 = vpop.f32.mrb[0].mxu0
        %3412 = vmatprep.mubr.bf16.mxu0 %v2198
        %3413 = vmatmul.mubr.bf16.gmra.mrb[0].mxu0 %v2197
        %v3414 = vpop.f32.mrb[0].mxu0
        %v3415 = vadd.f32 %v3126, %v3414
        %v3416 = vpop.f32.mrb[0].mxu0
        %v3417 = vpop.f32.mrb[0].mxu0
        %v3418 = vadd.f32 %v3129, %v3417
        %v3419 = vpop.f32.mrb[0].mxu0
        %3420 = vmatprep.mubr.bf16.mxu0 %v2206
        %3421 = vmatmul.mubr.bf16.gmra.mrb[0].mxu0 %v2205
        %v3422 = vpop.f32.mrb[0].mxu0
        %v3423 = vadd.f32 %v3134, %v3422
        %v3424 = vpop.f32.mrb[0].mxu0
        %v3425 = vpop.f32.mrb[0].mxu0
        %v3426 = vadd.f32 %v3137, %v3425
        %v3427 = vpop.f32.mrb[0].mxu0
        %3428 = vmatprep.mubr.bf16.mxu0 %v2214
        %3429 = vmatmul.mubr.bf16.gmra.mrb[0].mxu0 %v2213
        %v3430 = vpop.f32.mrb[0].mxu0
        %v3431 = vadd.f32 %v3142, %v3430
        %v3432 = vpop.f32.mrb[0].mxu0
        %v3433 = vpop.f32.mrb[0].mxu0
        %v3434 = vadd.f32 %v3145, %v3433
        %v3435 = vpop.f32.mrb[0].mxu0
        %3436 = vmatprep.mubr.bf16.mxu0 %v2222
        %3437 = vmatmul.mubr.bf16.gmra.mrb[0].mxu0 %v2221
        %v3438 = vpop.f32.mrb[0].mxu0
        %v3439 = vadd.f32 %v3150, %v3438
        %v3440 = vpop.f32.mrb[0].mxu0
        %v3441 = vpop.f32.mrb[0].mxu0
        %v3442 = vadd.f32 %v3153, %v3441
        %v3443 = vpop.f32.mrb[0].mxu0
        %3444 = vmatprep.mubr.bf16.mxu0 %v2230
        %3445 = vmatmul.mubr.bf16.gmra.mrb[0].mxu0 %v2229
        %v3446 = vpop.f32.mrb[0].mxu0
        %v3447 = vadd.f32 %v3158, %v3446
        %v3448 = vpop.f32.mrb[0].mxu0
        %v3449 = vpop.f32.mrb[0].mxu0
        %v3450 = vadd.f32 %v3161, %v3449
        %v3451 = vpop.f32.mrb[0].mxu0
        %3452 = vmatprep.mubr.bf16.mxu0 %v2238
        %3453 = vmatmul.mubr.bf16.gmra.mrb[0].mxu0 %v2237
        %v3454 = vpop.f32.mrb[0].mxu0
        %v3455 = vadd.f32 %v3166, %v3454
        %v3456 = vpop.f32.mrb[0].mxu0
        %v3457 = vpop.f32.mrb[0].mxu0
        %v3458 = vadd.f32 %v3169, %v3457
        %v3459 = vpop.f32.mrb[0].mxu0
        %3460 = vmatprep.mubr.bf16.mxu0 %v2246
        %3461 = vmatmul.mubr.bf16.gmra.mrb[0].mxu0 %v2245
        %v3462 = vpop.f32.mrb[0].mxu0
        %v3463 = vadd.f32 %v3174, %v3462
        %v3464 = vpop.f32.mrb[0].mxu0
        %v3465 = vpop.f32.mrb[0].mxu0
        %v3466 = vadd.f32 %v3177, %v3465
        %v3467 = vpop.f32.mrb[0].mxu0
        %3468 = vmatprep.mubr.bf16.mxu0 %v2254
        %3469 = vmatmul.mubr.bf16.gmra.mrb[0].mxu0 %v2253
        %v3470 = vpop.f32.mrb[0].mxu0
        %v3471 = vadd.f32 %v3182, %v3470
        %v3472 = vpop.f32.mrb[0].mxu0
        %v3473 = vpop.f32.mrb[0].mxu0
        %v3474 = vadd.f32 %v3185, %v3473
        %v3475 = vpop.f32.mrb[0].mxu0
        %3476 = vmatprep.mubr.bf16.mxu0 %v2262
        %3477 = vmatmul.mubr.bf16.gmra.mrb[0].mxu0 %v2261
        %v3478 = vpop.f32.mrb[0].mxu0
        %v3479 = vadd.f32 %v3190, %v3478
        %v3480 = vpop.f32.mrb[0].mxu0
        %v3481 = vpop.f32.mrb[0].mxu0
        %v3482 = vadd.f32 %v3193, %v3481
        %v3483 = vpop.f32.mrb[0].mxu0
        %3484 = vdwg.mxu0
        %3485 = vmatprep.subr.bf16.mxu0 0
        %3486 = vmatpush1.bf16.msra.mxu0 %v2811
        %3487 = vmatprep.subr.bf16.mxu0 0
        %3488 = vmatpush1.bf16.msra.mxu0 %v2812
        %3489 = vmatprep.subr.bf16.mxu0 0
        %3490 = vmatpush1.bf16.msra.mxu0 %v2813
        %3491 = vmatprep.subr.bf16.mxu0 0
        %3492 = vmatpush1.bf16.msra.mxu0 %v2814
        %3493 = vmatprep.subr.bf16.mxu0 0
        %3494 = vmatpush1.bf16.msra.mxu0 %v2815
        %3495 = vmatprep.subr.bf16.mxu0 0
        %3496 = vmatpush1.bf16.msra.mxu0 %v2816
        %3497 = vmatprep.subr.bf16.mxu0 0
        %3498 = vmatpush1.bf16.msra.mxu0 %v2817
        %3499 = vmatprep.subr.bf16.mxu0 0
        %3500 = vmatpush1.bf16.msra.mxu0 %v2818
        %3501 = vmatprep.subr.bf16.mxu0 0
        %3502 = vmatpush1.bf16.msra.mxu0 %v2819
        %3503 = vmatprep.subr.bf16.mxu0 0
        %3504 = vmatpush1.bf16.msra.mxu0 %v2820
        %3505 = vmatprep.subr.bf16.mxu0 0
        %3506 = vmatpush1.bf16.msra.mxu0 %v2821
        %3507 = vmatprep.subr.bf16.mxu0 0
        %3508 = vmatpush1.bf16.msra.mxu0 %v2822
        %3509 = vmatprep.subr.bf16.mxu0 0
        %3510 = vmatpush1.bf16.msra.mxu0 %v2823
        %3511 = vmatprep.subr.bf16.mxu0 0
        %3512 = vmatpush1.bf16.msra.mxu0 %v2824
        %3513 = vmatprep.subr.bf16.mxu0 0
        %3514 = vmatpush1.bf16.msra.mxu0 %v2825
        %3515 = vmatprep.subr.bf16.mxu0 0
        %3516 = vmatpush1.bf16.msra.mxu0 %v2826
        %3517 = vmatprep.mubr.bf16.mxu0 %v2016
        %3518 = vmatmul.mubr.bf16.gmra.mrb[0].mxu0 %v2015
        %v3519 = vpop.f32.mrb[0].mxu0
        %v3520 = vadd.f32 %v3231, %v3519
        %v3521 = vpop.f32.mrb[0].mxu0
        %v3522 = vpop.f32.mrb[0].mxu0
        %v3523 = vadd.f32 %v3234, %v3522
        %v3524 = vpop.f32.mrb[0].mxu0
        %3525 = vmatprep.mubr.bf16.mxu0 %v2024
        %3526 = vmatmul.mubr.bf16.gmra.mrb[0].mxu0 %v2023
        %v3527 = vpop.f32.mrb[0].mxu0
        %v3528 = vadd.f32 %v3239, %v3527
        %v3529 = vpop.f32.mrb[0].mxu0
        %v3530 = vpop.f32.mrb[0].mxu0
        %v3531 = vadd.f32 %v3242, %v3530
        %v3532 = vpop.f32.mrb[0].mxu0
        %3533 = vmatprep.mubr.bf16.mxu0 %v2032
        %3534 = vmatmul.mubr.bf16.gmra.mrb[0].mxu0 %v2031
        %v3535 = vpop.f32.mrb[0].mxu0
        %v3536 = vadd.f32 %v3247, %v3535
        %v3537 = vpop.f32.mrb[0].mxu0
        %v3538 = vpop.f32.mrb[0].mxu0
        %v3539 = vadd.f32 %v3250, %v3538
        %v3540 = vpop.f32.mrb[0].mxu0
        %3541 = vmatprep.mubr.bf16.mxu0 %v2040
        %3542 = vmatmul.mubr.bf16.gmra.mrb[0].mxu0 %v2039
        %v3543 = vpop.f32.mrb[0].mxu0
        %v3544 = vadd.f32 %v3255, %v3543
        %v3545 = vpop.f32.mrb[0].mxu0
        %v3546 = vpop.f32.mrb[0].mxu0
        %v3547 = vadd.f32 %v3258, %v3546
        %v3548 = vpop.f32.mrb[0].mxu0
        %3549 = vmatprep.mubr.bf16.mxu0 %v2048
        %3550 = vmatmul.mubr.bf16.gmra.mrb[0].mxu0 %v2047
        %v3551 = vpop.f32.mrb[0].mxu0
        %v3552 = vadd.f32 %v3263, %v3551
        %v3553 = vpop.f32.mrb[0].mxu0
        %v3554 = vpop.f32.mrb[0].mxu0
        %v3555 = vadd.f32 %v3266, %v3554
        %v3556 = vpop.f32.mrb[0].mxu0
        %3557 = vmatprep.mubr.bf16.mxu0 %v2056
        %3558 = vmatmul.mubr.bf16.gmra.mrb[0].mxu0 %v2055
        %v3559 = vpop.f32.mrb[0].mxu0
        %v3560 = vadd.f32 %v3271, %v3559
        %v3561 = vpop.f32.mrb[0].mxu0
        %v3562 = vpop.f32.mrb[0].mxu0
        %v3563 = vadd.f32 %v3274, %v3562
        %v3564 = vpop.f32.mrb[0].mxu0
        %3565 = vmatprep.mubr.bf16.mxu0 %v2064
        %3566 = vmatmul.mubr.bf16.gmra.mrb[0].mxu0 %v2063
        %v3567 = vpop.f32.mrb[0].mxu0
        %v3568 = vadd.f32 %v3279, %v3567
        %v3569 = vpop.f32.mrb[0].mxu0
        %v3570 = vpop.f32.mrb[0].mxu0
        %v3571 = vadd.f32 %v3282, %v3570
        %v3572 = vpop.f32.mrb[0].mxu0
        %3573 = vmatprep.mubr.bf16.mxu0 %v2072
        %3574 = vmatmul.mubr.bf16.gmra.mrb[0].mxu0 %v2071
        %v3575 = vpop.f32.mrb[0].mxu0
        %v3576 = vadd.f32 %v3287, %v3575
        %v3577 = vpop.f32.mrb[0].mxu0
        %v3578 = vpop.f32.mrb[0].mxu0
        %v3579 = vadd.f32 %v3290, %v3578
        %v3580 = vpop.f32.mrb[0].mxu0
        %3581 = vmatprep.mubr.bf16.mxu0 %v2080
        %3582 = vmatmul.mubr.bf16.gmra.mrb[0].mxu0 %v2079
        %v3583 = vpop.f32.mrb[0].mxu0
        %v3584 = vadd.f32 %v3295, %v3583
        %v3585 = vpop.f32.mrb[0].mxu0
        %v3586 = vpop.f32.mrb[0].mxu0
        %v3587 = vadd.f32 %v3298, %v3586
        %v3588 = vpop.f32.mrb[0].mxu0
        %3589 = vmatprep.mubr.bf16.mxu0 %v2088
        %3590 = vmatmul.mubr.bf16.gmra.mrb[0].mxu0 %v2087
        %v3591 = vpop.f32.mrb[0].mxu0
        %v3592 = vadd.f32 %v3303, %v3591
        %v3593 = vpop.f32.mrb[0].mxu0
        %v3594 = vpop.f32.mrb[0].mxu0
        %v3595 = vadd.f32 %v3306, %v3594
        %v3596 = vpop.f32.mrb[0].mxu0
        %3597 = vmatprep.mubr.bf16.mxu0 %v2096
        %3598 = vmatmul.mubr.bf16.gmra.mrb[0].mxu0 %v2095
        %v3599 = vpop.f32.mrb[0].mxu0
        %v3600 = vadd.f32 %v3311, %v3599
        %v3601 = vpop.f32.mrb[0].mxu0
        %v3602 = vpop.f32.mrb[0].mxu0
        %v3603 = vadd.f32 %v3314, %v3602
        %v3604 = vpop.f32.mrb[0].mxu0
        %3605 = vmatprep.mubr.bf16.mxu0 %v2104
        %3606 = vmatmul.mubr.bf16.gmra.mrb[0].mxu0 %v2103
        %v3607 = vpop.f32.mrb[0].mxu0
        %v3608 = vadd.f32 %v3319, %v3607
        %v3609 = vpop.f32.mrb[0].mxu0
        %v3610 = vpop.f32.mrb[0].mxu0
        %v3611 = vadd.f32 %v3322, %v3610
        %v3612 = vpop.f32.mrb[0].mxu0
        %3613 = vmatprep.mubr.bf16.mxu0 %v2112
        %3614 = vmatmul.mubr.bf16.gmra.mrb[0].mxu0 %v2111
        %v3615 = vpop.f32.mrb[0].mxu0
        %v3616 = vadd.f32 %v3327, %v3615
        %v3617 = vpop.f32.mrb[0].mxu0
        %v3618 = vpop.f32.mrb[0].mxu0
        %v3619 = vadd.f32 %v3330, %v3618
        %v3620 = vpop.f32.mrb[0].mxu0
        %3621 = vmatprep.mubr.bf16.mxu0 %v2120
        %3622 = vmatmul.mubr.bf16.gmra.mrb[0].mxu0 %v2119
        %v3623 = vpop.f32.mrb[0].mxu0
        %v3624 = vadd.f32 %v3335, %v3623
        %v3625 = vpop.f32.mrb[0].mxu0
        %v3626 = vpop.f32.mrb[0].mxu0
        %v3627 = vadd.f32 %v3338, %v3626
        %v3628 = vpop.f32.mrb[0].mxu0
        %3629 = vmatprep.mubr.bf16.mxu0 %v2128
        %3630 = vmatmul.mubr.bf16.gmra.mrb[0].mxu0 %v2127
        %v3631 = vpop.f32.mrb[0].mxu0
        %v3632 = vadd.f32 %v3343, %v3631
        %v3633 = vpop.f32.mrb[0].mxu0
        %v3634 = vpop.f32.mrb[0].mxu0
        %v3635 = vadd.f32 %v3346, %v3634
        %v3636 = vpop.f32.mrb[0].mxu0
        %3637 = vmatprep.mubr.bf16.mxu0 %v2136
        %3638 = vmatmul.mubr.bf16.gmra.mrb[0].mxu0 %v2135
        %v3639 = vpop.f32.mrb[0].mxu0
        %v3640 = vadd.f32 %v3351, %v3639
        %v3641 = vpop.f32.mrb[0].mxu0
        %v3642 = vpop.f32.mrb[0].mxu0
        %v3643 = vadd.f32 %v3354, %v3642
        %v3644 = vpop.f32.mrb[0].mxu0
        %3645 = vmatprep.mubr.bf16.mxu0 %v2144
        %3646 = vmatmul.mubr.bf16.gmra.mrb[0].mxu0 %v2143
        %v3647 = vpop.f32.mrb[0].mxu0
        %v3648 = vadd.f32 %v3359, %v3647
        %v3649 = vpop.f32.mrb[0].mxu0
        %v3650 = vpop.f32.mrb[0].mxu0
        %v3651 = vadd.f32 %v3362, %v3650
        %v3652 = vpop.f32.mrb[0].mxu0
        %3653 = vmatprep.mubr.bf16.mxu0 %v2152
        %3654 = vmatmul.mubr.bf16.gmra.mrb[0].mxu0 %v2151
        %v3655 = vpop.f32.mrb[0].mxu0
        %v3656 = vadd.f32 %v3367, %v3655
        %v3657 = vpop.f32.mrb[0].mxu0
        %v3658 = vpop.f32.mrb[0].mxu0
        %v3659 = vadd.f32 %v3370, %v3658
        %v3660 = vpop.f32.mrb[0].mxu0
        %3661 = vmatprep.mubr.bf16.mxu0 %v2160
        %3662 = vmatmul.mubr.bf16.gmra.mrb[0].mxu0 %v2159
        %v3663 = vpop.f32.mrb[0].mxu0
        %v3664 = vadd.f32 %v3375, %v3663
        %v3665 = vpop.f32.mrb[0].mxu0
        %v3666 = vpop.f32.mrb[0].mxu0
        %v3667 = vadd.f32 %v3378, %v3666
        %v3668 = vpop.f32.mrb[0].mxu0
        %3669 = vmatprep.mubr.bf16.mxu0 %v2168
        %3670 = vmatmul.mubr.bf16.gmra.mrb[0].mxu0 %v2167
        %v3671 = vpop.f32.mrb[0].mxu0
        %v3672 = vadd.f32 %v3383, %v3671
        %v3673 = vpop.f32.mrb[0].mxu0
        %v3674 = vpop.f32.mrb[0].mxu0
        %v3675 = vadd.f32 %v3386, %v3674
        %v3676 = vpop.f32.mrb[0].mxu0
        %3677 = vmatprep.mubr.bf16.mxu0 %v2176
        %3678 = vmatmul.mubr.bf16.gmra.mrb[0].mxu0 %v2175
        %v3679 = vpop.f32.mrb[0].mxu0
        %v3680 = vadd.f32 %v3391, %v3679
        %v3681 = vpop.f32.mrb[0].mxu0
        %v3682 = vpop.f32.mrb[0].mxu0
        %v3683 = vadd.f32 %v3394, %v3682
        %v3684 = vpop.f32.mrb[0].mxu0
        %3685 = vmatprep.mubr.bf16.mxu0 %v2184
        %3686 = vmatmul.mubr.bf16.gmra.mrb[0].mxu0 %v2183
        %v3687 = vpop.f32.mrb[0].mxu0
        %v3688 = vadd.f32 %v3399, %v3687
        %v3689 = vpop.f32.mrb[0].mxu0
        %v3690 = vpop.f32.mrb[0].mxu0
        %v3691 = vadd.f32 %v3402, %v3690
        %v3692 = vpop.f32.mrb[0].mxu0
        %3693 = vmatprep.mubr.bf16.mxu0 %v2192
        %3694 = vmatmul.mubr.bf16.gmra.mrb[0].mxu0 %v2191
        %v3695 = vpop.f32.mrb[0].mxu0
        %v3696 = vadd.f32 %v3407, %v3695
        %v3697 = vpop.f32.mrb[0].mxu0
        %v3698 = vpop.f32.mrb[0].mxu0
        %v3699 = vadd.f32 %v3410, %v3698
        %v3700 = vpop.f32.mrb[0].mxu0
        %3701 = vmatprep.mubr.bf16.mxu0 %v2200
        %3702 = vmatmul.mubr.bf16.gmra.mrb[0].mxu0 %v2199
        %v3703 = vpop.f32.mrb[0].mxu0
        %v3704 = vadd.f32 %v3415, %v3703
        %v3705 = vpop.f32.mrb[0].mxu0
        %v3706 = vpop.f32.mrb[0].mxu0
        %v3707 = vadd.f32 %v3418, %v3706
        %v3708 = vpop.f32.mrb[0].mxu0
        %3709 = vmatprep.mubr.bf16.mxu0 %v2208
        %3710 = vmatmul.mubr.bf16.gmra.mrb[0].mxu0 %v2207
        %v3711 = vpop.f32.mrb[0].mxu0
        %v3712 = vadd.f32 %v3423, %v3711
        %v3713 = vpop.f32.mrb[0].mxu0
        %v3714 = vpop.f32.mrb[0].mxu0
        %v3715 = vadd.f32 %v3426, %v3714
        %v3716 = vpop.f32.mrb[0].mxu0
        %3717 = vmatprep.mubr.bf16.mxu0 %v2216
        %3718 = vmatmul.mubr.bf16.gmra.mrb[0].mxu0 %v2215
        %v3719 = vpop.f32.mrb[0].mxu0
        %v3720 = vadd.f32 %v3431, %v3719
        %v3721 = vpop.f32.mrb[0].mxu0
        %v3722 = vpop.f32.mrb[0].mxu0
        %v3723 = vadd.f32 %v3434, %v3722
        %v3724 = vpop.f32.mrb[0].mxu0
        %3725 = vmatprep.mubr.bf16.mxu0 %v2224
        %3726 = vmatmul.mubr.bf16.gmra.mrb[0].mxu0 %v2223
        %v3727 = vpop.f32.mrb[0].mxu0
        %v3728 = vadd.f32 %v3439, %v3727
        %v3729 = vpop.f32.mrb[0].mxu0
        %v3730 = vpop.f32.mrb[0].mxu0
        %v3731 = vadd.f32 %v3442, %v3730
        %v3732 = vpop.f32.mrb[0].mxu0
        %3733 = vmatprep.mubr.bf16.mxu0 %v2232
        %3734 = vmatmul.mubr.bf16.gmra.mrb[0].mxu0 %v2231
        %v3735 = vpop.f32.mrb[0].mxu0
        %v3736 = vadd.f32 %v3447, %v3735
        %v3737 = vpop.f32.mrb[0].mxu0
        %v3738 = vpop.f32.mrb[0].mxu0
        %v3739 = vadd.f32 %v3450, %v3738
        %v3740 = vpop.f32.mrb[0].mxu0
        %3741 = vmatprep.mubr.bf16.mxu0 %v2240
        %3742 = vmatmul.mubr.bf16.gmra.mrb[0].mxu0 %v2239
        %v3743 = vpop.f32.mrb[0].mxu0
        %v3744 = vadd.f32 %v3455, %v3743
        %v3745 = vpop.f32.mrb[0].mxu0
        %v3746 = vpop.f32.mrb[0].mxu0
        %v3747 = vadd.f32 %v3458, %v3746
        %v3748 = vpop.f32.mrb[0].mxu0
        %3749 = vmatprep.mubr.bf16.mxu0 %v2248
        %3750 = vmatmul.mubr.bf16.gmra.mrb[0].mxu0 %v2247
        %v3751 = vpop.f32.mrb[0].mxu0
        %v3752 = vadd.f32 %v3463, %v3751
        %v3753 = vpop.f32.mrb[0].mxu0
        %v3754 = vpop.f32.mrb[0].mxu0
        %v3755 = vadd.f32 %v3466, %v3754
        %v3756 = vpop.f32.mrb[0].mxu0
        %3757 = vmatprep.mubr.bf16.mxu0 %v2256
        %3758 = vmatmul.mubr.bf16.gmra.mrb[0].mxu0 %v2255
        %v3759 = vpop.f32.mrb[0].mxu0
        %v3760 = vadd.f32 %v3471, %v3759
        %v3761 = vpop.f32.mrb[0].mxu0
        %v3762 = vpop.f32.mrb[0].mxu0
        %v3763 = vadd.f32 %v3474, %v3762
        %v3764 = vpop.f32.mrb[0].mxu0
        %3765 = vmatprep.mubr.bf16.mxu0 %v2264
        %3766 = vmatmul.mubr.bf16.gmra.mrb[0].mxu0 %v2263
        %v3767 = vpop.f32.mrb[0].mxu0
        %v3768 = vadd.f32 %v3479, %v3767
        %v3769 = vpop.f32.mrb[0].mxu0
        %v3770 = vpop.f32.mrb[0].mxu0
        %v3771 = vadd.f32 %v3482, %v3770
        %v3772 = vpop.f32.mrb[0].mxu0
        %3773 = vdwg.mxu0
        %3774 = vmatprep.subr.bf16.mxu0 0
        %3775 = vmatpush1.bf16.msra.mxu0 %v2827
        %3776 = vmatprep.subr.bf16.mxu0 0
        %3777 = vmatpush1.bf16.msra.mxu0 %v2828
        %3778 = vmatprep.subr.bf16.mxu0 0
        %3779 = vmatpush1.bf16.msra.mxu0 %v2829
        %3780 = vmatprep.subr.bf16.mxu0 0
        %3781 = vmatpush1.bf16.msra.mxu0 %v2830
        %3782 = vmatprep.subr.bf16.mxu0 0
        %3783 = vmatpush1.bf16.msra.mxu0 %v2831
        %3784 = vmatprep.subr.bf16.mxu0 0
        %3785 = vmatpush1.bf16.msra.mxu0 %v2832
        %3786 = vmatprep.subr.bf16.mxu0 0
        %3787 = vmatpush1.bf16.msra.mxu0 %v2833
        %3788 = vmatprep.subr.bf16.mxu0 0
        %3789 = vmatpush1.bf16.msra.mxu0 %v2834
        %3790 = vmatprep.subr.bf16.mxu0 0
        %3791 = vmatpush1.bf16.msra.mxu0 %v2835
        %3792 = vmatprep.subr.bf16.mxu0 0
        %3793 = vmatpush1.bf16.msra.mxu0 %v2836
        %3794 = vmatprep.subr.bf16.mxu0 0
        %3795 = vmatpush1.bf16.msra.mxu0 %v2837
        %3796 = vmatprep.subr.bf16.mxu0 0
        %3797 = vmatpush1.bf16.msra.mxu0 %v2838
        %3798 = vmatprep.subr.bf16.mxu0 0
        %3799 = vmatpush1.bf16.msra.mxu0 %v2839
        %3800 = vmatprep.subr.bf16.mxu0 0
        %3801 = vmatpush1.bf16.msra.mxu0 %v2840
        %3802 = vmatprep.subr.bf16.mxu0 0
        %3803 = vmatpush1.bf16.msra.mxu0 %v2841
        %3804 = vmatprep.subr.bf16.mxu0 0
        %3805 = vmatpush1.bf16.msra.mxu0 %v2842
        %3806 = vmatprep.mubr.bf16.mxu0 %v2018
        %3807 = vmatmul.mubr.bf16.gmra.mrb[0].mxu0 %v2017
        %v3808 = vpop.f32.mrb[0].mxu0
        %v3809 = vadd.f32 %v3520, %v3808
        %v3810 = vpop.f32.mrb[0].mxu0
        %v3811 = vpop.f32.mrb[0].mxu0
        %v3812 = vadd.f32 %v3523, %v3811
        %v3813 = vpop.f32.mrb[0].mxu0
        %3814 = vmatprep.mubr.bf16.mxu0 %v2026
        %3815 = vmatmul.mubr.bf16.gmra.mrb[0].mxu0 %v2025
        %v3816 = vpop.f32.mrb[0].mxu0
        %v3817 = vadd.f32 %v3528, %v3816
        %v3818 = vpop.f32.mrb[0].mxu0
        %v3819 = vpop.f32.mrb[0].mxu0
        %v3820 = vadd.f32 %v3531, %v3819
        %v3821 = vpop.f32.mrb[0].mxu0
        %3822 = vmatprep.mubr.bf16.mxu0 %v2034
        %3823 = vmatmul.mubr.bf16.gmra.mrb[0].mxu0 %v2033
        %v3824 = vpop.f32.mrb[0].mxu0
        %v3825 = vadd.f32 %v3536, %v3824
        %v3826 = vpop.f32.mrb[0].mxu0
        %v3827 = vpop.f32.mrb[0].mxu0
        %v3828 = vadd.f32 %v3539, %v3827
        %v3829 = vpop.f32.mrb[0].mxu0
        %3830 = vmatprep.mubr.bf16.mxu0 %v2042
        %3831 = vmatmul.mubr.bf16.gmra.mrb[0].mxu0 %v2041
        %v3832 = vpop.f32.mrb[0].mxu0
        %v3833 = vadd.f32 %v3544, %v3832
        %v3834 = vpop.f32.mrb[0].mxu0
        %v3835 = vpop.f32.mrb[0].mxu0
        %v3836 = vadd.f32 %v3547, %v3835
        %v3837 = vpop.f32.mrb[0].mxu0
        %3838 = vmatprep.mubr.bf16.mxu0 %v2050
        %3839 = vmatmul.mubr.bf16.gmra.mrb[0].mxu0 %v2049
        %v3840 = vpop.f32.mrb[0].mxu0
        %v3841 = vadd.f32 %v3552, %v3840
        %v3842 = vpop.f32.mrb[0].mxu0
        %v3843 = vpop.f32.mrb[0].mxu0
        %v3844 = vadd.f32 %v3555, %v3843
        %v3845 = vpop.f32.mrb[0].mxu0
        %3846 = vmatprep.mubr.bf16.mxu0 %v2058
        %3847 = vmatmul.mubr.bf16.gmra.mrb[0].mxu0 %v2057
        %v3848 = vpop.f32.mrb[0].mxu0
        %v3849 = vadd.f32 %v3560, %v3848
        %v3850 = vpop.f32.mrb[0].mxu0
        %v3851 = vpop.f32.mrb[0].mxu0
        %v3852 = vadd.f32 %v3563, %v3851
        %v3853 = vpop.f32.mrb[0].mxu0
        %3854 = vmatprep.mubr.bf16.mxu0 %v2066
        %3855 = vmatmul.mubr.bf16.gmra.mrb[0].mxu0 %v2065
        %v3856 = vpop.f32.mrb[0].mxu0
        %v3857 = vadd.f32 %v3568, %v3856
        %v3858 = vpop.f32.mrb[0].mxu0
        %v3859 = vpop.f32.mrb[0].mxu0
        %v3860 = vadd.f32 %v3571, %v3859
        %v3861 = vpop.f32.mrb[0].mxu0
        %3862 = vmatprep.mubr.bf16.mxu0 %v2074
        %3863 = vmatmul.mubr.bf16.gmra.mrb[0].mxu0 %v2073
        %v3864 = vpop.f32.mrb[0].mxu0
        %v3865 = vadd.f32 %v3576, %v3864
        %v3866 = vpop.f32.mrb[0].mxu0
        %v3867 = vpop.f32.mrb[0].mxu0
        %v3868 = vadd.f32 %v3579, %v3867
        %v3869 = vpop.f32.mrb[0].mxu0
        %3870 = vmatprep.mubr.bf16.mxu0 %v2082
        %3871 = vmatmul.mubr.bf16.gmra.mrb[0].mxu0 %v2081
        %v3872 = vpop.f32.mrb[0].mxu0
        %v3873 = vadd.f32 %v3584, %v3872
        %v3874 = vpop.f32.mrb[0].mxu0
        %v3875 = vpop.f32.mrb[0].mxu0
        %v3876 = vadd.f32 %v3587, %v3875
        %v3877 = vpop.f32.mrb[0].mxu0
        %3878 = vmatprep.mubr.bf16.mxu0 %v2090
        %3879 = vmatmul.mubr.bf16.gmra.mrb[0].mxu0 %v2089
        %v3880 = vpop.f32.mrb[0].mxu0
        %v3881 = vadd.f32 %v3592, %v3880
        %v3882 = vpop.f32.mrb[0].mxu0
        %v3883 = vpop.f32.mrb[0].mxu0
        %v3884 = vadd.f32 %v3595, %v3883
        %v3885 = vpop.f32.mrb[0].mxu0
        %3886 = vmatprep.mubr.bf16.mxu0 %v2098
        %3887 = vmatmul.mubr.bf16.gmra.mrb[0].mxu0 %v2097
        %v3888 = vpop.f32.mrb[0].mxu0
        %v3889 = vadd.f32 %v3600, %v3888
        %v3890 = vpop.f32.mrb[0].mxu0
        %v3891 = vpop.f32.mrb[0].mxu0
        %v3892 = vadd.f32 %v3603, %v3891
        %v3893 = vpop.f32.mrb[0].mxu0
        %3894 = vmatprep.mubr.bf16.mxu0 %v2106
        %3895 = vmatmul.mubr.bf16.gmra.mrb[0].mxu0 %v2105
        %v3896 = vpop.f32.mrb[0].mxu0
        %v3897 = vadd.f32 %v3608, %v3896
        %v3898 = vpop.f32.mrb[0].mxu0
        %v3899 = vpop.f32.mrb[0].mxu0
        %v3900 = vadd.f32 %v3611, %v3899
        %v3901 = vpop.f32.mrb[0].mxu0
        %3902 = vmatprep.mubr.bf16.mxu0 %v2114
        %3903 = vmatmul.mubr.bf16.gmra.mrb[0].mxu0 %v2113
        %v3904 = vpop.f32.mrb[0].mxu0
        %v3905 = vadd.f32 %v3616, %v3904
        %v3906 = vpop.f32.mrb[0].mxu0
        %v3907 = vpop.f32.mrb[0].mxu0
        %v3908 = vadd.f32 %v3619, %v3907
        %v3909 = vpop.f32.mrb[0].mxu0
        %3910 = vmatprep.mubr.bf16.mxu0 %v2122
        %3911 = vmatmul.mubr.bf16.gmra.mrb[0].mxu0 %v2121
        %v3912 = vpop.f32.mrb[0].mxu0
        %v3913 = vadd.f32 %v3624, %v3912
        %v3914 = vpop.f32.mrb[0].mxu0
        %v3915 = vpop.f32.mrb[0].mxu0
        %v3916 = vadd.f32 %v3627, %v3915
        %v3917 = vpop.f32.mrb[0].mxu0
        %3918 = vmatprep.mubr.bf16.mxu0 %v2130
        %3919 = vmatmul.mubr.bf16.gmra.mrb[0].mxu0 %v2129
        %v3920 = vpop.f32.mrb[0].mxu0
        %v3921 = vadd.f32 %v3632, %v3920
        %v3922 = vpop.f32.mrb[0].mxu0
        %v3923 = vpop.f32.mrb[0].mxu0
        %v3924 = vadd.f32 %v3635, %v3923
        %v3925 = vpop.f32.mrb[0].mxu0
        %3926 = vmatprep.mubr.bf16.mxu0 %v2138
        %3927 = vmatmul.mubr.bf16.gmra.mrb[0].mxu0 %v2137
        %v3928 = vpop.f32.mrb[0].mxu0
        %v3929 = vadd.f32 %v3640, %v3928
        %v3930 = vpop.f32.mrb[0].mxu0
        %v3931 = vpop.f32.mrb[0].mxu0
        %v3932 = vadd.f32 %v3643, %v3931
        %v3933 = vpop.f32.mrb[0].mxu0
        %3934 = vmatprep.mubr.bf16.mxu0 %v2146
        %3935 = vmatmul.mubr.bf16.gmra.mrb[0].mxu0 %v2145
        %v3936 = vpop.f32.mrb[0].mxu0
        %v3937 = vadd.f32 %v3648, %v3936
        %v3938 = vpop.f32.mrb[0].mxu0
        %v3939 = vpop.f32.mrb[0].mxu0
        %v3940 = vadd.f32 %v3651, %v3939
        %v3941 = vpop.f32.mrb[0].mxu0
        %3942 = vmatprep.mubr.bf16.mxu0 %v2154
        %3943 = vmatmul.mubr.bf16.gmra.mrb[0].mxu0 %v2153
        %v3944 = vpop.f32.mrb[0].mxu0
        %v3945 = vadd.f32 %v3656, %v3944
        %v3946 = vpop.f32.mrb[0].mxu0
        %v3947 = vpop.f32.mrb[0].mxu0
        %v3948 = vadd.f32 %v3659, %v3947
        %v3949 = vpop.f32.mrb[0].mxu0
        %3950 = vmatprep.mubr.bf16.mxu0 %v2162
        %3951 = vmatmul.mubr.bf16.gmra.mrb[0].mxu0 %v2161
        %v3952 = vpop.f32.mrb[0].mxu0
        %v3953 = vadd.f32 %v3664, %v3952
        %v3954 = vpop.f32.mrb[0].mxu0
        %v3955 = vpop.f32.mrb[0].mxu0
        %v3956 = vadd.f32 %v3667, %v3955
        %v3957 = vpop.f32.mrb[0].mxu0
        %3958 = vmatprep.mubr.bf16.mxu0 %v2170
        %3959 = vmatmul.mubr.bf16.gmra.mrb[0].mxu0 %v2169
        %v3960 = vpop.f32.mrb[0].mxu0
        %v3961 = vadd.f32 %v3672, %v3960
        %v3962 = vpop.f32.mrb[0].mxu0
        %v3963 = vpop.f32.mrb[0].mxu0
        %v3964 = vadd.f32 %v3675, %v3963
        %v3965 = vpop.f32.mrb[0].mxu0
        %3966 = vmatprep.mubr.bf16.mxu0 %v2178
        %3967 = vmatmul.mubr.bf16.gmra.mrb[0].mxu0 %v2177
        %v3968 = vpop.f32.mrb[0].mxu0
        %v3969 = vadd.f32 %v3680, %v3968
        %v3970 = vpop.f32.mrb[0].mxu0
        %v3971 = vpop.f32.mrb[0].mxu0
        %v3972 = vadd.f32 %v3683, %v3971
        %v3973 = vpop.f32.mrb[0].mxu0
        %3974 = vmatprep.mubr.bf16.mxu0 %v2186
        %3975 = vmatmul.mubr.bf16.gmra.mrb[0].mxu0 %v2185
        %v3976 = vpop.f32.mrb[0].mxu0
        %v3977 = vadd.f32 %v3688, %v3976
        %v3978 = vpop.f32.mrb[0].mxu0
        %v3979 = vpop.f32.mrb[0].mxu0
        %v3980 = vadd.f32 %v3691, %v3979
        %v3981 = vpop.f32.mrb[0].mxu0
        %3982 = vmatprep.mubr.bf16.mxu0 %v2194
        %3983 = vmatmul.mubr.bf16.gmra.mrb[0].mxu0 %v2193
        %v3984 = vpop.f32.mrb[0].mxu0
        %v3985 = vadd.f32 %v3696, %v3984
        %v3986 = vpop.f32.mrb[0].mxu0
        %v3987 = vpop.f32.mrb[0].mxu0
        %v3988 = vadd.f32 %v3699, %v3987
        %v3989 = vpop.f32.mrb[0].mxu0
        %3990 = vmatprep.mubr.bf16.mxu0 %v2202
        %3991 = vmatmul.mubr.bf16.gmra.mrb[0].mxu0 %v2201
        %v3992 = vpop.f32.mrb[0].mxu0
        %v3993 = vadd.f32 %v3704, %v3992
        %v3994 = vpop.f32.mrb[0].mxu0
        %v3995 = vpop.f32.mrb[0].mxu0
        %v3996 = vadd.f32 %v3707, %v3995
        %v3997 = vpop.f32.mrb[0].mxu0
        %3998 = vmatprep.mubr.bf16.mxu0 %v2210
        %3999 = vmatmul.mubr.bf16.gmra.mrb[0].mxu0 %v2209
        %v4000 = vpop.f32.mrb[0].mxu0
        %v4001 = vadd.f32 %v3712, %v4000
        %v4002 = vpop.f32.mrb[0].mxu0
        %v4003 = vpop.f32.mrb[0].mxu0
        %v4004 = vadd.f32 %v3715, %v4003
        %v4005 = vpop.f32.mrb[0].mxu0
        %4006 = vmatprep.mubr.bf16.mxu0 %v2218
        %4007 = vmatmul.mubr.bf16.gmra.mrb[0].mxu0 %v2217
        %v4008 = vpop.f32.mrb[0].mxu0
        %v4009 = vadd.f32 %v3720, %v4008
        %v4010 = vpop.f32.mrb[0].mxu0
        %v4011 = vpop.f32.mrb[0].mxu0
        %v4012 = vadd.f32 %v3723, %v4011
        %v4013 = vpop.f32.mrb[0].mxu0
        %4014 = vmatprep.mubr.bf16.mxu0 %v2226
        %4015 = vmatmul.mubr.bf16.gmra.mrb[0].mxu0 %v2225
        %v4016 = vpop.f32.mrb[0].mxu0
        %v4017 = vadd.f32 %v3728, %v4016
        %v4018 = vpop.f32.mrb[0].mxu0
        %v4019 = vpop.f32.mrb[0].mxu0
        %v4020 = vadd.f32 %v3731, %v4019
        %v4021 = vpop.f32.mrb[0].mxu0
        %4022 = vmatprep.mubr.bf16.mxu0 %v2234
        %4023 = vmatmul.mubr.bf16.gmra.mrb[0].mxu0 %v2233
        %v4024 = vpop.f32.mrb[0].mxu0
        %v4025 = vadd.f32 %v3736, %v4024
        %v4026 = vpop.f32.mrb[0].mxu0
        %v4027 = vpop.f32.mrb[0].mxu0
        %v4028 = vadd.f32 %v3739, %v4027
        %v4029 = vpop.f32.mrb[0].mxu0
        %4030 = vmatprep.mubr.bf16.mxu0 %v2242
        %4031 = vmatmul.mubr.bf16.gmra.mrb[0].mxu0 %v2241
        %v4032 = vpop.f32.mrb[0].mxu0
        %v4033 = vadd.f32 %v3744, %v4032
        %v4034 = vpop.f32.mrb[0].mxu0
        %v4035 = vpop.f32.mrb[0].mxu0
        %v4036 = vadd.f32 %v3747, %v4035
        %v4037 = vpop.f32.mrb[0].mxu0
        %4038 = vmatprep.mubr.bf16.mxu0 %v2250
        %4039 = vmatmul.mubr.bf16.gmra.mrb[0].mxu0 %v2249
        %v4040 = vpop.f32.mrb[0].mxu0
        %v4041 = vadd.f32 %v3752, %v4040
        %v4042 = vpop.f32.mrb[0].mxu0
        %v4043 = vpop.f32.mrb[0].mxu0
        %v4044 = vadd.f32 %v3755, %v4043
        %v4045 = vpop.f32.mrb[0].mxu0
        %4046 = vmatprep.mubr.bf16.mxu0 %v2258
        %4047 = vmatmul.mubr.bf16.gmra.mrb[0].mxu0 %v2257
        %v4048 = vpop.f32.mrb[0].mxu0
        %v4049 = vadd.f32 %v3760, %v4048
        %v4050 = vpop.f32.mrb[0].mxu0
        %v4051 = vpop.f32.mrb[0].mxu0
        %v4052 = vadd.f32 %v3763, %v4051
        %v4053 = vpop.f32.mrb[0].mxu0
        %4054 = vmatprep.mubr.bf16.mxu0 %v2266
        %4055 = vmatmul.mubr.bf16.gmra.mrb[0].mxu0 %v2265
        %v4056 = vpop.f32.mrb[0].mxu0
        %v4057 = vadd.f32 %v3768, %v4056
        %v4058 = vpop.f32.mrb[0].mxu0
        %v4059 = vpop.f32.mrb[0].mxu0
        %v4060 = vadd.f32 %v3771, %v4059
        %v4061 = vpop.f32.mrb[0].mxu0
        %4062 = vdwg.mxu0
        %v4063 = vadd.f32 %v923, %v3809
        %v4064 = vadd.f32 %v924, %v3812
        %v4065 = vadd.f32 %v925, %v3817
        %v4066 = vadd.f32 %v926, %v3820
        %v4067 = vadd.f32 %v927, %v3825
        %v4068 = vadd.f32 %v928, %v3828
        %v4069 = vadd.f32 %v929, %v3833
        %v4070 = vadd.f32 %v930, %v3836
        %v4071 = vadd.f32 %v931, %v3841
        %v4072 = vadd.f32 %v932, %v3844
        %v4073 = vadd.f32 %v933, %v3849
        %v4074 = vadd.f32 %v934, %v3852
        %v4075 = vadd.f32 %v935, %v3857
        %v4076 = vadd.f32 %v936, %v3860
        %v4077 = vadd.f32 %v937, %v3865
        %v4078 = vadd.f32 %v938, %v3868
        %v4079 = vadd.f32 %v939, %v3873
        %v4080 = vadd.f32 %v940, %v3876
        %v4081 = vadd.f32 %v941, %v3881
        %v4082 = vadd.f32 %v942, %v3884
        %v4083 = vadd.f32 %v943, %v3889
        %v4084 = vadd.f32 %v944, %v3892
        %v4085 = vadd.f32 %v945, %v3897
        %v4086 = vadd.f32 %v946, %v3900
        %v4087 = vadd.f32 %v947, %v3905
        %v4088 = vadd.f32 %v948, %v3908
        %v4089 = vadd.f32 %v949, %v3913
        %v4090 = vadd.f32 %v950, %v3916
        %v4091 = vadd.f32 %v951, %v3921
        %v4092 = vadd.f32 %v952, %v3924
        %v4093 = vadd.f32 %v953, %v3929
        %v4094 = vadd.f32 %v954, %v3932
        %v4095 = vadd.f32 %v955, %v3937
        %v4096 = vadd.f32 %v956, %v3940
        %v4097 = vadd.f32 %v957, %v3945
        %v4098 = vadd.f32 %v958, %v3948
        %v4099 = vadd.f32 %v959, %v3953
        %v4100 = vadd.f32 %v960, %v3956
        %v4101 = vadd.f32 %v961, %v3961
        %v4102 = vadd.f32 %v962, %v3964
        %v4103 = vadd.f32 %v963, %v3969
        %v4104 = vadd.f32 %v964, %v3972
        %v4105 = vadd.f32 %v965, %v3977
        %v4106 = vadd.f32 %v966, %v3980
        %v4107 = vadd.f32 %v967, %v3985
        %v4108 = vadd.f32 %v968, %v3988
        %v4109 = vadd.f32 %v969, %v3993
        %v4110 = vadd.f32 %v970, %v3996
        %v4111 = vadd.f32 %v971, %v4001
        %v4112 = vadd.f32 %v972, %v4004
        %v4113 = vadd.f32 %v973, %v4009
        %v4114 = vadd.f32 %v974, %v4012
        %v4115 = vadd.f32 %v975, %v4017
        %v4116 = vadd.f32 %v976, %v4020
        %v4117 = vadd.f32 %v977, %v4025
        %v4118 = vadd.f32 %v978, %v4028
        %v4119 = vadd.f32 %v979, %v4033
        %v4120 = vadd.f32 %v980, %v4036
        %v4121 = vadd.f32 %v981, %v4041
        %v4122 = vadd.f32 %v982, %v4044
        %v4123 = vadd.f32 %v983, %v4049
        %v4124 = vadd.f32 %v984, %v4052
        %v4125 = vadd.f32 %v985, %v4057
        %v4126 = vadd.f32 %v986, %v4060
        %4127 = vst [vmem:[#allocation2] sm:$0xff] %v4063
        %4128 = vst [vmem:[#allocation2 + $0x8] sm:$0xff] %v4064
        %4129 = vst [vmem:[#allocation2 + $0x10] sm:$0xff] %v4065
        %4130 = vst [vmem:[#allocation2 + $0x18] sm:$0xff] %v4066
        %4131 = vst [vmem:[#allocation2 + $0x20] sm:$0xff] %v4067
        %4132 = vst [vmem:[#allocation2 + $0x28] sm:$0xff] %v4068
        %4133 = vst [vmem:[#allocation2 + $0x30] sm:$0xff] %v4069
        %4134 = vst [vmem:[#allocation2 + $0x38] sm:$0xff] %v4070
        %4135 = vst [vmem:[#allocation2 + $0x40] sm:$0xff] %v4071
        %4136 = vst [vmem:[#allocation2 + $0x48] sm:$0xff] %v4072
        %4137 = vst [vmem:[#allocation2 + $0x50] sm:$0xff] %v4073
        %4138 = vst [vmem:[#allocation2 + $0x58] sm:$0xff] %v4074
        %4139 = vst [vmem:[#allocation2 + $0x60] sm:$0xff] %v4075
        %4140 = vst [vmem:[#allocation2 + $0x68] sm:$0xff] %v4076
        %4141 = vst [vmem:[#allocation2 + $0x70] sm:$0xff] %v4077
        %4142 = vst [vmem:[#allocation2 + $0x78] sm:$0xff] %v4078
        %4143 = vst [vmem:[#allocation2 + $0x80] sm:$0xff] %v4079
        %4144 = vst [vmem:[#allocation2 + $0x88] sm:$0xff] %v4080
        %4145 = vst [vmem:[#allocation2 + $0x90] sm:$0xff] %v4081
        %4146 = vst [vmem:[#allocation2 + $0x98] sm:$0xff] %v4082
        %4147 = vst [vmem:[#allocation2 + $0xa0] sm:$0xff] %v4083
        %4148 = vst [vmem:[#allocation2 + $0xa8] sm:$0xff] %v4084
        %4149 = vst [vmem:[#allocation2 + $0xb0] sm:$0xff] %v4085
        %4150 = vst [vmem:[#allocation2 + $0xb8] sm:$0xff] %v4086
        %4151 = vst [vmem:[#allocation2 + $0xc0] sm:$0xff] %v4087
        %4152 = vst [vmem:[#allocation2 + $0xc8] sm:$0xff] %v4088
        %4153 = vst [vmem:[#allocation2 + $0xd0] sm:$0xff] %v4089
        %4154 = vst [vmem:[#allocation2 + $0xd8] sm:$0xff] %v4090
        %4155 = vst [vmem:[#allocation2 + $0xe0] sm:$0xff] %v4091
        %4156 = vst [vmem:[#allocation2 + $0xe8] sm:$0xff] %v4092
        %4157 = vst [vmem:[#allocation2 + $0xf0] sm:$0xff] %v4093
        %4158 = vst [vmem:[#allocation2 + $0xf8] sm:$0xff] %v4094
        %4159 = vst [vmem:[#allocation2 + $0x100] sm:$0xff] %v4095
        %4160 = vst [vmem:[#allocation2 + $0x108] sm:$0xff] %v4096
        %4161 = vst [vmem:[#allocation2 + $0x110] sm:$0xff] %v4097
        %4162 = vst [vmem:[#allocation2 + $0x118] sm:$0xff] %v4098
        %4163 = vst [vmem:[#allocation2 + $0x120] sm:$0xff] %v4099
        %4164 = vst [vmem:[#allocation2 + $0x128] sm:$0xff] %v4100
        %4165 = vst [vmem:[#allocation2 + $0x130] sm:$0xff] %v4101
        %4166 = vst [vmem:[#allocation2 + $0x138] sm:$0xff] %v4102
        %4167 = vst [vmem:[#allocation2 + $0x140] sm:$0xff] %v4103
        %4168 = vst [vmem:[#allocation2 + $0x148] sm:$0xff] %v4104
        %4169 = vst [vmem:[#allocation2 + $0x150] sm:$0xff] %v4105
        %4170 = vst [vmem:[#allocation2 + $0x158] sm:$0xff] %v4106
        %4171 = vst [vmem:[#allocation2 + $0x160] sm:$0xff] %v4107
        %4172 = vst [vmem:[#allocation2 + $0x168] sm:$0xff] %v4108
        %4173 = vst [vmem:[#allocation2 + $0x170] sm:$0xff] %v4109
        %4174 = vst [vmem:[#allocation2 + $0x178] sm:$0xff] %v4110
        %4175 = vst [vmem:[#allocation2 + $0x180] sm:$0xff] %v4111
        %4176 = vst [vmem:[#allocation2 + $0x188] sm:$0xff] %v4112
        %4177 = vst [vmem:[#allocation2 + $0x190] sm:$0xff] %v4113
        %4178 = vst [vmem:[#allocation2 + $0x198] sm:$0xff] %v4114
        %4179 = vst [vmem:[#allocation2 + $0x1a0] sm:$0xff] %v4115
        %4180 = vst [vmem:[#allocation2 + $0x1a8] sm:$0xff] %v4116
        %4181 = vst [vmem:[#allocation2 + $0x1b0] sm:$0xff] %v4117
        %4182 = vst [vmem:[#allocation2 + $0x1b8] sm:$0xff] %v4118
        %4183 = vst [vmem:[#allocation2 + $0x1c0] sm:$0xff] %v4119
        %4184 = vst [vmem:[#allocation2 + $0x1c8] sm:$0xff] %v4120
        %4185 = vst [vmem:[#allocation2 + $0x1d0] sm:$0xff] %v4121
        %4186 = vst [vmem:[#allocation2 + $0x1d8] sm:$0xff] %v4122
        %4187 = vst [vmem:[#allocation2 + $0x1e0] sm:$0xff] %v4123
        %4188 = vst [vmem:[#allocation2 + $0x1e8] sm:$0xff] %v4124
        %4189 = vst [vmem:[#allocation2 + $0x1f0] sm:$0xff] %v4125
        %4190 = vst [vmem:[#allocation2 + $0x1f8] sm:$0xff] %v4126
        %p4191 = scmp.eq.s32.totalorder %s19, 1
        // Predicated region
        $region60: #{_gcn_forward.2} parent=50 // pred_check
          %p4192 = pneg %p4191
        $region61: #{_gcn_forward.2} parent=50 // pred_check_branch
          %4194 = sbr.rel (%p4192) target = $region63
        $region62: #{_gcn_forward.2} parent=50 // pred_region
          %v4195 = vld [vmem:[#allocation2] sm:$0xff]
          %v4196 = vld [vmem:[#allocation2 + $0x8] sm:$0xff]
          %v4197 = vld [vmem:[#allocation2 + $0x10] sm:$0xff]
          %v4198 = vld [vmem:[#allocation2 + $0x18] sm:$0xff]
          %v4199 = vld [vmem:[#allocation2 + $0x20] sm:$0xff]
          %v4200 = vld [vmem:[#allocation2 + $0x28] sm:$0xff]
          %v4201 = vld [vmem:[#allocation2 + $0x30] sm:$0xff]
          %v4202 = vld [vmem:[#allocation2 + $0x38] sm:$0xff]
          %v4203 = vld [vmem:[#allocation2 + $0x40] sm:$0xff]
          %v4204 = vld [vmem:[#allocation2 + $0x48] sm:$0xff]
          %v4205 = vld [vmem:[#allocation2 + $0x50] sm:$0xff]
          %v4206 = vld [vmem:[#allocation2 + $0x58] sm:$0xff]
          %v4207 = vld [vmem:[#allocation2 + $0x60] sm:$0xff]
          %v4208 = vld [vmem:[#allocation2 + $0x68] sm:$0xff]
          %v4209 = vld [vmem:[#allocation2 + $0x70] sm:$0xff]
          %v4210 = vld [vmem:[#allocation2 + $0x78] sm:$0xff]
          %v4211 = vld [vmem:[#allocation2 + $0x80] sm:$0xff]
          %v4212 = vld [vmem:[#allocation2 + $0x88] sm:$0xff]
          %v4213 = vld [vmem:[#allocation2 + $0x90] sm:$0xff]
          %v4214 = vld [vmem:[#allocation2 + $0x98] sm:$0xff]
          %v4215 = vld [vmem:[#allocation2 + $0xa0] sm:$0xff]
          %v4216 = vld [vmem:[#allocation2 + $0xa8] sm:$0xff]
          %v4217 = vld [vmem:[#allocation2 + $0xb0] sm:$0xff]
          %v4218 = vld [vmem:[#allocation2 + $0xb8] sm:$0xff]
          %v4219 = vld [vmem:[#allocation2 + $0xc0] sm:$0xff]
          %v4220 = vld [vmem:[#allocation2 + $0xc8] sm:$0xff]
          %v4221 = vld [vmem:[#allocation2 + $0xd0] sm:$0xff]
          %v4222 = vld [vmem:[#allocation2 + $0xd8] sm:$0xff]
          %v4223 = vld [vmem:[#allocation2 + $0xe0] sm:$0xff]
          %v4224 = vld [vmem:[#allocation2 + $0xe8] sm:$0xff]
          %v4225 = vld [vmem:[#allocation2 + $0xf0] sm:$0xff]
          %v4226 = vld [vmem:[#allocation2 + $0xf8] sm:$0xff]
          %v4227 = vld [vmem:[#allocation2 + $0x100] sm:$0xff]
          %v4228 = vld [vmem:[#allocation2 + $0x108] sm:$0xff]
          %v4229 = vld [vmem:[#allocation2 + $0x110] sm:$0xff]
          %v4230 = vld [vmem:[#allocation2 + $0x118] sm:$0xff]
          %v4231 = vld [vmem:[#allocation2 + $0x120] sm:$0xff]
          %v4232 = vld [vmem:[#allocation2 + $0x128] sm:$0xff]
          %v4233 = vld [vmem:[#allocation2 + $0x130] sm:$0xff]
          %v4234 = vld [vmem:[#allocation2 + $0x138] sm:$0xff]
          %v4235 = vld [vmem:[#allocation2 + $0x140] sm:$0xff]
          %v4236 = vld [vmem:[#allocation2 + $0x148] sm:$0xff]
          %v4237 = vld [vmem:[#allocation2 + $0x150] sm:$0xff]
          %v4238 = vld [vmem:[#allocation2 + $0x158] sm:$0xff]
          %v4239 = vld [vmem:[#allocation2 + $0x160] sm:$0xff]
          %v4240 = vld [vmem:[#allocation2 + $0x168] sm:$0xff]
          %v4241 = vld [vmem:[#allocation2 + $0x170] sm:$0xff]
          %v4242 = vld [vmem:[#allocation2 + $0x178] sm:$0xff]
          %v4243 = vld [vmem:[#allocation2 + $0x180] sm:$0xff]
          %v4244 = vld [vmem:[#allocation2 + $0x188] sm:$0xff]
          %v4245 = vld [vmem:[#allocation2 + $0x190] sm:$0xff]
          %v4246 = vld [vmem:[#allocation2 + $0x198] sm:$0xff]
          %v4247 = vld [vmem:[#allocation2 + $0x1a0] sm:$0xff]
          %v4248 = vld [vmem:[#allocation2 + $0x1a8] sm:$0xff]
          %v4249 = vld [vmem:[#allocation2 + $0x1b0] sm:$0xff]
          %v4250 = vld [vmem:[#allocation2 + $0x1b8] sm:$0xff]
          %v4251 = vld [vmem:[#allocation2 + $0x1c0] sm:$0xff]
          %v4252 = vld [vmem:[#allocation2 + $0x1c8] sm:$0xff]
          %v4253 = vld [vmem:[#allocation2 + $0x1d0] sm:$0xff]
          %v4254 = vld [vmem:[#allocation2 + $0x1d8] sm:$0xff]
          %v4255 = vld [vmem:[#allocation2 + $0x1e0] sm:$0xff]
          %v4256 = vld [vmem:[#allocation2 + $0x1e8] sm:$0xff]
          %v4257 = vld [vmem:[#allocation2 + $0x1f0] sm:$0xff]
          %v4258 = vld [vmem:[#allocation2 + $0x1f8] sm:$0xff]
          %v4259 = vpack.c.bf16 %v4196, %v4195
          %v4260 = vpack.c.bf16 %v4198, %v4197
          %v4261 = vpack.c.bf16 %v4200, %v4199
          %v4262 = vpack.c.bf16 %v4202, %v4201
          %v4263 = vpack.c.bf16 %v4204, %v4203
          %v4264 = vpack.c.bf16 %v4206, %v4205
          %v4265 = vpack.c.bf16 %v4208, %v4207
          %v4266 = vpack.c.bf16 %v4210, %v4209
          %v4267 = vpack.c.bf16 %v4212, %v4211
          %v4268 = vpack.c.bf16 %v4214, %v4213
          %v4269 = vpack.c.bf16 %v4216, %v4215
          %v4270 = vpack.c.bf16 %v4218, %v4217
          %v4271 = vpack.c.bf16 %v4220, %v4219
          %v4272 = vpack.c.bf16 %v4222, %v4221
          %v4273 = vpack.c.bf16 %v4224, %v4223
          %v4274 = vpack.c.bf16 %v4226, %v4225
          %v4275 = vpack.c.bf16 %v4228, %v4227
          %v4276 = vpack.c.bf16 %v4230, %v4229
          %v4277 = vpack.c.bf16 %v4232, %v4231
          %v4278 = vpack.c.bf16 %v4234, %v4233
          %v4279 = vpack.c.bf16 %v4236, %v4235
          %v4280 = vpack.c.bf16 %v4238, %v4237
          %v4281 = vpack.c.bf16 %v4240, %v4239
          %v4282 = vpack.c.bf16 %v4242, %v4241
          %v4283 = vpack.c.bf16 %v4244, %v4243
          %v4284 = vpack.c.bf16 %v4246, %v4245
          %v4285 = vpack.c.bf16 %v4248, %v4247
          %v4286 = vpack.c.bf16 %v4250, %v4249
          %v4287 = vpack.c.bf16 %v4252, %v4251
          %v4288 = vpack.c.bf16 %v4254, %v4253
          %v4289 = vpack.c.bf16 %v4256, %v4255
          %v4290 = vpack.c.bf16 %v4258, %v4257
          %v4291 = vld [vmem:[%s2] sm:$0xf]
          %v4292 = vld [vmem:[%s2 + $0x4] sm:$0xf]
          %v4293 = vld [vmem:[%s2 + $0x8] sm:$0xf]
          %v4294 = vld [vmem:[%s2 + $0xc] sm:$0xf]
          %v4295 = vld [vmem:[%s2 + $0x10] sm:$0xf]
          %v4296 = vld [vmem:[%s2 + $0x14] sm:$0xf]
          %v4297 = vld [vmem:[%s2 + $0x18] sm:$0xf]
          %v4298 = vld [vmem:[%s2 + $0x1c] sm:$0xf]
          %v4299 = vld [vmem:[%s2 + $0x20] sm:$0xf]
          %v4300 = vld [vmem:[%s2 + $0x24] sm:$0xf]
          %v4301 = vld [vmem:[%s2 + $0x28] sm:$0xf]
          %v4302 = vld [vmem:[%s2 + $0x2c] sm:$0xf]
          %v4303 = vld [vmem:[%s2 + $0x30] sm:$0xf]
          %v4304 = vld [vmem:[%s2 + $0x34] sm:$0xf]
          %v4305 = vld [vmem:[%s2 + $0x38] sm:$0xf]
          %v4306 = vld [vmem:[%s2 + $0x3c] sm:$0xf]
          %v4323 = vunpack.c.l.b16 %v4291
          %v4324 = vunpack.c.l.b16 %v4292
          %v4325 = vunpack.c.l.b16 %v4293
          %v4326 = vunpack.c.l.b16 %v4294
          %v4327 = vunpack.c.l.b16 %v4295
          %v4328 = vunpack.c.l.b16 %v4296
          %v4329 = vunpack.c.l.b16 %v4297
          %v4330 = vunpack.c.l.b16 %v4298
          %v4331 = vunpack.c.l.b16 %v4299
          %v4332 = vunpack.c.l.b16 %v4300
          %v4333 = vunpack.c.l.b16 %v4301
          %v4334 = vunpack.c.l.b16 %v4302
          %v4335 = vunpack.c.l.b16 %v4303
          %v4336 = vunpack.c.l.b16 %v4304
          %v4337 = vunpack.c.l.b16 %v4305
          %v4338 = vunpack.c.l.b16 %v4306
          %v4339 = vpack.c.b16 %v4324, %v4323
          %v4340 = vpack.c.b16 %v4326, %v4325
          %v4341 = vpack.c.b16 %v4328, %v4327
          %v4342 = vpack.c.b16 %v4330, %v4329
          %v4343 = vpack.c.b16 %v4332, %v4331
          %v4344 = vpack.c.b16 %v4334, %v4333
          %v4345 = vpack.c.b16 %v4336, %v4335
          %v4346 = vpack.c.b16 %v4338, %v4337
          %4355 = vmatprep.subr.bf16.mxu0 0
          %4356 = vmatpush1.bf16.msra.mxu0 %v4339
          %4357 = vmatprep.subr.bf16.mxu0 0
          %4358 = vmatpush1.bf16.msra.mxu0 %v4340
          %4359 = vmatprep.subr.bf16.mxu0 0
          %4360 = vmatpush1.bf16.msra.mxu0 %v4341
          %4361 = vmatprep.subr.bf16.mxu0 0
          %4362 = vmatpush1.bf16.msra.mxu0 %v4342
          %4363 = vmatprep.subr.bf16.mxu0 0
          %4364 = vmatpush1.bf16.msra.mxu0 %v4343
          %4365 = vmatprep.subr.bf16.mxu0 0
          %4366 = vmatpush1.bf16.msra.mxu0 %v4344
          %4367 = vmatprep.subr.bf16.mxu0 0
          %4368 = vmatpush1.bf16.msra.mxu0 %v4345
          %4369 = vmatprep.subr.bf16.mxu0 0
          %4370 = vmatpush1.bf16.msra.mxu0 %v4346
          %4371 = vmatprep.subr.bf16.mxu0 0
          %4372 = vmatpush1.bf16.msra.mxu0 0
          %4373 = vmatprep.subr.bf16.mxu0 0
          %4374 = vmatpush1.bf16.msra.mxu0 0
          %4375 = vmatprep.subr.bf16.mxu0 0
          %4376 = vmatpush1.bf16.msra.mxu0 0
          %4377 = vmatprep.subr.bf16.mxu0 0
          %4378 = vmatpush1.bf16.msra.mxu0 0
          %4379 = vmatprep.subr.bf16.mxu0 0
          %4380 = vmatpush1.bf16.msra.mxu0 0
          %4381 = vmatprep.subr.bf16.mxu0 0
          %4382 = vmatpush1.bf16.msra.mxu0 0
          %4383 = vmatprep.subr.bf16.mxu0 0
          %4384 = vmatpush1.bf16.msra.mxu0 0
          %4385 = vmatprep.subr.bf16.mxu0 0
          %4386 = vmatpush1.bf16.msra.mxu0 0
          %4387 = vmatprep.mubr.bf16.mxu0 0
          %4388 = vmatmul.mubr.bf16.gmra.mrb[0].mxu0 %v4259
          %v4389 = vpop.f32.mrb[0].mxu0
          %v4390 = vadd.f32 0.0, %v4389
          %v4391 = vpop.f32.mrb[0].mxu0
          %v4392 = vpop.f32.mrb[0].mxu0
          %v4393 = vadd.f32 0.0, %v4392
          %v4394 = vpop.f32.mrb[0].mxu0
          %4395 = vmatprep.mubr.bf16.mxu0 0
          %4396 = vmatmul.mubr.bf16.gmra.mrb[0].mxu0 %v4260
          %v4397 = vpop.f32.mrb[0].mxu0
          %v4398 = vadd.f32 0.0, %v4397
          %v4399 = vpop.f32.mrb[0].mxu0
          %v4400 = vpop.f32.mrb[0].mxu0
          %v4401 = vadd.f32 0.0, %v4400
          %v4402 = vpop.f32.mrb[0].mxu0
          %4403 = vmatprep.mubr.bf16.mxu0 0
          %4404 = vmatmul.mubr.bf16.gmra.mrb[0].mxu0 %v4261
          %v4405 = vpop.f32.mrb[0].mxu0
          %v4406 = vadd.f32 0.0, %v4405
          %v4407 = vpop.f32.mrb[0].mxu0
          %v4408 = vpop.f32.mrb[0].mxu0
          %v4409 = vadd.f32 0.0, %v4408
          %v4410 = vpop.f32.mrb[0].mxu0
          %4411 = vmatprep.mubr.bf16.mxu0 0
          %4412 = vmatmul.mubr.bf16.gmra.mrb[0].mxu0 %v4262
          %v4413 = vpop.f32.mrb[0].mxu0
          %v4414 = vadd.f32 0.0, %v4413
          %v4415 = vpop.f32.mrb[0].mxu0
          %v4416 = vpop.f32.mrb[0].mxu0
          %v4417 = vadd.f32 0.0, %v4416
          %v4418 = vpop.f32.mrb[0].mxu0
          %4419 = vmatprep.mubr.bf16.mxu0 0
          %4420 = vmatmul.mubr.bf16.gmra.mrb[0].mxu0 %v4263
          %v4421 = vpop.f32.mrb[0].mxu0
          %v4422 = vadd.f32 0.0, %v4421
          %v4423 = vpop.f32.mrb[0].mxu0
          %v4424 = vpop.f32.mrb[0].mxu0
          %v4425 = vadd.f32 0.0, %v4424
          %v4426 = vpop.f32.mrb[0].mxu0
          %4427 = vmatprep.mubr.bf16.mxu0 0
          %4428 = vmatmul.mubr.bf16.gmra.mrb[0].mxu0 %v4264
          %v4429 = vpop.f32.mrb[0].mxu0
          %v4430 = vadd.f32 0.0, %v4429
          %v4431 = vpop.f32.mrb[0].mxu0
          %v4432 = vpop.f32.mrb[0].mxu0
          %v4433 = vadd.f32 0.0, %v4432
          %v4434 = vpop.f32.mrb[0].mxu0
          %4435 = vmatprep.mubr.bf16.mxu0 0
          %4436 = vmatmul.mubr.bf16.gmra.mrb[0].mxu0 %v4265
          %v4437 = vpop.f32.mrb[0].mxu0
          %v4438 = vadd.f32 0.0, %v4437
          %v4439 = vpop.f32.mrb[0].mxu0
          %v4440 = vpop.f32.mrb[0].mxu0
          %v4441 = vadd.f32 0.0, %v4440
          %v4442 = vpop.f32.mrb[0].mxu0
          %4443 = vmatprep.mubr.bf16.mxu0 0
          %4444 = vmatmul.mubr.bf16.gmra.mrb[0].mxu0 %v4266
          %v4445 = vpop.f32.mrb[0].mxu0
          %v4446 = vadd.f32 0.0, %v4445
          %v4447 = vpop.f32.mrb[0].mxu0
          %v4448 = vpop.f32.mrb[0].mxu0
          %v4449 = vadd.f32 0.0, %v4448
          %v4450 = vpop.f32.mrb[0].mxu0
          %4451 = vmatprep.mubr.bf16.mxu0 0
          %4452 = vmatmul.mubr.bf16.gmra.mrb[0].mxu0 %v4267
          %v4453 = vpop.f32.mrb[0].mxu0
          %v4454 = vadd.f32 0.0, %v4453
          %v4455 = vpop.f32.mrb[0].mxu0
          %v4456 = vpop.f32.mrb[0].mxu0
          %v4457 = vadd.f32 0.0, %v4456
          %v4458 = vpop.f32.mrb[0].mxu0
          %4459 = vmatprep.mubr.bf16.mxu0 0
          %4460 = vmatmul.mubr.bf16.gmra.mrb[0].mxu0 %v4268
          %v4461 = vpop.f32.mrb[0].mxu0
          %v4462 = vadd.f32 0.0, %v4461
          %v4463 = vpop.f32.mrb[0].mxu0
          %v4464 = vpop.f32.mrb[0].mxu0
          %v4465 = vadd.f32 0.0, %v4464
          %v4466 = vpop.f32.mrb[0].mxu0
          %4467 = vmatprep.mubr.bf16.mxu0 0
          %4468 = vmatmul.mubr.bf16.gmra.mrb[0].mxu0 %v4269
          %v4469 = vpop.f32.mrb[0].mxu0
          %v4470 = vadd.f32 0.0, %v4469
          %v4471 = vpop.f32.mrb[0].mxu0
          %v4472 = vpop.f32.mrb[0].mxu0
          %v4473 = vadd.f32 0.0, %v4472
          %v4474 = vpop.f32.mrb[0].mxu0
          %4475 = vmatprep.mubr.bf16.mxu0 0
          %4476 = vmatmul.mubr.bf16.gmra.mrb[0].mxu0 %v4270
          %v4477 = vpop.f32.mrb[0].mxu0
          %v4478 = vadd.f32 0.0, %v4477
          %v4479 = vpop.f32.mrb[0].mxu0
          %v4480 = vpop.f32.mrb[0].mxu0
          %v4481 = vadd.f32 0.0, %v4480
          %v4482 = vpop.f32.mrb[0].mxu0
          %4483 = vmatprep.mubr.bf16.mxu0 0
          %4484 = vmatmul.mubr.bf16.gmra.mrb[0].mxu0 %v4271
          %v4485 = vpop.f32.mrb[0].mxu0
          %v4486 = vadd.f32 0.0, %v4485
          %v4487 = vpop.f32.mrb[0].mxu0
          %v4488 = vpop.f32.mrb[0].mxu0
          %v4489 = vadd.f32 0.0, %v4488
          %v4490 = vpop.f32.mrb[0].mxu0
          %4491 = vmatprep.mubr.bf16.mxu0 0
          %4492 = vmatmul.mubr.bf16.gmra.mrb[0].mxu0 %v4272
          %v4493 = vpop.f32.mrb[0].mxu0
          %v4494 = vadd.f32 0.0, %v4493
          %v4495 = vpop.f32.mrb[0].mxu0
          %v4496 = vpop.f32.mrb[0].mxu0
          %v4497 = vadd.f32 0.0, %v4496
          %v4498 = vpop.f32.mrb[0].mxu0
          %4499 = vmatprep.mubr.bf16.mxu0 0
          %4500 = vmatmul.mubr.bf16.gmra.mrb[0].mxu0 %v4273
          %v4501 = vpop.f32.mrb[0].mxu0
          %v4502 = vadd.f32 0.0, %v4501
          %v4503 = vpop.f32.mrb[0].mxu0
          %v4504 = vpop.f32.mrb[0].mxu0
          %v4505 = vadd.f32 0.0, %v4504
          %v4506 = vpop.f32.mrb[0].mxu0
          %4507 = vmatprep.mubr.bf16.mxu0 0
          %4508 = vmatmul.mubr.bf16.gmra.mrb[0].mxu0 %v4274
          %v4509 = vpop.f32.mrb[0].mxu0
          %v4510 = vadd.f32 0.0, %v4509
          %v4511 = vpop.f32.mrb[0].mxu0
          %v4512 = vpop.f32.mrb[0].mxu0
          %v4513 = vadd.f32 0.0, %v4512
          %v4514 = vpop.f32.mrb[0].mxu0
          %4515 = vmatprep.mubr.bf16.mxu0 0
          %4516 = vmatmul.mubr.bf16.gmra.mrb[0].mxu0 %v4275
          %v4517 = vpop.f32.mrb[0].mxu0
          %v4518 = vadd.f32 0.0, %v4517
          %v4519 = vpop.f32.mrb[0].mxu0
          %v4520 = vpop.f32.mrb[0].mxu0
          %v4521 = vadd.f32 0.0, %v4520
          %v4522 = vpop.f32.mrb[0].mxu0
          %4523 = vmatprep.mubr.bf16.mxu0 0
          %4524 = vmatmul.mubr.bf16.gmra.mrb[0].mxu0 %v4276
          %v4525 = vpop.f32.mrb[0].mxu0
          %v4526 = vadd.f32 0.0, %v4525
          %v4527 = vpop.f32.mrb[0].mxu0
          %v4528 = vpop.f32.mrb[0].mxu0
          %v4529 = vadd.f32 0.0, %v4528
          %v4530 = vpop.f32.mrb[0].mxu0
          %4531 = vmatprep.mubr.bf16.mxu0 0
          %4532 = vmatmul.mubr.bf16.gmra.mrb[0].mxu0 %v4277
          %v4533 = vpop.f32.mrb[0].mxu0
          %v4534 = vadd.f32 0.0, %v4533
          %v4535 = vpop.f32.mrb[0].mxu0
          %v4536 = vpop.f32.mrb[0].mxu0
          %v4537 = vadd.f32 0.0, %v4536
          %v4538 = vpop.f32.mrb[0].mxu0
          %4539 = vmatprep.mubr.bf16.mxu0 0
          %4540 = vmatmul.mubr.bf16.gmra.mrb[0].mxu0 %v4278
          %v4541 = vpop.f32.mrb[0].mxu0
          %v4542 = vadd.f32 0.0, %v4541
          %v4543 = vpop.f32.mrb[0].mxu0
          %v4544 = vpop.f32.mrb[0].mxu0
          %v4545 = vadd.f32 0.0, %v4544
          %v4546 = vpop.f32.mrb[0].mxu0
          %4547 = vmatprep.mubr.bf16.mxu0 0
          %4548 = vmatmul.mubr.bf16.gmra.mrb[0].mxu0 %v4279
          %v4549 = vpop.f32.mrb[0].mxu0
          %v4550 = vadd.f32 0.0, %v4549
          %v4551 = vpop.f32.mrb[0].mxu0
          %v4552 = vpop.f32.mrb[0].mxu0
          %v4553 = vadd.f32 0.0, %v4552
          %v4554 = vpop.f32.mrb[0].mxu0
          %4555 = vmatprep.mubr.bf16.mxu0 0
          %4556 = vmatmul.mubr.bf16.gmra.mrb[0].mxu0 %v4280
          %v4557 = vpop.f32.mrb[0].mxu0
          %v4558 = vadd.f32 0.0, %v4557
          %v4559 = vpop.f32.mrb[0].mxu0
          %v4560 = vpop.f32.mrb[0].mxu0
          %v4561 = vadd.f32 0.0, %v4560
          %v4562 = vpop.f32.mrb[0].mxu0
          %4563 = vmatprep.mubr.bf16.mxu0 0
          %4564 = vmatmul.mubr.bf16.gmra.mrb[0].mxu0 %v4281
          %v4565 = vpop.f32.mrb[0].mxu0
          %v4566 = vadd.f32 0.0, %v4565
          %v4567 = vpop.f32.mrb[0].mxu0
          %v4568 = vpop.f32.mrb[0].mxu0
          %v4569 = vadd.f32 0.0, %v4568
          %v4570 = vpop.f32.mrb[0].mxu0
          %4571 = vmatprep.mubr.bf16.mxu0 0
          %4572 = vmatmul.mubr.bf16.gmra.mrb[0].mxu0 %v4282
          %v4573 = vpop.f32.mrb[0].mxu0
          %v4574 = vadd.f32 0.0, %v4573
          %v4575 = vpop.f32.mrb[0].mxu0
          %v4576 = vpop.f32.mrb[0].mxu0
          %v4577 = vadd.f32 0.0, %v4576
          %v4578 = vpop.f32.mrb[0].mxu0
          %4579 = vmatprep.mubr.bf16.mxu0 0
          %4580 = vmatmul.mubr.bf16.gmra.mrb[0].mxu0 %v4283
          %v4581 = vpop.f32.mrb[0].mxu0
          %v4582 = vadd.f32 0.0, %v4581
          %v4583 = vpop.f32.mrb[0].mxu0
          %v4584 = vpop.f32.mrb[0].mxu0
          %v4585 = vadd.f32 0.0, %v4584
          %v4586 = vpop.f32.mrb[0].mxu0
          %4587 = vmatprep.mubr.bf16.mxu0 0
          %4588 = vmatmul.mubr.bf16.gmra.mrb[0].mxu0 %v4284
          %v4589 = vpop.f32.mrb[0].mxu0
          %v4590 = vadd.f32 0.0, %v4589
          %v4591 = vpop.f32.mrb[0].mxu0
          %v4592 = vpop.f32.mrb[0].mxu0
          %v4593 = vadd.f32 0.0, %v4592
          %v4594 = vpop.f32.mrb[0].mxu0
          %4595 = vmatprep.mubr.bf16.mxu0 0
          %4596 = vmatmul.mubr.bf16.gmra.mrb[0].mxu0 %v4285
          %v4597 = vpop.f32.mrb[0].mxu0
          %v4598 = vadd.f32 0.0, %v4597
          %v4599 = vpop.f32.mrb[0].mxu0
          %v4600 = vpop.f32.mrb[0].mxu0
          %v4601 = vadd.f32 0.0, %v4600
          %v4602 = vpop.f32.mrb[0].mxu0
          %4603 = vmatprep.mubr.bf16.mxu0 0
          %4604 = vmatmul.mubr.bf16.gmra.mrb[0].mxu0 %v4286
          %v4605 = vpop.f32.mrb[0].mxu0
          %v4606 = vadd.f32 0.0, %v4605
          %v4607 = vpop.f32.mrb[0].mxu0
          %v4608 = vpop.f32.mrb[0].mxu0
          %v4609 = vadd.f32 0.0, %v4608
          %v4610 = vpop.f32.mrb[0].mxu0
          %4611 = vmatprep.mubr.bf16.mxu0 0
          %4612 = vmatmul.mubr.bf16.gmra.mrb[0].mxu0 %v4287
          %v4613 = vpop.f32.mrb[0].mxu0
          %v4614 = vadd.f32 0.0, %v4613
          %v4615 = vpop.f32.mrb[0].mxu0
          %v4616 = vpop.f32.mrb[0].mxu0
          %v4617 = vadd.f32 0.0, %v4616
          %v4618 = vpop.f32.mrb[0].mxu0
          %4619 = vmatprep.mubr.bf16.mxu0 0
          %4620 = vmatmul.mubr.bf16.gmra.mrb[0].mxu0 %v4288
          %v4621 = vpop.f32.mrb[0].mxu0
          %v4622 = vadd.f32 0.0, %v4621
          %v4623 = vpop.f32.mrb[0].mxu0
          %v4624 = vpop.f32.mrb[0].mxu0
          %v4625 = vadd.f32 0.0, %v4624
          %v4626 = vpop.f32.mrb[0].mxu0
          %4627 = vmatprep.mubr.bf16.mxu0 0
          %4628 = vmatmul.mubr.bf16.gmra.mrb[0].mxu0 %v4289
          %v4629 = vpop.f32.mrb[0].mxu0
          %v4630 = vadd.f32 0.0, %v4629
          %v4631 = vpop.f32.mrb[0].mxu0
          %v4632 = vpop.f32.mrb[0].mxu0
          %v4633 = vadd.f32 0.0, %v4632
          %v4634 = vpop.f32.mrb[0].mxu0
          %4635 = vmatprep.mubr.bf16.mxu0 0
          %4636 = vmatmul.mubr.bf16.gmra.mrb[0].mxu0 %v4290
          %v4637 = vpop.f32.mrb[0].mxu0
          %v4638 = vadd.f32 0.0, %v4637
          %v4639 = vpop.f32.mrb[0].mxu0
          %v4640 = vpop.f32.mrb[0].mxu0
          %v4641 = vadd.f32 0.0, %v4640
          %v4642 = vpop.f32.mrb[0].mxu0
          %4643 = vdwg.mxu0
          %v4644 = vmax.f32 %v4390, 0.0
          %v4645 = vmax.f32 %v4393, 0.0
          %v4646 = vmax.f32 %v4398, 0.0
          %v4647 = vmax.f32 %v4401, 0.0
          %v4648 = vmax.f32 %v4406, 0.0
          %v4649 = vmax.f32 %v4409, 0.0
          %v4650 = vmax.f32 %v4414, 0.0
          %v4651 = vmax.f32 %v4417, 0.0
          %v4652 = vmax.f32 %v4422, 0.0
          %v4653 = vmax.f32 %v4425, 0.0
          %v4654 = vmax.f32 %v4430, 0.0
          %v4655 = vmax.f32 %v4433, 0.0
          %v4656 = vmax.f32 %v4438, 0.0
          %v4657 = vmax.f32 %v4441, 0.0
          %v4658 = vmax.f32 %v4446, 0.0
          %v4659 = vmax.f32 %v4449, 0.0
          %v4660 = vmax.f32 %v4454, 0.0
          %v4661 = vmax.f32 %v4457, 0.0
          %v4662 = vmax.f32 %v4462, 0.0
          %v4663 = vmax.f32 %v4465, 0.0
          %v4664 = vmax.f32 %v4470, 0.0
          %v4665 = vmax.f32 %v4473, 0.0
          %v4666 = vmax.f32 %v4478, 0.0
          %v4667 = vmax.f32 %v4481, 0.0
          %v4668 = vmax.f32 %v4486, 0.0
          %v4669 = vmax.f32 %v4489, 0.0
          %v4670 = vmax.f32 %v4494, 0.0
          %v4671 = vmax.f32 %v4497, 0.0
          %v4672 = vmax.f32 %v4502, 0.0
          %v4673 = vmax.f32 %v4505, 0.0
          %v4674 = vmax.f32 %v4510, 0.0
          %v4675 = vmax.f32 %v4513, 0.0
          %v4676 = vmax.f32 %v4518, 0.0
          %v4677 = vmax.f32 %v4521, 0.0
          %v4678 = vmax.f32 %v4526, 0.0
          %v4679 = vmax.f32 %v4529, 0.0
          %v4680 = vmax.f32 %v4534, 0.0
          %v4681 = vmax.f32 %v4537, 0.0
          %v4682 = vmax.f32 %v4542, 0.0
          %v4683 = vmax.f32 %v4545, 0.0
          %v4684 = vmax.f32 %v4550, 0.0
          %v4685 = vmax.f32 %v4553, 0.0
          %v4686 = vmax.f32 %v4558, 0.0
          %v4687 = vmax.f32 %v4561, 0.0
          %v4688 = vmax.f32 %v4566, 0.0
          %v4689 = vmax.f32 %v4569, 0.0
          %v4690 = vmax.f32 %v4574, 0.0
          %v4691 = vmax.f32 %v4577, 0.0
          %v4692 = vmax.f32 %v4582, 0.0
          %v4693 = vmax.f32 %v4585, 0.0
          %v4694 = vmax.f32 %v4590, 0.0
          %v4695 = vmax.f32 %v4593, 0.0
          %v4696 = vmax.f32 %v4598, 0.0
          %v4697 = vmax.f32 %v4601, 0.0
          %v4698 = vmax.f32 %v4606, 0.0
          %v4699 = vmax.f32 %v4609, 0.0
          %v4700 = vmax.f32 %v4614, 0.0
          %v4701 = vmax.f32 %v4617, 0.0
          %v4702 = vmax.f32 %v4622, 0.0
          %v4703 = vmax.f32 %v4625, 0.0
          %v4704 = vmax.f32 %v4630, 0.0
          %v4705 = vmax.f32 %v4633, 0.0
          %v4706 = vmax.f32 %v4638, 0.0
          %v4707 = vmax.f32 %v4641, 0.0
          %4708 = vadd.xlane.f32.xlu0 %v4644
          %v4709 = vpop.xlane.xlu0 %4708
          %4710 = vadd.xlane.f32.xlu0 %v4645
          %v4711 = vpop.xlane.xlu0 %4710
          %4712 = vadd.xlane.f32.xlu0 %v4646
          %v4713 = vpop.xlane.xlu0 %4712
          %4714 = vadd.xlane.f32.xlu0 %v4647
          %v4715 = vpop.xlane.xlu0 %4714
          %4716 = vadd.xlane.f32.xlu0 %v4648
          %v4717 = vpop.xlane.xlu0 %4716
          %4718 = vadd.xlane.f32.xlu0 %v4649
          %v4719 = vpop.xlane.xlu0 %4718
          %4720 = vadd.xlane.f32.xlu0 %v4650
          %v4721 = vpop.xlane.xlu0 %4720
          %4722 = vadd.xlane.f32.xlu0 %v4651
          %v4723 = vpop.xlane.xlu0 %4722
          %4724 = vadd.xlane.f32.xlu0 %v4652
          %v4725 = vpop.xlane.xlu0 %4724
          %4726 = vadd.xlane.f32.xlu0 %v4653
          %v4727 = vpop.xlane.xlu0 %4726
          %4728 = vadd.xlane.f32.xlu0 %v4654
          %v4729 = vpop.xlane.xlu0 %4728
          %4730 = vadd.xlane.f32.xlu0 %v4655
          %v4731 = vpop.xlane.xlu0 %4730
          %4732 = vadd.xlane.f32.xlu0 %v4656
          %v4733 = vpop.xlane.xlu0 %4732
          %4734 = vadd.xlane.f32.xlu0 %v4657
          %v4735 = vpop.xlane.xlu0 %4734
          %4736 = vadd.xlane.f32.xlu0 %v4658
          %v4737 = vpop.xlane.xlu0 %4736
          %4738 = vadd.xlane.f32.xlu0 %v4659
          %v4739 = vpop.xlane.xlu0 %4738
          %4740 = vadd.xlane.f32.xlu0 %v4660
          %v4741 = vpop.xlane.xlu0 %4740
          %4742 = vadd.xlane.f32.xlu0 %v4661
          %v4743 = vpop.xlane.xlu0 %4742
          %4744 = vadd.xlane.f32.xlu0 %v4662
          %v4745 = vpop.xlane.xlu0 %4744
          %4746 = vadd.xlane.f32.xlu0 %v4663
          %v4747 = vpop.xlane.xlu0 %4746
          %4748 = vadd.xlane.f32.xlu0 %v4664
          %v4749 = vpop.xlane.xlu0 %4748
          %4750 = vadd.xlane.f32.xlu0 %v4665
          %v4751 = vpop.xlane.xlu0 %4750
          %4752 = vadd.xlane.f32.xlu0 %v4666
          %v4753 = vpop.xlane.xlu0 %4752
          %4754 = vadd.xlane.f32.xlu0 %v4667
          %v4755 = vpop.xlane.xlu0 %4754
          %4756 = vadd.xlane.f32.xlu0 %v4668
          %v4757 = vpop.xlane.xlu0 %4756
          %4758 = vadd.xlane.f32.xlu0 %v4669
          %v4759 = vpop.xlane.xlu0 %4758
          %4760 = vadd.xlane.f32.xlu0 %v4670
          %v4761 = vpop.xlane.xlu0 %4760
          %4762 = vadd.xlane.f32.xlu0 %v4671
          %v4763 = vpop.xlane.xlu0 %4762
          %4764 = vadd.xlane.f32.xlu0 %v4672
          %v4765 = vpop.xlane.xlu0 %4764
          %4766 = vadd.xlane.f32.xlu0 %v4673
          %v4767 = vpop.xlane.xlu0 %4766
          %4768 = vadd.xlane.f32.xlu0 %v4674
          %v4769 = vpop.xlane.xlu0 %4768
          %4770 = vadd.xlane.f32.xlu0 %v4675
          %v4771 = vpop.xlane.xlu0 %4770
          %4772 = vadd.xlane.f32.xlu0 %v4676
          %v4773 = vpop.xlane.xlu0 %4772
          %4774 = vadd.xlane.f32.xlu0 %v4677
          %v4775 = vpop.xlane.xlu0 %4774
          %4776 = vadd.xlane.f32.xlu0 %v4678
          %v4777 = vpop.xlane.xlu0 %4776
          %4778 = vadd.xlane.f32.xlu0 %v4679
          %v4779 = vpop.xlane.xlu0 %4778
          %4780 = vadd.xlane.f32.xlu0 %v4680
          %v4781 = vpop.xlane.xlu0 %4780
          %4782 = vadd.xlane.f32.xlu0 %v4681
          %v4783 = vpop.xlane.xlu0 %4782
          %4784 = vadd.xlane.f32.xlu0 %v4682
          %v4785 = vpop.xlane.xlu0 %4784
          %4786 = vadd.xlane.f32.xlu0 %v4683
          %v4787 = vpop.xlane.xlu0 %4786
          %4788 = vadd.xlane.f32.xlu0 %v4684
          %v4789 = vpop.xlane.xlu0 %4788
          %4790 = vadd.xlane.f32.xlu0 %v4685
          %v4791 = vpop.xlane.xlu0 %4790
          %4792 = vadd.xlane.f32.xlu0 %v4686
          %v4793 = vpop.xlane.xlu0 %4792
          %4794 = vadd.xlane.f32.xlu0 %v4687
          %v4795 = vpop.xlane.xlu0 %4794
          %4796 = vadd.xlane.f32.xlu0 %v4688
          %v4797 = vpop.xlane.xlu0 %4796
          %4798 = vadd.xlane.f32.xlu0 %v4689
          %v4799 = vpop.xlane.xlu0 %4798
          %4800 = vadd.xlane.f32.xlu0 %v4690
          %v4801 = vpop.xlane.xlu0 %4800
          %4802 = vadd.xlane.f32.xlu0 %v4691
          %v4803 = vpop.xlane.xlu0 %4802
          %4804 = vadd.xlane.f32.xlu0 %v4692
          %v4805 = vpop.xlane.xlu0 %4804
          %4806 = vadd.xlane.f32.xlu0 %v4693
          %v4807 = vpop.xlane.xlu0 %4806
          %4808 = vadd.xlane.f32.xlu0 %v4694
          %v4809 = vpop.xlane.xlu0 %4808
          %4810 = vadd.xlane.f32.xlu0 %v4695
          %v4811 = vpop.xlane.xlu0 %4810
          %4812 = vadd.xlane.f32.xlu0 %v4696
          %v4813 = vpop.xlane.xlu0 %4812
          %4814 = vadd.xlane.f32.xlu0 %v4697
          %v4815 = vpop.xlane.xlu0 %4814
          %4816 = vadd.xlane.f32.xlu0 %v4698
          %v4817 = vpop.xlane.xlu0 %4816
          %4818 = vadd.xlane.f32.xlu0 %v4699
          %v4819 = vpop.xlane.xlu0 %4818
          %4820 = vadd.xlane.f32.xlu0 %v4700
          %v4821 = vpop.xlane.xlu0 %4820
          %4822 = vadd.xlane.f32.xlu0 %v4701
          %v4823 = vpop.xlane.xlu0 %4822
          %4824 = vadd.xlane.f32.xlu0 %v4702
          %v4825 = vpop.xlane.xlu0 %4824
          %4826 = vadd.xlane.f32.xlu0 %v4703
          %v4827 = vpop.xlane.xlu0 %4826
          %4828 = vadd.xlane.f32.xlu0 %v4704
          %v4829 = vpop.xlane.xlu0 %4828
          %4830 = vadd.xlane.f32.xlu0 %v4705
          %v4831 = vpop.xlane.xlu0 %4830
          %4832 = vadd.xlane.f32.xlu0 %v4706
          %v4833 = vpop.xlane.xlu0 %4832
          %4834 = vadd.xlane.f32.xlu0 %v4707
          %v4835 = vpop.xlane.xlu0 %4834
          %v4836 = vmul.f32 %v4644, %v4644
          %v4837 = vmul.f32 %v4645, %v4645
          %v4838 = vmul.f32 %v4646, %v4646
          %v4839 = vmul.f32 %v4647, %v4647
          %v4840 = vmul.f32 %v4648, %v4648
          %v4841 = vmul.f32 %v4649, %v4649
          %v4842 = vmul.f32 %v4650, %v4650
          %v4843 = vmul.f32 %v4651, %v4651
          %v4844 = vmul.f32 %v4652, %v4652
          %v4845 = vmul.f32 %v4653, %v4653
          %v4846 = vmul.f32 %v4654, %v4654
          %v4847 = vmul.f32 %v4655, %v4655
          %v4848 = vmul.f32 %v4656, %v4656
          %v4849 = vmul.f32 %v4657, %v4657
          %v4850 = vmul.f32 %v4658, %v4658
          %v4851 = vmul.f32 %v4659, %v4659
          %v4852 = vmul.f32 %v4660, %v4660
          %v4853 = vmul.f32 %v4661, %v4661
          %v4854 = vmul.f32 %v4662, %v4662
          %v4855 = vmul.f32 %v4663, %v4663
          %v4856 = vmul.f32 %v4664, %v4664
          %v4857 = vmul.f32 %v4665, %v4665
          %v4858 = vmul.f32 %v4666, %v4666
          %v4859 = vmul.f32 %v4667, %v4667
          %v4860 = vmul.f32 %v4668, %v4668
          %v4861 = vmul.f32 %v4669, %v4669
          %v4862 = vmul.f32 %v4670, %v4670
          %v4863 = vmul.f32 %v4671, %v4671
          %v4864 = vmul.f32 %v4672, %v4672
          %v4865 = vmul.f32 %v4673, %v4673
          %v4866 = vmul.f32 %v4674, %v4674
          %v4867 = vmul.f32 %v4675, %v4675
          %v4868 = vmul.f32 %v4676, %v4676
          %v4869 = vmul.f32 %v4677, %v4677
          %v4870 = vmul.f32 %v4678, %v4678
          %v4871 = vmul.f32 %v4679, %v4679
          %v4872 = vmul.f32 %v4680, %v4680
          %v4873 = vmul.f32 %v4681, %v4681
          %v4874 = vmul.f32 %v4682, %v4682
          %v4875 = vmul.f32 %v4683, %v4683
          %v4876 = vmul.f32 %v4684, %v4684
          %v4877 = vmul.f32 %v4685, %v4685
          %v4878 = vmul.f32 %v4686, %v4686
          %v4879 = vmul.f32 %v4687, %v4687
          %v4880 = vmul.f32 %v4688, %v4688
          %v4881 = vmul.f32 %v4689, %v4689
          %v4882 = vmul.f32 %v4690, %v4690
          %v4883 = vmul.f32 %v4691, %v4691
          %v4884 = vmul.f32 %v4692, %v4692
          %v4885 = vmul.f32 %v4693, %v4693
          %v4886 = vmul.f32 %v4694, %v4694
          %v4887 = vmul.f32 %v4695, %v4695
          %v4888 = vmul.f32 %v4696, %v4696
          %v4889 = vmul.f32 %v4697, %v4697
          %v4890 = vmul.f32 %v4698, %v4698
          %v4891 = vmul.f32 %v4699, %v4699
          %v4892 = vmul.f32 %v4700, %v4700
          %v4893 = vmul.f32 %v4701, %v4701
          %v4894 = vmul.f32 %v4702, %v4702
          %v4895 = vmul.f32 %v4703, %v4703
          %v4896 = vmul.f32 %v4704, %v4704
          %v4897 = vmul.f32 %v4705, %v4705
          %v4898 = vmul.f32 %v4706, %v4706
          %v4899 = vmul.f32 %v4707, %v4707
          %4900 = vadd.xlane.f32.xlu0 %v4836
          %v4901 = vpop.xlane.xlu0 %4900
          %4902 = vadd.xlane.f32.xlu0 %v4837
          %v4903 = vpop.xlane.xlu0 %4902
          %4904 = vadd.xlane.f32.xlu0 %v4838
          %v4905 = vpop.xlane.xlu0 %4904
          %4906 = vadd.xlane.f32.xlu0 %v4839
          %v4907 = vpop.xlane.xlu0 %4906
          %4908 = vadd.xlane.f32.xlu0 %v4840
          %v4909 = vpop.xlane.xlu0 %4908
          %4910 = vadd.xlane.f32.xlu0 %v4841
          %v4911 = vpop.xlane.xlu0 %4910
          %4912 = vadd.xlane.f32.xlu0 %v4842
          %v4913 = vpop.xlane.xlu0 %4912
          %4914 = vadd.xlane.f32.xlu0 %v4843
          %v4915 = vpop.xlane.xlu0 %4914
          %4916 = vadd.xlane.f32.xlu0 %v4844
          %v4917 = vpop.xlane.xlu0 %4916
          %4918 = vadd.xlane.f32.xlu0 %v4845
          %v4919 = vpop.xlane.xlu0 %4918
          %4920 = vadd.xlane.f32.xlu0 %v4846
          %v4921 = vpop.xlane.xlu0 %4920
          %4922 = vadd.xlane.f32.xlu0 %v4847
          %v4923 = vpop.xlane.xlu0 %4922
          %4924 = vadd.xlane.f32.xlu0 %v4848
          %v4925 = vpop.xlane.xlu0 %4924
          %4926 = vadd.xlane.f32.xlu0 %v4849
          %v4927 = vpop.xlane.xlu0 %4926
          %4928 = vadd.xlane.f32.xlu0 %v4850
          %v4929 = vpop.xlane.xlu0 %4928
          %4930 = vadd.xlane.f32.xlu0 %v4851
          %v4931 = vpop.xlane.xlu0 %4930
          %4932 = vadd.xlane.f32.xlu0 %v4852
          %v4933 = vpop.xlane.xlu0 %4932
          %4934 = vadd.xlane.f32.xlu0 %v4853
          %v4935 = vpop.xlane.xlu0 %4934
          %4936 = vadd.xlane.f32.xlu0 %v4854
          %v4937 = vpop.xlane.xlu0 %4936
          %4938 = vadd.xlane.f32.xlu0 %v4855
          %v4939 = vpop.xlane.xlu0 %4938
          %4940 = vadd.xlane.f32.xlu0 %v4856
          %v4941 = vpop.xlane.xlu0 %4940
          %4942 = vadd.xlane.f32.xlu0 %v4857
          %v4943 = vpop.xlane.xlu0 %4942
          %4944 = vadd.xlane.f32.xlu0 %v4858
          %v4945 = vpop.xlane.xlu0 %4944
          %4946 = vadd.xlane.f32.xlu0 %v4859
          %v4947 = vpop.xlane.xlu0 %4946
          %4948 = vadd.xlane.f32.xlu0 %v4860
          %v4949 = vpop.xlane.xlu0 %4948
          %4950 = vadd.xlane.f32.xlu0 %v4861
          %v4951 = vpop.xlane.xlu0 %4950
          %4952 = vadd.xlane.f32.xlu0 %v4862
          %v4953 = vpop.xlane.xlu0 %4952
          %4954 = vadd.xlane.f32.xlu0 %v4863
          %v4955 = vpop.xlane.xlu0 %4954
          %4956 = vadd.xlane.f32.xlu0 %v4864
          %v4957 = vpop.xlane.xlu0 %4956
          %4958 = vadd.xlane.f32.xlu0 %v4865
          %v4959 = vpop.xlane.xlu0 %4958
          %4960 = vadd.xlane.f32.xlu0 %v4866
          %v4961 = vpop.xlane.xlu0 %4960
          %4962 = vadd.xlane.f32.xlu0 %v4867
          %v4963 = vpop.xlane.xlu0 %4962
          %4964 = vadd.xlane.f32.xlu0 %v4868
          %v4965 = vpop.xlane.xlu0 %4964
          %4966 = vadd.xlane.f32.xlu0 %v4869
          %v4967 = vpop.xlane.xlu0 %4966
          %4968 = vadd.xlane.f32.xlu0 %v4870
          %v4969 = vpop.xlane.xlu0 %4968
          %4970 = vadd.xlane.f32.xlu0 %v4871
          %v4971 = vpop.xlane.xlu0 %4970
          %4972 = vadd.xlane.f32.xlu0 %v4872
          %v4973 = vpop.xlane.xlu0 %4972
          %4974 = vadd.xlane.f32.xlu0 %v4873
          %v4975 = vpop.xlane.xlu0 %4974
          %4976 = vadd.xlane.f32.xlu0 %v4874
          %v4977 = vpop.xlane.xlu0 %4976
          %4978 = vadd.xlane.f32.xlu0 %v4875
          %v4979 = vpop.xlane.xlu0 %4978
          %4980 = vadd.xlane.f32.xlu0 %v4876
          %v4981 = vpop.xlane.xlu0 %4980
          %4982 = vadd.xlane.f32.xlu0 %v4877
          %v4983 = vpop.xlane.xlu0 %4982
          %4984 = vadd.xlane.f32.xlu0 %v4878
          %v4985 = vpop.xlane.xlu0 %4984
          %4986 = vadd.xlane.f32.xlu0 %v4879
          %v4987 = vpop.xlane.xlu0 %4986
          %4988 = vadd.xlane.f32.xlu0 %v4880
          %v4989 = vpop.xlane.xlu0 %4988
          %4990 = vadd.xlane.f32.xlu0 %v4881
          %v4991 = vpop.xlane.xlu0 %4990
          %4992 = vadd.xlane.f32.xlu0 %v4882
          %v4993 = vpop.xlane.xlu0 %4992
          %4994 = vadd.xlane.f32.xlu0 %v4883
          %v4995 = vpop.xlane.xlu0 %4994
          %4996 = vadd.xlane.f32.xlu0 %v4884
          %v4997 = vpop.xlane.xlu0 %4996
          %4998 = vadd.xlane.f32.xlu0 %v4885
          %v4999 = vpop.xlane.xlu0 %4998
          %5000 = vadd.xlane.f32.xlu0 %v4886
          %v5001 = vpop.xlane.xlu0 %5000
          %5002 = vadd.xlane.f32.xlu0 %v4887
          %v5003 = vpop.xlane.xlu0 %5002
          %5004 = vadd.xlane.f32.xlu0 %v4888
          %v5005 = vpop.xlane.xlu0 %5004
          %5006 = vadd.xlane.f32.xlu0 %v4889
          %v5007 = vpop.xlane.xlu0 %5006
          %5008 = vadd.xlane.f32.xlu0 %v4890
          %v5009 = vpop.xlane.xlu0 %5008
          %5010 = vadd.xlane.f32.xlu0 %v4891
          %v5011 = vpop.xlane.xlu0 %5010
          %5012 = vadd.xlane.f32.xlu0 %v4892
          %v5013 = vpop.xlane.xlu0 %5012
          %5014 = vadd.xlane.f32.xlu0 %v4893
          %v5015 = vpop.xlane.xlu0 %5014
          %5016 = vadd.xlane.f32.xlu0 %v4894
          %v5017 = vpop.xlane.xlu0 %5016
          %5018 = vadd.xlane.f32.xlu0 %v4895
          %v5019 = vpop.xlane.xlu0 %5018
          %5020 = vadd.xlane.f32.xlu0 %v4896
          %v5021 = vpop.xlane.xlu0 %5020
          %5022 = vadd.xlane.f32.xlu0 %v4897
          %v5023 = vpop.xlane.xlu0 %5022
          %5024 = vadd.xlane.f32.xlu0 %v4898
          %v5025 = vpop.xlane.xlu0 %5024
          %5026 = vadd.xlane.f32.xlu0 %v4899
          %v5027 = vpop.xlane.xlu0 %5026
          %v5028 = vmul.f32 %v4709, 0.03125
          %v5029 = vmul.f32 %v4711, 0.03125
          %v5030 = vmul.f32 %v4713, 0.03125
          %v5031 = vmul.f32 %v4715, 0.03125
          %v5032 = vmul.f32 %v4717, 0.03125
          %v5033 = vmul.f32 %v4719, 0.03125
          %v5034 = vmul.f32 %v4721, 0.03125
          %v5035 = vmul.f32 %v4723, 0.03125
          %v5036 = vmul.f32 %v4725, 0.03125
          %v5037 = vmul.f32 %v4727, 0.03125
          %v5038 = vmul.f32 %v4729, 0.03125
          %v5039 = vmul.f32 %v4731, 0.03125
          %v5040 = vmul.f32 %v4733, 0.03125
          %v5041 = vmul.f32 %v4735, 0.03125
          %v5042 = vmul.f32 %v4737, 0.03125
          %v5043 = vmul.f32 %v4739, 0.03125
          %v5044 = vmul.f32 %v4741, 0.03125
          %v5045 = vmul.f32 %v4743, 0.03125
          %v5046 = vmul.f32 %v4745, 0.03125
          %v5047 = vmul.f32 %v4747, 0.03125
          %v5048 = vmul.f32 %v4749, 0.03125
          %v5049 = vmul.f32 %v4751, 0.03125
          %v5050 = vmul.f32 %v4753, 0.03125
          %v5051 = vmul.f32 %v4755, 0.03125
          %v5052 = vmul.f32 %v4757, 0.03125
          %v5053 = vmul.f32 %v4759, 0.03125
          %v5054 = vmul.f32 %v4761, 0.03125
          %v5055 = vmul.f32 %v4763, 0.03125
          %v5056 = vmul.f32 %v4765, 0.03125
          %v5057 = vmul.f32 %v4767, 0.03125
          %v5058 = vmul.f32 %v4769, 0.03125
          %v5059 = vmul.f32 %v4771, 0.03125
          %v5060 = vmul.f32 %v4773, 0.03125
          %v5061 = vmul.f32 %v4775, 0.03125
          %v5062 = vmul.f32 %v4777, 0.03125
          %v5063 = vmul.f32 %v4779, 0.03125
          %v5064 = vmul.f32 %v4781, 0.03125
          %v5065 = vmul.f32 %v4783, 0.03125
          %v5066 = vmul.f32 %v4785, 0.03125
          %v5067 = vmul.f32 %v4787, 0.03125
          %v5068 = vmul.f32 %v4789, 0.03125
          %v5069 = vmul.f32 %v4791, 0.03125
          %v5070 = vmul.f32 %v4793, 0.03125
          %v5071 = vmul.f32 %v4795, 0.03125
          %v5072 = vmul.f32 %v4797, 0.03125
          %v5073 = vmul.f32 %v4799, 0.03125
          %v5074 = vmul.f32 %v4801, 0.03125
          %v5075 = vmul.f32 %v4803, 0.03125
          %v5076 = vmul.f32 %v4805, 0.03125
          %v5077 = vmul.f32 %v4807, 0.03125
          %v5078 = vmul.f32 %v4809, 0.03125
          %v5079 = vmul.f32 %v4811, 0.03125
          %v5080 = vmul.f32 %v4813, 0.03125
          %v5081 = vmul.f32 %v4815, 0.03125
          %v5082 = vmul.f32 %v4817, 0.03125
          %v5083 = vmul.f32 %v4819, 0.03125
          %v5084 = vmul.f32 %v4821, 0.03125
          %v5085 = vmul.f32 %v4823, 0.03125
          %v5086 = vmul.f32 %v4825, 0.03125
          %v5087 = vmul.f32 %v4827, 0.03125
          %v5088 = vmul.f32 %v4829, 0.03125
          %v5089 = vmul.f32 %v4831, 0.03125
          %v5090 = vmul.f32 %v4833, 0.03125
          %v5091 = vmul.f32 %v4835, 0.03125
          %v5092 = vmul.f32 %v4901, 0.03125
          %v5093 = vmul.f32 %v4903, 0.03125
          %v5094 = vmul.f32 %v4905, 0.03125
          %v5095 = vmul.f32 %v4907, 0.03125
          %v5096 = vmul.f32 %v4909, 0.03125
          %v5097 = vmul.f32 %v4911, 0.03125
          %v5098 = vmul.f32 %v4913, 0.03125
          %v5099 = vmul.f32 %v4915, 0.03125
          %v5100 = vmul.f32 %v4917, 0.03125
          %v5101 = vmul.f32 %v4919, 0.03125
          %v5102 = vmul.f32 %v4921, 0.03125
          %v5103 = vmul.f32 %v4923, 0.03125
          %v5104 = vmul.f32 %v4925, 0.03125
          %v5105 = vmul.f32 %v4927, 0.03125
          %v5106 = vmul.f32 %v4929, 0.03125
          %v5107 = vmul.f32 %v4931, 0.03125
          %v5108 = vmul.f32 %v4933, 0.03125
          %v5109 = vmul.f32 %v4935, 0.03125
          %v5110 = vmul.f32 %v4937, 0.03125
          %v5111 = vmul.f32 %v4939, 0.03125
          %v5112 = vmul.f32 %v4941, 0.03125
          %v5113 = vmul.f32 %v4943, 0.03125
          %v5114 = vmul.f32 %v4945, 0.03125
          %v5115 = vmul.f32 %v4947, 0.03125
          %v5116 = vmul.f32 %v4949, 0.03125
          %v5117 = vmul.f32 %v4951, 0.03125
          %v5118 = vmul.f32 %v4953, 0.03125
          %v5119 = vmul.f32 %v4955, 0.03125
          %v5120 = vmul.f32 %v4957, 0.03125
          %v5121 = vmul.f32 %v4959, 0.03125
          %v5122 = vmul.f32 %v4961, 0.03125
          %v5123 = vmul.f32 %v4963, 0.03125
          %v5124 = vmul.f32 %v4965, 0.03125
          %v5125 = vmul.f32 %v4967, 0.03125
          %v5126 = vmul.f32 %v4969, 0.03125
          %v5127 = vmul.f32 %v4971, 0.03125
          %v5128 = vmul.f32 %v4973, 0.03125
          %v5129 = vmul.f32 %v4975, 0.03125
          %v5130 = vmul.f32 %v4977, 0.03125
          %v5131 = vmul.f32 %v4979, 0.03125
          %v5132 = vmul.f32 %v4981, 0.03125
          %v5133 = vmul.f32 %v4983, 0.03125
          %v5134 = vmul.f32 %v4985, 0.03125
          %v5135 = vmul.f32 %v4987, 0.03125
          %v5136 = vmul.f32 %v4989, 0.03125
          %v5137 = vmul.f32 %v4991, 0.03125
          %v5138 = vmul.f32 %v4993, 0.03125
          %v5139 = vmul.f32 %v4995, 0.03125
          %v5140 = vmul.f32 %v4997, 0.03125
          %v5141 = vmul.f32 %v4999, 0.03125
          %v5142 = vmul.f32 %v5001, 0.03125
          %v5143 = vmul.f32 %v5003, 0.03125
          %v5144 = vmul.f32 %v5005, 0.03125
          %v5145 = vmul.f32 %v5007, 0.03125
          %v5146 = vmul.f32 %v5009, 0.03125
          %v5147 = vmul.f32 %v5011, 0.03125
          %v5148 = vmul.f32 %v5013, 0.03125
          %v5149 = vmul.f32 %v5015, 0.03125
          %v5150 = vmul.f32 %v5017, 0.03125
          %v5151 = vmul.f32 %v5019, 0.03125
          %v5152 = vmul.f32 %v5021, 0.03125
          %v5153 = vmul.f32 %v5023, 0.03125
          %v5154 = vmul.f32 %v5025, 0.03125
          %v5155 = vmul.f32 %v5027, 0.03125
          %v5156 = vmul.f32 %v5028, %v5028
          %v5157 = vmul.f32 %v5029, %v5029
          %v5158 = vmul.f32 %v5030, %v5030
          %v5159 = vmul.f32 %v5031, %v5031
          %v5160 = vmul.f32 %v5032, %v5032
          %v5161 = vmul.f32 %v5033, %v5033
          %v5162 = vmul.f32 %v5034, %v5034
          %v5163 = vmul.f32 %v5035, %v5035
          %v5164 = vmul.f32 %v5036, %v5036
          %v5165 = vmul.f32 %v5037, %v5037
          %v5166 = vmul.f32 %v5038, %v5038
          %v5167 = vmul.f32 %v5039, %v5039
          %v5168 = vmul.f32 %v5040, %v5040
          %v5169 = vmul.f32 %v5041, %v5041
          %v5170 = vmul.f32 %v5042, %v5042
          %v5171 = vmul.f32 %v5043, %v5043
          %v5172 = vmul.f32 %v5044, %v5044
          %v5173 = vmul.f32 %v5045, %v5045
          %v5174 = vmul.f32 %v5046, %v5046
          %v5175 = vmul.f32 %v5047, %v5047
          %v5176 = vmul.f32 %v5048, %v5048
          %v5177 = vmul.f32 %v5049, %v5049
          %v5178 = vmul.f32 %v5050, %v5050
          %v5179 = vmul.f32 %v5051, %v5051
          %v5180 = vmul.f32 %v5052, %v5052
          %v5181 = vmul.f32 %v5053, %v5053
          %v5182 = vmul.f32 %v5054, %v5054
          %v5183 = vmul.f32 %v5055, %v5055
          %v5184 = vmul.f32 %v5056, %v5056
          %v5185 = vmul.f32 %v5057, %v5057
          %v5186 = vmul.f32 %v5058, %v5058
          %v5187 = vmul.f32 %v5059, %v5059
          %v5188 = vmul.f32 %v5060, %v5060
          %v5189 = vmul.f32 %v5061, %v5061
          %v5190 = vmul.f32 %v5062, %v5062
          %v5191 = vmul.f32 %v5063, %v5063
          %v5192 = vmul.f32 %v5064, %v5064
          %v5193 = vmul.f32 %v5065, %v5065
          %v5194 = vmul.f32 %v5066, %v5066
          %v5195 = vmul.f32 %v5067, %v5067
          %v5196 = vmul.f32 %v5068, %v5068
          %v5197 = vmul.f32 %v5069, %v5069
          %v5198 = vmul.f32 %v5070, %v5070
          %v5199 = vmul.f32 %v5071, %v5071
          %v5200 = vmul.f32 %v5072, %v5072
          %v5201 = vmul.f32 %v5073, %v5073
          %v5202 = vmul.f32 %v5074, %v5074
          %v5203 = vmul.f32 %v5075, %v5075
          %v5204 = vmul.f32 %v5076, %v5076
          %v5205 = vmul.f32 %v5077, %v5077
          %v5206 = vmul.f32 %v5078, %v5078
          %v5207 = vmul.f32 %v5079, %v5079
          %v5208 = vmul.f32 %v5080, %v5080
          %v5209 = vmul.f32 %v5081, %v5081
          %v5210 = vmul.f32 %v5082, %v5082
          %v5211 = vmul.f32 %v5083, %v5083
          %v5212 = vmul.f32 %v5084, %v5084
          %v5213 = vmul.f32 %v5085, %v5085
          %v5214 = vmul.f32 %v5086, %v5086
          %v5215 = vmul.f32 %v5087, %v5087
          %v5216 = vmul.f32 %v5088, %v5088
          %v5217 = vmul.f32 %v5089, %v5089
          %v5218 = vmul.f32 %v5090, %v5090
          %v5219 = vmul.f32 %v5091, %v5091
          %v5220 = vsub.f32 %v5092, %v5156
          %v5221 = vsub.f32 %v5093, %v5157
          %v5222 = vsub.f32 %v5094, %v5158
          %v5223 = vsub.f32 %v5095, %v5159
          %v5224 = vsub.f32 %v5096, %v5160
          %v5225 = vsub.f32 %v5097, %v5161
          %v5226 = vsub.f32 %v5098, %v5162
          %v5227 = vsub.f32 %v5099, %v5163
          %v5228 = vsub.f32 %v5100, %v5164
          %v5229 = vsub.f32 %v5101, %v5165
          %v5230 = vsub.f32 %v5102, %v5166
          %v5231 = vsub.f32 %v5103, %v5167
          %v5232 = vsub.f32 %v5104, %v5168
          %v5233 = vsub.f32 %v5105, %v5169
          %v5234 = vsub.f32 %v5106, %v5170
          %v5235 = vsub.f32 %v5107, %v5171
          %v5236 = vsub.f32 %v5108, %v5172
          %v5237 = vsub.f32 %v5109, %v5173
          %v5238 = vsub.f32 %v5110, %v5174
          %v5239 = vsub.f32 %v5111, %v5175
          %v5240 = vsub.f32 %v5112, %v5176
          %v5241 = vsub.f32 %v5113, %v5177
          %v5242 = vsub.f32 %v5114, %v5178
          %v5243 = vsub.f32 %v5115, %v5179
          %v5244 = vsub.f32 %v5116, %v5180
          %v5245 = vsub.f32 %v5117, %v5181
          %v5246 = vsub.f32 %v5118, %v5182
          %v5247 = vsub.f32 %v5119, %v5183
          %v5248 = vsub.f32 %v5120, %v5184
          %v5249 = vsub.f32 %v5121, %v5185
          %v5250 = vsub.f32 %v5122, %v5186
          %v5251 = vsub.f32 %v5123, %v5187
          %v5252 = vsub.f32 %v5124, %v5188
          %v5253 = vsub.f32 %v5125, %v5189
          %v5254 = vsub.f32 %v5126, %v5190
          %v5255 = vsub.f32 %v5127, %v5191
          %v5256 = vsub.f32 %v5128, %v5192
          %v5257 = vsub.f32 %v5129, %v5193
          %v5258 = vsub.f32 %v5130, %v5194
          %v5259 = vsub.f32 %v5131, %v5195
          %v5260 = vsub.f32 %v5132, %v5196
          %v5261 = vsub.f32 %v5133, %v5197
          %v5262 = vsub.f32 %v5134, %v5198
          %v5263 = vsub.f32 %v5135, %v5199
          %v5264 = vsub.f32 %v5136, %v5200
          %v5265 = vsub.f32 %v5137, %v5201
          %v5266 = vsub.f32 %v5138, %v5202
          %v5267 = vsub.f32 %v5139, %v5203
          %v5268 = vsub.f32 %v5140, %v5204
          %v5269 = vsub.f32 %v5141, %v5205
          %v5270 = vsub.f32 %v5142, %v5206
          %v5271 = vsub.f32 %v5143, %v5207
          %v5272 = vsub.f32 %v5144, %v5208
          %v5273 = vsub.f32 %v5145, %v5209
          %v5274 = vsub.f32 %v5146, %v5210
          %v5275 = vsub.f32 %v5147, %v5211
          %v5276 = vsub.f32 %v5148, %v5212
          %v5277 = vsub.f32 %v5149, %v5213
          %v5278 = vsub.f32 %v5150, %v5214
          %v5279 = vsub.f32 %v5151, %v5215
          %v5280 = vsub.f32 %v5152, %v5216
          %v5281 = vsub.f32 %v5153, %v5217
          %v5282 = vsub.f32 %v5154, %v5218
          %v5283 = vsub.f32 %v5155, %v5219
          %v5284 = vsub.f32 %v4644, %v5028
          %v5285 = vsub.f32 %v4645, %v5029
          %v5286 = vsub.f32 %v4646, %v5030
          %v5287 = vsub.f32 %v4647, %v5031
          %v5288 = vsub.f32 %v4648, %v5032
          %v5289 = vsub.f32 %v4649, %v5033
          %v5290 = vsub.f32 %v4650, %v5034
          %v5291 = vsub.f32 %v4651, %v5035
          %v5292 = vsub.f32 %v4652, %v5036
          %v5293 = vsub.f32 %v4653, %v5037
          %v5294 = vsub.f32 %v4654, %v5038
          %v5295 = vsub.f32 %v4655, %v5039
          %v5296 = vsub.f32 %v4656, %v5040
          %v5297 = vsub.f32 %v4657, %v5041
          %v5298 = vsub.f32 %v4658, %v5042
          %v5299 = vsub.f32 %v4659, %v5043
          %v5300 = vsub.f32 %v4660, %v5044
          %v5301 = vsub.f32 %v4661, %v5045
          %v5302 = vsub.f32 %v4662, %v5046
          %v5303 = vsub.f32 %v4663, %v5047
          %v5304 = vsub.f32 %v4664, %v5048
          %v5305 = vsub.f32 %v4665, %v5049
          %v5306 = vsub.f32 %v4666, %v5050
          %v5307 = vsub.f32 %v4667, %v5051
          %v5308 = vsub.f32 %v4668, %v5052
          %v5309 = vsub.f32 %v4669, %v5053
          %v5310 = vsub.f32 %v4670, %v5054
          %v5311 = vsub.f32 %v4671, %v5055
          %v5312 = vsub.f32 %v4672, %v5056
          %v5313 = vsub.f32 %v4673, %v5057
          %v5314 = vsub.f32 %v4674, %v5058
          %v5315 = vsub.f32 %v4675, %v5059
          %v5316 = vsub.f32 %v4676, %v5060
          %v5317 = vsub.f32 %v4677, %v5061
          %v5318 = vsub.f32 %v4678, %v5062
          %v5319 = vsub.f32 %v4679, %v5063
          %v5320 = vsub.f32 %v4680, %v5064
          %v5321 = vsub.f32 %v4681, %v5065
          %v5322 = vsub.f32 %v4682, %v5066
          %v5323 = vsub.f32 %v4683, %v5067
          %v5324 = vsub.f32 %v4684, %v5068
          %v5325 = vsub.f32 %v4685, %v5069
          %v5326 = vsub.f32 %v4686, %v5070
          %v5327 = vsub.f32 %v4687, %v5071
          %v5328 = vsub.f32 %v4688, %v5072
          %v5329 = vsub.f32 %v4689, %v5073
          %v5330 = vsub.f32 %v4690, %v5074
          %v5331 = vsub.f32 %v4691, %v5075
          %v5332 = vsub.f32 %v4692, %v5076
          %v5333 = vsub.f32 %v4693, %v5077
          %v5334 = vsub.f32 %v4694, %v5078
          %v5335 = vsub.f32 %v4695, %v5079
          %v5336 = vsub.f32 %v4696, %v5080
          %v5337 = vsub.f32 %v4697, %v5081
          %v5338 = vsub.f32 %v4698, %v5082
          %v5339 = vsub.f32 %v4699, %v5083
          %v5340 = vsub.f32 %v4700, %v5084
          %v5341 = vsub.f32 %v4701, %v5085
          %v5342 = vsub.f32 %v4702, %v5086
          %v5343 = vsub.f32 %v4703, %v5087
          %v5344 = vsub.f32 %v4704, %v5088
          %v5345 = vsub.f32 %v4705, %v5089
          %v5346 = vsub.f32 %v4706, %v5090
          %v5347 = vsub.f32 %v4707, %v5091
          %v5348 = vadd.f32 %v5220, 1e-05
          %v5349 = vadd.f32 %v5221, 1e-05
          %v5350 = vadd.f32 %v5222, 1e-05
          %v5351 = vadd.f32 %v5223, 1e-05
          %v5352 = vadd.f32 %v5224, 1e-05
          %v5353 = vadd.f32 %v5225, 1e-05
          %v5354 = vadd.f32 %v5226, 1e-05
          %v5355 = vadd.f32 %v5227, 1e-05
          %v5356 = vadd.f32 %v5228, 1e-05
          %v5357 = vadd.f32 %v5229, 1e-05
          %v5358 = vadd.f32 %v5230, 1e-05
          %v5359 = vadd.f32 %v5231, 1e-05
          %v5360 = vadd.f32 %v5232, 1e-05
          %v5361 = vadd.f32 %v5233, 1e-05
          %v5362 = vadd.f32 %v5234, 1e-05
          %v5363 = vadd.f32 %v5235, 1e-05
          %v5364 = vadd.f32 %v5236, 1e-05
          %v5365 = vadd.f32 %v5237, 1e-05
          %v5366 = vadd.f32 %v5238, 1e-05
          %v5367 = vadd.f32 %v5239, 1e-05
          %v5368 = vadd.f32 %v5240, 1e-05
          %v5369 = vadd.f32 %v5241, 1e-05
          %v5370 = vadd.f32 %v5242, 1e-05
          %v5371 = vadd.f32 %v5243, 1e-05
          %v5372 = vadd.f32 %v5244, 1e-05
          %v5373 = vadd.f32 %v5245, 1e-05
          %v5374 = vadd.f32 %v5246, 1e-05
          %v5375 = vadd.f32 %v5247, 1e-05
          %v5376 = vadd.f32 %v5248, 1e-05
          %v5377 = vadd.f32 %v5249, 1e-05
          %v5378 = vadd.f32 %v5250, 1e-05
          %v5379 = vadd.f32 %v5251, 1e-05
          %v5380 = vadd.f32 %v5252, 1e-05
          %v5381 = vadd.f32 %v5253, 1e-05
          %v5382 = vadd.f32 %v5254, 1e-05
          %v5383 = vadd.f32 %v5255, 1e-05
          %v5384 = vadd.f32 %v5256, 1e-05
          %v5385 = vadd.f32 %v5257, 1e-05
          %v5386 = vadd.f32 %v5258, 1e-05
          %v5387 = vadd.f32 %v5259, 1e-05
          %v5388 = vadd.f32 %v5260, 1e-05
          %v5389 = vadd.f32 %v5261, 1e-05
          %v5390 = vadd.f32 %v5262, 1e-05
          %v5391 = vadd.f32 %v5263, 1e-05
          %v5392 = vadd.f32 %v5264, 1e-05
          %v5393 = vadd.f32 %v5265, 1e-05
          %v5394 = vadd.f32 %v5266, 1e-05
          %v5395 = vadd.f32 %v5267, 1e-05
          %v5396 = vadd.f32 %v5268, 1e-05
          %v5397 = vadd.f32 %v5269, 1e-05
          %v5398 = vadd.f32 %v5270, 1e-05
          %v5399 = vadd.f32 %v5271, 1e-05
          %v5400 = vadd.f32 %v5272, 1e-05
          %v5401 = vadd.f32 %v5273, 1e-05
          %v5402 = vadd.f32 %v5274, 1e-05
          %v5403 = vadd.f32 %v5275, 1e-05
          %v5404 = vadd.f32 %v5276, 1e-05
          %v5405 = vadd.f32 %v5277, 1e-05
          %v5406 = vadd.f32 %v5278, 1e-05
          %v5407 = vadd.f32 %v5279, 1e-05
          %v5408 = vadd.f32 %v5280, 1e-05
          %v5409 = vadd.f32 %v5281, 1e-05
          %v5410 = vadd.f32 %v5282, 1e-05
          %v5411 = vadd.f32 %v5283, 1e-05
          %v5412 = vrsqrt.pop %v5348
          %v5413 = vrsqrt.pop %v5349
          %v5414 = vrsqrt.pop %v5350
          %v5415 = vrsqrt.pop %v5351
          %v5416 = vrsqrt.pop %v5352
          %v5417 = vrsqrt.pop %v5353
          %v5418 = vrsqrt.pop %v5354
          %v5419 = vrsqrt.pop %v5355
          %v5420 = vrsqrt.pop %v5356
          %v5421 = vrsqrt.pop %v5357
          %v5422 = vrsqrt.pop %v5358
          %v5423 = vrsqrt.pop %v5359
          %v5424 = vrsqrt.pop %v5360
          %v5425 = vrsqrt.pop %v5361
          %v5426 = vrsqrt.pop %v5362
          %v5427 = vrsqrt.pop %v5363
          %v5428 = vrsqrt.pop %v5364
          %v5429 = vrsqrt.pop %v5365
          %v5430 = vrsqrt.pop %v5366
          %v5431 = vrsqrt.pop %v5367
          %v5432 = vrsqrt.pop %v5368
          %v5433 = vrsqrt.pop %v5369
          %v5434 = vrsqrt.pop %v5370
          %v5435 = vrsqrt.pop %v5371
          %v5436 = vrsqrt.pop %v5372
          %v5437 = vrsqrt.pop %v5373
          %v5438 = vrsqrt.pop %v5374
          %v5439 = vrsqrt.pop %v5375
          %v5440 = vrsqrt.pop %v5376
          %v5441 = vrsqrt.pop %v5377
          %v5442 = vrsqrt.pop %v5378
          %v5443 = vrsqrt.pop %v5379
          %v5444 = vrsqrt.pop %v5380
          %v5445 = vrsqrt.pop %v5381
          %v5446 = vrsqrt.pop %v5382
          %v5447 = vrsqrt.pop %v5383
          %v5448 = vrsqrt.pop %v5384
          %v5449 = vrsqrt.pop %v5385
          %v5450 = vrsqrt.pop %v5386
          %v5451 = vrsqrt.pop %v5387
          %v5452 = vrsqrt.pop %v5388
          %v5453 = vrsqrt.pop %v5389
          %v5454 = vrsqrt.pop %v5390
          %v5455 = vrsqrt.pop %v5391
          %v5456 = vrsqrt.pop %v5392
          %v5457 = vrsqrt.pop %v5393
          %v5458 = vrsqrt.pop %v5394
          %v5459 = vrsqrt.pop %v5395
          %v5460 = vrsqrt.pop %v5396
          %v5461 = vrsqrt.pop %v5397
          %v5462 = vrsqrt.pop %v5398
          %v5463 = vrsqrt.pop %v5399
          %v5464 = vrsqrt.pop %v5400
          %v5465 = vrsqrt.pop %v5401
          %v5466 = vrsqrt.pop %v5402
          %v5467 = vrsqrt.pop %v5403
          %v5468 = vrsqrt.pop %v5404
          %v5469 = vrsqrt.pop %v5405
          %v5470 = vrsqrt.pop %v5406
          %v5471 = vrsqrt.pop %v5407
          %v5472 = vrsqrt.pop %v5408
          %v5473 = vrsqrt.pop %v5409
          %v5474 = vrsqrt.pop %v5410
          %v5475 = vrsqrt.pop %v5411
          %v5476 = vmul.f32 %v5284, %v5412
          %v5477 = vmul.f32 %v5285, %v5413
          %v5478 = vmul.f32 %v5286, %v5414
          %v5479 = vmul.f32 %v5287, %v5415
          %v5480 = vmul.f32 %v5288, %v5416
          %v5481 = vmul.f32 %v5289, %v5417
          %v5482 = vmul.f32 %v5290, %v5418
          %v5483 = vmul.f32 %v5291, %v5419
          %v5484 = vmul.f32 %v5292, %v5420
          %v5485 = vmul.f32 %v5293, %v5421
          %v5486 = vmul.f32 %v5294, %v5422
          %v5487 = vmul.f32 %v5295, %v5423
          %v5488 = vmul.f32 %v5296, %v5424
          %v5489 = vmul.f32 %v5297, %v5425
          %v5490 = vmul.f32 %v5298, %v5426
          %v5491 = vmul.f32 %v5299, %v5427
          %v5492 = vmul.f32 %v5300, %v5428
          %v5493 = vmul.f32 %v5301, %v5429
          %v5494 = vmul.f32 %v5302, %v5430
          %v5495 = vmul.f32 %v5303, %v5431
          %v5496 = vmul.f32 %v5304, %v5432
          %v5497 = vmul.f32 %v5305, %v5433
          %v5498 = vmul.f32 %v5306, %v5434
          %v5499 = vmul.f32 %v5307, %v5435
          %v5500 = vmul.f32 %v5308, %v5436
          %v5501 = vmul.f32 %v5309, %v5437
          %v5502 = vmul.f32 %v5310, %v5438
          %v5503 = vmul.f32 %v5311, %v5439
          %v5504 = vmul.f32 %v5312, %v5440
          %v5505 = vmul.f32 %v5313, %v5441
          %v5506 = vmul.f32 %v5314, %v5442
          %v5507 = vmul.f32 %v5315, %v5443
          %v5508 = vmul.f32 %v5316, %v5444
          %v5509 = vmul.f32 %v5317, %v5445
          %v5510 = vmul.f32 %v5318, %v5446
          %v5511 = vmul.f32 %v5319, %v5447
          %v5512 = vmul.f32 %v5320, %v5448
          %v5513 = vmul.f32 %v5321, %v5449
          %v5514 = vmul.f32 %v5322, %v5450
          %v5515 = vmul.f32 %v5323, %v5451
          %v5516 = vmul.f32 %v5324, %v5452
          %v5517 = vmul.f32 %v5325, %v5453
          %v5518 = vmul.f32 %v5326, %v5454
          %v5519 = vmul.f32 %v5327, %v5455
          %v5520 = vmul.f32 %v5328, %v5456
          %v5521 = vmul.f32 %v5329, %v5457
          %v5522 = vmul.f32 %v5330, %v5458
          %v5523 = vmul.f32 %v5331, %v5459
          %v5524 = vmul.f32 %v5332, %v5460
          %v5525 = vmul.f32 %v5333, %v5461
          %v5526 = vmul.f32 %v5334, %v5462
          %v5527 = vmul.f32 %v5335, %v5463
          %v5528 = vmul.f32 %v5336, %v5464
          %v5529 = vmul.f32 %v5337, %v5465
          %v5530 = vmul.f32 %v5338, %v5466
          %v5531 = vmul.f32 %v5339, %v5467
          %v5532 = vmul.f32 %v5340, %v5468
          %v5533 = vmul.f32 %v5341, %v5469
          %v5534 = vmul.f32 %v5342, %v5470
          %v5535 = vmul.f32 %v5343, %v5471
          %v5536 = vmul.f32 %v5344, %v5472
          %v5537 = vmul.f32 %v5345, %v5473
          %v5538 = vmul.f32 %v5346, %v5474
          %v5539 = vmul.f32 %v5347, %v5475
          %v5540 = vpack.c.bf16 %v5477, %v5476
          %v5541 = vpack.c.bf16 %v5479, %v5478
          %v5542 = vpack.c.bf16 %v5481, %v5480
          %v5543 = vpack.c.bf16 %v5483, %v5482
          %v5544 = vpack.c.bf16 %v5485, %v5484
          %v5545 = vpack.c.bf16 %v5487, %v5486
          %v5546 = vpack.c.bf16 %v5489, %v5488
          %v5547 = vpack.c.bf16 %v5491, %v5490
          %v5548 = vpack.c.bf16 %v5493, %v5492
          %v5549 = vpack.c.bf16 %v5495, %v5494
          %v5550 = vpack.c.bf16 %v5497, %v5496
          %v5551 = vpack.c.bf16 %v5499, %v5498
          %v5552 = vpack.c.bf16 %v5501, %v5500
          %v5553 = vpack.c.bf16 %v5503, %v5502
          %v5554 = vpack.c.bf16 %v5505, %v5504
          %v5555 = vpack.c.bf16 %v5507, %v5506
          %v5556 = vpack.c.bf16 %v5509, %v5508
          %v5557 = vpack.c.bf16 %v5511, %v5510
          %v5558 = vpack.c.bf16 %v5513, %v5512
          %v5559 = vpack.c.bf16 %v5515, %v5514
          %v5560 = vpack.c.bf16 %v5517, %v5516
          %v5561 = vpack.c.bf16 %v5519, %v5518
          %v5562 = vpack.c.bf16 %v5521, %v5520
          %v5563 = vpack.c.bf16 %v5523, %v5522
          %v5564 = vpack.c.bf16 %v5525, %v5524
          %v5565 = vpack.c.bf16 %v5527, %v5526
          %v5566 = vpack.c.bf16 %v5529, %v5528
          %v5567 = vpack.c.bf16 %v5531, %v5530
          %v5568 = vpack.c.bf16 %v5533, %v5532
          %v5569 = vpack.c.bf16 %v5535, %v5534
          %v5570 = vpack.c.bf16 %v5537, %v5536
          %v5571 = vpack.c.bf16 %v5539, %v5538
          %5572 = vst [vmem:[%s719] sm:$0xff] %v5540
          %5573 = vst [vmem:[%s719 + $0x8] sm:$0xff] %v5541
          %5574 = vst [vmem:[%s719 + $0x10] sm:$0xff] %v5542
          %5575 = vst [vmem:[%s719 + $0x18] sm:$0xff] %v5543
          %5576 = vst [vmem:[%s719 + $0x20] sm:$0xff] %v5544
          %5577 = vst [vmem:[%s719 + $0x28] sm:$0xff] %v5545
          %5578 = vst [vmem:[%s719 + $0x30] sm:$0xff] %v5546
          %5579 = vst [vmem:[%s719 + $0x38] sm:$0xff] %v5547
          %5580 = vst [vmem:[%s719 + $0x40] sm:$0xff] %v5548
          %5581 = vst [vmem:[%s719 + $0x48] sm:$0xff] %v5549
          %5582 = vst [vmem:[%s719 + $0x50] sm:$0xff] %v5550
          %5583 = vst [vmem:[%s719 + $0x58] sm:$0xff] %v5551
          %5584 = vst [vmem:[%s719 + $0x60] sm:$0xff] %v5552
          %5585 = vst [vmem:[%s719 + $0x68] sm:$0xff] %v5553
          %5586 = vst [vmem:[%s719 + $0x70] sm:$0xff] %v5554
          %5587 = vst [vmem:[%s719 + $0x78] sm:$0xff] %v5555
          %5588 = vst [vmem:[%s719 + $0x80] sm:$0xff] %v5556
          %5589 = vst [vmem:[%s719 + $0x88] sm:$0xff] %v5557
          %5590 = vst [vmem:[%s719 + $0x90] sm:$0xff] %v5558
          %5591 = vst [vmem:[%s719 + $0x98] sm:$0xff] %v5559
          %5592 = vst [vmem:[%s719 + $0xa0] sm:$0xff] %v5560
          %5593 = vst [vmem:[%s719 + $0xa8] sm:$0xff] %v5561
          %5594 = vst [vmem:[%s719 + $0xb0] sm:$0xff] %v5562
          %5595 = vst [vmem:[%s719 + $0xb8] sm:$0xff] %v5563
          %5596 = vst [vmem:[%s719 + $0xc0] sm:$0xff] %v5564
          %5597 = vst [vmem:[%s719 + $0xc8] sm:$0xff] %v5565
          %5598 = vst [vmem:[%s719 + $0xd0] sm:$0xff] %v5566
          %5599 = vst [vmem:[%s719 + $0xd8] sm:$0xff] %v5567
          %5600 = vst [vmem:[%s719 + $0xe0] sm:$0xff] %v5568
          %5601 = vst [vmem:[%s719 + $0xe8] sm:$0xff] %v5569
          %5602 = vst [vmem:[%s719 + $0xf0] sm:$0xff] %v5570
          %5603 = vst [vmem:[%s719 + $0xf8] sm:$0xff] %v5571
        $region63: #{_gcn_forward.2} parent=50 // pred_fallthru
          _
        %s5604 = smul.u32 32, %s18
        %p5605 = scmp.lt.s32.totalorder %s5604, 95
        %s5606 = scalar_select %p5605, %s5604, 95
        %s5607 = smul.addr %s5606, 8
        %s5608 = scalar_lea.vmem %s3, %s5607
        // Predicated region
        $region64: #{_gcn_forward.2} parent=50 // pred_check
          %p5609 = pneg %p114
        $region65: #{_gcn_forward.2} parent=50 // pred_check_branch
          %5611 = sbr.rel (%p5609) target = $region67
        $region66: #{_gcn_forward.2} parent=50 // pred_region
          %s5612 = smul.u32 32, %s18
        $region67: #{_gcn_forward.2} parent=50 // pred_fallthru
          _
      $region51: #{_gcn_forward.2} parent=5 // pred_fallthru
        _
      %p5613 = scmp.le.s32.totalorder 2, %s9
      // Predicated region
      $region68: #{_gcn_forward.2} parent=5 // pred_check
        %p5614 = pneg %p5613
      $region69: #{_gcn_forward.2} parent=5 // pred_check_branch
        %5616 = sbr.rel (%p5614) target = $region71
      $region70: #{_gcn_forward.2} parent=5 // pred_region
        %s5617 = ssub.s32 %s9, 2
        // Predicated region
        $region72: #{_gcn_forward.2} parent=70 // pred_check
          %p5618 = pneg %p120
        $region73: #{_gcn_forward.2} parent=70 // pred_check_branch
          %5620 = sbr.rel (%p5618) target = $region75
        $region74: #{_gcn_forward.2} parent=70 // pred_region
          %s5621 = smul.u32 32, %s20
          %p5622 = scmp.lt.s32.totalorder %s5621, 95
          %s5623 = scalar_select %p5622, %s5621, 95
          %s5624 = smul.addr %s5623, 8
          %s5625 = scalar_lea.vmem %s3, %s5624
        $region75: #{_gcn_forward.2} parent=70 // pred_fallthru
          _
      $region71: #{_gcn_forward.2} parent=5 // pred_fallthru
        _
    $region6: #{_gcn_forward.2} parent=1 // loop_footer
      %s13 = sadd.s32 1, %s9
    $region7: #{_gcn_forward.2} parent=1 // loop_footer_branch
      %8 = sbr.rel target = $region3
    $region8: #{_gcn_forward.2} parent=1 // loop_exit
      _

// kernel: _gcn_forward.3
$region0: #{_gcn_forward.3}
  #allocation0 [shape = 'u32[]', space=smem, size = 0x4, offset = 0x4, fixed_abs, tag = 'smem constant byte address 0x4 - core index']
  #allocation1 [shape = 'u32[144,128]{1,0:T(1,128)}', space=vmem, size = 0x12000, scoped, tag = 'internal scratch']
  #allocation2 [shape = 'f32[512,128]{1,0:T(8,128)}', space=vmem, size = 0x40000, scoped, tag = 'scratch operand']
  %s0 = inlined_call_operand.vmem [shape: bf16[1536,2048], index: 0, kind: input, shape index: {}]
  %s1 = inlined_call_operand.vmem [shape: bf16[2048,128], index: 1, kind: input, shape index: {}]
  %s2 = inlined_call_operand.vmem [shape: f32[1536,128], index: 2, kind: output, shape index: {}]
  %s3 = sld [smem:[#allocation0]]
  $region72: #{_gcn_forward.3} parent=0
    _
  %s5 = ssub.s32 1, %s3
  %s6 = scalar_select 0, %s5, %s3
  $region1: #{_gcn_forward.3} parent=0
    #allocation3 [shape = 'u8[2097152]{0}', space=vmem, size = 0x200000, scoped, tag = 'input window, operand 0']
    loop: start=0, step=1, limit=8
    $region2: #{_gcn_forward.3} parent=1 // loop_pre_header
      _
    $region3: #{_gcn_forward.3} parent=1 // loop_header
      %s8 = sphi 0, %s12
      %p9 = scmp.ge.s32.totalorder %s8, 8
      %s15 = sphi 0, %s27
      %s16 = sphi 0, %s23
      %s17 = sphi 0, %s15
      %s18 = sphi 0, %s16
      %s19 = sphi 0, %s17
      %s20 = sphi 0, %s18
      %s32 = sphi 0, %s34
      %s35 = sphi 0, %s32
      %s36 = sphi 0, %s35
      %s52 = sphi 0, %s36
      %s56 = sphi 0, %s56
      %s58 = sphi 0, %s56
      %s59 = sphi 0, %s58
      %s73 = sphi 0, %s59
      %s79 = sphi 0, %s81
      %s82 = sphi 0, %s79
      %s83 = sphi 0, %s82
      %s99 = sphi 0, %s83
    $region4: #{_gcn_forward.3} parent=1 // loop_header_branch
      %11 = sbr.rel (%p9) target = $region8
    $region5: #{_gcn_forward.3} parent=1 // loop_body
      %s13 = ssub.s32 %s8, 1
      %s14 = ssub.s32 %s8, 2
      %s21 = sadd.s32 1, %s16
      %p22 = scmp.ge.s32.totalorder %s21, 2
      %s23 = scalar_select %p22, 0, %s21
      %s24 = sadd.s32 1, %s15
      %s25 = scalar_select %p22, %s24, %s15
      %p26 = scmp.ge.s32.totalorder %s25, 3
      %s27 = scalar_select %p26, 0, %s25
      %s28 = ssub.s32 %s15, %s27
      %s29 = ssub.s32 %s16, %s23
      %s30 = sor.u32 %s28, %s29
      %p31 = scmp.eq.s32.totalorder %s30, 0
      %s33 = sadd.s32 %s32, 1
      %s34 = scalar_select %p31, %s32, %s33
      %p37 = pneg %p31
      %p38 = scmp.eq.s32.totalorder %s8, 5
      %p39 = por %p37, %p38
      %p40 = scmp.ne.s32.totalorder %s32, %s35
      %p41 = scmp.eq.s32.totalorder %s8, 0
      %p42 = por %p40, %p41
      %p43 = scmp.ne.s32.totalorder %s32, %s35
      %p44 = scmp.eq.s32.totalorder %s13, 5
      %p45 = por %p43, %p44
      %p46 = scmp.ne.s32.totalorder %s35, %s36
      %p47 = scmp.eq.s32.totalorder %s13, 0
      %p48 = por %p46, %p47
      %p49 = scmp.ne.s32.totalorder %s35, %s36
      %p50 = scmp.eq.s32.totalorder %s14, 5
      %p51 = por %p49, %p50
      %p53 = scmp.ne.s32.totalorder %s36, %s52
      %p54 = scmp.eq.s32.totalorder %s14, 0
      %p55 = por %p53, %p54
      %s57 = sadd.s32 %s56, 1
      %p60 = scmp.eq.s32.totalorder %s8, 5
      %p61 = scmp.ne.s32.totalorder %s56, %s58
      %p62 = scmp.eq.s32.totalorder %s8, 0
      %p63 = por %p61, %p62
      %p64 = scmp.ne.s32.totalorder %s56, %s58
      %p65 = scmp.eq.s32.totalorder %s13, 5
      %p66 = por %p64, %p65
      %p67 = scmp.ne.s32.totalorder %s58, %s59
      %p68 = scmp.eq.s32.totalorder %s13, 0
      %p69 = por %p67, %p68
      %p70 = scmp.ne.s32.totalorder %s58, %s59
      %p71 = scmp.eq.s32.totalorder %s14, 5
      %p72 = por %p70, %p71
      %p74 = scmp.ne.s32.totalorder %s59, %s73
      %p75 = scmp.eq.s32.totalorder %s14, 0
      %p76 = por %p74, %p75
      %s77 = ssub.s32 %s15, %s27
      %p78 = scmp.eq.s32.totalorder %s77, 0
      %s80 = sadd.s32 %s79, 1
      %s81 = scalar_select %p78, %s79, %s80
      %p84 = pneg %p78
      %p85 = scmp.eq.s32.totalorder %s8, 5
      %p86 = por %p84, %p85
      %p87 = scmp.ne.s32.totalorder %s79, %s82
      %p88 = scmp.eq.s32.totalorder %s8, 0
      %p89 = por %p87, %p88
      %p90 = scmp.ne.s32.totalorder %s79, %s82
      %p91 = scmp.eq.s32.totalorder %s13, 5
      %p92 = por %p90, %p91
      %p93 = scmp.ne.s32.totalorder %s82, %s83
      %p94 = scmp.eq.s32.totalorder %s13, 0
      %p95 = por %p93, %p94
      %p96 = scmp.ne.s32.totalorder %s82, %s83
      %p97 = scmp.eq.s32.totalorder %s14, 5
      %p98 = por %p96, %p97
      %p100 = scmp.ne.s32.totalorder %s83, %s99
      %p101 = scmp.eq.s32.totalorder %s14, 0
      %p102 = por %p100, %p101
      %p103 = scmp.le.s32.totalorder 1, %s8
      %p104 = scmp.lt.s32.totalorder %s8, 7
      %p105 = pnand %p103, %p104
      %p106 = pneg %p105
      // Predicated region
      $region9: #{_gcn_forward.3} parent=5 // pred_check
        _
      $region10: #{_gcn_forward.3} parent=5 // pred_check_branch
        %108 = sbr.rel (%p105) target = $region12
      $region11: #{_gcn_forward.3} parent=5 // pred_region
        %s109 = ssub.s32 %s8, 1
        // Predicated region
        $region13: #{_gcn_forward.3} parent=11 // pred_check
          %p110 = pneg %p69
        $region14: #{_gcn_forward.3} parent=11 // pred_check_branch
          %112 = sbr.rel (%p110) target = $region16
        $region15: #{_gcn_forward.3} parent=11 // pred_region
          _
        $region16: #{_gcn_forward.3} parent=11 // pred_fallthru
          _
      $region12: #{_gcn_forward.3} parent=5 // pred_fallthru
        _
      %p113 = scmp.lt.s32.totalorder %s8, 6
      // Predicated region
      $region17: #{_gcn_forward.3} parent=5 // pred_check
        %p114 = pneg %p113
      $region18: #{_gcn_forward.3} parent=5 // pred_check_branch
        %116 = sbr.rel (%p114) target = $region20
      $region19: #{_gcn_forward.3} parent=5 // pred_region
        // Predicated region
        $region21: #{_gcn_forward.3} parent=19 // pred_check
          %p117 = pneg %p42
        $region22: #{_gcn_forward.3} parent=19 // pred_check_branch
          %119 = sbr.rel (%p117) target = $region24
        $region23: #{_gcn_forward.3} parent=19 // pred_region
          %s120 = sand.u32 %s32, 1
          %s121 = sand.u32 %s32, 1
          %s122 = smul.addr %s121, 2048
          %s123 = scalar_lea.vmem [#allocation3], %s122
          %s124 = smul.u32 64, %s15
          %s125 = smul.u32 8, %s16
          %s126 = smul.addr %s124, 16
          %s127 = sadd.s32 %s125, %s126
          %s128 = smul.addr %s127, 4
          %s129 = scalar_lea.vmem %s0, %s128
          // Predicated region
          $region25: #{_gcn_forward.3} parent=23 // pred_check
            _
          $region26: #{_gcn_forward.3} parent=23 // pred_check_branch
            %131 = sbr.rel (0) target = $region28
          $region27: #{_gcn_forward.3} parent=23 // pred_region
            // Predicated region
            $region29: #{_gcn_forward.3} parent=27 // pred_check
              _
            $region30: #{_gcn_forward.3} parent=27 // pred_check_branch
              %133 = sbr.rel (0) target = $region32
            $region31: #{_gcn_forward.3} parent=27 // pred_region
              loop: start=0, step=1, limit=1
              $region33: #{_gcn_forward.3} parent=31 // loop_pre_header
                _
              $region34: #{_gcn_forward.3} parent=31 // loop_header
                %s135 = sphi 0, %s139
                %p136 = scmp.ge.s32.totalorder %s135, 1
                %s140 = sphi %s129, %s129
                %s141 = sphi %s123, %s123
              $region35: #{_gcn_forward.3} parent=31 // loop_header_branch
                %138 = sbr.rel (%p136) target = $region39
              $region36: #{_gcn_forward.3} parent=31 // loop_body
                %v142 = vld [vmem:[%s140] sm:$0xff]
                %143 = vst [vmem:[%s141] sm:$0xff] %v142
                %v144 = vld [vmem:[%s140 + $0x8] sm:$0xff]
                %145 = vst [vmem:[%s141 + $0x8] sm:$0xff] %v144
                %v146 = vld [vmem:[%s140 + $0x10] sm:$0xff]
                %147 = vst [vmem:[%s141 + $0x10] sm:$0xff] %v146
                %v148 = vld [vmem:[%s140 + $0x18] sm:$0xff]
                %149 = vst [vmem:[%s141 + $0x18] sm:$0xff] %v148
                %v150 = vld [vmem:[%s140 + $0x40] sm:$0xff]
                %151 = vst [vmem:[%s141 + $0x20] sm:$0xff] %v150
                %v152 = vld [vmem:[%s140 + $0x48] sm:$0xff]
                %153 = vst [vmem:[%s141 + $0x28] sm:$0xff] %v152
                %v154 = vld [vmem:[%s140 + $0x50] sm:$0xff]
                %155 = vst [vmem:[%s141 + $0x30] sm:$0xff] %v154
                %v156 = vld [vmem:[%s140 + $0x58] sm:$0xff]
                %157 = vst [vmem:[%s141 + $0x38] sm:$0xff] %v156
                %v158 = vld [vmem:[%s140 + $0x80] sm:$0xff]
                %159 = vst [vmem:[%s141 + $0x40] sm:$0xff] %v158
                %v160 = vld [vmem:[%s140 + $0x88] sm:$0xff]
                %161 = vst [vmem:[%s141 + $0x48] sm:$0xff] %v160
                %v162 = vld [vmem:[%s140 + $0x90] sm:$0xff]
                %163 = vst [vmem:[%s141 + $0x50] sm:$0xff] %v162
                %v164 = vld [vmem:[%s140 + $0x98] sm:$0xff]
                %165 = vst [vmem:[%s141 + $0x58] sm:$0xff] %v164
                %v166 = vld [vmem:[%s140 + $0xc0] sm:$0xff]
                %167 = vst [vmem:[%s141 + $0x60] sm:$0xff] %v166
                %v168 = vld [vmem:[%s140 + $0xc8] sm:$0xff]
                %169 = vst [vmem:[%s141 + $0x68] sm:$0xff] %v168
                %v170 = vld [vmem:[%s140 + $0xd0] sm:$0xff]
                %171 = vst [vmem:[%s141 + $0x70] sm:$0xff] %v170
                %v172 = vld [vmem:[%s140 + $0xd8] sm:$0xff]
                %173 = vst [vmem:[%s141 + $0x78] sm:$0xff] %v172
                %v174 = vld [vmem:[%s140 + $0x100] sm:$0xff]
                %175 = vst [vmem:[%s141 + $0x80] sm:$0xff] %v174
                %v176 = vld [vmem:[%s140 + $0x108] sm:$0xff]
                %177 = vst [vmem:[%s141 + $0x88] sm:$0xff] %v176
                %v178 = vld [vmem:[%s140 + $0x110] sm:$0xff]
                %179 = vst [vmem:[%s141 + $0x90] sm:$0xff] %v178
                %v180 = vld [vmem:[%s140 + $0x118] sm:$0xff]
                %181 = vst [vmem:[%s141 + $0x98] sm:$0xff] %v180
                %v182 = vld [vmem:[%s140 + $0x140] sm:$0xff]
                %183 = vst [vmem:[%s141 + $0xa0] sm:$0xff] %v182
                %v184 = vld [vmem:[%s140 + $0x148] sm:$0xff]
                %185 = vst [vmem:[%s141 + $0xa8] sm:$0xff] %v184
                %v186 = vld [vmem:[%s140 + $0x150] sm:$0xff]
                %187 = vst [vmem:[%s141 + $0xb0] sm:$0xff] %v186
                %v188 = vld [vmem:[%s140 + $0x158] sm:$0xff]
                %189 = vst [vmem:[%s141 + $0xb8] sm:$0xff] %v188
                %v190 = vld [vmem:[%s140 + $0x180] sm:$0xff]
                %191 = vst [vmem:[%s141 + $0xc0] sm:$0xff] %v190
                %v192 = vld [vmem:[%s140 + $0x188] sm:$0xff]
                %193 = vst [vmem:[%s141 + $0xc8] sm:$0xff] %v192
                %v194 = vld [vmem:[%s140 + $0x190] sm:$0xff]
                %195 = vst [vmem:[%s141 + $0xd0] sm:$0xff] %v194
                %v196 = vld [vmem:[%s140 + $0x198] sm:$0xff]
                %197 = vst [vmem:[%s141 + $0xd8] sm:$0xff] %v196
                %v198 = vld [vmem:[%s140 + $0x1c0] sm:$0xff]
                %199 = vst [vmem:[%s141 + $0xe0] sm:$0xff] %v198
                %v200 = vld [vmem:[%s140 + $0x1c8] sm:$0xff]
                %201 = vst [vmem:[%s141 + $0xe8] sm:$0xff] %v200
                %v202 = vld [vmem:[%s140 + $0x1d0] sm:$0xff]
                %203 = vst [vmem:[%s141 + $0xf0] sm:$0xff] %v202
                %v204 = vld [vmem:[%s140 + $0x1d8] sm:$0xff]
                %205 = vst [vmem:[%s141 + $0xf8] sm:$0xff] %v204
                %v206 = vld [vmem:[%s140 + $0x200] sm:$0xff]
                %207 = vst [vmem:[%s141 + $0x100] sm:$0xff] %v206
                %v208 = vld [vmem:[%s140 + $0x208] sm:$0xff]
                %209 = vst [vmem:[%s141 + $0x108] sm:$0xff] %v208
                %v210 = vld [vmem:[%s140 + $0x210] sm:$0xff]
                %211 = vst [vmem:[%s141 + $0x110] sm:$0xff] %v210
                %v212 = vld [vmem:[%s140 + $0x218] sm:$0xff]
                %213 = vst [vmem:[%s141 + $0x118] sm:$0xff] %v212
                %v214 = vld [vmem:[%s140 + $0x240] sm:$0xff]
                %215 = vst [vmem:[%s141 + $0x120] sm:$0xff] %v214
                %v216 = vld [vmem:[%s140 + $0x248] sm:$0xff]
                %217 = vst [vmem:[%s141 + $0x128] sm:$0xff] %v216
                %v218 = vld [vmem:[%s140 + $0x250] sm:$0xff]
                %219 = vst [vmem:[%s141 + $0x130] sm:$0xff] %v218
                %v220 = vld [vmem:[%s140 + $0x258] sm:$0xff]
                %221 = vst [vmem:[%s141 + $0x138] sm:$0xff] %v220
                %v222 = vld [vmem:[%s140 + $0x280] sm:$0xff]
                %223 = vst [vmem:[%s141 + $0x140] sm:$0xff] %v222
                %v224 = vld [vmem:[%s140 + $0x288] sm:$0xff]
                %225 = vst [vmem:[%s141 + $0x148] sm:$0xff] %v224
                %v226 = vld [vmem:[%s140 + $0x290] sm:$0xff]
                %227 = vst [vmem:[%s141 + $0x150] sm:$0xff] %v226
                %v228 = vld [vmem:[%s140 + $0x298] sm:$0xff]
                %229 = vst [vmem:[%s141 + $0x158] sm:$0xff] %v228
                %v230 = vld [vmem:[%s140 + $0x2c0] sm:$0xff]
                %231 = vst [vmem:[%s141 + $0x160] sm:$0xff] %v230
                %v232 = vld [vmem:[%s140 + $0x2c8] sm:$0xff]
                %233 = vst [vmem:[%s141 + $0x168] sm:$0xff] %v232
                %v234 = vld [vmem:[%s140 + $0x2d0] sm:$0xff]
                %235 = vst [vmem:[%s141 + $0x170] sm:$0xff] %v234
                %v236 = vld [vmem:[%s140 + $0x2d8] sm:$0xff]
                %237 = vst [vmem:[%s141 + $0x178] sm:$0xff] %v236
                %v238 = vld [vmem:[%s140 + $0x300] sm:$0xff]
                %239 = vst [vmem:[%s141 + $0x180] sm:$0xff] %v238
                %v240 = vld [vmem:[%s140 + $0x308] sm:$0xff]
                %241 = vst [vmem:[%s141 + $0x188] sm:$0xff] %v240
                %v242 = vld [vmem:[%s140 + $0x310] sm:$0xff]
                %243 = vst [vmem:[%s141 + $0x190] sm:$0xff] %v242
                %v244 = vld [vmem:[%s140 + $0x318] sm:$0xff]
                %245 = vst [vmem:[%s141 + $0x198] sm:$0xff] %v244
                %v246 = vld [vmem:[%s140 + $0x340] sm:$0xff]
                %247 = vst [vmem:[%s141 + $0x1a0] sm:$0xff] %v246
                %v248 = vld [vmem:[%s140 + $0x348] sm:$0xff]
                %249 = vst [vmem:[%s141 + $0x1a8] sm:$0xff] %v248
                %v250 = vld [vmem:[%s140 + $0x350] sm:$0xff]
                %251 = vst [vmem:[%s141 + $0x1b0] sm:$0xff] %v250
                %v252 = vld [vmem:[%s140 + $0x358] sm:$0xff]
                %253 = vst [vmem:[%s141 + $0x1b8] sm:$0xff] %v252
                %v254 = vld [vmem:[%s140 + $0x380] sm:$0xff]
                %255 = vst [vmem:[%s141 + $0x1c0] sm:$0xff] %v254
                %v256 = vld [vmem:[%s140 + $0x388] sm:$0xff]
                %257 = vst [vmem:[%s141 + $0x1c8] sm:$0xff] %v256
                %v258 = vld [vmem:[%s140 + $0x390] sm:$0xff]
                %259 = vst [vmem:[%s141 + $0x1d0] sm:$0xff] %v258
                %v260 = vld [vmem:[%s140 + $0x398] sm:$0xff]
                %261 = vst [vmem:[%s141 + $0x1d8] sm:$0xff] %v260
                %v262 = vld [vmem:[%s140 + $0x3c0] sm:$0xff]
                %263 = vst [vmem:[%s141 + $0x1e0] sm:$0xff] %v262
                %v264 = vld [vmem:[%s140 + $0x3c8] sm:$0xff]
                %265 = vst [vmem:[%s141 + $0x1e8] sm:$0xff] %v264
                %v266 = vld [vmem:[%s140 + $0x3d0] sm:$0xff]
                %267 = vst [vmem:[%s141 + $0x1f0] sm:$0xff] %v266
                %v268 = vld [vmem:[%s140 + $0x3d8] sm:$0xff]
                %269 = vst [vmem:[%s141 + $0x1f8] sm:$0xff] %v268
                %v270 = vld [vmem:[%s140 + $0x400] sm:$0xff]
                %271 = vst [vmem:[%s141 + $0x200] sm:$0xff] %v270
                %v272 = vld [vmem:[%s140 + $0x408] sm:$0xff]
                %273 = vst [vmem:[%s141 + $0x208] sm:$0xff] %v272
                %v274 = vld [vmem:[%s140 + $0x410] sm:$0xff]
                %275 = vst [vmem:[%s141 + $0x210] sm:$0xff] %v274
                %v276 = vld [vmem:[%s140 + $0x418] sm:$0xff]
                %277 = vst [vmem:[%s141 + $0x218] sm:$0xff] %v276
                %v278 = vld [vmem:[%s140 + $0x440] sm:$0xff]
                %279 = vst [vmem:[%s141 + $0x220] sm:$0xff] %v278
                %v280 = vld [vmem:[%s140 + $0x448] sm:$0xff]
                %281 = vst [vmem:[%s141 + $0x228] sm:$0xff] %v280
                %v282 = vld [vmem:[%s140 + $0x450] sm:$0xff]
                %283 = vst [vmem:[%s141 + $0x230] sm:$0xff] %v282
                %v284 = vld [vmem:[%s140 + $0x458] sm:$0xff]
                %285 = vst [vmem:[%s141 + $0x238] sm:$0xff] %v284
                %v286 = vld [vmem:[%s140 + $0x480] sm:$0xff]
                %287 = vst [vmem:[%s141 + $0x240] sm:$0xff] %v286
                %v288 = vld [vmem:[%s140 + $0x488] sm:$0xff]
                %289 = vst [vmem:[%s141 + $0x248] sm:$0xff] %v288
                %v290 = vld [vmem:[%s140 + $0x490] sm:$0xff]
                %291 = vst [vmem:[%s141 + $0x250] sm:$0xff] %v290
                %v292 = vld [vmem:[%s140 + $0x498] sm:$0xff]
                %293 = vst [vmem:[%s141 + $0x258] sm:$0xff] %v292
                %v294 = vld [vmem:[%s140 + $0x4c0] sm:$0xff]
                %295 = vst [vmem:[%s141 + $0x260] sm:$0xff] %v294
                %v296 = vld [vmem:[%s140 + $0x4c8] sm:$0xff]
                %297 = vst [vmem:[%s141 + $0x268] sm:$0xff] %v296
                %v298 = vld [vmem:[%s140 + $0x4d0] sm:$0xff]
                %299 = vst [vmem:[%s141 + $0x270] sm:$0xff] %v298
                %v300 = vld [vmem:[%s140 + $0x4d8] sm:$0xff]
                %301 = vst [vmem:[%s141 + $0x278] sm:$0xff] %v300
                %v302 = vld [vmem:[%s140 + $0x500] sm:$0xff]
                %303 = vst [vmem:[%s141 + $0x280] sm:$0xff] %v302
                %v304 = vld [vmem:[%s140 + $0x508] sm:$0xff]
                %305 = vst [vmem:[%s141 + $0x288] sm:$0xff] %v304
                %v306 = vld [vmem:[%s140 + $0x510] sm:$0xff]
                %307 = vst [vmem:[%s141 + $0x290] sm:$0xff] %v306
                %v308 = vld [vmem:[%s140 + $0x518] sm:$0xff]
                %309 = vst [vmem:[%s141 + $0x298] sm:$0xff] %v308
                %v310 = vld [vmem:[%s140 + $0x540] sm:$0xff]
                %311 = vst [vmem:[%s141 + $0x2a0] sm:$0xff] %v310
                %v312 = vld [vmem:[%s140 + $0x548] sm:$0xff]
                %313 = vst [vmem:[%s141 + $0x2a8] sm:$0xff] %v312
                %v314 = vld [vmem:[%s140 + $0x550] sm:$0xff]
                %315 = vst [vmem:[%s141 + $0x2b0] sm:$0xff] %v314
                %v316 = vld [vmem:[%s140 + $0x558] sm:$0xff]
                %317 = vst [vmem:[%s141 + $0x2b8] sm:$0xff] %v316
                %v318 = vld [vmem:[%s140 + $0x580] sm:$0xff]
                %319 = vst [vmem:[%s141 + $0x2c0] sm:$0xff] %v318
                %v320 = vld [vmem:[%s140 + $0x588] sm:$0xff]
                %321 = vst [vmem:[%s141 + $0x2c8] sm:$0xff] %v320
                %v322 = vld [vmem:[%s140 + $0x590] sm:$0xff]
                %323 = vst [vmem:[%s141 + $0x2d0] sm:$0xff] %v322
                %v324 = vld [vmem:[%s140 + $0x598] sm:$0xff]
                %325 = vst [vmem:[%s141 + $0x2d8] sm:$0xff] %v324
                %v326 = vld [vmem:[%s140 + $0x5c0] sm:$0xff]
                %327 = vst [vmem:[%s141 + $0x2e0] sm:$0xff] %v326
                %v328 = vld [vmem:[%s140 + $0x5c8] sm:$0xff]
                %329 = vst [vmem:[%s141 + $0x2e8] sm:$0xff] %v328
                %v330 = vld [vmem:[%s140 + $0x5d0] sm:$0xff]
                %331 = vst [vmem:[%s141 + $0x2f0] sm:$0xff] %v330
                %v332 = vld [vmem:[%s140 + $0x5d8] sm:$0xff]
                %333 = vst [vmem:[%s141 + $0x2f8] sm:$0xff] %v332
                %v334 = vld [vmem:[%s140 + $0x600] sm:$0xff]
                %335 = vst [vmem:[%s141 + $0x300] sm:$0xff] %v334
                %v336 = vld [vmem:[%s140 + $0x608] sm:$0xff]
                %337 = vst [vmem:[%s141 + $0x308] sm:$0xff] %v336
                %v338 = vld [vmem:[%s140 + $0x610] sm:$0xff]
                %339 = vst [vmem:[%s141 + $0x310] sm:$0xff] %v338
                %v340 = vld [vmem:[%s140 + $0x618] sm:$0xff]
                %341 = vst [vmem:[%s141 + $0x318] sm:$0xff] %v340
                %v342 = vld [vmem:[%s140 + $0x640] sm:$0xff]
                %343 = vst [vmem:[%s141 + $0x320] sm:$0xff] %v342
                %v344 = vld [vmem:[%s140 + $0x648] sm:$0xff]
                %345 = vst [vmem:[%s141 + $0x328] sm:$0xff] %v344
                %v346 = vld [vmem:[%s140 + $0x650] sm:$0xff]
                %347 = vst [vmem:[%s141 + $0x330] sm:$0xff] %v346
                %v348 = vld [vmem:[%s140 + $0x658] sm:$0xff]
                %349 = vst [vmem:[%s141 + $0x338] sm:$0xff] %v348
                %v350 = vld [vmem:[%s140 + $0x680] sm:$0xff]
                %351 = vst [vmem:[%s141 + $0x340] sm:$0xff] %v350
                %v352 = vld [vmem:[%s140 + $0x688] sm:$0xff]
                %353 = vst [vmem:[%s141 + $0x348] sm:$0xff] %v352
                %v354 = vld [vmem:[%s140 + $0x690] sm:$0xff]
                %355 = vst [vmem:[%s141 + $0x350] sm:$0xff] %v354
                %v356 = vld [vmem:[%s140 + $0x698] sm:$0xff]
                %357 = vst [vmem:[%s141 + $0x358] sm:$0xff] %v356
                %v358 = vld [vmem:[%s140 + $0x6c0] sm:$0xff]
                %359 = vst [vmem:[%s141 + $0x360] sm:$0xff] %v358
                %v360 = vld [vmem:[%s140 + $0x6c8] sm:$0xff]
                %361 = vst [vmem:[%s141 + $0x368] sm:$0xff] %v360
                %v362 = vld [vmem:[%s140 + $0x6d0] sm:$0xff]
                %363 = vst [vmem:[%s141 + $0x370] sm:$0xff] %v362
                %v364 = vld [vmem:[%s140 + $0x6d8] sm:$0xff]
                %365 = vst [vmem:[%s141 + $0x378] sm:$0xff] %v364
                %v366 = vld [vmem:[%s140 + $0x700] sm:$0xff]
                %367 = vst [vmem:[%s141 + $0x380] sm:$0xff] %v366
                %v368 = vld [vmem:[%s140 + $0x708] sm:$0xff]
                %369 = vst [vmem:[%s141 + $0x388] sm:$0xff] %v368
                %v370 = vld [vmem:[%s140 + $0x710] sm:$0xff]
                %371 = vst [vmem:[%s141 + $0x390] sm:$0xff] %v370
                %v372 = vld [vmem:[%s140 + $0x718] sm:$0xff]
                %373 = vst [vmem:[%s141 + $0x398] sm:$0xff] %v372
                %v374 = vld [vmem:[%s140 + $0x740] sm:$0xff]
                %375 = vst [vmem:[%s141 + $0x3a0] sm:$0xff] %v374
                %v376 = vld [vmem:[%s140 + $0x748] sm:$0xff]
                %377 = vst [vmem:[%s141 + $0x3a8] sm:$0xff] %v376
                %v378 = vld [vmem:[%s140 + $0x750] sm:$0xff]
                %379 = vst [vmem:[%s141 + $0x3b0] sm:$0xff] %v378
                %v380 = vld [vmem:[%s140 + $0x758] sm:$0xff]
                %381 = vst [vmem:[%s141 + $0x3b8] sm:$0xff] %v380
                %v382 = vld [vmem:[%s140 + $0x780] sm:$0xff]
                %383 = vst [vmem:[%s141 + $0x3c0] sm:$0xff] %v382
                %v384 = vld [vmem:[%s140 + $0x788] sm:$0xff]
                %385 = vst [vmem:[%s141 + $0x3c8] sm:$0xff] %v384
                %v386 = vld [vmem:[%s140 + $0x790] sm:$0xff]
                %387 = vst [vmem:[%s141 + $0x3d0] sm:$0xff] %v386
                %v388 = vld [vmem:[%s140 + $0x798] sm:$0xff]
                %389 = vst [vmem:[%s141 + $0x3d8] sm:$0xff] %v388
                %v390 = vld [vmem:[%s140 + $0x7c0] sm:$0xff]
                %391 = vst [vmem:[%s141 + $0x3e0] sm:$0xff] %v390
                %v392 = vld [vmem:[%s140 + $0x7c8] sm:$0xff]
                %393 = vst [vmem:[%s141 + $0x3e8] sm:$0xff] %v392
                %v394 = vld [vmem:[%s140 + $0x7d0] sm:$0xff]
                %395 = vst [vmem:[%s141 + $0x3f0] sm:$0xff] %v394
                %v396 = vld [vmem:[%s140 + $0x7d8] sm:$0xff]
                %397 = vst [vmem:[%s141 + $0x3f8] sm:$0xff] %v396
                %v398 = vld [vmem:[%s140 + $0x800] sm:$0xff]
                %399 = vst [vmem:[%s141 + $0x400] sm:$0xff] %v398
                %v400 = vld [vmem:[%s140 + $0x808] sm:$0xff]
                %401 = vst [vmem:[%s141 + $0x408] sm:$0xff] %v400
                %v402 = vld [vmem:[%s140 + $0x810] sm:$0xff]
                %403 = vst [vmem:[%s141 + $0x410] sm:$0xff] %v402
                %v404 = vld [vmem:[%s140 + $0x818] sm:$0xff]
                %405 = vst [vmem:[%s141 + $0x418] sm:$0xff] %v404
                %v406 = vld [vmem:[%s140 + $0x840] sm:$0xff]
                %407 = vst [vmem:[%s141 + $0x420] sm:$0xff] %v406
                %v408 = vld [vmem:[%s140 + $0x848] sm:$0xff]
                %409 = vst [vmem:[%s141 + $0x428] sm:$0xff] %v408
                %v410 = vld [vmem:[%s140 + $0x850] sm:$0xff]
                %411 = vst [vmem:[%s141 + $0x430] sm:$0xff] %v410
                %v412 = vld [vmem:[%s140 + $0x858] sm:$0xff]
                %413 = vst [vmem:[%s141 + $0x438] sm:$0xff] %v412
                %v414 = vld [vmem:[%s140 + $0x880] sm:$0xff]
                %415 = vst [vmem:[%s141 + $0x440] sm:$0xff] %v414
                %v416 = vld [vmem:[%s140 + $0x888] sm:$0xff]
                %417 = vst [vmem:[%s141 + $0x448] sm:$0xff] %v416
                %v418 = vld [vmem:[%s140 + $0x890] sm:$0xff]
                %419 = vst [vmem:[%s141 + $0x450] sm:$0xff] %v418
                %v420 = vld [vmem:[%s140 + $0x898] sm:$0xff]
                %421 = vst [vmem:[%s141 + $0x458] sm:$0xff] %v420
                %v422 = vld [vmem:[%s140 + $0x8c0] sm:$0xff]
                %423 = vst [vmem:[%s141 + $0x460] sm:$0xff] %v422
                %v424 = vld [vmem:[%s140 + $0x8c8] sm:$0xff]
                %425 = vst [vmem:[%s141 + $0x468] sm:$0xff] %v424
                %v426 = vld [vmem:[%s140 + $0x8d0] sm:$0xff]
                %427 = vst [vmem:[%s141 + $0x470] sm:$0xff] %v426
                %v428 = vld [vmem:[%s140 + $0x8d8] sm:$0xff]
                %429 = vst [vmem:[%s141 + $0x478] sm:$0xff] %v428
                %v430 = vld [vmem:[%s140 + $0x900] sm:$0xff]
                %431 = vst [vmem:[%s141 + $0x480] sm:$0xff] %v430
                %v432 = vld [vmem:[%s140 + $0x908] sm:$0xff]
                %433 = vst [vmem:[%s141 + $0x488] sm:$0xff] %v432
                %v434 = vld [vmem:[%s140 + $0x910] sm:$0xff]
                %435 = vst [vmem:[%s141 + $0x490] sm:$0xff] %v434
                %v436 = vld [vmem:[%s140 + $0x918] sm:$0xff]
                %437 = vst [vmem:[%s141 + $0x498] sm:$0xff] %v436
                %v438 = vld [vmem:[%s140 + $0x940] sm:$0xff]
                %439 = vst [vmem:[%s141 + $0x4a0] sm:$0xff] %v438
                %v440 = vld [vmem:[%s140 + $0x948] sm:$0xff]
                %441 = vst [vmem:[%s141 + $0x4a8] sm:$0xff] %v440
                %v442 = vld [vmem:[%s140 + $0x950] sm:$0xff]
                %443 = vst [vmem:[%s141 + $0x4b0] sm:$0xff] %v442
                %v444 = vld [vmem:[%s140 + $0x958] sm:$0xff]
                %445 = vst [vmem:[%s141 + $0x4b8] sm:$0xff] %v444
                %v446 = vld [vmem:[%s140 + $0x980] sm:$0xff]
                %447 = vst [vmem:[%s141 + $0x4c0] sm:$0xff] %v446
                %v448 = vld [vmem:[%s140 + $0x988] sm:$0xff]
                %449 = vst [vmem:[%s141 + $0x4c8] sm:$0xff] %v448
                %v450 = vld [vmem:[%s140 + $0x990] sm:$0xff]
                %451 = vst [vmem:[%s141 + $0x4d0] sm:$0xff] %v450
                %v452 = vld [vmem:[%s140 + $0x998] sm:$0xff]
                %453 = vst [vmem:[%s141 + $0x4d8] sm:$0xff] %v452
                %v454 = vld [vmem:[%s140 + $0x9c0] sm:$0xff]
                %455 = vst [vmem:[%s141 + $0x4e0] sm:$0xff] %v454
                %v456 = vld [vmem:[%s140 + $0x9c8] sm:$0xff]
                %457 = vst [vmem:[%s141 + $0x4e8] sm:$0xff] %v456
                %v458 = vld [vmem:[%s140 + $0x9d0] sm:$0xff]
                %459 = vst [vmem:[%s141 + $0x4f0] sm:$0xff] %v458
                %v460 = vld [vmem:[%s140 + $0x9d8] sm:$0xff]
                %461 = vst [vmem:[%s141 + $0x4f8] sm:$0xff] %v460
                %v462 = vld [vmem:[%s140 + $0xa00] sm:$0xff]
                %463 = vst [vmem:[%s141 + $0x500] sm:$0xff] %v462
                %v464 = vld [vmem:[%s140 + $0xa08] sm:$0xff]
                %465 = vst [vmem:[%s141 + $0x508] sm:$0xff] %v464
                %v466 = vld [vmem:[%s140 + $0xa10] sm:$0xff]
                %467 = vst [vmem:[%s141 + $0x510] sm:$0xff] %v466
                %v468 = vld [vmem:[%s140 + $0xa18] sm:$0xff]
                %469 = vst [vmem:[%s141 + $0x518] sm:$0xff] %v468
                %v470 = vld [vmem:[%s140 + $0xa40] sm:$0xff]
                %471 = vst [vmem:[%s141 + $0x520] sm:$0xff] %v470
                %v472 = vld [vmem:[%s140 + $0xa48] sm:$0xff]
                %473 = vst [vmem:[%s141 + $0x528] sm:$0xff] %v472
                %v474 = vld [vmem:[%s140 + $0xa50] sm:$0xff]
                %475 = vst [vmem:[%s141 + $0x530] sm:$0xff] %v474
                %v476 = vld [vmem:[%s140 + $0xa58] sm:$0xff]
                %477 = vst [vmem:[%s141 + $0x538] sm:$0xff] %v476
                %v478 = vld [vmem:[%s140 + $0xa80] sm:$0xff]
                %479 = vst [vmem:[%s141 + $0x540] sm:$0xff] %v478
                %v480 = vld [vmem:[%s140 + $0xa88] sm:$0xff]
                %481 = vst [vmem:[%s141 + $0x548] sm:$0xff] %v480
                %v482 = vld [vmem:[%s140 + $0xa90] sm:$0xff]
                %483 = vst [vmem:[%s141 + $0x550] sm:$0xff] %v482
                %v484 = vld [vmem:[%s140 + $0xa98] sm:$0xff]
                %485 = vst [vmem:[%s141 + $0x558] sm:$0xff] %v484
                %v486 = vld [vmem:[%s140 + $0xac0] sm:$0xff]
                %487 = vst [vmem:[%s141 + $0x560] sm:$0xff] %v486
                %v488 = vld [vmem:[%s140 + $0xac8] sm:$0xff]
                %489 = vst [vmem:[%s141 + $0x568] sm:$0xff] %v488
                %v490 = vld [vmem:[%s140 + $0xad0] sm:$0xff]
                %491 = vst [vmem:[%s141 + $0x570] sm:$0xff] %v490
                %v492 = vld [vmem:[%s140 + $0xad8] sm:$0xff]
                %493 = vst [vmem:[%s141 + $0x578] sm:$0xff] %v492
                %v494 = vld [vmem:[%s140 + $0xb00] sm:$0xff]
                %495 = vst [vmem:[%s141 + $0x580] sm:$0xff] %v494
                %v496 = vld [vmem:[%s140 + $0xb08] sm:$0xff]
                %497 = vst [vmem:[%s141 + $0x588] sm:$0xff] %v496
                %v498 = vld [vmem:[%s140 + $0xb10] sm:$0xff]
                %499 = vst [vmem:[%s141 + $0x590] sm:$0xff] %v498
                %v500 = vld [vmem:[%s140 + $0xb18] sm:$0xff]
                %501 = vst [vmem:[%s141 + $0x598] sm:$0xff] %v500
                %v502 = vld [vmem:[%s140 + $0xb40] sm:$0xff]
                %503 = vst [vmem:[%s141 + $0x5a0] sm:$0xff] %v502
                %v504 = vld [vmem:[%s140 + $0xb48] sm:$0xff]
                %505 = vst [vmem:[%s141 + $0x5a8] sm:$0xff] %v504
                %v506 = vld [vmem:[%s140 + $0xb50] sm:$0xff]
                %507 = vst [vmem:[%s141 + $0x5b0] sm:$0xff] %v506
                %v508 = vld [vmem:[%s140 + $0xb58] sm:$0xff]
                %509 = vst [vmem:[%s141 + $0x5b8] sm:$0xff] %v508
                %v510 = vld [vmem:[%s140 + $0xb80] sm:$0xff]
                %511 = vst [vmem:[%s141 + $0x5c0] sm:$0xff] %v510
                %v512 = vld [vmem:[%s140 + $0xb88] sm:$0xff]
                %513 = vst [vmem:[%s141 + $0x5c8] sm:$0xff] %v512
                %v514 = vld [vmem:[%s140 + $0xb90] sm:$0xff]
                %515 = vst [vmem:[%s141 + $0x5d0] sm:$0xff] %v514
                %v516 = vld [vmem:[%s140 + $0xb98] sm:$0xff]
                %517 = vst [vmem:[%s141 + $0x5d8] sm:$0xff] %v516
                %v518 = vld [vmem:[%s140 + $0xbc0] sm:$0xff]
                %519 = vst [vmem:[%s141 + $0x5e0] sm:$0xff] %v518
                %v520 = vld [vmem:[%s140 + $0xbc8] sm:$0xff]
                %521 = vst [vmem:[%s141 + $0x5e8] sm:$0xff] %v520
                %v522 = vld [vmem:[%s140 + $0xbd0] sm:$0xff]
                %523 = vst [vmem:[%s141 + $0x5f0] sm:$0xff] %v522
                %v524 = vld [vmem:[%s140 + $0xbd8] sm:$0xff]
                %525 = vst [vmem:[%s141 + $0x5f8] sm:$0xff] %v524
                %v526 = vld [vmem:[%s140 + $0xc00] sm:$0xff]
                %527 = vst [vmem:[%s141 + $0x600] sm:$0xff] %v526
                %v528 = vld [vmem:[%s140 + $0xc08] sm:$0xff]
                %529 = vst [vmem:[%s141 + $0x608] sm:$0xff] %v528
                %v530 = vld [vmem:[%s140 + $0xc10] sm:$0xff]
                %531 = vst [vmem:[%s141 + $0x610] sm:$0xff] %v530
                %v532 = vld [vmem:[%s140 + $0xc18] sm:$0xff]
                %533 = vst [vmem:[%s141 + $0x618] sm:$0xff] %v532
                %v534 = vld [vmem:[%s140 + $0xc40] sm:$0xff]
                %535 = vst [vmem:[%s141 + $0x620] sm:$0xff] %v534
                %v536 = vld [vmem:[%s140 + $0xc48] sm:$0xff]
                %537 = vst [vmem:[%s141 + $0x628] sm:$0xff] %v536
                %v538 = vld [vmem:[%s140 + $0xc50] sm:$0xff]
                %539 = vst [vmem:[%s141 + $0x630] sm:$0xff] %v538
                %v540 = vld [vmem:[%s140 + $0xc58] sm:$0xff]
                %541 = vst [vmem:[%s141 + $0x638] sm:$0xff] %v540
                %v542 = vld [vmem:[%s140 + $0xc80] sm:$0xff]
                %543 = vst [vmem:[%s141 + $0x640] sm:$0xff] %v542
                %v544 = vld [vmem:[%s140 + $0xc88] sm:$0xff]
                %545 = vst [vmem:[%s141 + $0x648] sm:$0xff] %v544
                %v546 = vld [vmem:[%s140 + $0xc90] sm:$0xff]
                %547 = vst [vmem:[%s141 + $0x650] sm:$0xff] %v546
                %v548 = vld [vmem:[%s140 + $0xc98] sm:$0xff]
                %549 = vst [vmem:[%s141 + $0x658] sm:$0xff] %v548
                %v550 = vld [vmem:[%s140 + $0xcc0] sm:$0xff]
                %551 = vst [vmem:[%s141 + $0x660] sm:$0xff] %v550
                %v552 = vld [vmem:[%s140 + $0xcc8] sm:$0xff]
                %553 = vst [vmem:[%s141 + $0x668] sm:$0xff] %v552
                %v554 = vld [vmem:[%s140 + $0xcd0] sm:$0xff]
                %555 = vst [vmem:[%s141 + $0x670] sm:$0xff] %v554
                %v556 = vld [vmem:[%s140 + $0xcd8] sm:$0xff]
                %557 = vst [vmem:[%s141 + $0x678] sm:$0xff] %v556
                %v558 = vld [vmem:[%s140 + $0xd00] sm:$0xff]
                %559 = vst [vmem:[%s141 + $0x680] sm:$0xff] %v558
                %v560 = vld [vmem:[%s140 + $0xd08] sm:$0xff]
                %561 = vst [vmem:[%s141 + $0x688] sm:$0xff] %v560
                %v562 = vld [vmem:[%s140 + $0xd10] sm:$0xff]
                %563 = vst [vmem:[%s141 + $0x690] sm:$0xff] %v562
                %v564 = vld [vmem:[%s140 + $0xd18] sm:$0xff]
                %565 = vst [vmem:[%s141 + $0x698] sm:$0xff] %v564
                %v566 = vld [vmem:[%s140 + $0xd40] sm:$0xff]
                %567 = vst [vmem:[%s141 + $0x6a0] sm:$0xff] %v566
                %v568 = vld [vmem:[%s140 + $0xd48] sm:$0xff]
                %569 = vst [vmem:[%s141 + $0x6a8] sm:$0xff] %v568
                %v570 = vld [vmem:[%s140 + $0xd50] sm:$0xff]
                %571 = vst [vmem:[%s141 + $0x6b0] sm:$0xff] %v570
                %v572 = vld [vmem:[%s140 + $0xd58] sm:$0xff]
                %573 = vst [vmem:[%s141 + $0x6b8] sm:$0xff] %v572
                %v574 = vld [vmem:[%s140 + $0xd80] sm:$0xff]
                %575 = vst [vmem:[%s141 + $0x6c0] sm:$0xff] %v574
                %v576 = vld [vmem:[%s140 + $0xd88] sm:$0xff]
                %577 = vst [vmem:[%s141 + $0x6c8] sm:$0xff] %v576
                %v578 = vld [vmem:[%s140 + $0xd90] sm:$0xff]
                %579 = vst [vmem:[%s141 + $0x6d0] sm:$0xff] %v578
                %v580 = vld [vmem:[%s140 + $0xd98] sm:$0xff]
                %581 = vst [vmem:[%s141 + $0x6d8] sm:$0xff] %v580
                %v582 = vld [vmem:[%s140 + $0xdc0] sm:$0xff]
                %583 = vst [vmem:[%s141 + $0x6e0] sm:$0xff] %v582
                %v584 = vld [vmem:[%s140 + $0xdc8] sm:$0xff]
                %585 = vst [vmem:[%s141 + $0x6e8] sm:$0xff] %v584
                %v586 = vld [vmem:[%s140 + $0xdd0] sm:$0xff]
                %587 = vst [vmem:[%s141 + $0x6f0] sm:$0xff] %v586
                %v588 = vld [vmem:[%s140 + $0xdd8] sm:$0xff]
                %589 = vst [vmem:[%s141 + $0x6f8] sm:$0xff] %v588
                %v590 = vld [vmem:[%s140 + $0xe00] sm:$0xff]
                %591 = vst [vmem:[%s141 + $0x700] sm:$0xff] %v590
                %v592 = vld [vmem:[%s140 + $0xe08] sm:$0xff]
                %593 = vst [vmem:[%s141 + $0x708] sm:$0xff] %v592
                %v594 = vld [vmem:[%s140 + $0xe10] sm:$0xff]
                %595 = vst [vmem:[%s141 + $0x710] sm:$0xff] %v594
                %v596 = vld [vmem:[%s140 + $0xe18] sm:$0xff]
                %597 = vst [vmem:[%s141 + $0x718] sm:$0xff] %v596
                %v598 = vld [vmem:[%s140 + $0xe40] sm:$0xff]
                %599 = vst [vmem:[%s141 + $0x720] sm:$0xff] %v598
                %v600 = vld [vmem:[%s140 + $0xe48] sm:$0xff]
                %601 = vst [vmem:[%s141 + $0x728] sm:$0xff] %v600
                %v602 = vld [vmem:[%s140 + $0xe50] sm:$0xff]
                %603 = vst [vmem:[%s141 + $0x730] sm:$0xff] %v602
                %v604 = vld [vmem:[%s140 + $0xe58] sm:$0xff]
                %605 = vst [vmem:[%s141 + $0x738] sm:$0xff] %v604
                %v606 = vld [vmem:[%s140 + $0xe80] sm:$0xff]
                %607 = vst [vmem:[%s141 + $0x740] sm:$0xff] %v606
                %v608 = vld [vmem:[%s140 + $0xe88] sm:$0xff]
                %609 = vst [vmem:[%s141 + $0x748] sm:$0xff] %v608
                %v610 = vld [vmem:[%s140 + $0xe90] sm:$0xff]
                %611 = vst [vmem:[%s141 + $0x750] sm:$0xff] %v610
                %v612 = vld [vmem:[%s140 + $0xe98] sm:$0xff]
                %613 = vst [vmem:[%s141 + $0x758] sm:$0xff] %v612
                %v614 = vld [vmem:[%s140 + $0xec0] sm:$0xff]
                %615 = vst [vmem:[%s141 + $0x760] sm:$0xff] %v614
                %v616 = vld [vmem:[%s140 + $0xec8] sm:$0xff]
                %617 = vst [vmem:[%s141 + $0x768] sm:$0xff] %v616
                %v618 = vld [vmem:[%s140 + $0xed0] sm:$0xff]
                %619 = vst [vmem:[%s141 + $0x770] sm:$0xff] %v618
                %v620 = vld [vmem:[%s140 + $0xed8] sm:$0xff]
                %621 = vst [vmem:[%s141 + $0x778] sm:$0xff] %v620
                %v622 = vld [vmem:[%s140 + $0xf00] sm:$0xff]
                %623 = vst [vmem:[%s141 + $0x780] sm:$0xff] %v622
                %v624 = vld [vmem:[%s140 + $0xf08] sm:$0xff]
                %625 = vst [vmem:[%s141 + $0x788] sm:$0xff] %v624
                %v626 = vld [vmem:[%s140 + $0xf10] sm:$0xff]
                %627 = vst [vmem:[%s141 + $0x790] sm:$0xff] %v626
                %v628 = vld [vmem:[%s140 + $0xf18] sm:$0xff]
                %629 = vst [vmem:[%s141 + $0x798] sm:$0xff] %v628
                %v630 = vld [vmem:[%s140 + $0xf40] sm:$0xff]
                %631 = vst [vmem:[%s141 + $0x7a0] sm:$0xff] %v630
                %v632 = vld [vmem:[%s140 + $0xf48] sm:$0xff]
                %633 = vst [vmem:[%s141 + $0x7a8] sm:$0xff] %v632
                %v634 = vld [vmem:[%s140 + $0xf50] sm:$0xff]
                %635 = vst [vmem:[%s141 + $0x7b0] sm:$0xff] %v634
                %v636 = vld [vmem:[%s140 + $0xf58] sm:$0xff]
                %637 = vst [vmem:[%s141 + $0x7b8] sm:$0xff] %v636
                %v638 = vld [vmem:[%s140 + $0xf80] sm:$0xff]
                %639 = vst [vmem:[%s141 + $0x7c0] sm:$0xff] %v638
                %v640 = vld [vmem:[%s140 + $0xf88] sm:$0xff]
                %641 = vst [vmem:[%s141 + $0x7c8] sm:$0xff] %v640
                %v642 = vld [vmem:[%s140 + $0xf90] sm:$0xff]
                %643 = vst [vmem:[%s141 + $0x7d0] sm:$0xff] %v642
                %v644 = vld [vmem:[%s140 + $0xf98] sm:$0xff]
                %645 = vst [vmem:[%s141 + $0x7d8] sm:$0xff] %v644
                %v646 = vld [vmem:[%s140 + $0xfc0] sm:$0xff]
                %647 = vst [vmem:[%s141 + $0x7e0] sm:$0xff] %v646
                %v648 = vld [vmem:[%s140 + $0xfc8] sm:$0xff]
                %649 = vst [vmem:[%s141 + $0x7e8] sm:$0xff] %v648
                %v650 = vld [vmem:[%s140 + $0xfd0] sm:$0xff]
                %651 = vst [vmem:[%s141 + $0x7f0] sm:$0xff] %v650
                %v652 = vld [vmem:[%s140 + $0xfd8] sm:$0xff]
                %653 = vst [vmem:[%s141 + $0x7f8] sm:$0xff] %v652
              $region37: #{_gcn_forward.3} parent=31 // loop_footer
                %s139 = sadd.s32 1, %s135
              $region38: #{_gcn_forward.3} parent=31 // loop_footer_branch
                %134 = sbr.rel target = $region34
              $region39: #{_gcn_forward.3} parent=31 // loop_exit
                _
            $region32: #{_gcn_forward.3} parent=27 // pred_fallthru
              _
            // Predicated region
            $region40: #{_gcn_forward.3} parent=27 // pred_check
              _
            $region41: #{_gcn_forward.3} parent=27 // pred_check_branch
              %655 = sbr.rel target = $region43
            $region42: #{_gcn_forward.3} parent=27 // pred_region
              _
            $region43: #{_gcn_forward.3} parent=27 // pred_fallthru
              _
          $region28: #{_gcn_forward.3} parent=23 // pred_fallthru
            _
          %656 = vnop
        $region24: #{_gcn_forward.3} parent=19 // pred_fallthru
          _
      $region20: #{_gcn_forward.3} parent=5 // pred_fallthru
        _
      %p657 = scmp.le.s32.totalorder 1, %s8
      %p658 = scmp.lt.s32.totalorder %s8, 7
      %p659 = pnand %p657, %p658
      %p660 = pneg %p659
      // Predicated region
      $region44: #{_gcn_forward.3} parent=5 // pred_check
        _
      $region45: #{_gcn_forward.3} parent=5 // pred_check_branch
        %662 = sbr.rel (%p659) target = $region47
      $region46: #{_gcn_forward.3} parent=5 // pred_region
        %s663 = ssub.s32 %s8, 1
        %s664 = sand.u32 %s35, 1
        %s665 = sand.u32 %s35, 1
        %s666 = smul.addr %s665, 2048
        %s667 = scalar_lea.vmem [#allocation3], %s666
        // Predicated region
        $region48: #{_gcn_forward.3} parent=46 // pred_check
          %p668 = pneg %p48
        $region49: #{_gcn_forward.3} parent=46 // pred_check_branch
          %670 = sbr.rel (%p668) target = $region51
        $region50: #{_gcn_forward.3} parent=46 // pred_region
          _
        $region51: #{_gcn_forward.3} parent=46 // pred_fallthru
          _
        %s671 = sand.u32 %s35, 1
        %s672 = sand.u32 %s35, 1
        %s673 = smul.addr %s672, 2048
        %s674 = scalar_lea.vmem [#allocation3], %s673
        %p675 = pneg %p48
        %p676 = pneg %p45
        %p677 = pneg %p69
        %p678 = pneg %p66
        %p679 = pneg %p95
        %p680 = pneg %p92
        %s681 = smul.u32 64, %s17
        %p682 = scmp.lt.s32.totalorder %s681, 191
        %s683 = scalar_select %p682, %s681, 191
        %s684 = smul.addr %s683, 8
        %s685 = scalar_lea.vmem %s2, %s684
        %s686 = smul.u32 64, %s17
        %s687 = smul.u32 8, %s18
        %s688 = smul.u32 64, %s17
        %p689 = scmp.lt.s32.totalorder %s688, 191
        %s690 = scalar_select %p689, %s688, 191
        %s691 = smul.addr %s690, 8
        %s692 = scalar_lea.vmem %s2, %s691
        %s693 = smul.u32 64, %s17
        %p695 = scmp.eq.s32.totalorder %s18, 0
        // Predicated region
        $region52: #{_gcn_forward.3} parent=46 // pred_check
          %p696 = pneg %p695
        $region53: #{_gcn_forward.3} parent=46 // pred_check_branch
          %698 = sbr.rel (%p696) target = $region55
        $region54: #{_gcn_forward.3} parent=46 // pred_region
          %699 = vst [vmem:[#allocation2] sm:$0xff] 0.0
          %700 = vst [vmem:[#allocation2 + $0x8] sm:$0xff] 0.0
          %701 = vst [vmem:[#allocation2 + $0x10] sm:$0xff] 0.0
          %702 = vst [vmem:[#allocation2 + $0x18] sm:$0xff] 0.0
          %703 = vst [vmem:[#allocation2 + $0x20] sm:$0xff] 0.0
          %704 = vst [vmem:[#allocation2 + $0x28] sm:$0xff] 0.0
          %705 = vst [vmem:[#allocation2 + $0x30] sm:$0xff] 0.0
          %706 = vst [vmem:[#allocation2 + $0x38] sm:$0xff] 0.0
          %707 = vst [vmem:[#allocation2 + $0x40] sm:$0xff] 0.0
          %708 = vst [vmem:[#allocation2 + $0x48] sm:$0xff] 0.0
          %709 = vst [vmem:[#allocation2 + $0x50] sm:$0xff] 0.0
          %710 = vst [vmem:[#allocation2 + $0x58] sm:$0xff] 0.0
          %711 = vst [vmem:[#allocation2 + $0x60] sm:$0xff] 0.0
          %712 = vst [vmem:[#allocation2 + $0x68] sm:$0xff] 0.0
          %713 = vst [vmem:[#allocation2 + $0x70] sm:$0xff] 0.0
          %714 = vst [vmem:[#allocation2 + $0x78] sm:$0xff] 0.0
          %715 = vst [vmem:[#allocation2 + $0x80] sm:$0xff] 0.0
          %716 = vst [vmem:[#allocation2 + $0x88] sm:$0xff] 0.0
          %717 = vst [vmem:[#allocation2 + $0x90] sm:$0xff] 0.0
          %718 = vst [vmem:[#allocation2 + $0x98] sm:$0xff] 0.0
          %719 = vst [vmem:[#allocation2 + $0xa0] sm:$0xff] 0.0
          %720 = vst [vmem:[#allocation2 + $0xa8] sm:$0xff] 0.0
          %721 = vst [vmem:[#allocation2 + $0xb0] sm:$0xff] 0.0
          %722 = vst [vmem:[#allocation2 + $0xb8] sm:$0xff] 0.0
          %723 = vst [vmem:[#allocation2 + $0xc0] sm:$0xff] 0.0
          %724 = vst [vmem:[#allocation2 + $0xc8] sm:$0xff] 0.0
          %725 = vst [vmem:[#allocation2 + $0xd0] sm:$0xff] 0.0
          %726 = vst [vmem:[#allocation2 + $0xd8] sm:$0xff] 0.0
          %727 = vst [vmem:[#allocation2 + $0xe0] sm:$0xff] 0.0
          %728 = vst [vmem:[#allocation2 + $0xe8] sm:$0xff] 0.0
          %729 = vst [vmem:[#allocation2 + $0xf0] sm:$0xff] 0.0
          %730 = vst [vmem:[#allocation2 + $0xf8] sm:$0xff] 0.0
          %731 = vst [vmem:[#allocation2 + $0x100] sm:$0xff] 0.0
          %732 = vst [vmem:[#allocation2 + $0x108] sm:$0xff] 0.0
          %733 = vst [vmem:[#allocation2 + $0x110] sm:$0xff] 0.0
          %734 = vst [vmem:[#allocation2 + $0x118] sm:$0xff] 0.0
          %735 = vst [vmem:[#allocation2 + $0x120] sm:$0xff] 0.0
          %736 = vst [vmem:[#allocation2 + $0x128] sm:$0xff] 0.0
          %737 = vst [vmem:[#allocation2 + $0x130] sm:$0xff] 0.0
          %738 = vst [vmem:[#allocation2 + $0x138] sm:$0xff] 0.0
          %739 = vst [vmem:[#allocation2 + $0x140] sm:$0xff] 0.0
          %740 = vst [vmem:[#allocation2 + $0x148] sm:$0xff] 0.0
          %741 = vst [vmem:[#allocation2 + $0x150] sm:$0xff] 0.0
          %742 = vst [vmem:[#allocation2 + $0x158] sm:$0xff] 0.0
          %743 = vst [vmem:[#allocation2 + $0x160] sm:$0xff] 0.0
          %744 = vst [vmem:[#allocation2 + $0x168] sm:$0xff] 0.0
          %745 = vst [vmem:[#allocation2 + $0x170] sm:$0xff] 0.0
          %746 = vst [vmem:[#allocation2 + $0x178] sm:$0xff] 0.0
          %747 = vst [vmem:[#allocation2 + $0x180] sm:$0xff] 0.0
          %748 = vst [vmem:[#allocation2 + $0x188] sm:$0xff] 0.0
          %749 = vst [vmem:[#allocation2 + $0x190] sm:$0xff] 0.0
          %750 = vst [vmem:[#allocation2 + $0x198] sm:$0xff] 0.0
          %751 = vst [vmem:[#allocation2 + $0x1a0] sm:$0xff] 0.0
          %752 = vst [vmem:[#allocation2 + $0x1a8] sm:$0xff] 0.0
          %753 = vst [vmem:[#allocation2 + $0x1b0] sm:$0xff] 0.0
          %754 = vst [vmem:[#allocation2 + $0x1b8] sm:$0xff] 0.0
          %755 = vst [vmem:[#allocation2 + $0x1c0] sm:$0xff] 0.0
          %756 = vst [vmem:[#allocation2 + $0x1c8] sm:$0xff] 0.0
          %757 = vst [vmem:[#allocation2 + $0x1d0] sm:$0xff] 0.0
          %758 = vst [vmem:[#allocation2 + $0x1d8] sm:$0xff] 0.0
          %759 = vst [vmem:[#allocation2 + $0x1e0] sm:$0xff] 0.0
          %760 = vst [vmem:[#allocation2 + $0x1e8] sm:$0xff] 0.0
          %761 = vst [vmem:[#allocation2 + $0x1f0] sm:$0xff] 0.0
          %762 = vst [vmem:[#allocation2 + $0x1f8] sm:$0xff] 0.0
        $region55: #{_gcn_forward.3} parent=46 // pred_fallthru
          _
        %s763 = smul.u32 %s18, 1024
        %s764 = sshra.s32 %s763, 3
        %s765 = sand.u32 %s763, 7
        %s766 = smul.addr %s764, 4
        %s767 = scalar_lea.vmem %s1, %s766
        %v768 = vld [vmem:[%s767] sm:$0xf]
        %v769 = vld [vmem:[%s767 + $0x4] sm:$0xf]
        %v770 = vld [vmem:[%s767 + $0x8] sm:$0xf]
        %v771 = vld [vmem:[%s767 + $0xc] sm:$0xf]
        %v772 = vld [vmem:[%s767 + $0x10] sm:$0xf]
        %v773 = vld [vmem:[%s767 + $0x14] sm:$0xf]
        %v774 = vld [vmem:[%s767 + $0x18] sm:$0xf]
        %v775 = vld [vmem:[%s767 + $0x1c] sm:$0xf]
        %v776 = vld [vmem:[%s767 + $0x20] sm:$0xf]
        %v777 = vld [vmem:[%s767 + $0x24] sm:$0xf]
        %v778 = vld [vmem:[%s767 + $0x28] sm:$0xf]
        %v779 = vld [vmem:[%s767 + $0x2c] sm:$0xf]
        %v780 = vld [vmem:[%s767 + $0x30] sm:$0xf]
        %v781 = vld [vmem:[%s767 + $0x34] sm:$0xf]
        %v782 = vld [vmem:[%s767 + $0x38] sm:$0xf]
        %v783 = vld [vmem:[%s767 + $0x3c] sm:$0xf]
        %v784 = vld [vmem:[%s767 + $0x40] sm:$0xf]
        %v785 = vld [vmem:[%s767 + $0x44] sm:$0xf]
        %v786 = vld [vmem:[%s767 + $0x48] sm:$0xf]
        %v787 = vld [vmem:[%s767 + $0x4c] sm:$0xf]
        %v788 = vld [vmem:[%s767 + $0x50] sm:$0xf]
        %v789 = vld [vmem:[%s767 + $0x54] sm:$0xf]
        %v790 = vld [vmem:[%s767 + $0x58] sm:$0xf]
        %v791 = vld [vmem:[%s767 + $0x5c] sm:$0xf]
        %v792 = vld [vmem:[%s767 + $0x60] sm:$0xf]
        %v793 = vld [vmem:[%s767 + $0x64] sm:$0xf]
        %v794 = vld [vmem:[%s767 + $0x68] sm:$0xf]
        %v795 = vld [vmem:[%s767 + $0x6c] sm:$0xf]
        %v796 = vld [vmem:[%s767 + $0x70] sm:$0xf]
        %v797 = vld [vmem:[%s767 + $0x74] sm:$0xf]
        %v798 = vld [vmem:[%s767 + $0x78] sm:$0xf]
        %v799 = vld [vmem:[%s767 + $0x7c] sm:$0xf]
        %v800 = vld [vmem:[%s767 + $0x80] sm:$0xf]
        %v801 = vld [vmem:[%s767 + $0x84] sm:$0xf]
        %v802 = vld [vmem:[%s767 + $0x88] sm:$0xf]
        %v803 = vld [vmem:[%s767 + $0x8c] sm:$0xf]
        %v804 = vld [vmem:[%s767 + $0x90] sm:$0xf]
        %v805 = vld [vmem:[%s767 + $0x94] sm:$0xf]
        %v806 = vld [vmem:[%s767 + $0x98] sm:$0xf]
        %v807 = vld [vmem:[%s767 + $0x9c] sm:$0xf]
        %v808 = vld [vmem:[%s767 + $0xa0] sm:$0xf]
        %v809 = vld [vmem:[%s767 + $0xa4] sm:$0xf]
        %v810 = vld [vmem:[%s767 + $0xa8] sm:$0xf]
        %v811 = vld [vmem:[%s767 + $0xac] sm:$0xf]
        %v812 = vld [vmem:[%s767 + $0xb0] sm:$0xf]
        %v813 = vld [vmem:[%s767 + $0xb4] sm:$0xf]
        %v814 = vld [vmem:[%s767 + $0xb8] sm:$0xf]
        %v815 = vld [vmem:[%s767 + $0xbc] sm:$0xf]
        %v816 = vld [vmem:[%s767 + $0xc0] sm:$0xf]
        %v817 = vld [vmem:[%s767 + $0xc4] sm:$0xf]
        %v818 = vld [vmem:[%s767 + $0xc8] sm:$0xf]
        %v819 = vld [vmem:[%s767 + $0xcc] sm:$0xf]
        %v820 = vld [vmem:[%s767 + $0xd0] sm:$0xf]
        %v821 = vld [vmem:[%s767 + $0xd4] sm:$0xf]
        %v822 = vld [vmem:[%s767 + $0xd8] sm:$0xf]
        %v823 = vld [vmem:[%s767 + $0xdc] sm:$0xf]
        %v824 = vld [vmem:[%s767 + $0xe0] sm:$0xf]
        %v825 = vld [vmem:[%s767 + $0xe4] sm:$0xf]
        %v826 = vld [vmem:[%s767 + $0xe8] sm:$0xf]
        %v827 = vld [vmem:[%s767 + $0xec] sm:$0xf]
        %v828 = vld [vmem:[%s767 + $0xf0] sm:$0xf]
        %v829 = vld [vmem:[%s767 + $0xf4] sm:$0xf]
        %v830 = vld [vmem:[%s767 + $0xf8] sm:$0xf]
        %v831 = vld [vmem:[%s767 + $0xfc] sm:$0xf]
        %v832 = vld [vmem:[%s767 + $0x100] sm:$0xf]
        %v833 = vld [vmem:[%s767 + $0x104] sm:$0xf]
        %v834 = vld [vmem:[%s767 + $0x108] sm:$0xf]
        %v835 = vld [vmem:[%s767 + $0x10c] sm:$0xf]
        %v836 = vld [vmem:[%s767 + $0x110] sm:$0xf]
        %v837 = vld [vmem:[%s767 + $0x114] sm:$0xf]
        %v838 = vld [vmem:[%s767 + $0x118] sm:$0xf]
        %v839 = vld [vmem:[%s767 + $0x11c] sm:$0xf]
        %v840 = vld [vmem:[%s767 + $0x120] sm:$0xf]
        %v841 = vld [vmem:[%s767 + $0x124] sm:$0xf]
        %v842 = vld [vmem:[%s767 + $0x128] sm:$0xf]
        %v843 = vld [vmem:[%s767 + $0x12c] sm:$0xf]
        %v844 = vld [vmem:[%s767 + $0x130] sm:$0xf]
        %v845 = vld [vmem:[%s767 + $0x134] sm:$0xf]
        %v846 = vld [vmem:[%s767 + $0x138] sm:$0xf]
        %v847 = vld [vmem:[%s767 + $0x13c] sm:$0xf]
        %v848 = vld [vmem:[%s767 + $0x140] sm:$0xf]
        %v849 = vld [vmem:[%s767 + $0x144] sm:$0xf]
        %v850 = vld [vmem:[%s767 + $0x148] sm:$0xf]
        %v851 = vld [vmem:[%s767 + $0x14c] sm:$0xf]
        %v852 = vld [vmem:[%s767 + $0x150] sm:$0xf]
        %v853 = vld [vmem:[%s767 + $0x154] sm:$0xf]
        %v854 = vld [vmem:[%s767 + $0x158] sm:$0xf]
        %v855 = vld [vmem:[%s767 + $0x15c] sm:$0xf]
        %v856 = vld [vmem:[%s767 + $0x160] sm:$0xf]
        %v857 = vld [vmem:[%s767 + $0x164] sm:$0xf]
        %v858 = vld [vmem:[%s767 + $0x168] sm:$0xf]
        %v859 = vld [vmem:[%s767 + $0x16c] sm:$0xf]
        %v860 = vld [vmem:[%s767 + $0x170] sm:$0xf]
        %v861 = vld [vmem:[%s767 + $0x174] sm:$0xf]
        %v862 = vld [vmem:[%s767 + $0x178] sm:$0xf]
        %v863 = vld [vmem:[%s767 + $0x17c] sm:$0xf]
        %v864 = vld [vmem:[%s767 + $0x180] sm:$0xf]
        %v865 = vld [vmem:[%s767 + $0x184] sm:$0xf]
        %v866 = vld [vmem:[%s767 + $0x188] sm:$0xf]
        %v867 = vld [vmem:[%s767 + $0x18c] sm:$0xf]
        %v868 = vld [vmem:[%s767 + $0x190] sm:$0xf]
        %v869 = vld [vmem:[%s767 + $0x194] sm:$0xf]
        %v870 = vld [vmem:[%s767 + $0x198] sm:$0xf]
        %v871 = vld [vmem:[%s767 + $0x19c] sm:$0xf]
        %v872 = vld [vmem:[%s767 + $0x1a0] sm:$0xf]
        %v873 = vld [vmem:[%s767 + $0x1a4] sm:$0xf]
        %v874 = vld [vmem:[%s767 + $0x1a8] sm:$0xf]
        %v875 = vld [vmem:[%s767 + $0x1ac] sm:$0xf]
        %v876 = vld [vmem:[%s767 + $0x1b0] sm:$0xf]
        %v877 = vld [vmem:[%s767 + $0x1b4] sm:$0xf]
        %v878 = vld [vmem:[%s767 + $0x1b8] sm:$0xf]
        %v879 = vld [vmem:[%s767 + $0x1bc] sm:$0xf]
        %v880 = vld [vmem:[%s767 + $0x1c0] sm:$0xf]
        %v881 = vld [vmem:[%s767 + $0x1c4] sm:$0xf]
        %v882 = vld [vmem:[%s767 + $0x1c8] sm:$0xf]
        %v883 = vld [vmem:[%s767 + $0x1cc] sm:$0xf]
        %v884 = vld [vmem:[%s767 + $0x1d0] sm:$0xf]
        %v885 = vld [vmem:[%s767 + $0x1d4] sm:$0xf]
        %v886 = vld [vmem:[%s767 + $0x1d8] sm:$0xf]
        %v887 = vld [vmem:[%s767 + $0x1dc] sm:$0xf]
        %v888 = vld [vmem:[%s767 + $0x1e0] sm:$0xf]
        %v889 = vld [vmem:[%s767 + $0x1e4] sm:$0xf]
        %v890 = vld [vmem:[%s767 + $0x1e8] sm:$0xf]
        %v891 = vld [vmem:[%s767 + $0x1ec] sm:$0xf]
        %v892 = vld [vmem:[%s767 + $0x1f0] sm:$0xf]
        %v893 = vld [vmem:[%s767 + $0x1f4] sm:$0xf]
        %v894 = vld [vmem:[%s767 + $0x1f8] sm:$0xf]
        %v895 = vld [vmem:[%s767 + $0x1fc] sm:$0xf]
        %v896 = vld [vmem:[#allocation2] sm:$0xff]
        %v897 = vld [vmem:[#allocation2 + $0x8] sm:$0xff]
        %v898 = vld [vmem:[#allocation2 + $0x10] sm:$0xff]
        %v899 = vld [vmem:[#allocation2 + $0x18] sm:$0xff]
        %v900 = vld [vmem:[#allocation2 + $0x20] sm:$0xff]
        %v901 = vld [vmem:[#allocation2 + $0x28] sm:$0xff]
        %v902 = vld [vmem:[#allocation2 + $0x30] sm:$0xff]
        %v903 = vld [vmem:[#allocation2 + $0x38] sm:$0xff]
        %v904 = vld [vmem:[#allocation2 + $0x40] sm:$0xff]
        %v905 = vld [vmem:[#allocation2 + $0x48] sm:$0xff]
        %v906 = vld [vmem:[#allocation2 + $0x50] sm:$0xff]
        %v907 = vld [vmem:[#allocation2 + $0x58] sm:$0xff]
        %v908 = vld [vmem:[#allocation2 + $0x60] sm:$0xff]
        %v909 = vld [vmem:[#allocation2 + $0x68] sm:$0xff]
        %v910 = vld [vmem:[#allocation2 + $0x70] sm:$0xff]
        %v911 = vld [vmem:[#allocation2 + $0x78] sm:$0xff]
        %v912 = vld [vmem:[#allocation2 + $0x80] sm:$0xff]
        %v913 = vld [vmem:[#allocation2 + $0x88] sm:$0xff]
        %v914 = vld [vmem:[#allocation2 + $0x90] sm:$0xff]
        %v915 = vld [vmem:[#allocation2 + $0x98] sm:$0xff]
        %v916 = vld [vmem:[#allocation2 + $0xa0] sm:$0xff]
        %v917 = vld [vmem:[#allocation2 + $0xa8] sm:$0xff]
        %v918 = vld [vmem:[#allocation2 + $0xb0] sm:$0xff]
        %v919 = vld [vmem:[#allocation2 + $0xb8] sm:$0xff]
        %v920 = vld [vmem:[#allocation2 + $0xc0] sm:$0xff]
        %v921 = vld [vmem:[#allocation2 + $0xc8] sm:$0xff]
        %v922 = vld [vmem:[#allocation2 + $0xd0] sm:$0xff]
        %v923 = vld [vmem:[#allocation2 + $0xd8] sm:$0xff]
        %v924 = vld [vmem:[#allocation2 + $0xe0] sm:$0xff]
        %v925 = vld [vmem:[#allocation2 + $0xe8] sm:$0xff]
        %v926 = vld [vmem:[#allocation2 + $0xf0] sm:$0xff]
        %v927 = vld [vmem:[#allocation2 + $0xf8] sm:$0xff]
        %v928 = vld [vmem:[#allocation2 + $0x100] sm:$0xff]
        %v929 = vld [vmem:[#allocation2 + $0x108] sm:$0xff]
        %v930 = vld [vmem:[#allocation2 + $0x110] sm:$0xff]
        %v931 = vld [vmem:[#allocation2 + $0x118] sm:$0xff]
        %v932 = vld [vmem:[#allocation2 + $0x120] sm:$0xff]
        %v933 = vld [vmem:[#allocation2 + $0x128] sm:$0xff]
        %v934 = vld [vmem:[#allocation2 + $0x130] sm:$0xff]
        %v935 = vld [vmem:[#allocation2 + $0x138] sm:$0xff]
        %v936 = vld [vmem:[#allocation2 + $0x140] sm:$0xff]
        %v937 = vld [vmem:[#allocation2 + $0x148] sm:$0xff]
        %v938 = vld [vmem:[#allocation2 + $0x150] sm:$0xff]
        %v939 = vld [vmem:[#allocation2 + $0x158] sm:$0xff]
        %v940 = vld [vmem:[#allocation2 + $0x160] sm:$0xff]
        %v941 = vld [vmem:[#allocation2 + $0x168] sm:$0xff]
        %v942 = vld [vmem:[#allocation2 + $0x170] sm:$0xff]
        %v943 = vld [vmem:[#allocation2 + $0x178] sm:$0xff]
        %v944 = vld [vmem:[#allocation2 + $0x180] sm:$0xff]
        %v945 = vld [vmem:[#allocation2 + $0x188] sm:$0xff]
        %v946 = vld [vmem:[#allocation2 + $0x190] sm:$0xff]
        %v947 = vld [vmem:[#allocation2 + $0x198] sm:$0xff]
        %v948 = vld [vmem:[#allocation2 + $0x1a0] sm:$0xff]
        %v949 = vld [vmem:[#allocation2 + $0x1a8] sm:$0xff]
        %v950 = vld [vmem:[#allocation2 + $0x1b0] sm:$0xff]
        %v951 = vld [vmem:[#allocation2 + $0x1b8] sm:$0xff]
        %v952 = vld [vmem:[#allocation2 + $0x1c0] sm:$0xff]
        %v953 = vld [vmem:[#allocation2 + $0x1c8] sm:$0xff]
        %v954 = vld [vmem:[#allocation2 + $0x1d0] sm:$0xff]
        %v955 = vld [vmem:[#allocation2 + $0x1d8] sm:$0xff]
        %v956 = vld [vmem:[#allocation2 + $0x1e0] sm:$0xff]
        %v957 = vld [vmem:[#allocation2 + $0x1e8] sm:$0xff]
        %v958 = vld [vmem:[#allocation2 + $0x1f0] sm:$0xff]
        %v959 = vld [vmem:[#allocation2 + $0x1f8] sm:$0xff]
        %v960 = vld [vmem:[%s667] sm:$0xff]
        %v961 = vld [vmem:[%s667 + $0x8] sm:$0xff]
        %v962 = vld [vmem:[%s667 + $0x10] sm:$0xff]
        %v963 = vld [vmem:[%s667 + $0x18] sm:$0xff]
        %v964 = vld [vmem:[%s667 + $0x20] sm:$0xff]
        %v965 = vld [vmem:[%s667 + $0x28] sm:$0xff]
        %v966 = vld [vmem:[%s667 + $0x30] sm:$0xff]
        %v967 = vld [vmem:[%s667 + $0x38] sm:$0xff]
        %v968 = vld [vmem:[%s667 + $0x40] sm:$0xff]
        %v969 = vld [vmem:[%s667 + $0x48] sm:$0xff]
        %v970 = vld [vmem:[%s667 + $0x50] sm:$0xff]
        %v971 = vld [vmem:[%s667 + $0x58] sm:$0xff]
        %v972 = vld [vmem:[%s667 + $0x60] sm:$0xff]
        %v973 = vld [vmem:[%s667 + $0x68] sm:$0xff]
        %v974 = vld [vmem:[%s667 + $0x70] sm:$0xff]
        %v975 = vld [vmem:[%s667 + $0x78] sm:$0xff]
        %v976 = vld [vmem:[%s667 + $0x80] sm:$0xff]
        %v977 = vld [vmem:[%s667 + $0x88] sm:$0xff]
        %v978 = vld [vmem:[%s667 + $0x90] sm:$0xff]
        %v979 = vld [vmem:[%s667 + $0x98] sm:$0xff]
        %v980 = vld [vmem:[%s667 + $0xa0] sm:$0xff]
        %v981 = vld [vmem:[%s667 + $0xa8] sm:$0xff]
        %v982 = vld [vmem:[%s667 + $0xb0] sm:$0xff]
        %v983 = vld [vmem:[%s667 + $0xb8] sm:$0xff]
        %v984 = vld [vmem:[%s667 + $0xc0] sm:$0xff]
        %v985 = vld [vmem:[%s667 + $0xc8] sm:$0xff]
        %v986 = vld [vmem:[%s667 + $0xd0] sm:$0xff]
        %v987 = vld [vmem:[%s667 + $0xd8] sm:$0xff]
        %v988 = vld [vmem:[%s667 + $0xe0] sm:$0xff]
        %v989 = vld [vmem:[%s667 + $0xe8] sm:$0xff]
        %v990 = vld [vmem:[%s667 + $0xf0] sm:$0xff]
        %v991 = vld [vmem:[%s667 + $0xf8] sm:$0xff]
        %v992 = vld [vmem:[%s667 + $0x100] sm:$0xff]
        %v993 = vld [vmem:[%s667 + $0x108] sm:$0xff]
        %v994 = vld [vmem:[%s667 + $0x110] sm:$0xff]
        %v995 = vld [vmem:[%s667 + $0x118] sm:$0xff]
        %v996 = vld [vmem:[%s667 + $0x120] sm:$0xff]
        %v997 = vld [vmem:[%s667 + $0x128] sm:$0xff]
        %v998 = vld [vmem:[%s667 + $0x130] sm:$0xff]
        %v999 = vld [vmem:[%s667 + $0x138] sm:$0xff]
        %v1000 = vld [vmem:[%s667 + $0x140] sm:$0xff]
        %v1001 = vld [vmem:[%s667 + $0x148] sm:$0xff]
        %v1002 = vld [vmem:[%s667 + $0x150] sm:$0xff]
        %v1003 = vld [vmem:[%s667 + $0x158] sm:$0xff]
        %v1004 = vld [vmem:[%s667 + $0x160] sm:$0xff]
        %v1005 = vld [vmem:[%s667 + $0x168] sm:$0xff]
        %v1006 = vld [vmem:[%s667 + $0x170] sm:$0xff]
        %v1007 = vld [vmem:[%s667 + $0x178] sm:$0xff]
        %v1008 = vld [vmem:[%s667 + $0x180] sm:$0xff]
        %v1009 = vld [vmem:[%s667 + $0x188] sm:$0xff]
        %v1010 = vld [vmem:[%s667 + $0x190] sm:$0xff]
        %v1011 = vld [vmem:[%s667 + $0x198] sm:$0xff]
        %v1012 = vld [vmem:[%s667 + $0x1a0] sm:$0xff]
        %v1013 = vld [vmem:[%s667 + $0x1a8] sm:$0xff]
        %v1014 = vld [vmem:[%s667 + $0x1b0] sm:$0xff]
        %v1015 = vld [vmem:[%s667 + $0x1b8] sm:$0xff]
        %v1016 = vld [vmem:[%s667 + $0x1c0] sm:$0xff]
        %v1017 = vld [vmem:[%s667 + $0x1c8] sm:$0xff]
        %v1018 = vld [vmem:[%s667 + $0x1d0] sm:$0xff]
        %v1019 = vld [vmem:[%s667 + $0x1d8] sm:$0xff]
        %v1020 = vld [vmem:[%s667 + $0x1e0] sm:$0xff]
        %v1021 = vld [vmem:[%s667 + $0x1e8] sm:$0xff]
        %v1022 = vld [vmem:[%s667 + $0x1f0] sm:$0xff]
        %v1023 = vld [vmem:[%s667 + $0x1f8] sm:$0xff]
        %v1024 = vld [vmem:[%s667 + $0x200] sm:$0xff]
        %v1025 = vld [vmem:[%s667 + $0x208] sm:$0xff]
        %v1026 = vld [vmem:[%s667 + $0x210] sm:$0xff]
        %v1027 = vld [vmem:[%s667 + $0x218] sm:$0xff]
        %v1028 = vld [vmem:[%s667 + $0x220] sm:$0xff]
        %v1029 = vld [vmem:[%s667 + $0x228] sm:$0xff]
        %v1030 = vld [vmem:[%s667 + $0x230] sm:$0xff]
        %v1031 = vld [vmem:[%s667 + $0x238] sm:$0xff]
        %v1032 = vld [vmem:[%s667 + $0x240] sm:$0xff]
        %v1033 = vld [vmem:[%s667 + $0x248] sm:$0xff]
        %v1034 = vld [vmem:[%s667 + $0x250] sm:$0xff]
        %v1035 = vld [vmem:[%s667 + $0x258] sm:$0xff]
        %v1036 = vld [vmem:[%s667 + $0x260] sm:$0xff]
        %v1037 = vld [vmem:[%s667 + $0x268] sm:$0xff]
        %v1038 = vld [vmem:[%s667 + $0x270] sm:$0xff]
        %v1039 = vld [vmem:[%s667 + $0x278] sm:$0xff]
        %v1040 = vld [vmem:[%s667 + $0x280] sm:$0xff]
        %v1041 = vld [vmem:[%s667 + $0x288] sm:$0xff]
        %v1042 = vld [vmem:[%s667 + $0x290] sm:$0xff]
        %v1043 = vld [vmem:[%s667 + $0x298] sm:$0xff]
        %v1044 = vld [vmem:[%s667 + $0x2a0] sm:$0xff]
        %v1045 = vld [vmem:[%s667 + $0x2a8] sm:$0xff]
        %v1046 = vld [vmem:[%s667 + $0x2b0] sm:$0xff]
        %v1047 = vld [vmem:[%s667 + $0x2b8] sm:$0xff]
        %v1048 = vld [vmem:[%s667 + $0x2c0] sm:$0xff]
        %v1049 = vld [vmem:[%s667 + $0x2c8] sm:$0xff]
        %v1050 = vld [vmem:[%s667 + $0x2d0] sm:$0xff]
        %v1051 = vld [vmem:[%s667 + $0x2d8] sm:$0xff]
        %v1052 = vld [vmem:[%s667 + $0x2e0] sm:$0xff]
        %v1053 = vld [vmem:[%s667 + $0x2e8] sm:$0xff]
        %v1054 = vld [vmem:[%s667 + $0x2f0] sm:$0xff]
        %v1055 = vld [vmem:[%s667 + $0x2f8] sm:$0xff]
        %v1056 = vld [vmem:[%s667 + $0x300] sm:$0xff]
        %v1057 = vld [vmem:[%s667 + $0x308] sm:$0xff]
        %v1058 = vld [vmem:[%s667 + $0x310] sm:$0xff]
        %v1059 = vld [vmem:[%s667 + $0x318] sm:$0xff]
        %v1060 = vld [vmem:[%s667 + $0x320] sm:$0xff]
        %v1061 = vld [vmem:[%s667 + $0x328] sm:$0xff]
        %v1062 = vld [vmem:[%s667 + $0x330] sm:$0xff]
        %v1063 = vld [vmem:[%s667 + $0x338] sm:$0xff]
        %v1064 = vld [vmem:[%s667 + $0x340] sm:$0xff]
        %v1065 = vld [vmem:[%s667 + $0x348] sm:$0xff]
        %v1066 = vld [vmem:[%s667 + $0x350] sm:$0xff]
        %v1067 = vld [vmem:[%s667 + $0x358] sm:$0xff]
        %v1068 = vld [vmem:[%s667 + $0x360] sm:$0xff]
        %v1069 = vld [vmem:[%s667 + $0x368] sm:$0xff]
        %v1070 = vld [vmem:[%s667 + $0x370] sm:$0xff]
        %v1071 = vld [vmem:[%s667 + $0x378] sm:$0xff]
        %v1072 = vld [vmem:[%s667 + $0x380] sm:$0xff]
        %v1073 = vld [vmem:[%s667 + $0x388] sm:$0xff]
        %v1074 = vld [vmem:[%s667 + $0x390] sm:$0xff]
        %v1075 = vld [vmem:[%s667 + $0x398] sm:$0xff]
        %v1076 = vld [vmem:[%s667 + $0x3a0] sm:$0xff]
        %v1077 = vld [vmem:[%s667 + $0x3a8] sm:$0xff]
        %v1078 = vld [vmem:[%s667 + $0x3b0] sm:$0xff]
        %v1079 = vld [vmem:[%s667 + $0x3b8] sm:$0xff]
        %v1080 = vld [vmem:[%s667 + $0x3c0] sm:$0xff]
        %v1081 = vld [vmem:[%s667 + $0x3c8] sm:$0xff]
        %v1082 = vld [vmem:[%s667 + $0x3d0] sm:$0xff]
        %v1083 = vld [vmem:[%s667 + $0x3d8] sm:$0xff]
        %v1084 = vld [vmem:[%s667 + $0x3e0] sm:$0xff]
        %v1085 = vld [vmem:[%s667 + $0x3e8] sm:$0xff]
        %v1086 = vld [vmem:[%s667 + $0x3f0] sm:$0xff]
        %v1087 = vld [vmem:[%s667 + $0x3f8] sm:$0xff]
        %v1088 = vld [vmem:[%s667 + $0x400] sm:$0xff]
        %v1089 = vld [vmem:[%s667 + $0x408] sm:$0xff]
        %v1090 = vld [vmem:[%s667 + $0x410] sm:$0xff]
        %v1091 = vld [vmem:[%s667 + $0x418] sm:$0xff]
        %v1092 = vld [vmem:[%s667 + $0x420] sm:$0xff]
        %v1093 = vld [vmem:[%s667 + $0x428] sm:$0xff]
        %v1094 = vld [vmem:[%s667 + $0x430] sm:$0xff]
        %v1095 = vld [vmem:[%s667 + $0x438] sm:$0xff]
        %v1096 = vld [vmem:[%s667 + $0x440] sm:$0xff]
        %v1097 = vld [vmem:[%s667 + $0x448] sm:$0xff]
        %v1098 = vld [vmem:[%s667 + $0x450] sm:$0xff]
        %v1099 = vld [vmem:[%s667 + $0x458] sm:$0xff]
        %v1100 = vld [vmem:[%s667 + $0x460] sm:$0xff]
        %v1101 = vld [vmem:[%s667 + $0x468] sm:$0xff]
        %v1102 = vld [vmem:[%s667 + $0x470] sm:$0xff]
        %v1103 = vld [vmem:[%s667 + $0x478] sm:$0xff]
        %v1104 = vld [vmem:[%s667 + $0x480] sm:$0xff]
        %v1105 = vld [vmem:[%s667 + $0x488] sm:$0xff]
        %v1106 = vld [vmem:[%s667 + $0x490] sm:$0xff]
        %v1107 = vld [vmem:[%s667 + $0x498] sm:$0xff]
        %v1108 = vld [vmem:[%s667 + $0x4a0] sm:$0xff]
        %v1109 = vld [vmem:[%s667 + $0x4a8] sm:$0xff]
        %v1110 = vld [vmem:[%s667 + $0x4b0] sm:$0xff]
        %v1111 = vld [vmem:[%s667 + $0x4b8] sm:$0xff]
        %v1112 = vld [vmem:[%s667 + $0x4c0] sm:$0xff]
        %v1113 = vld [vmem:[%s667 + $0x4c8] sm:$0xff]
        %v1114 = vld [vmem:[%s667 + $0x4d0] sm:$0xff]
        %v1115 = vld [vmem:[%s667 + $0x4d8] sm:$0xff]
        %v1116 = vld [vmem:[%s667 + $0x4e0] sm:$0xff]
        %v1117 = vld [vmem:[%s667 + $0x4e8] sm:$0xff]
        %v1118 = vld [vmem:[%s667 + $0x4f0] sm:$0xff]
        %v1119 = vld [vmem:[%s667 + $0x4f8] sm:$0xff]
        %v1120 = vld [vmem:[%s667 + $0x500] sm:$0xff]
        %v1121 = vld [vmem:[%s667 + $0x508] sm:$0xff]
        %v1122 = vld [vmem:[%s667 + $0x510] sm:$0xff]
        %v1123 = vld [vmem:[%s667 + $0x518] sm:$0xff]
        %v1124 = vld [vmem:[%s667 + $0x520] sm:$0xff]
        %v1125 = vld [vmem:[%s667 + $0x528] sm:$0xff]
        %v1126 = vld [vmem:[%s667 + $0x530] sm:$0xff]
        %v1127 = vld [vmem:[%s667 + $0x538] sm:$0xff]
        %v1128 = vld [vmem:[%s667 + $0x540] sm:$0xff]
        %v1129 = vld [vmem:[%s667 + $0x548] sm:$0xff]
        %v1130 = vld [vmem:[%s667 + $0x550] sm:$0xff]
        %v1131 = vld [vmem:[%s667 + $0x558] sm:$0xff]
        %v1132 = vld [vmem:[%s667 + $0x560] sm:$0xff]
        %v1133 = vld [vmem:[%s667 + $0x568] sm:$0xff]
        %v1134 = vld [vmem:[%s667 + $0x570] sm:$0xff]
        %v1135 = vld [vmem:[%s667 + $0x578] sm:$0xff]
        %v1136 = vld [vmem:[%s667 + $0x580] sm:$0xff]
        %v1137 = vld [vmem:[%s667 + $0x588] sm:$0xff]
        %v1138 = vld [vmem:[%s667 + $0x590] sm:$0xff]
        %v1139 = vld [vmem:[%s667 + $0x598] sm:$0xff]
        %v1140 = vld [vmem:[%s667 + $0x5a0] sm:$0xff]
        %v1141 = vld [vmem:[%s667 + $0x5a8] sm:$0xff]
        %v1142 = vld [vmem:[%s667 + $0x5b0] sm:$0xff]
        %v1143 = vld [vmem:[%s667 + $0x5b8] sm:$0xff]
        %v1144 = vld [vmem:[%s667 + $0x5c0] sm:$0xff]
        %v1145 = vld [vmem:[%s667 + $0x5c8] sm:$0xff]
        %v1146 = vld [vmem:[%s667 + $0x5d0] sm:$0xff]
        %v1147 = vld [vmem:[%s667 + $0x5d8] sm:$0xff]
        %v1148 = vld [vmem:[%s667 + $0x5e0] sm:$0xff]
        %v1149 = vld [vmem:[%s667 + $0x5e8] sm:$0xff]
        %v1150 = vld [vmem:[%s667 + $0x5f0] sm:$0xff]
        %v1151 = vld [vmem:[%s667 + $0x5f8] sm:$0xff]
        %v1152 = vld [vmem:[%s667 + $0x600] sm:$0xff]
        %v1153 = vld [vmem:[%s667 + $0x608] sm:$0xff]
        %v1154 = vld [vmem:[%s667 + $0x610] sm:$0xff]
        %v1155 = vld [vmem:[%s667 + $0x618] sm:$0xff]
        %v1156 = vld [vmem:[%s667 + $0x620] sm:$0xff]
        %v1157 = vld [vmem:[%s667 + $0x628] sm:$0xff]
        %v1158 = vld [vmem:[%s667 + $0x630] sm:$0xff]
        %v1159 = vld [vmem:[%s667 + $0x638] sm:$0xff]
        %v1160 = vld [vmem:[%s667 + $0x640] sm:$0xff]
        %v1161 = vld [vmem:[%s667 + $0x648] sm:$0xff]
        %v1162 = vld [vmem:[%s667 + $0x650] sm:$0xff]
        %v1163 = vld [vmem:[%s667 + $0x658] sm:$0xff]
        %v1164 = vld [vmem:[%s667 + $0x660] sm:$0xff]
        %v1165 = vld [vmem:[%s667 + $0x668] sm:$0xff]
        %v1166 = vld [vmem:[%s667 + $0x670] sm:$0xff]
        %v1167 = vld [vmem:[%s667 + $0x678] sm:$0xff]
        %v1168 = vld [vmem:[%s667 + $0x680] sm:$0xff]
        %v1169 = vld [vmem:[%s667 + $0x688] sm:$0xff]
        %v1170 = vld [vmem:[%s667 + $0x690] sm:$0xff]
        %v1171 = vld [vmem:[%s667 + $0x698] sm:$0xff]
        %v1172 = vld [vmem:[%s667 + $0x6a0] sm:$0xff]
        %v1173 = vld [vmem:[%s667 + $0x6a8] sm:$0xff]
        %v1174 = vld [vmem:[%s667 + $0x6b0] sm:$0xff]
        %v1175 = vld [vmem:[%s667 + $0x6b8] sm:$0xff]
        %v1176 = vld [vmem:[%s667 + $0x6c0] sm:$0xff]
        %v1177 = vld [vmem:[%s667 + $0x6c8] sm:$0xff]
        %v1178 = vld [vmem:[%s667 + $0x6d0] sm:$0xff]
        %v1179 = vld [vmem:[%s667 + $0x6d8] sm:$0xff]
        %v1180 = vld [vmem:[%s667 + $0x6e0] sm:$0xff]
        %v1181 = vld [vmem:[%s667 + $0x6e8] sm:$0xff]
        %v1182 = vld [vmem:[%s667 + $0x6f0] sm:$0xff]
        %v1183 = vld [vmem:[%s667 + $0x6f8] sm:$0xff]
        %v1184 = vld [vmem:[%s667 + $0x700] sm:$0xff]
        %v1185 = vld [vmem:[%s667 + $0x708] sm:$0xff]
        %v1186 = vld [vmem:[%s667 + $0x710] sm:$0xff]
        %v1187 = vld [vmem:[%s667 + $0x718] sm:$0xff]
        %v1188 = vld [vmem:[%s667 + $0x720] sm:$0xff]
        %v1189 = vld [vmem:[%s667 + $0x728] sm:$0xff]
        %v1190 = vld [vmem:[%s667 + $0x730] sm:$0xff]
        %v1191 = vld [vmem:[%s667 + $0x738] sm:$0xff]
        %v1192 = vld [vmem:[%s667 + $0x740] sm:$0xff]
        %v1193 = vld [vmem:[%s667 + $0x748] sm:$0xff]
        %v1194 = vld [vmem:[%s667 + $0x750] sm:$0xff]
        %v1195 = vld [vmem:[%s667 + $0x758] sm:$0xff]
        %v1196 = vld [vmem:[%s667 + $0x760] sm:$0xff]
        %v1197 = vld [vmem:[%s667 + $0x768] sm:$0xff]
        %v1198 = vld [vmem:[%s667 + $0x770] sm:$0xff]
        %v1199 = vld [vmem:[%s667 + $0x778] sm:$0xff]
        %v1200 = vld [vmem:[%s667 + $0x780] sm:$0xff]
        %v1201 = vld [vmem:[%s667 + $0x788] sm:$0xff]
        %v1202 = vld [vmem:[%s667 + $0x790] sm:$0xff]
        %v1203 = vld [vmem:[%s667 + $0x798] sm:$0xff]
        %v1204 = vld [vmem:[%s667 + $0x7a0] sm:$0xff]
        %v1205 = vld [vmem:[%s667 + $0x7a8] sm:$0xff]
        %v1206 = vld [vmem:[%s667 + $0x7b0] sm:$0xff]
        %v1207 = vld [vmem:[%s667 + $0x7b8] sm:$0xff]
        %v1208 = vld [vmem:[%s667 + $0x7c0] sm:$0xff]
        %v1209 = vld [vmem:[%s667 + $0x7c8] sm:$0xff]
        %v1210 = vld [vmem:[%s667 + $0x7d0] sm:$0xff]
        %v1211 = vld [vmem:[%s667 + $0x7d8] sm:$0xff]
        %v1212 = vld [vmem:[%s667 + $0x7e0] sm:$0xff]
        %v1213 = vld [vmem:[%s667 + $0x7e8] sm:$0xff]
        %v1214 = vld [vmem:[%s667 + $0x7f0] sm:$0xff]
        %v1215 = vld [vmem:[%s667 + $0x7f8] sm:$0xff]
        %v1472 = vunpack.c.l.b16 %v960
        %v1473 = vunpack.c.h.b16 %v960
        %v1474 = vunpack.c.l.b16 %v961
        %v1475 = vunpack.c.h.b16 %v961
        %v1476 = vunpack.c.l.b16 %v962
        %v1477 = vunpack.c.h.b16 %v962
        %v1478 = vunpack.c.l.b16 %v963
        %v1479 = vunpack.c.h.b16 %v963
        %v1480 = vunpack.c.l.b16 %v964
        %v1481 = vunpack.c.h.b16 %v964
        %v1482 = vunpack.c.l.b16 %v965
        %v1483 = vunpack.c.h.b16 %v965
        %v1484 = vunpack.c.l.b16 %v966
        %v1485 = vunpack.c.h.b16 %v966
        %v1486 = vunpack.c.l.b16 %v967
        %v1487 = vunpack.c.h.b16 %v967
        %v1488 = vunpack.c.l.b16 %v968
        %v1489 = vunpack.c.h.b16 %v968
        %v1490 = vunpack.c.l.b16 %v969
        %v1491 = vunpack.c.h.b16 %v969
        %v1492 = vunpack.c.l.b16 %v970
        %v1493 = vunpack.c.h.b16 %v970
        %v1494 = vunpack.c.l.b16 %v971
        %v1495 = vunpack.c.h.b16 %v971
        %v1496 = vunpack.c.l.b16 %v972
        %v1497 = vunpack.c.h.b16 %v972
        %v1498 = vunpack.c.l.b16 %v973
        %v1499 = vunpack.c.h.b16 %v973
        %v1500 = vunpack.c.l.b16 %v974
        %v1501 = vunpack.c.h.b16 %v974
        %v1502 = vunpack.c.l.b16 %v975
        %v1503 = vunpack.c.h.b16 %v975
        %v1504 = vunpack.c.l.b16 %v976
        %v1505 = vunpack.c.h.b16 %v976
        %v1506 = vunpack.c.l.b16 %v977
        %v1507 = vunpack.c.h.b16 %v977
        %v1508 = vunpack.c.l.b16 %v978
        %v1509 = vunpack.c.h.b16 %v978
        %v1510 = vunpack.c.l.b16 %v979
        %v1511 = vunpack.c.h.b16 %v979
        %v1512 = vunpack.c.l.b16 %v980
        %v1513 = vunpack.c.h.b16 %v980
        %v1514 = vunpack.c.l.b16 %v981
        %v1515 = vunpack.c.h.b16 %v981
        %v1516 = vunpack.c.l.b16 %v982
        %v1517 = vunpack.c.h.b16 %v982
        %v1518 = vunpack.c.l.b16 %v983
        %v1519 = vunpack.c.h.b16 %v983
        %v1520 = vunpack.c.l.b16 %v984
        %v1521 = vunpack.c.h.b16 %v984
        %v1522 = vunpack.c.l.b16 %v985
        %v1523 = vunpack.c.h.b16 %v985
        %v1524 = vunpack.c.l.b16 %v986
        %v1525 = vunpack.c.h.b16 %v986
        %v1526 = vunpack.c.l.b16 %v987
        %v1527 = vunpack.c.h.b16 %v987
        %v1528 = vunpack.c.l.b16 %v988
        %v1529 = vunpack.c.h.b16 %v988
        %v1530 = vunpack.c.l.b16 %v989
        %v1531 = vunpack.c.h.b16 %v989
        %v1532 = vunpack.c.l.b16 %v990
        %v1533 = vunpack.c.h.b16 %v990
        %v1534 = vunpack.c.l.b16 %v991
        %v1535 = vunpack.c.h.b16 %v991
        %v1536 = vunpack.c.l.b16 %v992
        %v1537 = vunpack.c.h.b16 %v992
        %v1538 = vunpack.c.l.b16 %v993
        %v1539 = vunpack.c.h.b16 %v993
        %v1540 = vunpack.c.l.b16 %v994
        %v1541 = vunpack.c.h.b16 %v994
        %v1542 = vunpack.c.l.b16 %v995
        %v1543 = vunpack.c.h.b16 %v995
        %v1544 = vunpack.c.l.b16 %v996
        %v1545 = vunpack.c.h.b16 %v996
        %v1546 = vunpack.c.l.b16 %v997
        %v1547 = vunpack.c.h.b16 %v997
        %v1548 = vunpack.c.l.b16 %v998
        %v1549 = vunpack.c.h.b16 %v998
        %v1550 = vunpack.c.l.b16 %v999
        %v1551 = vunpack.c.h.b16 %v999
        %v1552 = vunpack.c.l.b16 %v1000
        %v1553 = vunpack.c.h.b16 %v1000
        %v1554 = vunpack.c.l.b16 %v1001
        %v1555 = vunpack.c.h.b16 %v1001
        %v1556 = vunpack.c.l.b16 %v1002
        %v1557 = vunpack.c.h.b16 %v1002
        %v1558 = vunpack.c.l.b16 %v1003
        %v1559 = vunpack.c.h.b16 %v1003
        %v1560 = vunpack.c.l.b16 %v1004
        %v1561 = vunpack.c.h.b16 %v1004
        %v1562 = vunpack.c.l.b16 %v1005
        %v1563 = vunpack.c.h.b16 %v1005
        %v1564 = vunpack.c.l.b16 %v1006
        %v1565 = vunpack.c.h.b16 %v1006
        %v1566 = vunpack.c.l.b16 %v1007
        %v1567 = vunpack.c.h.b16 %v1007
        %v1568 = vunpack.c.l.b16 %v1008
        %v1569 = vunpack.c.h.b16 %v1008
        %v1570 = vunpack.c.l.b16 %v1009
        %v1571 = vunpack.c.h.b16 %v1009
        %v1572 = vunpack.c.l.b16 %v1010
        %v1573 = vunpack.c.h.b16 %v1010
        %v1574 = vunpack.c.l.b16 %v1011
        %v1575 = vunpack.c.h.b16 %v1011
        %v1576 = vunpack.c.l.b16 %v1012
        %v1577 = vunpack.c.h.b16 %v1012
        %v1578 = vunpack.c.l.b16 %v1013
        %v1579 = vunpack.c.h.b16 %v1013
        %v1580 = vunpack.c.l.b16 %v1014
        %v1581 = vunpack.c.h.b16 %v1014
        %v1582 = vunpack.c.l.b16 %v1015
        %v1583 = vunpack.c.h.b16 %v1015
        %v1584 = vunpack.c.l.b16 %v1016
        %v1585 = vunpack.c.h.b16 %v1016
        %v1586 = vunpack.c.l.b16 %v1017
        %v1587 = vunpack.c.h.b16 %v1017
        %v1588 = vunpack.c.l.b16 %v1018
        %v1589 = vunpack.c.h.b16 %v1018
        %v1590 = vunpack.c.l.b16 %v1019
        %v1591 = vunpack.c.h.b16 %v1019
        %v1592 = vunpack.c.l.b16 %v1020
        %v1593 = vunpack.c.h.b16 %v1020
        %v1594 = vunpack.c.l.b16 %v1021
        %v1595 = vunpack.c.h.b16 %v1021
        %v1596 = vunpack.c.l.b16 %v1022
        %v1597 = vunpack.c.h.b16 %v1022
        %v1598 = vunpack.c.l.b16 %v1023
        %v1599 = vunpack.c.h.b16 %v1023
        %v1600 = vunpack.c.l.b16 %v1024
        %v1601 = vunpack.c.h.b16 %v1024
        %v1602 = vunpack.c.l.b16 %v1025
        %v1603 = vunpack.c.h.b16 %v1025
        %v1604 = vunpack.c.l.b16 %v1026
        %v1605 = vunpack.c.h.b16 %v1026
        %v1606 = vunpack.c.l.b16 %v1027
        %v1607 = vunpack.c.h.b16 %v1027
        %v1608 = vunpack.c.l.b16 %v1028
        %v1609 = vunpack.c.h.b16 %v1028
        %v1610 = vunpack.c.l.b16 %v1029
        %v1611 = vunpack.c.h.b16 %v1029
        %v1612 = vunpack.c.l.b16 %v1030
        %v1613 = vunpack.c.h.b16 %v1030
        %v1614 = vunpack.c.l.b16 %v1031
        %v1615 = vunpack.c.h.b16 %v1031
        %v1616 = vunpack.c.l.b16 %v1032
        %v1617 = vunpack.c.h.b16 %v1032
        %v1618 = vunpack.c.l.b16 %v1033
        %v1619 = vunpack.c.h.b16 %v1033
        %v1620 = vunpack.c.l.b16 %v1034
        %v1621 = vunpack.c.h.b16 %v1034
        %v1622 = vunpack.c.l.b16 %v1035
        %v1623 = vunpack.c.h.b16 %v1035
        %v1624 = vunpack.c.l.b16 %v1036
        %v1625 = vunpack.c.h.b16 %v1036
        %v1626 = vunpack.c.l.b16 %v1037
        %v1627 = vunpack.c.h.b16 %v1037
        %v1628 = vunpack.c.l.b16 %v1038
        %v1629 = vunpack.c.h.b16 %v1038
        %v1630 = vunpack.c.l.b16 %v1039
        %v1631 = vunpack.c.h.b16 %v1039
        %v1632 = vunpack.c.l.b16 %v1040
        %v1633 = vunpack.c.h.b16 %v1040
        %v1634 = vunpack.c.l.b16 %v1041
        %v1635 = vunpack.c.h.b16 %v1041
        %v1636 = vunpack.c.l.b16 %v1042
        %v1637 = vunpack.c.h.b16 %v1042
        %v1638 = vunpack.c.l.b16 %v1043
        %v1639 = vunpack.c.h.b16 %v1043
        %v1640 = vunpack.c.l.b16 %v1044
        %v1641 = vunpack.c.h.b16 %v1044
        %v1642 = vunpack.c.l.b16 %v1045
        %v1643 = vunpack.c.h.b16 %v1045
        %v1644 = vunpack.c.l.b16 %v1046
        %v1645 = vunpack.c.h.b16 %v1046
        %v1646 = vunpack.c.l.b16 %v1047
        %v1647 = vunpack.c.h.b16 %v1047
        %v1648 = vunpack.c.l.b16 %v1048
        %v1649 = vunpack.c.h.b16 %v1048
        %v1650 = vunpack.c.l.b16 %v1049
        %v1651 = vunpack.c.h.b16 %v1049
        %v1652 = vunpack.c.l.b16 %v1050
        %v1653 = vunpack.c.h.b16 %v1050
        %v1654 = vunpack.c.l.b16 %v1051
        %v1655 = vunpack.c.h.b16 %v1051
        %v1656 = vunpack.c.l.b16 %v1052
        %v1657 = vunpack.c.h.b16 %v1052
        %v1658 = vunpack.c.l.b16 %v1053
        %v1659 = vunpack.c.h.b16 %v1053
        %v1660 = vunpack.c.l.b16 %v1054
        %v1661 = vunpack.c.h.b16 %v1054
        %v1662 = vunpack.c.l.b16 %v1055
        %v1663 = vunpack.c.h.b16 %v1055
        %v1664 = vunpack.c.l.b16 %v1056
        %v1665 = vunpack.c.h.b16 %v1056
        %v1666 = vunpack.c.l.b16 %v1057
        %v1667 = vunpack.c.h.b16 %v1057
        %v1668 = vunpack.c.l.b16 %v1058
        %v1669 = vunpack.c.h.b16 %v1058
        %v1670 = vunpack.c.l.b16 %v1059
        %v1671 = vunpack.c.h.b16 %v1059
        %v1672 = vunpack.c.l.b16 %v1060
        %v1673 = vunpack.c.h.b16 %v1060
        %v1674 = vunpack.c.l.b16 %v1061
        %v1675 = vunpack.c.h.b16 %v1061
        %v1676 = vunpack.c.l.b16 %v1062
        %v1677 = vunpack.c.h.b16 %v1062
        %v1678 = vunpack.c.l.b16 %v1063
        %v1679 = vunpack.c.h.b16 %v1063
        %v1680 = vunpack.c.l.b16 %v1064
        %v1681 = vunpack.c.h.b16 %v1064
        %v1682 = vunpack.c.l.b16 %v1065
        %v1683 = vunpack.c.h.b16 %v1065
        %v1684 = vunpack.c.l.b16 %v1066
        %v1685 = vunpack.c.h.b16 %v1066
        %v1686 = vunpack.c.l.b16 %v1067
        %v1687 = vunpack.c.h.b16 %v1067
        %v1688 = vunpack.c.l.b16 %v1068
        %v1689 = vunpack.c.h.b16 %v1068
        %v1690 = vunpack.c.l.b16 %v1069
        %v1691 = vunpack.c.h.b16 %v1069
        %v1692 = vunpack.c.l.b16 %v1070
        %v1693 = vunpack.c.h.b16 %v1070
        %v1694 = vunpack.c.l.b16 %v1071
        %v1695 = vunpack.c.h.b16 %v1071
        %v1696 = vunpack.c.l.b16 %v1072
        %v1697 = vunpack.c.h.b16 %v1072
        %v1698 = vunpack.c.l.b16 %v1073
        %v1699 = vunpack.c.h.b16 %v1073
        %v1700 = vunpack.c.l.b16 %v1074
        %v1701 = vunpack.c.h.b16 %v1074
        %v1702 = vunpack.c.l.b16 %v1075
        %v1703 = vunpack.c.h.b16 %v1075
        %v1704 = vunpack.c.l.b16 %v1076
        %v1705 = vunpack.c.h.b16 %v1076
        %v1706 = vunpack.c.l.b16 %v1077
        %v1707 = vunpack.c.h.b16 %v1077
        %v1708 = vunpack.c.l.b16 %v1078
        %v1709 = vunpack.c.h.b16 %v1078
        %v1710 = vunpack.c.l.b16 %v1079
        %v1711 = vunpack.c.h.b16 %v1079
        %v1712 = vunpack.c.l.b16 %v1080
        %v1713 = vunpack.c.h.b16 %v1080
        %v1714 = vunpack.c.l.b16 %v1081
        %v1715 = vunpack.c.h.b16 %v1081
        %v1716 = vunpack.c.l.b16 %v1082
        %v1717 = vunpack.c.h.b16 %v1082
        %v1718 = vunpack.c.l.b16 %v1083
        %v1719 = vunpack.c.h.b16 %v1083
        %v1720 = vunpack.c.l.b16 %v1084
        %v1721 = vunpack.c.h.b16 %v1084
        %v1722 = vunpack.c.l.b16 %v1085
        %v1723 = vunpack.c.h.b16 %v1085
        %v1724 = vunpack.c.l.b16 %v1086
        %v1725 = vunpack.c.h.b16 %v1086
        %v1726 = vunpack.c.l.b16 %v1087
        %v1727 = vunpack.c.h.b16 %v1087
        %v1728 = vunpack.c.l.b16 %v1088
        %v1729 = vunpack.c.h.b16 %v1088
        %v1730 = vunpack.c.l.b16 %v1089
        %v1731 = vunpack.c.h.b16 %v1089
        %v1732 = vunpack.c.l.b16 %v1090
        %v1733 = vunpack.c.h.b16 %v1090
        %v1734 = vunpack.c.l.b16 %v1091
        %v1735 = vunpack.c.h.b16 %v1091
        %v1736 = vunpack.c.l.b16 %v1092
        %v1737 = vunpack.c.h.b16 %v1092
        %v1738 = vunpack.c.l.b16 %v1093
        %v1739 = vunpack.c.h.b16 %v1093
        %v1740 = vunpack.c.l.b16 %v1094
        %v1741 = vunpack.c.h.b16 %v1094
        %v1742 = vunpack.c.l.b16 %v1095
        %v1743 = vunpack.c.h.b16 %v1095
        %v1744 = vunpack.c.l.b16 %v1096
        %v1745 = vunpack.c.h.b16 %v1096
        %v1746 = vunpack.c.l.b16 %v1097
        %v1747 = vunpack.c.h.b16 %v1097
        %v1748 = vunpack.c.l.b16 %v1098
        %v1749 = vunpack.c.h.b16 %v1098
        %v1750 = vunpack.c.l.b16 %v1099
        %v1751 = vunpack.c.h.b16 %v1099
        %v1752 = vunpack.c.l.b16 %v1100
        %v1753 = vunpack.c.h.b16 %v1100
        %v1754 = vunpack.c.l.b16 %v1101
        %v1755 = vunpack.c.h.b16 %v1101
        %v1756 = vunpack.c.l.b16 %v1102
        %v1757 = vunpack.c.h.b16 %v1102
        %v1758 = vunpack.c.l.b16 %v1103
        %v1759 = vunpack.c.h.b16 %v1103
        %v1760 = vunpack.c.l.b16 %v1104
        %v1761 = vunpack.c.h.b16 %v1104
        %v1762 = vunpack.c.l.b16 %v1105
        %v1763 = vunpack.c.h.b16 %v1105
        %v1764 = vunpack.c.l.b16 %v1106
        %v1765 = vunpack.c.h.b16 %v1106
        %v1766 = vunpack.c.l.b16 %v1107
        %v1767 = vunpack.c.h.b16 %v1107
        %v1768 = vunpack.c.l.b16 %v1108
        %v1769 = vunpack.c.h.b16 %v1108
        %v1770 = vunpack.c.l.b16 %v1109
        %v1771 = vunpack.c.h.b16 %v1109
        %v1772 = vunpack.c.l.b16 %v1110
        %v1773 = vunpack.c.h.b16 %v1110
        %v1774 = vunpack.c.l.b16 %v1111
        %v1775 = vunpack.c.h.b16 %v1111
        %v1776 = vunpack.c.l.b16 %v1112
        %v1777 = vunpack.c.h.b16 %v1112
        %v1778 = vunpack.c.l.b16 %v1113
        %v1779 = vunpack.c.h.b16 %v1113
        %v1780 = vunpack.c.l.b16 %v1114
        %v1781 = vunpack.c.h.b16 %v1114
        %v1782 = vunpack.c.l.b16 %v1115
        %v1783 = vunpack.c.h.b16 %v1115
        %v1784 = vunpack.c.l.b16 %v1116
        %v1785 = vunpack.c.h.b16 %v1116
        %v1786 = vunpack.c.l.b16 %v1117
        %v1787 = vunpack.c.h.b16 %v1117
        %v1788 = vunpack.c.l.b16 %v1118
        %v1789 = vunpack.c.h.b16 %v1118
        %v1790 = vunpack.c.l.b16 %v1119
        %v1791 = vunpack.c.h.b16 %v1119
        %v1792 = vunpack.c.l.b16 %v1120
        %v1793 = vunpack.c.h.b16 %v1120
        %v1794 = vunpack.c.l.b16 %v1121
        %v1795 = vunpack.c.h.b16 %v1121
        %v1796 = vunpack.c.l.b16 %v1122
        %v1797 = vunpack.c.h.b16 %v1122
        %v1798 = vunpack.c.l.b16 %v1123
        %v1799 = vunpack.c.h.b16 %v1123
        %v1800 = vunpack.c.l.b16 %v1124
        %v1801 = vunpack.c.h.b16 %v1124
        %v1802 = vunpack.c.l.b16 %v1125
        %v1803 = vunpack.c.h.b16 %v1125
        %v1804 = vunpack.c.l.b16 %v1126
        %v1805 = vunpack.c.h.b16 %v1126
        %v1806 = vunpack.c.l.b16 %v1127
        %v1807 = vunpack.c.h.b16 %v1127
        %v1808 = vunpack.c.l.b16 %v1128
        %v1809 = vunpack.c.h.b16 %v1128
        %v1810 = vunpack.c.l.b16 %v1129
        %v1811 = vunpack.c.h.b16 %v1129
        %v1812 = vunpack.c.l.b16 %v1130
        %v1813 = vunpack.c.h.b16 %v1130
        %v1814 = vunpack.c.l.b16 %v1131
        %v1815 = vunpack.c.h.b16 %v1131
        %v1816 = vunpack.c.l.b16 %v1132
        %v1817 = vunpack.c.h.b16 %v1132
        %v1818 = vunpack.c.l.b16 %v1133
        %v1819 = vunpack.c.h.b16 %v1133
        %v1820 = vunpack.c.l.b16 %v1134
        %v1821 = vunpack.c.h.b16 %v1134
        %v1822 = vunpack.c.l.b16 %v1135
        %v1823 = vunpack.c.h.b16 %v1135
        %v1824 = vunpack.c.l.b16 %v1136
        %v1825 = vunpack.c.h.b16 %v1136
        %v1826 = vunpack.c.l.b16 %v1137
        %v1827 = vunpack.c.h.b16 %v1137
        %v1828 = vunpack.c.l.b16 %v1138
        %v1829 = vunpack.c.h.b16 %v1138
        %v1830 = vunpack.c.l.b16 %v1139
        %v1831 = vunpack.c.h.b16 %v1139
        %v1832 = vunpack.c.l.b16 %v1140
        %v1833 = vunpack.c.h.b16 %v1140
        %v1834 = vunpack.c.l.b16 %v1141
        %v1835 = vunpack.c.h.b16 %v1141
        %v1836 = vunpack.c.l.b16 %v1142
        %v1837 = vunpack.c.h.b16 %v1142
        %v1838 = vunpack.c.l.b16 %v1143
        %v1839 = vunpack.c.h.b16 %v1143
        %v1840 = vunpack.c.l.b16 %v1144
        %v1841 = vunpack.c.h.b16 %v1144
        %v1842 = vunpack.c.l.b16 %v1145
        %v1843 = vunpack.c.h.b16 %v1145
        %v1844 = vunpack.c.l.b16 %v1146
        %v1845 = vunpack.c.h.b16 %v1146
        %v1846 = vunpack.c.l.b16 %v1147
        %v1847 = vunpack.c.h.b16 %v1147
        %v1848 = vunpack.c.l.b16 %v1148
        %v1849 = vunpack.c.h.b16 %v1148
        %v1850 = vunpack.c.l.b16 %v1149
        %v1851 = vunpack.c.h.b16 %v1149
        %v1852 = vunpack.c.l.b16 %v1150
        %v1853 = vunpack.c.h.b16 %v1150
        %v1854 = vunpack.c.l.b16 %v1151
        %v1855 = vunpack.c.h.b16 %v1151
        %v1856 = vunpack.c.l.b16 %v1152
        %v1857 = vunpack.c.h.b16 %v1152
        %v1858 = vunpack.c.l.b16 %v1153
        %v1859 = vunpack.c.h.b16 %v1153
        %v1860 = vunpack.c.l.b16 %v1154
        %v1861 = vunpack.c.h.b16 %v1154
        %v1862 = vunpack.c.l.b16 %v1155
        %v1863 = vunpack.c.h.b16 %v1155
        %v1864 = vunpack.c.l.b16 %v1156
        %v1865 = vunpack.c.h.b16 %v1156
        %v1866 = vunpack.c.l.b16 %v1157
        %v1867 = vunpack.c.h.b16 %v1157
        %v1868 = vunpack.c.l.b16 %v1158
        %v1869 = vunpack.c.h.b16 %v1158
        %v1870 = vunpack.c.l.b16 %v1159
        %v1871 = vunpack.c.h.b16 %v1159
        %v1872 = vunpack.c.l.b16 %v1160
        %v1873 = vunpack.c.h.b16 %v1160
        %v1874 = vunpack.c.l.b16 %v1161
        %v1875 = vunpack.c.h.b16 %v1161
        %v1876 = vunpack.c.l.b16 %v1162
        %v1877 = vunpack.c.h.b16 %v1162
        %v1878 = vunpack.c.l.b16 %v1163
        %v1879 = vunpack.c.h.b16 %v1163
        %v1880 = vunpack.c.l.b16 %v1164
        %v1881 = vunpack.c.h.b16 %v1164
        %v1882 = vunpack.c.l.b16 %v1165
        %v1883 = vunpack.c.h.b16 %v1165
        %v1884 = vunpack.c.l.b16 %v1166
        %v1885 = vunpack.c.h.b16 %v1166
        %v1886 = vunpack.c.l.b16 %v1167
        %v1887 = vunpack.c.h.b16 %v1167
        %v1888 = vunpack.c.l.b16 %v1168
        %v1889 = vunpack.c.h.b16 %v1168
        %v1890 = vunpack.c.l.b16 %v1169
        %v1891 = vunpack.c.h.b16 %v1169
        %v1892 = vunpack.c.l.b16 %v1170
        %v1893 = vunpack.c.h.b16 %v1170
        %v1894 = vunpack.c.l.b16 %v1171
        %v1895 = vunpack.c.h.b16 %v1171
        %v1896 = vunpack.c.l.b16 %v1172
        %v1897 = vunpack.c.h.b16 %v1172
        %v1898 = vunpack.c.l.b16 %v1173
        %v1899 = vunpack.c.h.b16 %v1173
        %v1900 = vunpack.c.l.b16 %v1174
        %v1901 = vunpack.c.h.b16 %v1174
        %v1902 = vunpack.c.l.b16 %v1175
        %v1903 = vunpack.c.h.b16 %v1175
        %v1904 = vunpack.c.l.b16 %v1176
        %v1905 = vunpack.c.h.b16 %v1176
        %v1906 = vunpack.c.l.b16 %v1177
        %v1907 = vunpack.c.h.b16 %v1177
        %v1908 = vunpack.c.l.b16 %v1178
        %v1909 = vunpack.c.h.b16 %v1178
        %v1910 = vunpack.c.l.b16 %v1179
        %v1911 = vunpack.c.h.b16 %v1179
        %v1912 = vunpack.c.l.b16 %v1180
        %v1913 = vunpack.c.h.b16 %v1180
        %v1914 = vunpack.c.l.b16 %v1181
        %v1915 = vunpack.c.h.b16 %v1181
        %v1916 = vunpack.c.l.b16 %v1182
        %v1917 = vunpack.c.h.b16 %v1182
        %v1918 = vunpack.c.l.b16 %v1183
        %v1919 = vunpack.c.h.b16 %v1183
        %v1920 = vunpack.c.l.b16 %v1184
        %v1921 = vunpack.c.h.b16 %v1184
        %v1922 = vunpack.c.l.b16 %v1185
        %v1923 = vunpack.c.h.b16 %v1185
        %v1924 = vunpack.c.l.b16 %v1186
        %v1925 = vunpack.c.h.b16 %v1186
        %v1926 = vunpack.c.l.b16 %v1187
        %v1927 = vunpack.c.h.b16 %v1187
        %v1928 = vunpack.c.l.b16 %v1188
        %v1929 = vunpack.c.h.b16 %v1188
        %v1930 = vunpack.c.l.b16 %v1189
        %v1931 = vunpack.c.h.b16 %v1189
        %v1932 = vunpack.c.l.b16 %v1190
        %v1933 = vunpack.c.h.b16 %v1190
        %v1934 = vunpack.c.l.b16 %v1191
        %v1935 = vunpack.c.h.b16 %v1191
        %v1936 = vunpack.c.l.b16 %v1192
        %v1937 = vunpack.c.h.b16 %v1192
        %v1938 = vunpack.c.l.b16 %v1193
        %v1939 = vunpack.c.h.b16 %v1193
        %v1940 = vunpack.c.l.b16 %v1194
        %v1941 = vunpack.c.h.b16 %v1194
        %v1942 = vunpack.c.l.b16 %v1195
        %v1943 = vunpack.c.h.b16 %v1195
        %v1944 = vunpack.c.l.b16 %v1196
        %v1945 = vunpack.c.h.b16 %v1196
        %v1946 = vunpack.c.l.b16 %v1197
        %v1947 = vunpack.c.h.b16 %v1197
        %v1948 = vunpack.c.l.b16 %v1198
        %v1949 = vunpack.c.h.b16 %v1198
        %v1950 = vunpack.c.l.b16 %v1199
        %v1951 = vunpack.c.h.b16 %v1199
        %v1952 = vunpack.c.l.b16 %v1200
        %v1953 = vunpack.c.h.b16 %v1200
        %v1954 = vunpack.c.l.b16 %v1201
        %v1955 = vunpack.c.h.b16 %v1201
        %v1956 = vunpack.c.l.b16 %v1202
        %v1957 = vunpack.c.h.b16 %v1202
        %v1958 = vunpack.c.l.b16 %v1203
        %v1959 = vunpack.c.h.b16 %v1203
        %v1960 = vunpack.c.l.b16 %v1204
        %v1961 = vunpack.c.h.b16 %v1204
        %v1962 = vunpack.c.l.b16 %v1205
        %v1963 = vunpack.c.h.b16 %v1205
        %v1964 = vunpack.c.l.b16 %v1206
        %v1965 = vunpack.c.h.b16 %v1206
        %v1966 = vunpack.c.l.b16 %v1207
        %v1967 = vunpack.c.h.b16 %v1207
        %v1968 = vunpack.c.l.b16 %v1208
        %v1969 = vunpack.c.h.b16 %v1208
        %v1970 = vunpack.c.l.b16 %v1209
        %v1971 = vunpack.c.h.b16 %v1209
        %v1972 = vunpack.c.l.b16 %v1210
        %v1973 = vunpack.c.h.b16 %v1210
        %v1974 = vunpack.c.l.b16 %v1211
        %v1975 = vunpack.c.h.b16 %v1211
        %v1976 = vunpack.c.l.b16 %v1212
        %v1977 = vunpack.c.h.b16 %v1212
        %v1978 = vunpack.c.l.b16 %v1213
        %v1979 = vunpack.c.h.b16 %v1213
        %v1980 = vunpack.c.l.b16 %v1214
        %v1981 = vunpack.c.h.b16 %v1214
        %v1982 = vunpack.c.l.b16 %v1215
        %v1983 = vunpack.c.h.b16 %v1215
        %v1984 = vpack.c.b16 %v1480, %v1472
        %v1985 = vpack.c.b16 %v1481, %v1473
        %v1986 = vpack.c.b16 %v1482, %v1474
        %v1987 = vpack.c.b16 %v1483, %v1475
        %v1988 = vpack.c.b16 %v1484, %v1476
        %v1989 = vpack.c.b16 %v1485, %v1477
        %v1990 = vpack.c.b16 %v1486, %v1478
        %v1991 = vpack.c.b16 %v1487, %v1479
        %v1992 = vpack.c.b16 %v1496, %v1488
        %v1993 = vpack.c.b16 %v1497, %v1489
        %v1994 = vpack.c.b16 %v1498, %v1490
        %v1995 = vpack.c.b16 %v1499, %v1491
        %v1996 = vpack.c.b16 %v1500, %v1492
        %v1997 = vpack.c.b16 %v1501, %v1493
        %v1998 = vpack.c.b16 %v1502, %v1494
        %v1999 = vpack.c.b16 %v1503, %v1495
        %v2000 = vpack.c.b16 %v1512, %v1504
        %v2001 = vpack.c.b16 %v1513, %v1505
        %v2002 = vpack.c.b16 %v1514, %v1506
        %v2003 = vpack.c.b16 %v1515, %v1507
        %v2004 = vpack.c.b16 %v1516, %v1508
        %v2005 = vpack.c.b16 %v1517, %v1509
        %v2006 = vpack.c.b16 %v1518, %v1510
        %v2007 = vpack.c.b16 %v1519, %v1511
        %v2008 = vpack.c.b16 %v1528, %v1520
        %v2009 = vpack.c.b16 %v1529, %v1521
        %v2010 = vpack.c.b16 %v1530, %v1522
        %v2011 = vpack.c.b16 %v1531, %v1523
        %v2012 = vpack.c.b16 %v1532, %v1524
        %v2013 = vpack.c.b16 %v1533, %v1525
        %v2014 = vpack.c.b16 %v1534, %v1526
        %v2015 = vpack.c.b16 %v1535, %v1527
        %v2016 = vpack.c.b16 %v1544, %v1536
        %v2017 = vpack.c.b16 %v1545, %v1537
        %v2018 = vpack.c.b16 %v1546, %v1538
        %v2019 = vpack.c.b16 %v1547, %v1539
        %v2020 = vpack.c.b16 %v1548, %v1540
        %v2021 = vpack.c.b16 %v1549, %v1541
        %v2022 = vpack.c.b16 %v1550, %v1542
        %v2023 = vpack.c.b16 %v1551, %v1543
        %v2024 = vpack.c.b16 %v1560, %v1552
        %v2025 = vpack.c.b16 %v1561, %v1553
        %v2026 = vpack.c.b16 %v1562, %v1554
        %v2027 = vpack.c.b16 %v1563, %v1555
        %v2028 = vpack.c.b16 %v1564, %v1556
        %v2029 = vpack.c.b16 %v1565, %v1557
        %v2030 = vpack.c.b16 %v1566, %v1558
        %v2031 = vpack.c.b16 %v1567, %v1559
        %v2032 = vpack.c.b16 %v1576, %v1568
        %v2033 = vpack.c.b16 %v1577, %v1569
        %v2034 = vpack.c.b16 %v1578, %v1570
        %v2035 = vpack.c.b16 %v1579, %v1571
        %v2036 = vpack.c.b16 %v1580, %v1572
        %v2037 = vpack.c.b16 %v1581, %v1573
        %v2038 = vpack.c.b16 %v1582, %v1574
        %v2039 = vpack.c.b16 %v1583, %v1575
        %v2040 = vpack.c.b16 %v1592, %v1584
        %v2041 = vpack.c.b16 %v1593, %v1585
        %v2042 = vpack.c.b16 %v1594, %v1586
        %v2043 = vpack.c.b16 %v1595, %v1587
        %v2044 = vpack.c.b16 %v1596, %v1588
        %v2045 = vpack.c.b16 %v1597, %v1589
        %v2046 = vpack.c.b16 %v1598, %v1590
        %v2047 = vpack.c.b16 %v1599, %v1591
        %v2048 = vpack.c.b16 %v1608, %v1600
        %v2049 = vpack.c.b16 %v1609, %v1601
        %v2050 = vpack.c.b16 %v1610, %v1602
        %v2051 = vpack.c.b16 %v1611, %v1603
        %v2052 = vpack.c.b16 %v1612, %v1604
        %v2053 = vpack.c.b16 %v1613, %v1605
        %v2054 = vpack.c.b16 %v1614, %v1606
        %v2055 = vpack.c.b16 %v1615, %v1607
        %v2056 = vpack.c.b16 %v1624, %v1616
        %v2057 = vpack.c.b16 %v1625, %v1617
        %v2058 = vpack.c.b16 %v1626, %v1618
        %v2059 = vpack.c.b16 %v1627, %v1619
        %v2060 = vpack.c.b16 %v1628, %v1620
        %v2061 = vpack.c.b16 %v1629, %v1621
        %v2062 = vpack.c.b16 %v1630, %v1622
        %v2063 = vpack.c.b16 %v1631, %v1623
        %v2064 = vpack.c.b16 %v1640, %v1632
        %v2065 = vpack.c.b16 %v1641, %v1633
        %v2066 = vpack.c.b16 %v1642, %v1634
        %v2067 = vpack.c.b16 %v1643, %v1635
        %v2068 = vpack.c.b16 %v1644, %v1636
        %v2069 = vpack.c.b16 %v1645, %v1637
        %v2070 = vpack.c.b16 %v1646, %v1638
        %v2071 = vpack.c.b16 %v1647, %v1639
        %v2072 = vpack.c.b16 %v1656, %v1648
        %v2073 = vpack.c.b16 %v1657, %v1649
        %v2074 = vpack.c.b16 %v1658, %v1650
        %v2075 = vpack.c.b16 %v1659, %v1651
        %v2076 = vpack.c.b16 %v1660, %v1652
        %v2077 = vpack.c.b16 %v1661, %v1653
        %v2078 = vpack.c.b16 %v1662, %v1654
        %v2079 = vpack.c.b16 %v1663, %v1655
        %v2080 = vpack.c.b16 %v1672, %v1664
        %v2081 = vpack.c.b16 %v1673, %v1665
        %v2082 = vpack.c.b16 %v1674, %v1666
        %v2083 = vpack.c.b16 %v1675, %v1667
        %v2084 = vpack.c.b16 %v1676, %v1668
        %v2085 = vpack.c.b16 %v1677, %v1669
        %v2086 = vpack.c.b16 %v1678, %v1670
        %v2087 = vpack.c.b16 %v1679, %v1671
        %v2088 = vpack.c.b16 %v1688, %v1680
        %v2089 = vpack.c.b16 %v1689, %v1681
        %v2090 = vpack.c.b16 %v1690, %v1682
        %v2091 = vpack.c.b16 %v1691, %v1683
        %v2092 = vpack.c.b16 %v1692, %v1684
        %v2093 = vpack.c.b16 %v1693, %v1685
        %v2094 = vpack.c.b16 %v1694, %v1686
        %v2095 = vpack.c.b16 %v1695, %v1687
        %v2096 = vpack.c.b16 %v1704, %v1696
        %v2097 = vpack.c.b16 %v1705, %v1697
        %v2098 = vpack.c.b16 %v1706, %v1698
        %v2099 = vpack.c.b16 %v1707, %v1699
        %v2100 = vpack.c.b16 %v1708, %v1700
        %v2101 = vpack.c.b16 %v1709, %v1701
        %v2102 = vpack.c.b16 %v1710, %v1702
        %v2103 = vpack.c.b16 %v1711, %v1703
        %v2104 = vpack.c.b16 %v1720, %v1712
        %v2105 = vpack.c.b16 %v1721, %v1713
        %v2106 = vpack.c.b16 %v1722, %v1714
        %v2107 = vpack.c.b16 %v1723, %v1715
        %v2108 = vpack.c.b16 %v1724, %v1716
        %v2109 = vpack.c.b16 %v1725, %v1717
        %v2110 = vpack.c.b16 %v1726, %v1718
        %v2111 = vpack.c.b16 %v1727, %v1719
        %v2112 = vpack.c.b16 %v1736, %v1728
        %v2113 = vpack.c.b16 %v1737, %v1729
        %v2114 = vpack.c.b16 %v1738, %v1730
        %v2115 = vpack.c.b16 %v1739, %v1731
        %v2116 = vpack.c.b16 %v1740, %v1732
        %v2117 = vpack.c.b16 %v1741, %v1733
        %v2118 = vpack.c.b16 %v1742, %v1734
        %v2119 = vpack.c.b16 %v1743, %v1735
        %v2120 = vpack.c.b16 %v1752, %v1744
        %v2121 = vpack.c.b16 %v1753, %v1745
        %v2122 = vpack.c.b16 %v1754, %v1746
        %v2123 = vpack.c.b16 %v1755, %v1747
        %v2124 = vpack.c.b16 %v1756, %v1748
        %v2125 = vpack.c.b16 %v1757, %v1749
        %v2126 = vpack.c.b16 %v1758, %v1750
        %v2127 = vpack.c.b16 %v1759, %v1751
        %v2128 = vpack.c.b16 %v1768, %v1760
        %v2129 = vpack.c.b16 %v1769, %v1761
        %v2130 = vpack.c.b16 %v1770, %v1762
        %v2131 = vpack.c.b16 %v1771, %v1763
        %v2132 = vpack.c.b16 %v1772, %v1764
        %v2133 = vpack.c.b16 %v1773, %v1765
        %v2134 = vpack.c.b16 %v1774, %v1766
        %v2135 = vpack.c.b16 %v1775, %v1767
        %v2136 = vpack.c.b16 %v1784, %v1776
        %v2137 = vpack.c.b16 %v1785, %v1777
        %v2138 = vpack.c.b16 %v1786, %v1778
        %v2139 = vpack.c.b16 %v1787, %v1779
        %v2140 = vpack.c.b16 %v1788, %v1780
        %v2141 = vpack.c.b16 %v1789, %v1781
        %v2142 = vpack.c.b16 %v1790, %v1782
        %v2143 = vpack.c.b16 %v1791, %v1783
        %v2144 = vpack.c.b16 %v1800, %v1792
        %v2145 = vpack.c.b16 %v1801, %v1793
        %v2146 = vpack.c.b16 %v1802, %v1794
        %v2147 = vpack.c.b16 %v1803, %v1795
        %v2148 = vpack.c.b16 %v1804, %v1796
        %v2149 = vpack.c.b16 %v1805, %v1797
        %v2150 = vpack.c.b16 %v1806, %v1798
        %v2151 = vpack.c.b16 %v1807, %v1799
        %v2152 = vpack.c.b16 %v1816, %v1808
        %v2153 = vpack.c.b16 %v1817, %v1809
        %v2154 = vpack.c.b16 %v1818, %v1810
        %v2155 = vpack.c.b16 %v1819, %v1811
        %v2156 = vpack.c.b16 %v1820, %v1812
        %v2157 = vpack.c.b16 %v1821, %v1813
        %v2158 = vpack.c.b16 %v1822, %v1814
        %v2159 = vpack.c.b16 %v1823, %v1815
        %v2160 = vpack.c.b16 %v1832, %v1824
        %v2161 = vpack.c.b16 %v1833, %v1825
        %v2162 = vpack.c.b16 %v1834, %v1826
        %v2163 = vpack.c.b16 %v1835, %v1827
        %v2164 = vpack.c.b16 %v1836, %v1828
        %v2165 = vpack.c.b16 %v1837, %v1829
        %v2166 = vpack.c.b16 %v1838, %v1830
        %v2167 = vpack.c.b16 %v1839, %v1831
        %v2168 = vpack.c.b16 %v1848, %v1840
        %v2169 = vpack.c.b16 %v1849, %v1841
        %v2170 = vpack.c.b16 %v1850, %v1842
        %v2171 = vpack.c.b16 %v1851, %v1843
        %v2172 = vpack.c.b16 %v1852, %v1844
        %v2173 = vpack.c.b16 %v1853, %v1845
        %v2174 = vpack.c.b16 %v1854, %v1846
        %v2175 = vpack.c.b16 %v1855, %v1847
        %v2176 = vpack.c.b16 %v1864, %v1856
        %v2177 = vpack.c.b16 %v1865, %v1857
        %v2178 = vpack.c.b16 %v1866, %v1858
        %v2179 = vpack.c.b16 %v1867, %v1859
        %v2180 = vpack.c.b16 %v1868, %v1860
        %v2181 = vpack.c.b16 %v1869, %v1861
        %v2182 = vpack.c.b16 %v1870, %v1862
        %v2183 = vpack.c.b16 %v1871, %v1863
        %v2184 = vpack.c.b16 %v1880, %v1872
        %v2185 = vpack.c.b16 %v1881, %v1873
        %v2186 = vpack.c.b16 %v1882, %v1874
        %v2187 = vpack.c.b16 %v1883, %v1875
        %v2188 = vpack.c.b16 %v1884, %v1876
        %v2189 = vpack.c.b16 %v1885, %v1877
        %v2190 = vpack.c.b16 %v1886, %v1878
        %v2191 = vpack.c.b16 %v1887, %v1879
        %v2192 = vpack.c.b16 %v1896, %v1888
        %v2193 = vpack.c.b16 %v1897, %v1889
        %v2194 = vpack.c.b16 %v1898, %v1890
        %v2195 = vpack.c.b16 %v1899, %v1891
        %v2196 = vpack.c.b16 %v1900, %v1892
        %v2197 = vpack.c.b16 %v1901, %v1893
        %v2198 = vpack.c.b16 %v1902, %v1894
        %v2199 = vpack.c.b16 %v1903, %v1895
        %v2200 = vpack.c.b16 %v1912, %v1904
        %v2201 = vpack.c.b16 %v1913, %v1905
        %v2202 = vpack.c.b16 %v1914, %v1906
        %v2203 = vpack.c.b16 %v1915, %v1907
        %v2204 = vpack.c.b16 %v1916, %v1908
        %v2205 = vpack.c.b16 %v1917, %v1909
        %v2206 = vpack.c.b16 %v1918, %v1910
        %v2207 = vpack.c.b16 %v1919, %v1911
        %v2208 = vpack.c.b16 %v1928, %v1920
        %v2209 = vpack.c.b16 %v1929, %v1921
        %v2210 = vpack.c.b16 %v1930, %v1922
        %v2211 = vpack.c.b16 %v1931, %v1923
        %v2212 = vpack.c.b16 %v1932, %v1924
        %v2213 = vpack.c.b16 %v1933, %v1925
        %v2214 = vpack.c.b16 %v1934, %v1926
        %v2215 = vpack.c.b16 %v1935, %v1927
        %v2216 = vpack.c.b16 %v1944, %v1936
        %v2217 = vpack.c.b16 %v1945, %v1937
        %v2218 = vpack.c.b16 %v1946, %v1938
        %v2219 = vpack.c.b16 %v1947, %v1939
        %v2220 = vpack.c.b16 %v1948, %v1940
        %v2221 = vpack.c.b16 %v1949, %v1941
        %v2222 = vpack.c.b16 %v1950, %v1942
        %v2223 = vpack.c.b16 %v1951, %v1943
        %v2224 = vpack.c.b16 %v1960, %v1952
        %v2225 = vpack.c.b16 %v1961, %v1953
        %v2226 = vpack.c.b16 %v1962, %v1954
        %v2227 = vpack.c.b16 %v1963, %v1955
        %v2228 = vpack.c.b16 %v1964, %v1956
        %v2229 = vpack.c.b16 %v1965, %v1957
        %v2230 = vpack.c.b16 %v1966, %v1958
        %v2231 = vpack.c.b16 %v1967, %v1959
        %v2232 = vpack.c.b16 %v1976, %v1968
        %v2233 = vpack.c.b16 %v1977, %v1969
        %v2234 = vpack.c.b16 %v1978, %v1970
        %v2235 = vpack.c.b16 %v1979, %v1971
        %v2236 = vpack.c.b16 %v1980, %v1972
        %v2237 = vpack.c.b16 %v1981, %v1973
        %v2238 = vpack.c.b16 %v1982, %v1974
        %v2239 = vpack.c.b16 %v1983, %v1975
        %v2624 = vunpack.c.l.b16 %v768
        %v2625 = vunpack.c.l.b16 %v769
        %v2626 = vunpack.c.l.b16 %v770
        %v2627 = vunpack.c.l.b16 %v771
        %v2628 = vunpack.c.l.b16 %v772
        %v2629 = vunpack.c.l.b16 %v773
        %v2630 = vunpack.c.l.b16 %v774
        %v2631 = vunpack.c.l.b16 %v775
        %v2632 = vunpack.c.l.b16 %v776
        %v2633 = vunpack.c.l.b16 %v777
        %v2634 = vunpack.c.l.b16 %v778
        %v2635 = vunpack.c.l.b16 %v779
        %v2636 = vunpack.c.l.b16 %v780
        %v2637 = vunpack.c.l.b16 %v781
        %v2638 = vunpack.c.l.b16 %v782
        %v2639 = vunpack.c.l.b16 %v783
        %v2640 = vunpack.c.l.b16 %v784
        %v2641 = vunpack.c.l.b16 %v785
        %v2642 = vunpack.c.l.b16 %v786
        %v2643 = vunpack.c.l.b16 %v787
        %v2644 = vunpack.c.l.b16 %v788
        %v2645 = vunpack.c.l.b16 %v789
        %v2646 = vunpack.c.l.b16 %v790
        %v2647 = vunpack.c.l.b16 %v791
        %v2648 = vunpack.c.l.b16 %v792
        %v2649 = vunpack.c.l.b16 %v793
        %v2650 = vunpack.c.l.b16 %v794
        %v2651 = vunpack.c.l.b16 %v795
        %v2652 = vunpack.c.l.b16 %v796
        %v2653 = vunpack.c.l.b16 %v797
        %v2654 = vunpack.c.l.b16 %v798
        %v2655 = vunpack.c.l.b16 %v799
        %v2656 = vunpack.c.l.b16 %v800
        %v2657 = vunpack.c.l.b16 %v801
        %v2658 = vunpack.c.l.b16 %v802
        %v2659 = vunpack.c.l.b16 %v803
        %v2660 = vunpack.c.l.b16 %v804
        %v2661 = vunpack.c.l.b16 %v805
        %v2662 = vunpack.c.l.b16 %v806
        %v2663 = vunpack.c.l.b16 %v807
        %v2664 = vunpack.c.l.b16 %v808
        %v2665 = vunpack.c.l.b16 %v809
        %v2666 = vunpack.c.l.b16 %v810
        %v2667 = vunpack.c.l.b16 %v811
        %v2668 = vunpack.c.l.b16 %v812
        %v2669 = vunpack.c.l.b16 %v813
        %v2670 = vunpack.c.l.b16 %v814
        %v2671 = vunpack.c.l.b16 %v815
        %v2672 = vunpack.c.l.b16 %v816
        %v2673 = vunpack.c.l.b16 %v817
        %v2674 = vunpack.c.l.b16 %v818
        %v2675 = vunpack.c.l.b16 %v819
        %v2676 = vunpack.c.l.b16 %v820
        %v2677 = vunpack.c.l.b16 %v821
        %v2678 = vunpack.c.l.b16 %v822
        %v2679 = vunpack.c.l.b16 %v823
        %v2680 = vunpack.c.l.b16 %v824
        %v2681 = vunpack.c.l.b16 %v825
        %v2682 = vunpack.c.l.b16 %v826
        %v2683 = vunpack.c.l.b16 %v827
        %v2684 = vunpack.c.l.b16 %v828
        %v2685 = vunpack.c.l.b16 %v829
        %v2686 = vunpack.c.l.b16 %v830
        %v2687 = vunpack.c.l.b16 %v831
        %v2688 = vunpack.c.l.b16 %v832
        %v2689 = vunpack.c.l.b16 %v833
        %v2690 = vunpack.c.l.b16 %v834
        %v2691 = vunpack.c.l.b16 %v835
        %v2692 = vunpack.c.l.b16 %v836
        %v2693 = vunpack.c.l.b16 %v837
        %v2694 = vunpack.c.l.b16 %v838
        %v2695 = vunpack.c.l.b16 %v839
        %v2696 = vunpack.c.l.b16 %v840
        %v2697 = vunpack.c.l.b16 %v841
        %v2698 = vunpack.c.l.b16 %v842
        %v2699 = vunpack.c.l.b16 %v843
        %v2700 = vunpack.c.l.b16 %v844
        %v2701 = vunpack.c.l.b16 %v845
        %v2702 = vunpack.c.l.b16 %v846
        %v2703 = vunpack.c.l.b16 %v847
        %v2704 = vunpack.c.l.b16 %v848
        %v2705 = vunpack.c.l.b16 %v849
        %v2706 = vunpack.c.l.b16 %v850
        %v2707 = vunpack.c.l.b16 %v851
        %v2708 = vunpack.c.l.b16 %v852
        %v2709 = vunpack.c.l.b16 %v853
        %v2710 = vunpack.c.l.b16 %v854
        %v2711 = vunpack.c.l.b16 %v855
        %v2712 = vunpack.c.l.b16 %v856
        %v2713 = vunpack.c.l.b16 %v857
        %v2714 = vunpack.c.l.b16 %v858
        %v2715 = vunpack.c.l.b16 %v859
        %v2716 = vunpack.c.l.b16 %v860
        %v2717 = vunpack.c.l.b16 %v861
        %v2718 = vunpack.c.l.b16 %v862
        %v2719 = vunpack.c.l.b16 %v863
        %v2720 = vunpack.c.l.b16 %v864
        %v2721 = vunpack.c.l.b16 %v865
        %v2722 = vunpack.c.l.b16 %v866
        %v2723 = vunpack.c.l.b16 %v867
        %v2724 = vunpack.c.l.b16 %v868
        %v2725 = vunpack.c.l.b16 %v869
        %v2726 = vunpack.c.l.b16 %v870
        %v2727 = vunpack.c.l.b16 %v871
        %v2728 = vunpack.c.l.b16 %v872
        %v2729 = vunpack.c.l.b16 %v873
        %v2730 = vunpack.c.l.b16 %v874
        %v2731 = vunpack.c.l.b16 %v875
        %v2732 = vunpack.c.l.b16 %v876
        %v2733 = vunpack.c.l.b16 %v877
        %v2734 = vunpack.c.l.b16 %v878
        %v2735 = vunpack.c.l.b16 %v879
        %v2736 = vunpack.c.l.b16 %v880
        %v2737 = vunpack.c.l.b16 %v881
        %v2738 = vunpack.c.l.b16 %v882
        %v2739 = vunpack.c.l.b16 %v883
        %v2740 = vunpack.c.l.b16 %v884
        %v2741 = vunpack.c.l.b16 %v885
        %v2742 = vunpack.c.l.b16 %v886
        %v2743 = vunpack.c.l.b16 %v887
        %v2744 = vunpack.c.l.b16 %v888
        %v2745 = vunpack.c.l.b16 %v889
        %v2746 = vunpack.c.l.b16 %v890
        %v2747 = vunpack.c.l.b16 %v891
        %v2748 = vunpack.c.l.b16 %v892
        %v2749 = vunpack.c.l.b16 %v893
        %v2750 = vunpack.c.l.b16 %v894
        %v2751 = vunpack.c.l.b16 %v895
        %v2752 = vpack.c.b16 %v2625, %v2624
        %v2753 = vpack.c.b16 %v2627, %v2626
        %v2754 = vpack.c.b16 %v2629, %v2628
        %v2755 = vpack.c.b16 %v2631, %v2630
        %v2756 = vpack.c.b16 %v2633, %v2632
        %v2757 = vpack.c.b16 %v2635, %v2634
        %v2758 = vpack.c.b16 %v2637, %v2636
        %v2759 = vpack.c.b16 %v2639, %v2638
        %v2760 = vpack.c.b16 %v2641, %v2640
        %v2761 = vpack.c.b16 %v2643, %v2642
        %v2762 = vpack.c.b16 %v2645, %v2644
        %v2763 = vpack.c.b16 %v2647, %v2646
        %v2764 = vpack.c.b16 %v2649, %v2648
        %v2765 = vpack.c.b16 %v2651, %v2650
        %v2766 = vpack.c.b16 %v2653, %v2652
        %v2767 = vpack.c.b16 %v2655, %v2654
        %v2768 = vpack.c.b16 %v2657, %v2656
        %v2769 = vpack.c.b16 %v2659, %v2658
        %v2770 = vpack.c.b16 %v2661, %v2660
        %v2771 = vpack.c.b16 %v2663, %v2662
        %v2772 = vpack.c.b16 %v2665, %v2664
        %v2773 = vpack.c.b16 %v2667, %v2666
        %v2774 = vpack.c.b16 %v2669, %v2668
        %v2775 = vpack.c.b16 %v2671, %v2670
        %v2776 = vpack.c.b16 %v2673, %v2672
        %v2777 = vpack.c.b16 %v2675, %v2674
        %v2778 = vpack.c.b16 %v2677, %v2676
        %v2779 = vpack.c.b16 %v2679, %v2678
        %v2780 = vpack.c.b16 %v2681, %v2680
        %v2781 = vpack.c.b16 %v2683, %v2682
        %v2782 = vpack.c.b16 %v2685, %v2684
        %v2783 = vpack.c.b16 %v2687, %v2686
        %v2784 = vpack.c.b16 %v2689, %v2688
        %v2785 = vpack.c.b16 %v2691, %v2690
        %v2786 = vpack.c.b16 %v2693, %v2692
        %v2787 = vpack.c.b16 %v2695, %v2694
        %v2788 = vpack.c.b16 %v2697, %v2696
        %v2789 = vpack.c.b16 %v2699, %v2698
        %v2790 = vpack.c.b16 %v2701, %v2700
        %v2791 = vpack.c.b16 %v2703, %v2702
        %v2792 = vpack.c.b16 %v2705, %v2704
        %v2793 = vpack.c.b16 %v2707, %v2706
        %v2794 = vpack.c.b16 %v2709, %v2708
        %v2795 = vpack.c.b16 %v2711, %v2710
        %v2796 = vpack.c.b16 %v2713, %v2712
        %v2797 = vpack.c.b16 %v2715, %v2714
        %v2798 = vpack.c.b16 %v2717, %v2716
        %v2799 = vpack.c.b16 %v2719, %v2718
        %v2800 = vpack.c.b16 %v2721, %v2720
        %v2801 = vpack.c.b16 %v2723, %v2722
        %v2802 = vpack.c.b16 %v2725, %v2724
        %v2803 = vpack.c.b16 %v2727, %v2726
        %v2804 = vpack.c.b16 %v2729, %v2728
        %v2805 = vpack.c.b16 %v2731, %v2730
        %v2806 = vpack.c.b16 %v2733, %v2732
        %v2807 = vpack.c.b16 %v2735, %v2734
        %v2808 = vpack.c.b16 %v2737, %v2736
        %v2809 = vpack.c.b16 %v2739, %v2738
        %v2810 = vpack.c.b16 %v2741, %v2740
        %v2811 = vpack.c.b16 %v2743, %v2742
        %v2812 = vpack.c.b16 %v2745, %v2744
        %v2813 = vpack.c.b16 %v2747, %v2746
        %v2814 = vpack.c.b16 %v2749, %v2748
        %v2815 = vpack.c.b16 %v2751, %v2750
        %2880 = vmatprep.subr.bf16.mxu0 0
        %2881 = vmatpush1.bf16.msra.mxu0 %v2752
        %2882 = vmatprep.subr.bf16.mxu0 0
        %2883 = vmatpush1.bf16.msra.mxu0 %v2753
        %2884 = vmatprep.subr.bf16.mxu0 0
        %2885 = vmatpush1.bf16.msra.mxu0 %v2754
        %2886 = vmatprep.subr.bf16.mxu0 0
        %2887 = vmatpush1.bf16.msra.mxu0 %v2755
        %2888 = vmatprep.subr.bf16.mxu0 0
        %2889 = vmatpush1.bf16.msra.mxu0 %v2756
        %2890 = vmatprep.subr.bf16.mxu0 0
        %2891 = vmatpush1.bf16.msra.mxu0 %v2757
        %2892 = vmatprep.subr.bf16.mxu0 0
        %2893 = vmatpush1.bf16.msra.mxu0 %v2758
        %2894 = vmatprep.subr.bf16.mxu0 0
        %2895 = vmatpush1.bf16.msra.mxu0 %v2759
        %2896 = vmatprep.subr.bf16.mxu0 0
        %2897 = vmatpush1.bf16.msra.mxu0 %v2760
        %2898 = vmatprep.subr.bf16.mxu0 0
        %2899 = vmatpush1.bf16.msra.mxu0 %v2761
        %2900 = vmatprep.subr.bf16.mxu0 0
        %2901 = vmatpush1.bf16.msra.mxu0 %v2762
        %2902 = vmatprep.subr.bf16.mxu0 0
        %2903 = vmatpush1.bf16.msra.mxu0 %v2763
        %2904 = vmatprep.subr.bf16.mxu0 0
        %2905 = vmatpush1.bf16.msra.mxu0 %v2764
        %2906 = vmatprep.subr.bf16.mxu0 0
        %2907 = vmatpush1.bf16.msra.mxu0 %v2765
        %2908 = vmatprep.subr.bf16.mxu0 0
        %2909 = vmatpush1.bf16.msra.mxu0 %v2766
        %2910 = vmatprep.subr.bf16.mxu0 0
        %2911 = vmatpush1.bf16.msra.mxu0 %v2767
        %2912 = vmatprep.mubr.bf16.mxu0 %v1985
        %2913 = vmatmul.mubr.bf16.gmra.mrb[0].mxu0 %v1984
        %v2914 = vpop.f32.mrb[0].mxu0
        %v2915 = vadd.f32 0.0, %v2914
        %v2916 = vpop.f32.mrb[0].mxu0
        %v2917 = vpop.f32.mrb[0].mxu0
        %v2918 = vadd.f32 0.0, %v2917
        %v2919 = vpop.f32.mrb[0].mxu0
        %2920 = vmatprep.mubr.bf16.mxu0 %v1993
        %2921 = vmatmul.mubr.bf16.gmra.mrb[0].mxu0 %v1992
        %v2922 = vpop.f32.mrb[0].mxu0
        %v2923 = vadd.f32 0.0, %v2922
        %v2924 = vpop.f32.mrb[0].mxu0
        %v2925 = vpop.f32.mrb[0].mxu0
        %v2926 = vadd.f32 0.0, %v2925
        %v2927 = vpop.f32.mrb[0].mxu0
        %2928 = vmatprep.mubr.bf16.mxu0 %v2001
        %2929 = vmatmul.mubr.bf16.gmra.mrb[0].mxu0 %v2000
        %v2930 = vpop.f32.mrb[0].mxu0
        %v2931 = vadd.f32 0.0, %v2930
        %v2932 = vpop.f32.mrb[0].mxu0
        %v2933 = vpop.f32.mrb[0].mxu0
        %v2934 = vadd.f32 0.0, %v2933
        %v2935 = vpop.f32.mrb[0].mxu0
        %2936 = vmatprep.mubr.bf16.mxu0 %v2009
        %2937 = vmatmul.mubr.bf16.gmra.mrb[0].mxu0 %v2008
        %v2938 = vpop.f32.mrb[0].mxu0
        %v2939 = vadd.f32 0.0, %v2938
        %v2940 = vpop.f32.mrb[0].mxu0
        %v2941 = vpop.f32.mrb[0].mxu0
        %v2942 = vadd.f32 0.0, %v2941
        %v2943 = vpop.f32.mrb[0].mxu0
        %2944 = vmatprep.mubr.bf16.mxu0 %v2017
        %2945 = vmatmul.mubr.bf16.gmra.mrb[0].mxu0 %v2016
        %v2946 = vpop.f32.mrb[0].mxu0
        %v2947 = vadd.f32 0.0, %v2946
        %v2948 = vpop.f32.mrb[0].mxu0
        %v2949 = vpop.f32.mrb[0].mxu0
        %v2950 = vadd.f32 0.0, %v2949
        %v2951 = vpop.f32.mrb[0].mxu0
        %2952 = vmatprep.mubr.bf16.mxu0 %v2025
        %2953 = vmatmul.mubr.bf16.gmra.mrb[0].mxu0 %v2024
        %v2954 = vpop.f32.mrb[0].mxu0
        %v2955 = vadd.f32 0.0, %v2954
        %v2956 = vpop.f32.mrb[0].mxu0
        %v2957 = vpop.f32.mrb[0].mxu0
        %v2958 = vadd.f32 0.0, %v2957
        %v2959 = vpop.f32.mrb[0].mxu0
        %2960 = vmatprep.mubr.bf16.mxu0 %v2033
        %2961 = vmatmul.mubr.bf16.gmra.mrb[0].mxu0 %v2032
        %v2962 = vpop.f32.mrb[0].mxu0
        %v2963 = vadd.f32 0.0, %v2962
        %v2964 = vpop.f32.mrb[0].mxu0
        %v2965 = vpop.f32.mrb[0].mxu0
        %v2966 = vadd.f32 0.0, %v2965
        %v2967 = vpop.f32.mrb[0].mxu0
        %2968 = vmatprep.mubr.bf16.mxu0 %v2041
        %2969 = vmatmul.mubr.bf16.gmra.mrb[0].mxu0 %v2040
        %v2970 = vpop.f32.mrb[0].mxu0
        %v2971 = vadd.f32 0.0, %v2970
        %v2972 = vpop.f32.mrb[0].mxu0
        %v2973 = vpop.f32.mrb[0].mxu0
        %v2974 = vadd.f32 0.0, %v2973
        %v2975 = vpop.f32.mrb[0].mxu0
        %2976 = vmatprep.mubr.bf16.mxu0 %v2049
        %2977 = vmatmul.mubr.bf16.gmra.mrb[0].mxu0 %v2048
        %v2978 = vpop.f32.mrb[0].mxu0
        %v2979 = vadd.f32 0.0, %v2978
        %v2980 = vpop.f32.mrb[0].mxu0
        %v2981 = vpop.f32.mrb[0].mxu0
        %v2982 = vadd.f32 0.0, %v2981
        %v2983 = vpop.f32.mrb[0].mxu0
        %2984 = vmatprep.mubr.bf16.mxu0 %v2057
        %2985 = vmatmul.mubr.bf16.gmra.mrb[0].mxu0 %v2056
        %v2986 = vpop.f32.mrb[0].mxu0
        %v2987 = vadd.f32 0.0, %v2986
        %v2988 = vpop.f32.mrb[0].mxu0
        %v2989 = vpop.f32.mrb[0].mxu0
        %v2990 = vadd.f32 0.0, %v2989
        %v2991 = vpop.f32.mrb[0].mxu0
        %2992 = vmatprep.mubr.bf16.mxu0 %v2065
        %2993 = vmatmul.mubr.bf16.gmra.mrb[0].mxu0 %v2064
        %v2994 = vpop.f32.mrb[0].mxu0
        %v2995 = vadd.f32 0.0, %v2994
        %v2996 = vpop.f32.mrb[0].mxu0
        %v2997 = vpop.f32.mrb[0].mxu0
        %v2998 = vadd.f32 0.0, %v2997
        %v2999 = vpop.f32.mrb[0].mxu0
        %3000 = vmatprep.mubr.bf16.mxu0 %v2073
        %3001 = vmatmul.mubr.bf16.gmra.mrb[0].mxu0 %v2072
        %v3002 = vpop.f32.mrb[0].mxu0
        %v3003 = vadd.f32 0.0, %v3002
        %v3004 = vpop.f32.mrb[0].mxu0
        %v3005 = vpop.f32.mrb[0].mxu0
        %v3006 = vadd.f32 0.0, %v3005
        %v3007 = vpop.f32.mrb[0].mxu0
        %3008 = vmatprep.mubr.bf16.mxu0 %v2081
        %3009 = vmatmul.mubr.bf16.gmra.mrb[0].mxu0 %v2080
        %v3010 = vpop.f32.mrb[0].mxu0
        %v3011 = vadd.f32 0.0, %v3010
        %v3012 = vpop.f32.mrb[0].mxu0
        %v3013 = vpop.f32.mrb[0].mxu0
        %v3014 = vadd.f32 0.0, %v3013
        %v3015 = vpop.f32.mrb[0].mxu0
        %3016 = vmatprep.mubr.bf16.mxu0 %v2089
        %3017 = vmatmul.mubr.bf16.gmra.mrb[0].mxu0 %v2088
        %v3018 = vpop.f32.mrb[0].mxu0
        %v3019 = vadd.f32 0.0, %v3018
        %v3020 = vpop.f32.mrb[0].mxu0
        %v3021 = vpop.f32.mrb[0].mxu0
        %v3022 = vadd.f32 0.0, %v3021
        %v3023 = vpop.f32.mrb[0].mxu0
        %3024 = vmatprep.mubr.bf16.mxu0 %v2097
        %3025 = vmatmul.mubr.bf16.gmra.mrb[0].mxu0 %v2096
        %v3026 = vpop.f32.mrb[0].mxu0
        %v3027 = vadd.f32 0.0, %v3026
        %v3028 = vpop.f32.mrb[0].mxu0
        %v3029 = vpop.f32.mrb[0].mxu0
        %v3030 = vadd.f32 0.0, %v3029
        %v3031 = vpop.f32.mrb[0].mxu0
        %3032 = vmatprep.mubr.bf16.mxu0 %v2105
        %3033 = vmatmul.mubr.bf16.gmra.mrb[0].mxu0 %v2104
        %v3034 = vpop.f32.mrb[0].mxu0
        %v3035 = vadd.f32 0.0, %v3034
        %v3036 = vpop.f32.mrb[0].mxu0
        %v3037 = vpop.f32.mrb[0].mxu0
        %v3038 = vadd.f32 0.0, %v3037
        %v3039 = vpop.f32.mrb[0].mxu0
        %3040 = vmatprep.mubr.bf16.mxu0 %v2113
        %3041 = vmatmul.mubr.bf16.gmra.mrb[0].mxu0 %v2112
        %v3042 = vpop.f32.mrb[0].mxu0
        %v3043 = vadd.f32 0.0, %v3042
        %v3044 = vpop.f32.mrb[0].mxu0
        %v3045 = vpop.f32.mrb[0].mxu0
        %v3046 = vadd.f32 0.0, %v3045
        %v3047 = vpop.f32.mrb[0].mxu0
        %3048 = vmatprep.mubr.bf16.mxu0 %v2121
        %3049 = vmatmul.mubr.bf16.gmra.mrb[0].mxu0 %v2120
        %v3050 = vpop.f32.mrb[0].mxu0
        %v3051 = vadd.f32 0.0, %v3050
        %v3052 = vpop.f32.mrb[0].mxu0
        %v3053 = vpop.f32.mrb[0].mxu0
        %v3054 = vadd.f32 0.0, %v3053
        %v3055 = vpop.f32.mrb[0].mxu0
        %3056 = vmatprep.mubr.bf16.mxu0 %v2129
        %3057 = vmatmul.mubr.bf16.gmra.mrb[0].mxu0 %v2128
        %v3058 = vpop.f32.mrb[0].mxu0
        %v3059 = vadd.f32 0.0, %v3058
        %v3060 = vpop.f32.mrb[0].mxu0
        %v3061 = vpop.f32.mrb[0].mxu0
        %v3062 = vadd.f32 0.0, %v3061
        %v3063 = vpop.f32.mrb[0].mxu0
        %3064 = vmatprep.mubr.bf16.mxu0 %v2137
        %3065 = vmatmul.mubr.bf16.gmra.mrb[0].mxu0 %v2136
        %v3066 = vpop.f32.mrb[0].mxu0
        %v3067 = vadd.f32 0.0, %v3066
        %v3068 = vpop.f32.mrb[0].mxu0
        %v3069 = vpop.f32.mrb[0].mxu0
        %v3070 = vadd.f32 0.0, %v3069
        %v3071 = vpop.f32.mrb[0].mxu0
        %3072 = vmatprep.mubr.bf16.mxu0 %v2145
        %3073 = vmatmul.mubr.bf16.gmra.mrb[0].mxu0 %v2144
        %v3074 = vpop.f32.mrb[0].mxu0
        %v3075 = vadd.f32 0.0, %v3074
        %v3076 = vpop.f32.mrb[0].mxu0
        %v3077 = vpop.f32.mrb[0].mxu0
        %v3078 = vadd.f32 0.0, %v3077
        %v3079 = vpop.f32.mrb[0].mxu0
        %3080 = vmatprep.mubr.bf16.mxu0 %v2153
        %3081 = vmatmul.mubr.bf16.gmra.mrb[0].mxu0 %v2152
        %v3082 = vpop.f32.mrb[0].mxu0
        %v3083 = vadd.f32 0.0, %v3082
        %v3084 = vpop.f32.mrb[0].mxu0
        %v3085 = vpop.f32.mrb[0].mxu0
        %v3086 = vadd.f32 0.0, %v3085
        %v3087 = vpop.f32.mrb[0].mxu0
        %3088 = vmatprep.mubr.bf16.mxu0 %v2161
        %3089 = vmatmul.mubr.bf16.gmra.mrb[0].mxu0 %v2160
        %v3090 = vpop.f32.mrb[0].mxu0
        %v3091 = vadd.f32 0.0, %v3090
        %v3092 = vpop.f32.mrb[0].mxu0
        %v3093 = vpop.f32.mrb[0].mxu0
        %v3094 = vadd.f32 0.0, %v3093
        %v3095 = vpop.f32.mrb[0].mxu0
        %3096 = vmatprep.mubr.bf16.mxu0 %v2169
        %3097 = vmatmul.mubr.bf16.gmra.mrb[0].mxu0 %v2168
        %v3098 = vpop.f32.mrb[0].mxu0
        %v3099 = vadd.f32 0.0, %v3098
        %v3100 = vpop.f32.mrb[0].mxu0
        %v3101 = vpop.f32.mrb[0].mxu0
        %v3102 = vadd.f32 0.0, %v3101
        %v3103 = vpop.f32.mrb[0].mxu0
        %3104 = vmatprep.mubr.bf16.mxu0 %v2177
        %3105 = vmatmul.mubr.bf16.gmra.mrb[0].mxu0 %v2176
        %v3106 = vpop.f32.mrb[0].mxu0
        %v3107 = vadd.f32 0.0, %v3106
        %v3108 = vpop.f32.mrb[0].mxu0
        %v3109 = vpop.f32.mrb[0].mxu0
        %v3110 = vadd.f32 0.0, %v3109
        %v3111 = vpop.f32.mrb[0].mxu0
        %3112 = vmatprep.mubr.bf16.mxu0 %v2185
        %3113 = vmatmul.mubr.bf16.gmra.mrb[0].mxu0 %v2184
        %v3114 = vpop.f32.mrb[0].mxu0
        %v3115 = vadd.f32 0.0, %v3114
        %v3116 = vpop.f32.mrb[0].mxu0
        %v3117 = vpop.f32.mrb[0].mxu0
        %v3118 = vadd.f32 0.0, %v3117
        %v3119 = vpop.f32.mrb[0].mxu0
        %3120 = vmatprep.mubr.bf16.mxu0 %v2193
        %3121 = vmatmul.mubr.bf16.gmra.mrb[0].mxu0 %v2192
        %v3122 = vpop.f32.mrb[0].mxu0
        %v3123 = vadd.f32 0.0, %v3122
        %v3124 = vpop.f32.mrb[0].mxu0
        %v3125 = vpop.f32.mrb[0].mxu0
        %v3126 = vadd.f32 0.0, %v3125
        %v3127 = vpop.f32.mrb[0].mxu0
        %3128 = vmatprep.mubr.bf16.mxu0 %v2201
        %3129 = vmatmul.mubr.bf16.gmra.mrb[0].mxu0 %v2200
        %v3130 = vpop.f32.mrb[0].mxu0
        %v3131 = vadd.f32 0.0, %v3130
        %v3132 = vpop.f32.mrb[0].mxu0
        %v3133 = vpop.f32.mrb[0].mxu0
        %v3134 = vadd.f32 0.0, %v3133
        %v3135 = vpop.f32.mrb[0].mxu0
        %3136 = vmatprep.mubr.bf16.mxu0 %v2209
        %3137 = vmatmul.mubr.bf16.gmra.mrb[0].mxu0 %v2208
        %v3138 = vpop.f32.mrb[0].mxu0
        %v3139 = vadd.f32 0.0, %v3138
        %v3140 = vpop.f32.mrb[0].mxu0
        %v3141 = vpop.f32.mrb[0].mxu0
        %v3142 = vadd.f32 0.0, %v3141
        %v3143 = vpop.f32.mrb[0].mxu0
        %3144 = vmatprep.mubr.bf16.mxu0 %v2217
        %3145 = vmatmul.mubr.bf16.gmra.mrb[0].mxu0 %v2216
        %v3146 = vpop.f32.mrb[0].mxu0
        %v3147 = vadd.f32 0.0, %v3146
        %v3148 = vpop.f32.mrb[0].mxu0
        %v3149 = vpop.f32.mrb[0].mxu0
        %v3150 = vadd.f32 0.0, %v3149
        %v3151 = vpop.f32.mrb[0].mxu0
        %3152 = vmatprep.mubr.bf16.mxu0 %v2225
        %3153 = vmatmul.mubr.bf16.gmra.mrb[0].mxu0 %v2224
        %v3154 = vpop.f32.mrb[0].mxu0
        %v3155 = vadd.f32 0.0, %v3154
        %v3156 = vpop.f32.mrb[0].mxu0
        %v3157 = vpop.f32.mrb[0].mxu0
        %v3158 = vadd.f32 0.0, %v3157
        %v3159 = vpop.f32.mrb[0].mxu0
        %3160 = vmatprep.mubr.bf16.mxu0 %v2233
        %3161 = vmatmul.mubr.bf16.gmra.mrb[0].mxu0 %v2232
        %v3162 = vpop.f32.mrb[0].mxu0
        %v3163 = vadd.f32 0.0, %v3162
        %v3164 = vpop.f32.mrb[0].mxu0
        %v3165 = vpop.f32.mrb[0].mxu0
        %v3166 = vadd.f32 0.0, %v3165
        %v3167 = vpop.f32.mrb[0].mxu0
        %3168 = vdwg.mxu0
        %3169 = vmatprep.subr.bf16.mxu0 0
        %3170 = vmatpush1.bf16.msra.mxu0 %v2768
        %3171 = vmatprep.subr.bf16.mxu0 0
        %3172 = vmatpush1.bf16.msra.mxu0 %v2769
        %3173 = vmatprep.subr.bf16.mxu0 0
        %3174 = vmatpush1.bf16.msra.mxu0 %v2770
        %3175 = vmatprep.subr.bf16.mxu0 0
        %3176 = vmatpush1.bf16.msra.mxu0 %v2771
        %3177 = vmatprep.subr.bf16.mxu0 0
        %3178 = vmatpush1.bf16.msra.mxu0 %v2772
        %3179 = vmatprep.subr.bf16.mxu0 0
        %3180 = vmatpush1.bf16.msra.mxu0 %v2773
        %3181 = vmatprep.subr.bf16.mxu0 0
        %3182 = vmatpush1.bf16.msra.mxu0 %v2774
        %3183 = vmatprep.subr.bf16.mxu0 0
        %3184 = vmatpush1.bf16.msra.mxu0 %v2775
        %3185 = vmatprep.subr.bf16.mxu0 0
        %3186 = vmatpush1.bf16.msra.mxu0 %v2776
        %3187 = vmatprep.subr.bf16.mxu0 0
        %3188 = vmatpush1.bf16.msra.mxu0 %v2777
        %3189 = vmatprep.subr.bf16.mxu0 0
        %3190 = vmatpush1.bf16.msra.mxu0 %v2778
        %3191 = vmatprep.subr.bf16.mxu0 0
        %3192 = vmatpush1.bf16.msra.mxu0 %v2779
        %3193 = vmatprep.subr.bf16.mxu0 0
        %3194 = vmatpush1.bf16.msra.mxu0 %v2780
        %3195 = vmatprep.subr.bf16.mxu0 0
        %3196 = vmatpush1.bf16.msra.mxu0 %v2781
        %3197 = vmatprep.subr.bf16.mxu0 0
        %3198 = vmatpush1.bf16.msra.mxu0 %v2782
        %3199 = vmatprep.subr.bf16.mxu0 0
        %3200 = vmatpush1.bf16.msra.mxu0 %v2783
        %3201 = vmatprep.mubr.bf16.mxu0 %v1987
        %3202 = vmatmul.mubr.bf16.gmra.mrb[0].mxu0 %v1986
        %v3203 = vpop.f32.mrb[0].mxu0
        %v3204 = vadd.f32 %v2915, %v3203
        %v3205 = vpop.f32.mrb[0].mxu0
        %v3206 = vpop.f32.mrb[0].mxu0
        %v3207 = vadd.f32 %v2918, %v3206
        %v3208 = vpop.f32.mrb[0].mxu0
        %3209 = vmatprep.mubr.bf16.mxu0 %v1995
        %3210 = vmatmul.mubr.bf16.gmra.mrb[0].mxu0 %v1994
        %v3211 = vpop.f32.mrb[0].mxu0
        %v3212 = vadd.f32 %v2923, %v3211
        %v3213 = vpop.f32.mrb[0].mxu0
        %v3214 = vpop.f32.mrb[0].mxu0
        %v3215 = vadd.f32 %v2926, %v3214
        %v3216 = vpop.f32.mrb[0].mxu0
        %3217 = vmatprep.mubr.bf16.mxu0 %v2003
        %3218 = vmatmul.mubr.bf16.gmra.mrb[0].mxu0 %v2002
        %v3219 = vpop.f32.mrb[0].mxu0
        %v3220 = vadd.f32 %v2931, %v3219
        %v3221 = vpop.f32.mrb[0].mxu0
        %v3222 = vpop.f32.mrb[0].mxu0
        %v3223 = vadd.f32 %v2934, %v3222
        %v3224 = vpop.f32.mrb[0].mxu0
        %3225 = vmatprep.mubr.bf16.mxu0 %v2011
        %3226 = vmatmul.mubr.bf16.gmra.mrb[0].mxu0 %v2010
        %v3227 = vpop.f32.mrb[0].mxu0
        %v3228 = vadd.f32 %v2939, %v3227
        %v3229 = vpop.f32.mrb[0].mxu0
        %v3230 = vpop.f32.mrb[0].mxu0
        %v3231 = vadd.f32 %v2942, %v3230
        %v3232 = vpop.f32.mrb[0].mxu0
        %3233 = vmatprep.mubr.bf16.mxu0 %v2019
        %3234 = vmatmul.mubr.bf16.gmra.mrb[0].mxu0 %v2018
        %v3235 = vpop.f32.mrb[0].mxu0
        %v3236 = vadd.f32 %v2947, %v3235
        %v3237 = vpop.f32.mrb[0].mxu0
        %v3238 = vpop.f32.mrb[0].mxu0
        %v3239 = vadd.f32 %v2950, %v3238
        %v3240 = vpop.f32.mrb[0].mxu0
        %3241 = vmatprep.mubr.bf16.mxu0 %v2027
        %3242 = vmatmul.mubr.bf16.gmra.mrb[0].mxu0 %v2026
        %v3243 = vpop.f32.mrb[0].mxu0
        %v3244 = vadd.f32 %v2955, %v3243
        %v3245 = vpop.f32.mrb[0].mxu0
        %v3246 = vpop.f32.mrb[0].mxu0
        %v3247 = vadd.f32 %v2958, %v3246
        %v3248 = vpop.f32.mrb[0].mxu0
        %3249 = vmatprep.mubr.bf16.mxu0 %v2035
        %3250 = vmatmul.mubr.bf16.gmra.mrb[0].mxu0 %v2034
        %v3251 = vpop.f32.mrb[0].mxu0
        %v3252 = vadd.f32 %v2963, %v3251
        %v3253 = vpop.f32.mrb[0].mxu0
        %v3254 = vpop.f32.mrb[0].mxu0
        %v3255 = vadd.f32 %v2966, %v3254
        %v3256 = vpop.f32.mrb[0].mxu0
        %3257 = vmatprep.mubr.bf16.mxu0 %v2043
        %3258 = vmatmul.mubr.bf16.gmra.mrb[0].mxu0 %v2042
        %v3259 = vpop.f32.mrb[0].mxu0
        %v3260 = vadd.f32 %v2971, %v3259
        %v3261 = vpop.f32.mrb[0].mxu0
        %v3262 = vpop.f32.mrb[0].mxu0
        %v3263 = vadd.f32 %v2974, %v3262
        %v3264 = vpop.f32.mrb[0].mxu0
        %3265 = vmatprep.mubr.bf16.mxu0 %v2051
        %3266 = vmatmul.mubr.bf16.gmra.mrb[0].mxu0 %v2050
        %v3267 = vpop.f32.mrb[0].mxu0
        %v3268 = vadd.f32 %v2979, %v3267
        %v3269 = vpop.f32.mrb[0].mxu0
        %v3270 = vpop.f32.mrb[0].mxu0
        %v3271 = vadd.f32 %v2982, %v3270
        %v3272 = vpop.f32.mrb[0].mxu0
        %3273 = vmatprep.mubr.bf16.mxu0 %v2059
        %3274 = vmatmul.mubr.bf16.gmra.mrb[0].mxu0 %v2058
        %v3275 = vpop.f32.mrb[0].mxu0
        %v3276 = vadd.f32 %v2987, %v3275
        %v3277 = vpop.f32.mrb[0].mxu0
        %v3278 = vpop.f32.mrb[0].mxu0
        %v3279 = vadd.f32 %v2990, %v3278
        %v3280 = vpop.f32.mrb[0].mxu0
        %3281 = vmatprep.mubr.bf16.mxu0 %v2067
        %3282 = vmatmul.mubr.bf16.gmra.mrb[0].mxu0 %v2066
        %v3283 = vpop.f32.mrb[0].mxu0
        %v3284 = vadd.f32 %v2995, %v3283
        %v3285 = vpop.f32.mrb[0].mxu0
        %v3286 = vpop.f32.mrb[0].mxu0
        %v3287 = vadd.f32 %v2998, %v3286
        %v3288 = vpop.f32.mrb[0].mxu0
        %3289 = vmatprep.mubr.bf16.mxu0 %v2075
        %3290 = vmatmul.mubr.bf16.gmra.mrb[0].mxu0 %v2074
        %v3291 = vpop.f32.mrb[0].mxu0
        %v3292 = vadd.f32 %v3003, %v3291
        %v3293 = vpop.f32.mrb[0].mxu0
        %v3294 = vpop.f32.mrb[0].mxu0
        %v3295 = vadd.f32 %v3006, %v3294
        %v3296 = vpop.f32.mrb[0].mxu0
        %3297 = vmatprep.mubr.bf16.mxu0 %v2083
        %3298 = vmatmul.mubr.bf16.gmra.mrb[0].mxu0 %v2082
        %v3299 = vpop.f32.mrb[0].mxu0
        %v3300 = vadd.f32 %v3011, %v3299
        %v3301 = vpop.f32.mrb[0].mxu0
        %v3302 = vpop.f32.mrb[0].mxu0
        %v3303 = vadd.f32 %v3014, %v3302
        %v3304 = vpop.f32.mrb[0].mxu0
        %3305 = vmatprep.mubr.bf16.mxu0 %v2091
        %3306 = vmatmul.mubr.bf16.gmra.mrb[0].mxu0 %v2090
        %v3307 = vpop.f32.mrb[0].mxu0
        %v3308 = vadd.f32 %v3019, %v3307
        %v3309 = vpop.f32.mrb[0].mxu0
        %v3310 = vpop.f32.mrb[0].mxu0
        %v3311 = vadd.f32 %v3022, %v3310
        %v3312 = vpop.f32.mrb[0].mxu0
        %3313 = vmatprep.mubr.bf16.mxu0 %v2099
        %3314 = vmatmul.mubr.bf16.gmra.mrb[0].mxu0 %v2098
        %v3315 = vpop.f32.mrb[0].mxu0
        %v3316 = vadd.f32 %v3027, %v3315
        %v3317 = vpop.f32.mrb[0].mxu0
        %v3318 = vpop.f32.mrb[0].mxu0
        %v3319 = vadd.f32 %v3030, %v3318
        %v3320 = vpop.f32.mrb[0].mxu0
        %3321 = vmatprep.mubr.bf16.mxu0 %v2107
        %3322 = vmatmul.mubr.bf16.gmra.mrb[0].mxu0 %v2106
        %v3323 = vpop.f32.mrb[0].mxu0
        %v3324 = vadd.f32 %v3035, %v3323
        %v3325 = vpop.f32.mrb[0].mxu0
        %v3326 = vpop.f32.mrb[0].mxu0
        %v3327 = vadd.f32 %v3038, %v3326
        %v3328 = vpop.f32.mrb[0].mxu0
        %3329 = vmatprep.mubr.bf16.mxu0 %v2115
        %3330 = vmatmul.mubr.bf16.gmra.mrb[0].mxu0 %v2114
        %v3331 = vpop.f32.mrb[0].mxu0
        %v3332 = vadd.f32 %v3043, %v3331
        %v3333 = vpop.f32.mrb[0].mxu0
        %v3334 = vpop.f32.mrb[0].mxu0
        %v3335 = vadd.f32 %v3046, %v3334
        %v3336 = vpop.f32.mrb[0].mxu0
        %3337 = vmatprep.mubr.bf16.mxu0 %v2123
        %3338 = vmatmul.mubr.bf16.gmra.mrb[0].mxu0 %v2122
        %v3339 = vpop.f32.mrb[0].mxu0
        %v3340 = vadd.f32 %v3051, %v3339
        %v3341 = vpop.f32.mrb[0].mxu0
        %v3342 = vpop.f32.mrb[0].mxu0
        %v3343 = vadd.f32 %v3054, %v3342
        %v3344 = vpop.f32.mrb[0].mxu0
        %3345 = vmatprep.mubr.bf16.mxu0 %v2131
        %3346 = vmatmul.mubr.bf16.gmra.mrb[0].mxu0 %v2130
        %v3347 = vpop.f32.mrb[0].mxu0
        %v3348 = vadd.f32 %v3059, %v3347
        %v3349 = vpop.f32.mrb[0].mxu0
        %v3350 = vpop.f32.mrb[0].mxu0
        %v3351 = vadd.f32 %v3062, %v3350
        %v3352 = vpop.f32.mrb[0].mxu0
        %3353 = vmatprep.mubr.bf16.mxu0 %v2139
        %3354 = vmatmul.mubr.bf16.gmra.mrb[0].mxu0 %v2138
        %v3355 = vpop.f32.mrb[0].mxu0
        %v3356 = vadd.f32 %v3067, %v3355
        %v3357 = vpop.f32.mrb[0].mxu0
        %v3358 = vpop.f32.mrb[0].mxu0
        %v3359 = vadd.f32 %v3070, %v3358
        %v3360 = vpop.f32.mrb[0].mxu0
        %3361 = vmatprep.mubr.bf16.mxu0 %v2147
        %3362 = vmatmul.mubr.bf16.gmra.mrb[0].mxu0 %v2146
        %v3363 = vpop.f32.mrb[0].mxu0
        %v3364 = vadd.f32 %v3075, %v3363
        %v3365 = vpop.f32.mrb[0].mxu0
        %v3366 = vpop.f32.mrb[0].mxu0
        %v3367 = vadd.f32 %v3078, %v3366
        %v3368 = vpop.f32.mrb[0].mxu0
        %3369 = vmatprep.mubr.bf16.mxu0 %v2155
        %3370 = vmatmul.mubr.bf16.gmra.mrb[0].mxu0 %v2154
        %v3371 = vpop.f32.mrb[0].mxu0
        %v3372 = vadd.f32 %v3083, %v3371
        %v3373 = vpop.f32.mrb[0].mxu0
        %v3374 = vpop.f32.mrb[0].mxu0
        %v3375 = vadd.f32 %v3086, %v3374
        %v3376 = vpop.f32.mrb[0].mxu0
        %3377 = vmatprep.mubr.bf16.mxu0 %v2163
        %3378 = vmatmul.mubr.bf16.gmra.mrb[0].mxu0 %v2162
        %v3379 = vpop.f32.mrb[0].mxu0
        %v3380 = vadd.f32 %v3091, %v3379
        %v3381 = vpop.f32.mrb[0].mxu0
        %v3382 = vpop.f32.mrb[0].mxu0
        %v3383 = vadd.f32 %v3094, %v3382
        %v3384 = vpop.f32.mrb[0].mxu0
        %3385 = vmatprep.mubr.bf16.mxu0 %v2171
        %3386 = vmatmul.mubr.bf16.gmra.mrb[0].mxu0 %v2170
        %v3387 = vpop.f32.mrb[0].mxu0
        %v3388 = vadd.f32 %v3099, %v3387
        %v3389 = vpop.f32.mrb[0].mxu0
        %v3390 = vpop.f32.mrb[0].mxu0
        %v3391 = vadd.f32 %v3102, %v3390
        %v3392 = vpop.f32.mrb[0].mxu0
        %3393 = vmatprep.mubr.bf16.mxu0 %v2179
        %3394 = vmatmul.mubr.bf16.gmra.mrb[0].mxu0 %v2178
        %v3395 = vpop.f32.mrb[0].mxu0
        %v3396 = vadd.f32 %v3107, %v3395
        %v3397 = vpop.f32.mrb[0].mxu0
        %v3398 = vpop.f32.mrb[0].mxu0
        %v3399 = vadd.f32 %v3110, %v3398
        %v3400 = vpop.f32.mrb[0].mxu0
        %3401 = vmatprep.mubr.bf16.mxu0 %v2187
        %3402 = vmatmul.mubr.bf16.gmra.mrb[0].mxu0 %v2186
        %v3403 = vpop.f32.mrb[0].mxu0
        %v3404 = vadd.f32 %v3115, %v3403
        %v3405 = vpop.f32.mrb[0].mxu0
        %v3406 = vpop.f32.mrb[0].mxu0
        %v3407 = vadd.f32 %v3118, %v3406
        %v3408 = vpop.f32.mrb[0].mxu0
        %3409 = vmatprep.mubr.bf16.mxu0 %v2195
        %3410 = vmatmul.mubr.bf16.gmra.mrb[0].mxu0 %v2194
        %v3411 = vpop.f32.mrb[0].mxu0
        %v3412 = vadd.f32 %v3123, %v3411
        %v3413 = vpop.f32.mrb[0].mxu0
        %v3414 = vpop.f32.mrb[0].mxu0
        %v3415 = vadd.f32 %v3126, %v3414
        %v3416 = vpop.f32.mrb[0].mxu0
        %3417 = vmatprep.mubr.bf16.mxu0 %v2203
        %3418 = vmatmul.mubr.bf16.gmra.mrb[0].mxu0 %v2202
        %v3419 = vpop.f32.mrb[0].mxu0
        %v3420 = vadd.f32 %v3131, %v3419
        %v3421 = vpop.f32.mrb[0].mxu0
        %v3422 = vpop.f32.mrb[0].mxu0
        %v3423 = vadd.f32 %v3134, %v3422
        %v3424 = vpop.f32.mrb[0].mxu0
        %3425 = vmatprep.mubr.bf16.mxu0 %v2211
        %3426 = vmatmul.mubr.bf16.gmra.mrb[0].mxu0 %v2210
        %v3427 = vpop.f32.mrb[0].mxu0
        %v3428 = vadd.f32 %v3139, %v3427
        %v3429 = vpop.f32.mrb[0].mxu0
        %v3430 = vpop.f32.mrb[0].mxu0
        %v3431 = vadd.f32 %v3142, %v3430
        %v3432 = vpop.f32.mrb[0].mxu0
        %3433 = vmatprep.mubr.bf16.mxu0 %v2219
        %3434 = vmatmul.mubr.bf16.gmra.mrb[0].mxu0 %v2218
        %v3435 = vpop.f32.mrb[0].mxu0
        %v3436 = vadd.f32 %v3147, %v3435
        %v3437 = vpop.f32.mrb[0].mxu0
        %v3438 = vpop.f32.mrb[0].mxu0
        %v3439 = vadd.f32 %v3150, %v3438
        %v3440 = vpop.f32.mrb[0].mxu0
        %3441 = vmatprep.mubr.bf16.mxu0 %v2227
        %3442 = vmatmul.mubr.bf16.gmra.mrb[0].mxu0 %v2226
        %v3443 = vpop.f32.mrb[0].mxu0
        %v3444 = vadd.f32 %v3155, %v3443
        %v3445 = vpop.f32.mrb[0].mxu0
        %v3446 = vpop.f32.mrb[0].mxu0
        %v3447 = vadd.f32 %v3158, %v3446
        %v3448 = vpop.f32.mrb[0].mxu0
        %3449 = vmatprep.mubr.bf16.mxu0 %v2235
        %3450 = vmatmul.mubr.bf16.gmra.mrb[0].mxu0 %v2234
        %v3451 = vpop.f32.mrb[0].mxu0
        %v3452 = vadd.f32 %v3163, %v3451
        %v3453 = vpop.f32.mrb[0].mxu0
        %v3454 = vpop.f32.mrb[0].mxu0
        %v3455 = vadd.f32 %v3166, %v3454
        %v3456 = vpop.f32.mrb[0].mxu0
        %3457 = vdwg.mxu0
        %3458 = vmatprep.subr.bf16.mxu0 0
        %3459 = vmatpush1.bf16.msra.mxu0 %v2784
        %3460 = vmatprep.subr.bf16.mxu0 0
        %3461 = vmatpush1.bf16.msra.mxu0 %v2785
        %3462 = vmatprep.subr.bf16.mxu0 0
        %3463 = vmatpush1.bf16.msra.mxu0 %v2786
        %3464 = vmatprep.subr.bf16.mxu0 0
        %3465 = vmatpush1.bf16.msra.mxu0 %v2787
        %3466 = vmatprep.subr.bf16.mxu0 0
        %3467 = vmatpush1.bf16.msra.mxu0 %v2788
        %3468 = vmatprep.subr.bf16.mxu0 0
        %3469 = vmatpush1.bf16.msra.mxu0 %v2789
        %3470 = vmatprep.subr.bf16.mxu0 0
        %3471 = vmatpush1.bf16.msra.mxu0 %v2790
        %3472 = vmatprep.subr.bf16.mxu0 0
        %3473 = vmatpush1.bf16.msra.mxu0 %v2791
        %3474 = vmatprep.subr.bf16.mxu0 0
        %3475 = vmatpush1.bf16.msra.mxu0 %v2792
        %3476 = vmatprep.subr.bf16.mxu0 0
        %3477 = vmatpush1.bf16.msra.mxu0 %v2793
        %3478 = vmatprep.subr.bf16.mxu0 0
        %3479 = vmatpush1.bf16.msra.mxu0 %v2794
        %3480 = vmatprep.subr.bf16.mxu0 0
        %3481 = vmatpush1.bf16.msra.mxu0 %v2795
        %3482 = vmatprep.subr.bf16.mxu0 0
        %3483 = vmatpush1.bf16.msra.mxu0 %v2796
        %3484 = vmatprep.subr.bf16.mxu0 0
        %3485 = vmatpush1.bf16.msra.mxu0 %v2797
        %3486 = vmatprep.subr.bf16.mxu0 0
        %3487 = vmatpush1.bf16.msra.mxu0 %v2798
        %3488 = vmatprep.subr.bf16.mxu0 0
        %3489 = vmatpush1.bf16.msra.mxu0 %v2799
        %3490 = vmatprep.mubr.bf16.mxu0 %v1989
        %3491 = vmatmul.mubr.bf16.gmra.mrb[0].mxu0 %v1988
        %v3492 = vpop.f32.mrb[0].mxu0
        %v3493 = vadd.f32 %v3204, %v3492
        %v3494 = vpop.f32.mrb[0].mxu0
        %v3495 = vpop.f32.mrb[0].mxu0
        %v3496 = vadd.f32 %v3207, %v3495
        %v3497 = vpop.f32.mrb[0].mxu0
        %3498 = vmatprep.mubr.bf16.mxu0 %v1997
        %3499 = vmatmul.mubr.bf16.gmra.mrb[0].mxu0 %v1996
        %v3500 = vpop.f32.mrb[0].mxu0
        %v3501 = vadd.f32 %v3212, %v3500
        %v3502 = vpop.f32.mrb[0].mxu0
        %v3503 = vpop.f32.mrb[0].mxu0
        %v3504 = vadd.f32 %v3215, %v3503
        %v3505 = vpop.f32.mrb[0].mxu0
        %3506 = vmatprep.mubr.bf16.mxu0 %v2005
        %3507 = vmatmul.mubr.bf16.gmra.mrb[0].mxu0 %v2004
        %v3508 = vpop.f32.mrb[0].mxu0
        %v3509 = vadd.f32 %v3220, %v3508
        %v3510 = vpop.f32.mrb[0].mxu0
        %v3511 = vpop.f32.mrb[0].mxu0
        %v3512 = vadd.f32 %v3223, %v3511
        %v3513 = vpop.f32.mrb[0].mxu0
        %3514 = vmatprep.mubr.bf16.mxu0 %v2013
        %3515 = vmatmul.mubr.bf16.gmra.mrb[0].mxu0 %v2012
        %v3516 = vpop.f32.mrb[0].mxu0
        %v3517 = vadd.f32 %v3228, %v3516
        %v3518 = vpop.f32.mrb[0].mxu0
        %v3519 = vpop.f32.mrb[0].mxu0
        %v3520 = vadd.f32 %v3231, %v3519
        %v3521 = vpop.f32.mrb[0].mxu0
        %3522 = vmatprep.mubr.bf16.mxu0 %v2021
        %3523 = vmatmul.mubr.bf16.gmra.mrb[0].mxu0 %v2020
        %v3524 = vpop.f32.mrb[0].mxu0
        %v3525 = vadd.f32 %v3236, %v3524
        %v3526 = vpop.f32.mrb[0].mxu0
        %v3527 = vpop.f32.mrb[0].mxu0
        %v3528 = vadd.f32 %v3239, %v3527
        %v3529 = vpop.f32.mrb[0].mxu0
        %3530 = vmatprep.mubr.bf16.mxu0 %v2029
        %3531 = vmatmul.mubr.bf16.gmra.mrb[0].mxu0 %v2028
        %v3532 = vpop.f32.mrb[0].mxu0
        %v3533 = vadd.f32 %v3244, %v3532
        %v3534 = vpop.f32.mrb[0].mxu0
        %v3535 = vpop.f32.mrb[0].mxu0
        %v3536 = vadd.f32 %v3247, %v3535
        %v3537 = vpop.f32.mrb[0].mxu0
        %3538 = vmatprep.mubr.bf16.mxu0 %v2037
        %3539 = vmatmul.mubr.bf16.gmra.mrb[0].mxu0 %v2036
        %v3540 = vpop.f32.mrb[0].mxu0
        %v3541 = vadd.f32 %v3252, %v3540
        %v3542 = vpop.f32.mrb[0].mxu0
        %v3543 = vpop.f32.mrb[0].mxu0
        %v3544 = vadd.f32 %v3255, %v3543
        %v3545 = vpop.f32.mrb[0].mxu0
        %3546 = vmatprep.mubr.bf16.mxu0 %v2045
        %3547 = vmatmul.mubr.bf16.gmra.mrb[0].mxu0 %v2044
        %v3548 = vpop.f32.mrb[0].mxu0
        %v3549 = vadd.f32 %v3260, %v3548
        %v3550 = vpop.f32.mrb[0].mxu0
        %v3551 = vpop.f32.mrb[0].mxu0
        %v3552 = vadd.f32 %v3263, %v3551
        %v3553 = vpop.f32.mrb[0].mxu0
        %3554 = vmatprep.mubr.bf16.mxu0 %v2053
        %3555 = vmatmul.mubr.bf16.gmra.mrb[0].mxu0 %v2052
        %v3556 = vpop.f32.mrb[0].mxu0
        %v3557 = vadd.f32 %v3268, %v3556
        %v3558 = vpop.f32.mrb[0].mxu0
        %v3559 = vpop.f32.mrb[0].mxu0
        %v3560 = vadd.f32 %v3271, %v3559
        %v3561 = vpop.f32.mrb[0].mxu0
        %3562 = vmatprep.mubr.bf16.mxu0 %v2061
        %3563 = vmatmul.mubr.bf16.gmra.mrb[0].mxu0 %v2060
        %v3564 = vpop.f32.mrb[0].mxu0
        %v3565 = vadd.f32 %v3276, %v3564
        %v3566 = vpop.f32.mrb[0].mxu0
        %v3567 = vpop.f32.mrb[0].mxu0
        %v3568 = vadd.f32 %v3279, %v3567
        %v3569 = vpop.f32.mrb[0].mxu0
        %3570 = vmatprep.mubr.bf16.mxu0 %v2069
        %3571 = vmatmul.mubr.bf16.gmra.mrb[0].mxu0 %v2068
        %v3572 = vpop.f32.mrb[0].mxu0
        %v3573 = vadd.f32 %v3284, %v3572
        %v3574 = vpop.f32.mrb[0].mxu0
        %v3575 = vpop.f32.mrb[0].mxu0
        %v3576 = vadd.f32 %v3287, %v3575
        %v3577 = vpop.f32.mrb[0].mxu0
        %3578 = vmatprep.mubr.bf16.mxu0 %v2077
        %3579 = vmatmul.mubr.bf16.gmra.mrb[0].mxu0 %v2076
        %v3580 = vpop.f32.mrb[0].mxu0
        %v3581 = vadd.f32 %v3292, %v3580
        %v3582 = vpop.f32.mrb[0].mxu0
        %v3583 = vpop.f32.mrb[0].mxu0
        %v3584 = vadd.f32 %v3295, %v3583
        %v3585 = vpop.f32.mrb[0].mxu0
        %3586 = vmatprep.mubr.bf16.mxu0 %v2085
        %3587 = vmatmul.mubr.bf16.gmra.mrb[0].mxu0 %v2084
        %v3588 = vpop.f32.mrb[0].mxu0
        %v3589 = vadd.f32 %v3300, %v3588
        %v3590 = vpop.f32.mrb[0].mxu0
        %v3591 = vpop.f32.mrb[0].mxu0
        %v3592 = vadd.f32 %v3303, %v3591
        %v3593 = vpop.f32.mrb[0].mxu0
        %3594 = vmatprep.mubr.bf16.mxu0 %v2093
        %3595 = vmatmul.mubr.bf16.gmra.mrb[0].mxu0 %v2092
        %v3596 = vpop.f32.mrb[0].mxu0
        %v3597 = vadd.f32 %v3308, %v3596
        %v3598 = vpop.f32.mrb[0].mxu0
        %v3599 = vpop.f32.mrb[0].mxu0
        %v3600 = vadd.f32 %v3311, %v3599
        %v3601 = vpop.f32.mrb[0].mxu0
        %3602 = vmatprep.mubr.bf16.mxu0 %v2101
        %3603 = vmatmul.mubr.bf16.gmra.mrb[0].mxu0 %v2100
        %v3604 = vpop.f32.mrb[0].mxu0
        %v3605 = vadd.f32 %v3316, %v3604
        %v3606 = vpop.f32.mrb[0].mxu0
        %v3607 = vpop.f32.mrb[0].mxu0
        %v3608 = vadd.f32 %v3319, %v3607
        %v3609 = vpop.f32.mrb[0].mxu0
        %3610 = vmatprep.mubr.bf16.mxu0 %v2109
        %3611 = vmatmul.mubr.bf16.gmra.mrb[0].mxu0 %v2108
        %v3612 = vpop.f32.mrb[0].mxu0
        %v3613 = vadd.f32 %v3324, %v3612
        %v3614 = vpop.f32.mrb[0].mxu0
        %v3615 = vpop.f32.mrb[0].mxu0
        %v3616 = vadd.f32 %v3327, %v3615
        %v3617 = vpop.f32.mrb[0].mxu0
        %3618 = vmatprep.mubr.bf16.mxu0 %v2117
        %3619 = vmatmul.mubr.bf16.gmra.mrb[0].mxu0 %v2116
        %v3620 = vpop.f32.mrb[0].mxu0
        %v3621 = vadd.f32 %v3332, %v3620
        %v3622 = vpop.f32.mrb[0].mxu0
        %v3623 = vpop.f32.mrb[0].mxu0
        %v3624 = vadd.f32 %v3335, %v3623
        %v3625 = vpop.f32.mrb[0].mxu0
        %3626 = vmatprep.mubr.bf16.mxu0 %v2125
        %3627 = vmatmul.mubr.bf16.gmra.mrb[0].mxu0 %v2124
        %v3628 = vpop.f32.mrb[0].mxu0
        %v3629 = vadd.f32 %v3340, %v3628
        %v3630 = vpop.f32.mrb[0].mxu0
        %v3631 = vpop.f32.mrb[0].mxu0
        %v3632 = vadd.f32 %v3343, %v3631
        %v3633 = vpop.f32.mrb[0].mxu0
        %3634 = vmatprep.mubr.bf16.mxu0 %v2133
        %3635 = vmatmul.mubr.bf16.gmra.mrb[0].mxu0 %v2132
        %v3636 = vpop.f32.mrb[0].mxu0
        %v3637 = vadd.f32 %v3348, %v3636
        %v3638 = vpop.f32.mrb[0].mxu0
        %v3639 = vpop.f32.mrb[0].mxu0
        %v3640 = vadd.f32 %v3351, %v3639
        %v3641 = vpop.f32.mrb[0].mxu0
        %3642 = vmatprep.mubr.bf16.mxu0 %v2141
        %3643 = vmatmul.mubr.bf16.gmra.mrb[0].mxu0 %v2140
        %v3644 = vpop.f32.mrb[0].mxu0
        %v3645 = vadd.f32 %v3356, %v3644
        %v3646 = vpop.f32.mrb[0].mxu0
        %v3647 = vpop.f32.mrb[0].mxu0
        %v3648 = vadd.f32 %v3359, %v3647
        %v3649 = vpop.f32.mrb[0].mxu0
        %3650 = vmatprep.mubr.bf16.mxu0 %v2149
        %3651 = vmatmul.mubr.bf16.gmra.mrb[0].mxu0 %v2148
        %v3652 = vpop.f32.mrb[0].mxu0
        %v3653 = vadd.f32 %v3364, %v3652
        %v3654 = vpop.f32.mrb[0].mxu0
        %v3655 = vpop.f32.mrb[0].mxu0
        %v3656 = vadd.f32 %v3367, %v3655
        %v3657 = vpop.f32.mrb[0].mxu0
        %3658 = vmatprep.mubr.bf16.mxu0 %v2157
        %3659 = vmatmul.mubr.bf16.gmra.mrb[0].mxu0 %v2156
        %v3660 = vpop.f32.mrb[0].mxu0
        %v3661 = vadd.f32 %v3372, %v3660
        %v3662 = vpop.f32.mrb[0].mxu0
        %v3663 = vpop.f32.mrb[0].mxu0
        %v3664 = vadd.f32 %v3375, %v3663
        %v3665 = vpop.f32.mrb[0].mxu0
        %3666 = vmatprep.mubr.bf16.mxu0 %v2165
        %3667 = vmatmul.mubr.bf16.gmra.mrb[0].mxu0 %v2164
        %v3668 = vpop.f32.mrb[0].mxu0
        %v3669 = vadd.f32 %v3380, %v3668
        %v3670 = vpop.f32.mrb[0].mxu0
        %v3671 = vpop.f32.mrb[0].mxu0
        %v3672 = vadd.f32 %v3383, %v3671
        %v3673 = vpop.f32.mrb[0].mxu0
        %3674 = vmatprep.mubr.bf16.mxu0 %v2173
        %3675 = vmatmul.mubr.bf16.gmra.mrb[0].mxu0 %v2172
        %v3676 = vpop.f32.mrb[0].mxu0
        %v3677 = vadd.f32 %v3388, %v3676
        %v3678 = vpop.f32.mrb[0].mxu0
        %v3679 = vpop.f32.mrb[0].mxu0
        %v3680 = vadd.f32 %v3391, %v3679
        %v3681 = vpop.f32.mrb[0].mxu0
        %3682 = vmatprep.mubr.bf16.mxu0 %v2181
        %3683 = vmatmul.mubr.bf16.gmra.mrb[0].mxu0 %v2180
        %v3684 = vpop.f32.mrb[0].mxu0
        %v3685 = vadd.f32 %v3396, %v3684
        %v3686 = vpop.f32.mrb[0].mxu0
        %v3687 = vpop.f32.mrb[0].mxu0
        %v3688 = vadd.f32 %v3399, %v3687
        %v3689 = vpop.f32.mrb[0].mxu0
        %3690 = vmatprep.mubr.bf16.mxu0 %v2189
        %3691 = vmatmul.mubr.bf16.gmra.mrb[0].mxu0 %v2188
        %v3692 = vpop.f32.mrb[0].mxu0
        %v3693 = vadd.f32 %v3404, %v3692
        %v3694 = vpop.f32.mrb[0].mxu0
        %v3695 = vpop.f32.mrb[0].mxu0
        %v3696 = vadd.f32 %v3407, %v3695
        %v3697 = vpop.f32.mrb[0].mxu0
        %3698 = vmatprep.mubr.bf16.mxu0 %v2197
        %3699 = vmatmul.mubr.bf16.gmra.mrb[0].mxu0 %v2196
        %v3700 = vpop.f32.mrb[0].mxu0
        %v3701 = vadd.f32 %v3412, %v3700
        %v3702 = vpop.f32.mrb[0].mxu0
        %v3703 = vpop.f32.mrb[0].mxu0
        %v3704 = vadd.f32 %v3415, %v3703
        %v3705 = vpop.f32.mrb[0].mxu0
        %3706 = vmatprep.mubr.bf16.mxu0 %v2205
        %3707 = vmatmul.mubr.bf16.gmra.mrb[0].mxu0 %v2204
        %v3708 = vpop.f32.mrb[0].mxu0
        %v3709 = vadd.f32 %v3420, %v3708
        %v3710 = vpop.f32.mrb[0].mxu0
        %v3711 = vpop.f32.mrb[0].mxu0
        %v3712 = vadd.f32 %v3423, %v3711
        %v3713 = vpop.f32.mrb[0].mxu0
        %3714 = vmatprep.mubr.bf16.mxu0 %v2213
        %3715 = vmatmul.mubr.bf16.gmra.mrb[0].mxu0 %v2212
        %v3716 = vpop.f32.mrb[0].mxu0
        %v3717 = vadd.f32 %v3428, %v3716
        %v3718 = vpop.f32.mrb[0].mxu0
        %v3719 = vpop.f32.mrb[0].mxu0
        %v3720 = vadd.f32 %v3431, %v3719
        %v3721 = vpop.f32.mrb[0].mxu0
        %3722 = vmatprep.mubr.bf16.mxu0 %v2221
        %3723 = vmatmul.mubr.bf16.gmra.mrb[0].mxu0 %v2220
        %v3724 = vpop.f32.mrb[0].mxu0
        %v3725 = vadd.f32 %v3436, %v3724
        %v3726 = vpop.f32.mrb[0].mxu0
        %v3727 = vpop.f32.mrb[0].mxu0
        %v3728 = vadd.f32 %v3439, %v3727
        %v3729 = vpop.f32.mrb[0].mxu0
        %3730 = vmatprep.mubr.bf16.mxu0 %v2229
        %3731 = vmatmul.mubr.bf16.gmra.mrb[0].mxu0 %v2228
        %v3732 = vpop.f32.mrb[0].mxu0
        %v3733 = vadd.f32 %v3444, %v3732
        %v3734 = vpop.f32.mrb[0].mxu0
        %v3735 = vpop.f32.mrb[0].mxu0
        %v3736 = vadd.f32 %v3447, %v3735
        %v3737 = vpop.f32.mrb[0].mxu0
        %3738 = vmatprep.mubr.bf16.mxu0 %v2237
        %3739 = vmatmul.mubr.bf16.gmra.mrb[0].mxu0 %v2236
        %v3740 = vpop.f32.mrb[0].mxu0
        %v3741 = vadd.f32 %v3452, %v3740
        %v3742 = vpop.f32.mrb[0].mxu0
        %v3743 = vpop.f32.mrb[0].mxu0
        %v3744 = vadd.f32 %v3455, %v3743
        %v3745 = vpop.f32.mrb[0].mxu0
        %3746 = vdwg.mxu0
        %3747 = vmatprep.subr.bf16.mxu0 0
        %3748 = vmatpush1.bf16.msra.mxu0 %v2800
        %3749 = vmatprep.subr.bf16.mxu0 0
        %3750 = vmatpush1.bf16.msra.mxu0 %v2801
        %3751 = vmatprep.subr.bf16.mxu0 0
        %3752 = vmatpush1.bf16.msra.mxu0 %v2802
        %3753 = vmatprep.subr.bf16.mxu0 0
        %3754 = vmatpush1.bf16.msra.mxu0 %v2803
        %3755 = vmatprep.subr.bf16.mxu0 0
        %3756 = vmatpush1.bf16.msra.mxu0 %v2804
        %3757 = vmatprep.subr.bf16.mxu0 0
        %3758 = vmatpush1.bf16.msra.mxu0 %v2805
        %3759 = vmatprep.subr.bf16.mxu0 0
        %3760 = vmatpush1.bf16.msra.mxu0 %v2806
        %3761 = vmatprep.subr.bf16.mxu0 0
        %3762 = vmatpush1.bf16.msra.mxu0 %v2807
        %3763 = vmatprep.subr.bf16.mxu0 0
        %3764 = vmatpush1.bf16.msra.mxu0 %v2808
        %3765 = vmatprep.subr.bf16.mxu0 0
        %3766 = vmatpush1.bf16.msra.mxu0 %v2809
        %3767 = vmatprep.subr.bf16.mxu0 0
        %3768 = vmatpush1.bf16.msra.mxu0 %v2810
        %3769 = vmatprep.subr.bf16.mxu0 0
        %3770 = vmatpush1.bf16.msra.mxu0 %v2811
        %3771 = vmatprep.subr.bf16.mxu0 0
        %3772 = vmatpush1.bf16.msra.mxu0 %v2812
        %3773 = vmatprep.subr.bf16.mxu0 0
        %3774 = vmatpush1.bf16.msra.mxu0 %v2813
        %3775 = vmatprep.subr.bf16.mxu0 0
        %3776 = vmatpush1.bf16.msra.mxu0 %v2814
        %3777 = vmatprep.subr.bf16.mxu0 0
        %3778 = vmatpush1.bf16.msra.mxu0 %v2815
        %3779 = vmatprep.mubr.bf16.mxu0 %v1991
        %3780 = vmatmul.mubr.bf16.gmra.mrb[0].mxu0 %v1990
        %v3781 = vpop.f32.mrb[0].mxu0
        %v3782 = vadd.f32 %v3493, %v3781
        %v3783 = vpop.f32.mrb[0].mxu0
        %v3784 = vpop.f32.mrb[0].mxu0
        %v3785 = vadd.f32 %v3496, %v3784
        %v3786 = vpop.f32.mrb[0].mxu0
        %3787 = vmatprep.mubr.bf16.mxu0 %v1999
        %3788 = vmatmul.mubr.bf16.gmra.mrb[0].mxu0 %v1998
        %v3789 = vpop.f32.mrb[0].mxu0
        %v3790 = vadd.f32 %v3501, %v3789
        %v3791 = vpop.f32.mrb[0].mxu0
        %v3792 = vpop.f32.mrb[0].mxu0
        %v3793 = vadd.f32 %v3504, %v3792
        %v3794 = vpop.f32.mrb[0].mxu0
        %3795 = vmatprep.mubr.bf16.mxu0 %v2007
        %3796 = vmatmul.mubr.bf16.gmra.mrb[0].mxu0 %v2006
        %v3797 = vpop.f32.mrb[0].mxu0
        %v3798 = vadd.f32 %v3509, %v3797
        %v3799 = vpop.f32.mrb[0].mxu0
        %v3800 = vpop.f32.mrb[0].mxu0
        %v3801 = vadd.f32 %v3512, %v3800
        %v3802 = vpop.f32.mrb[0].mxu0
        %3803 = vmatprep.mubr.bf16.mxu0 %v2015
        %3804 = vmatmul.mubr.bf16.gmra.mrb[0].mxu0 %v2014
        %v3805 = vpop.f32.mrb[0].mxu0
        %v3806 = vadd.f32 %v3517, %v3805
        %v3807 = vpop.f32.mrb[0].mxu0
        %v3808 = vpop.f32.mrb[0].mxu0
        %v3809 = vadd.f32 %v3520, %v3808
        %v3810 = vpop.f32.mrb[0].mxu0
        %3811 = vmatprep.mubr.bf16.mxu0 %v2023
        %3812 = vmatmul.mubr.bf16.gmra.mrb[0].mxu0 %v2022
        %v3813 = vpop.f32.mrb[0].mxu0
        %v3814 = vadd.f32 %v3525, %v3813
        %v3815 = vpop.f32.mrb[0].mxu0
        %v3816 = vpop.f32.mrb[0].mxu0
        %v3817 = vadd.f32 %v3528, %v3816
        %v3818 = vpop.f32.mrb[0].mxu0
        %3819 = vmatprep.mubr.bf16.mxu0 %v2031
        %3820 = vmatmul.mubr.bf16.gmra.mrb[0].mxu0 %v2030
        %v3821 = vpop.f32.mrb[0].mxu0
        %v3822 = vadd.f32 %v3533, %v3821
        %v3823 = vpop.f32.mrb[0].mxu0
        %v3824 = vpop.f32.mrb[0].mxu0
        %v3825 = vadd.f32 %v3536, %v3824
        %v3826 = vpop.f32.mrb[0].mxu0
        %3827 = vmatprep.mubr.bf16.mxu0 %v2039
        %3828 = vmatmul.mubr.bf16.gmra.mrb[0].mxu0 %v2038
        %v3829 = vpop.f32.mrb[0].mxu0
        %v3830 = vadd.f32 %v3541, %v3829
        %v3831 = vpop.f32.mrb[0].mxu0
        %v3832 = vpop.f32.mrb[0].mxu0
        %v3833 = vadd.f32 %v3544, %v3832
        %v3834 = vpop.f32.mrb[0].mxu0
        %3835 = vmatprep.mubr.bf16.mxu0 %v2047
        %3836 = vmatmul.mubr.bf16.gmra.mrb[0].mxu0 %v2046
        %v3837 = vpop.f32.mrb[0].mxu0
        %v3838 = vadd.f32 %v3549, %v3837
        %v3839 = vpop.f32.mrb[0].mxu0
        %v3840 = vpop.f32.mrb[0].mxu0
        %v3841 = vadd.f32 %v3552, %v3840
        %v3842 = vpop.f32.mrb[0].mxu0
        %3843 = vmatprep.mubr.bf16.mxu0 %v2055
        %3844 = vmatmul.mubr.bf16.gmra.mrb[0].mxu0 %v2054
        %v3845 = vpop.f32.mrb[0].mxu0
        %v3846 = vadd.f32 %v3557, %v3845
        %v3847 = vpop.f32.mrb[0].mxu0
        %v3848 = vpop.f32.mrb[0].mxu0
        %v3849 = vadd.f32 %v3560, %v3848
        %v3850 = vpop.f32.mrb[0].mxu0
        %3851 = vmatprep.mubr.bf16.mxu0 %v2063
        %3852 = vmatmul.mubr.bf16.gmra.mrb[0].mxu0 %v2062
        %v3853 = vpop.f32.mrb[0].mxu0
        %v3854 = vadd.f32 %v3565, %v3853
        %v3855 = vpop.f32.mrb[0].mxu0
        %v3856 = vpop.f32.mrb[0].mxu0
        %v3857 = vadd.f32 %v3568, %v3856
        %v3858 = vpop.f32.mrb[0].mxu0
        %3859 = vmatprep.mubr.bf16.mxu0 %v2071
        %3860 = vmatmul.mubr.bf16.gmra.mrb[0].mxu0 %v2070
        %v3861 = vpop.f32.mrb[0].mxu0
        %v3862 = vadd.f32 %v3573, %v3861
        %v3863 = vpop.f32.mrb[0].mxu0
        %v3864 = vpop.f32.mrb[0].mxu0
        %v3865 = vadd.f32 %v3576, %v3864
        %v3866 = vpop.f32.mrb[0].mxu0
        %3867 = vmatprep.mubr.bf16.mxu0 %v2079
        %3868 = vmatmul.mubr.bf16.gmra.mrb[0].mxu0 %v2078
        %v3869 = vpop.f32.mrb[0].mxu0
        %v3870 = vadd.f32 %v3581, %v3869
        %v3871 = vpop.f32.mrb[0].mxu0
        %v3872 = vpop.f32.mrb[0].mxu0
        %v3873 = vadd.f32 %v3584, %v3872
        %v3874 = vpop.f32.mrb[0].mxu0
        %3875 = vmatprep.mubr.bf16.mxu0 %v2087
        %3876 = vmatmul.mubr.bf16.gmra.mrb[0].mxu0 %v2086
        %v3877 = vpop.f32.mrb[0].mxu0
        %v3878 = vadd.f32 %v3589, %v3877
        %v3879 = vpop.f32.mrb[0].mxu0
        %v3880 = vpop.f32.mrb[0].mxu0
        %v3881 = vadd.f32 %v3592, %v3880
        %v3882 = vpop.f32.mrb[0].mxu0
        %3883 = vmatprep.mubr.bf16.mxu0 %v2095
        %3884 = vmatmul.mubr.bf16.gmra.mrb[0].mxu0 %v2094
        %v3885 = vpop.f32.mrb[0].mxu0
        %v3886 = vadd.f32 %v3597, %v3885
        %v3887 = vpop.f32.mrb[0].mxu0
        %v3888 = vpop.f32.mrb[0].mxu0
        %v3889 = vadd.f32 %v3600, %v3888
        %v3890 = vpop.f32.mrb[0].mxu0
        %3891 = vmatprep.mubr.bf16.mxu0 %v2103
        %3892 = vmatmul.mubr.bf16.gmra.mrb[0].mxu0 %v2102
        %v3893 = vpop.f32.mrb[0].mxu0
        %v3894 = vadd.f32 %v3605, %v3893
        %v3895 = vpop.f32.mrb[0].mxu0
        %v3896 = vpop.f32.mrb[0].mxu0
        %v3897 = vadd.f32 %v3608, %v3896
        %v3898 = vpop.f32.mrb[0].mxu0
        %3899 = vmatprep.mubr.bf16.mxu0 %v2111
        %3900 = vmatmul.mubr.bf16.gmra.mrb[0].mxu0 %v2110
        %v3901 = vpop.f32.mrb[0].mxu0
        %v3902 = vadd.f32 %v3613, %v3901
        %v3903 = vpop.f32.mrb[0].mxu0
        %v3904 = vpop.f32.mrb[0].mxu0
        %v3905 = vadd.f32 %v3616, %v3904
        %v3906 = vpop.f32.mrb[0].mxu0
        %3907 = vmatprep.mubr.bf16.mxu0 %v2119
        %3908 = vmatmul.mubr.bf16.gmra.mrb[0].mxu0 %v2118
        %v3909 = vpop.f32.mrb[0].mxu0
        %v3910 = vadd.f32 %v3621, %v3909
        %v3911 = vpop.f32.mrb[0].mxu0
        %v3912 = vpop.f32.mrb[0].mxu0
        %v3913 = vadd.f32 %v3624, %v3912
        %v3914 = vpop.f32.mrb[0].mxu0
        %3915 = vmatprep.mubr.bf16.mxu0 %v2127
        %3916 = vmatmul.mubr.bf16.gmra.mrb[0].mxu0 %v2126
        %v3917 = vpop.f32.mrb[0].mxu0
        %v3918 = vadd.f32 %v3629, %v3917
        %v3919 = vpop.f32.mrb[0].mxu0
        %v3920 = vpop.f32.mrb[0].mxu0
        %v3921 = vadd.f32 %v3632, %v3920
        %v3922 = vpop.f32.mrb[0].mxu0
        %3923 = vmatprep.mubr.bf16.mxu0 %v2135
        %3924 = vmatmul.mubr.bf16.gmra.mrb[0].mxu0 %v2134
        %v3925 = vpop.f32.mrb[0].mxu0
        %v3926 = vadd.f32 %v3637, %v3925
        %v3927 = vpop.f32.mrb[0].mxu0
        %v3928 = vpop.f32.mrb[0].mxu0
        %v3929 = vadd.f32 %v3640, %v3928
        %v3930 = vpop.f32.mrb[0].mxu0
        %3931 = vmatprep.mubr.bf16.mxu0 %v2143
        %3932 = vmatmul.mubr.bf16.gmra.mrb[0].mxu0 %v2142
        %v3933 = vpop.f32.mrb[0].mxu0
        %v3934 = vadd.f32 %v3645, %v3933
        %v3935 = vpop.f32.mrb[0].mxu0
        %v3936 = vpop.f32.mrb[0].mxu0
        %v3937 = vadd.f32 %v3648, %v3936
        %v3938 = vpop.f32.mrb[0].mxu0
        %3939 = vmatprep.mubr.bf16.mxu0 %v2151
        %3940 = vmatmul.mubr.bf16.gmra.mrb[0].mxu0 %v2150
        %v3941 = vpop.f32.mrb[0].mxu0
        %v3942 = vadd.f32 %v3653, %v3941
        %v3943 = vpop.f32.mrb[0].mxu0
        %v3944 = vpop.f32.mrb[0].mxu0
        %v3945 = vadd.f32 %v3656, %v3944
        %v3946 = vpop.f32.mrb[0].mxu0
        %3947 = vmatprep.mubr.bf16.mxu0 %v2159
        %3948 = vmatmul.mubr.bf16.gmra.mrb[0].mxu0 %v2158
        %v3949 = vpop.f32.mrb[0].mxu0
        %v3950 = vadd.f32 %v3661, %v3949
        %v3951 = vpop.f32.mrb[0].mxu0
        %v3952 = vpop.f32.mrb[0].mxu0
        %v3953 = vadd.f32 %v3664, %v3952
        %v3954 = vpop.f32.mrb[0].mxu0
        %3955 = vmatprep.mubr.bf16.mxu0 %v2167
        %3956 = vmatmul.mubr.bf16.gmra.mrb[0].mxu0 %v2166
        %v3957 = vpop.f32.mrb[0].mxu0
        %v3958 = vadd.f32 %v3669, %v3957
        %v3959 = vpop.f32.mrb[0].mxu0
        %v3960 = vpop.f32.mrb[0].mxu0
        %v3961 = vadd.f32 %v3672, %v3960
        %v3962 = vpop.f32.mrb[0].mxu0
        %3963 = vmatprep.mubr.bf16.mxu0 %v2175
        %3964 = vmatmul.mubr.bf16.gmra.mrb[0].mxu0 %v2174
        %v3965 = vpop.f32.mrb[0].mxu0
        %v3966 = vadd.f32 %v3677, %v3965
        %v3967 = vpop.f32.mrb[0].mxu0
        %v3968 = vpop.f32.mrb[0].mxu0
        %v3969 = vadd.f32 %v3680, %v3968
        %v3970 = vpop.f32.mrb[0].mxu0
        %3971 = vmatprep.mubr.bf16.mxu0 %v2183
        %3972 = vmatmul.mubr.bf16.gmra.mrb[0].mxu0 %v2182
        %v3973 = vpop.f32.mrb[0].mxu0
        %v3974 = vadd.f32 %v3685, %v3973
        %v3975 = vpop.f32.mrb[0].mxu0
        %v3976 = vpop.f32.mrb[0].mxu0
        %v3977 = vadd.f32 %v3688, %v3976
        %v3978 = vpop.f32.mrb[0].mxu0
        %3979 = vmatprep.mubr.bf16.mxu0 %v2191
        %3980 = vmatmul.mubr.bf16.gmra.mrb[0].mxu0 %v2190
        %v3981 = vpop.f32.mrb[0].mxu0
        %v3982 = vadd.f32 %v3693, %v3981
        %v3983 = vpop.f32.mrb[0].mxu0
        %v3984 = vpop.f32.mrb[0].mxu0
        %v3985 = vadd.f32 %v3696, %v3984
        %v3986 = vpop.f32.mrb[0].mxu0
        %3987 = vmatprep.mubr.bf16.mxu0 %v2199
        %3988 = vmatmul.mubr.bf16.gmra.mrb[0].mxu0 %v2198
        %v3989 = vpop.f32.mrb[0].mxu0
        %v3990 = vadd.f32 %v3701, %v3989
        %v3991 = vpop.f32.mrb[0].mxu0
        %v3992 = vpop.f32.mrb[0].mxu0
        %v3993 = vadd.f32 %v3704, %v3992
        %v3994 = vpop.f32.mrb[0].mxu0
        %3995 = vmatprep.mubr.bf16.mxu0 %v2207
        %3996 = vmatmul.mubr.bf16.gmra.mrb[0].mxu0 %v2206
        %v3997 = vpop.f32.mrb[0].mxu0
        %v3998 = vadd.f32 %v3709, %v3997
        %v3999 = vpop.f32.mrb[0].mxu0
        %v4000 = vpop.f32.mrb[0].mxu0
        %v4001 = vadd.f32 %v3712, %v4000
        %v4002 = vpop.f32.mrb[0].mxu0
        %4003 = vmatprep.mubr.bf16.mxu0 %v2215
        %4004 = vmatmul.mubr.bf16.gmra.mrb[0].mxu0 %v2214
        %v4005 = vpop.f32.mrb[0].mxu0
        %v4006 = vadd.f32 %v3717, %v4005
        %v4007 = vpop.f32.mrb[0].mxu0
        %v4008 = vpop.f32.mrb[0].mxu0
        %v4009 = vadd.f32 %v3720, %v4008
        %v4010 = vpop.f32.mrb[0].mxu0
        %4011 = vmatprep.mubr.bf16.mxu0 %v2223
        %4012 = vmatmul.mubr.bf16.gmra.mrb[0].mxu0 %v2222
        %v4013 = vpop.f32.mrb[0].mxu0
        %v4014 = vadd.f32 %v3725, %v4013
        %v4015 = vpop.f32.mrb[0].mxu0
        %v4016 = vpop.f32.mrb[0].mxu0
        %v4017 = vadd.f32 %v3728, %v4016
        %v4018 = vpop.f32.mrb[0].mxu0
        %4019 = vmatprep.mubr.bf16.mxu0 %v2231
        %4020 = vmatmul.mubr.bf16.gmra.mrb[0].mxu0 %v2230
        %v4021 = vpop.f32.mrb[0].mxu0
        %v4022 = vadd.f32 %v3733, %v4021
        %v4023 = vpop.f32.mrb[0].mxu0
        %v4024 = vpop.f32.mrb[0].mxu0
        %v4025 = vadd.f32 %v3736, %v4024
        %v4026 = vpop.f32.mrb[0].mxu0
        %4027 = vmatprep.mubr.bf16.mxu0 %v2239
        %4028 = vmatmul.mubr.bf16.gmra.mrb[0].mxu0 %v2238
        %v4029 = vpop.f32.mrb[0].mxu0
        %v4030 = vadd.f32 %v3741, %v4029
        %v4031 = vpop.f32.mrb[0].mxu0
        %v4032 = vpop.f32.mrb[0].mxu0
        %v4033 = vadd.f32 %v3744, %v4032
        %v4034 = vpop.f32.mrb[0].mxu0
        %4035 = vdwg.mxu0
        %v4036 = vadd.f32 %v896, %v3782
        %v4037 = vadd.f32 %v897, %v3785
        %v4038 = vadd.f32 %v898, %v3790
        %v4039 = vadd.f32 %v899, %v3793
        %v4040 = vadd.f32 %v900, %v3798
        %v4041 = vadd.f32 %v901, %v3801
        %v4042 = vadd.f32 %v902, %v3806
        %v4043 = vadd.f32 %v903, %v3809
        %v4044 = vadd.f32 %v904, %v3814
        %v4045 = vadd.f32 %v905, %v3817
        %v4046 = vadd.f32 %v906, %v3822
        %v4047 = vadd.f32 %v907, %v3825
        %v4048 = vadd.f32 %v908, %v3830
        %v4049 = vadd.f32 %v909, %v3833
        %v4050 = vadd.f32 %v910, %v3838
        %v4051 = vadd.f32 %v911, %v3841
        %v4052 = vadd.f32 %v912, %v3846
        %v4053 = vadd.f32 %v913, %v3849
        %v4054 = vadd.f32 %v914, %v3854
        %v4055 = vadd.f32 %v915, %v3857
        %v4056 = vadd.f32 %v916, %v3862
        %v4057 = vadd.f32 %v917, %v3865
        %v4058 = vadd.f32 %v918, %v3870
        %v4059 = vadd.f32 %v919, %v3873
        %v4060 = vadd.f32 %v920, %v3878
        %v4061 = vadd.f32 %v921, %v3881
        %v4062 = vadd.f32 %v922, %v3886
        %v4063 = vadd.f32 %v923, %v3889
        %v4064 = vadd.f32 %v924, %v3894
        %v4065 = vadd.f32 %v925, %v3897
        %v4066 = vadd.f32 %v926, %v3902
        %v4067 = vadd.f32 %v927, %v3905
        %v4068 = vadd.f32 %v928, %v3910
        %v4069 = vadd.f32 %v929, %v3913
        %v4070 = vadd.f32 %v930, %v3918
        %v4071 = vadd.f32 %v931, %v3921
        %v4072 = vadd.f32 %v932, %v3926
        %v4073 = vadd.f32 %v933, %v3929
        %v4074 = vadd.f32 %v934, %v3934
        %v4075 = vadd.f32 %v935, %v3937
        %v4076 = vadd.f32 %v936, %v3942
        %v4077 = vadd.f32 %v937, %v3945
        %v4078 = vadd.f32 %v938, %v3950
        %v4079 = vadd.f32 %v939, %v3953
        %v4080 = vadd.f32 %v940, %v3958
        %v4081 = vadd.f32 %v941, %v3961
        %v4082 = vadd.f32 %v942, %v3966
        %v4083 = vadd.f32 %v943, %v3969
        %v4084 = vadd.f32 %v944, %v3974
        %v4085 = vadd.f32 %v945, %v3977
        %v4086 = vadd.f32 %v946, %v3982
        %v4087 = vadd.f32 %v947, %v3985
        %v4088 = vadd.f32 %v948, %v3990
        %v4089 = vadd.f32 %v949, %v3993
        %v4090 = vadd.f32 %v950, %v3998
        %v4091 = vadd.f32 %v951, %v4001
        %v4092 = vadd.f32 %v952, %v4006
        %v4093 = vadd.f32 %v953, %v4009
        %v4094 = vadd.f32 %v954, %v4014
        %v4095 = vadd.f32 %v955, %v4017
        %v4096 = vadd.f32 %v956, %v4022
        %v4097 = vadd.f32 %v957, %v4025
        %v4098 = vadd.f32 %v958, %v4030
        %v4099 = vadd.f32 %v959, %v4033
        %4100 = vst [vmem:[#allocation2] sm:$0xff] %v4036
        %4101 = vst [vmem:[#allocation2 + $0x8] sm:$0xff] %v4037
        %4102 = vst [vmem:[#allocation2 + $0x10] sm:$0xff] %v4038
        %4103 = vst [vmem:[#allocation2 + $0x18] sm:$0xff] %v4039
        %4104 = vst [vmem:[#allocation2 + $0x20] sm:$0xff] %v4040
        %4105 = vst [vmem:[#allocation2 + $0x28] sm:$0xff] %v4041
        %4106 = vst [vmem:[#allocation2 + $0x30] sm:$0xff] %v4042
        %4107 = vst [vmem:[#allocation2 + $0x38] sm:$0xff] %v4043
        %4108 = vst [vmem:[#allocation2 + $0x40] sm:$0xff] %v4044
        %4109 = vst [vmem:[#allocation2 + $0x48] sm:$0xff] %v4045
        %4110 = vst [vmem:[#allocation2 + $0x50] sm:$0xff] %v4046
        %4111 = vst [vmem:[#allocation2 + $0x58] sm:$0xff] %v4047
        %4112 = vst [vmem:[#allocation2 + $0x60] sm:$0xff] %v4048
        %4113 = vst [vmem:[#allocation2 + $0x68] sm:$0xff] %v4049
        %4114 = vst [vmem:[#allocation2 + $0x70] sm:$0xff] %v4050
        %4115 = vst [vmem:[#allocation2 + $0x78] sm:$0xff] %v4051
        %4116 = vst [vmem:[#allocation2 + $0x80] sm:$0xff] %v4052
        %4117 = vst [vmem:[#allocation2 + $0x88] sm:$0xff] %v4053
        %4118 = vst [vmem:[#allocation2 + $0x90] sm:$0xff] %v4054
        %4119 = vst [vmem:[#allocation2 + $0x98] sm:$0xff] %v4055
        %4120 = vst [vmem:[#allocation2 + $0xa0] sm:$0xff] %v4056
        %4121 = vst [vmem:[#allocation2 + $0xa8] sm:$0xff] %v4057
        %4122 = vst [vmem:[#allocation2 + $0xb0] sm:$0xff] %v4058
        %4123 = vst [vmem:[#allocation2 + $0xb8] sm:$0xff] %v4059
        %4124 = vst [vmem:[#allocation2 + $0xc0] sm:$0xff] %v4060
        %4125 = vst [vmem:[#allocation2 + $0xc8] sm:$0xff] %v4061
        %4126 = vst [vmem:[#allocation2 + $0xd0] sm:$0xff] %v4062
        %4127 = vst [vmem:[#allocation2 + $0xd8] sm:$0xff] %v4063
        %4128 = vst [vmem:[#allocation2 + $0xe0] sm:$0xff] %v4064
        %4129 = vst [vmem:[#allocation2 + $0xe8] sm:$0xff] %v4065
        %4130 = vst [vmem:[#allocation2 + $0xf0] sm:$0xff] %v4066
        %4131 = vst [vmem:[#allocation2 + $0xf8] sm:$0xff] %v4067
        %4132 = vst [vmem:[#allocation2 + $0x100] sm:$0xff] %v4068
        %4133 = vst [vmem:[#allocation2 + $0x108] sm:$0xff] %v4069
        %4134 = vst [vmem:[#allocation2 + $0x110] sm:$0xff] %v4070
        %4135 = vst [vmem:[#allocation2 + $0x118] sm:$0xff] %v4071
        %4136 = vst [vmem:[#allocation2 + $0x120] sm:$0xff] %v4072
        %4137 = vst [vmem:[#allocation2 + $0x128] sm:$0xff] %v4073
        %4138 = vst [vmem:[#allocation2 + $0x130] sm:$0xff] %v4074
        %4139 = vst [vmem:[#allocation2 + $0x138] sm:$0xff] %v4075
        %4140 = vst [vmem:[#allocation2 + $0x140] sm:$0xff] %v4076
        %4141 = vst [vmem:[#allocation2 + $0x148] sm:$0xff] %v4077
        %4142 = vst [vmem:[#allocation2 + $0x150] sm:$0xff] %v4078
        %4143 = vst [vmem:[#allocation2 + $0x158] sm:$0xff] %v4079
        %4144 = vst [vmem:[#allocation2 + $0x160] sm:$0xff] %v4080
        %4145 = vst [vmem:[#allocation2 + $0x168] sm:$0xff] %v4081
        %4146 = vst [vmem:[#allocation2 + $0x170] sm:$0xff] %v4082
        %4147 = vst [vmem:[#allocation2 + $0x178] sm:$0xff] %v4083
        %4148 = vst [vmem:[#allocation2 + $0x180] sm:$0xff] %v4084
        %4149 = vst [vmem:[#allocation2 + $0x188] sm:$0xff] %v4085
        %4150 = vst [vmem:[#allocation2 + $0x190] sm:$0xff] %v4086
        %4151 = vst [vmem:[#allocation2 + $0x198] sm:$0xff] %v4087
        %4152 = vst [vmem:[#allocation2 + $0x1a0] sm:$0xff] %v4088
        %4153 = vst [vmem:[#allocation2 + $0x1a8] sm:$0xff] %v4089
        %4154 = vst [vmem:[#allocation2 + $0x1b0] sm:$0xff] %v4090
        %4155 = vst [vmem:[#allocation2 + $0x1b8] sm:$0xff] %v4091
        %4156 = vst [vmem:[#allocation2 + $0x1c0] sm:$0xff] %v4092
        %4157 = vst [vmem:[#allocation2 + $0x1c8] sm:$0xff] %v4093
        %4158 = vst [vmem:[#allocation2 + $0x1d0] sm:$0xff] %v4094
        %4159 = vst [vmem:[#allocation2 + $0x1d8] sm:$0xff] %v4095
        %4160 = vst [vmem:[#allocation2 + $0x1e0] sm:$0xff] %v4096
        %4161 = vst [vmem:[#allocation2 + $0x1e8] sm:$0xff] %v4097
        %4162 = vst [vmem:[#allocation2 + $0x1f0] sm:$0xff] %v4098
        %4163 = vst [vmem:[#allocation2 + $0x1f8] sm:$0xff] %v4099
        %p4164 = scmp.eq.s32.totalorder %s18, 1
        // Predicated region
        $region56: #{_gcn_forward.3} parent=46 // pred_check
          %p4165 = pneg %p4164
        $region57: #{_gcn_forward.3} parent=46 // pred_check_branch
          %4167 = sbr.rel (%p4165) target = $region59
        $region58: #{_gcn_forward.3} parent=46 // pred_region
          %v4168 = vld [vmem:[#allocation2] sm:$0xff]
          %v4169 = vld [vmem:[#allocation2 + $0x8] sm:$0xff]
          %v4170 = vld [vmem:[#allocation2 + $0x10] sm:$0xff]
          %v4171 = vld [vmem:[#allocation2 + $0x18] sm:$0xff]
          %v4172 = vld [vmem:[#allocation2 + $0x20] sm:$0xff]
          %v4173 = vld [vmem:[#allocation2 + $0x28] sm:$0xff]
          %v4174 = vld [vmem:[#allocation2 + $0x30] sm:$0xff]
          %v4175 = vld [vmem:[#allocation2 + $0x38] sm:$0xff]
          %v4176 = vld [vmem:[#allocation2 + $0x40] sm:$0xff]
          %v4177 = vld [vmem:[#allocation2 + $0x48] sm:$0xff]
          %v4178 = vld [vmem:[#allocation2 + $0x50] sm:$0xff]
          %v4179 = vld [vmem:[#allocation2 + $0x58] sm:$0xff]
          %v4180 = vld [vmem:[#allocation2 + $0x60] sm:$0xff]
          %v4181 = vld [vmem:[#allocation2 + $0x68] sm:$0xff]
          %v4182 = vld [vmem:[#allocation2 + $0x70] sm:$0xff]
          %v4183 = vld [vmem:[#allocation2 + $0x78] sm:$0xff]
          %v4184 = vld [vmem:[#allocation2 + $0x80] sm:$0xff]
          %v4185 = vld [vmem:[#allocation2 + $0x88] sm:$0xff]
          %v4186 = vld [vmem:[#allocation2 + $0x90] sm:$0xff]
          %v4187 = vld [vmem:[#allocation2 + $0x98] sm:$0xff]
          %v4188 = vld [vmem:[#allocation2 + $0xa0] sm:$0xff]
          %v4189 = vld [vmem:[#allocation2 + $0xa8] sm:$0xff]
          %v4190 = vld [vmem:[#allocation2 + $0xb0] sm:$0xff]
          %v4191 = vld [vmem:[#allocation2 + $0xb8] sm:$0xff]
          %v4192 = vld [vmem:[#allocation2 + $0xc0] sm:$0xff]
          %v4193 = vld [vmem:[#allocation2 + $0xc8] sm:$0xff]
          %v4194 = vld [vmem:[#allocation2 + $0xd0] sm:$0xff]
          %v4195 = vld [vmem:[#allocation2 + $0xd8] sm:$0xff]
          %v4196 = vld [vmem:[#allocation2 + $0xe0] sm:$0xff]
          %v4197 = vld [vmem:[#allocation2 + $0xe8] sm:$0xff]
          %v4198 = vld [vmem:[#allocation2 + $0xf0] sm:$0xff]
          %v4199 = vld [vmem:[#allocation2 + $0xf8] sm:$0xff]
          %v4200 = vld [vmem:[#allocation2 + $0x100] sm:$0xff]
          %v4201 = vld [vmem:[#allocation2 + $0x108] sm:$0xff]
          %v4202 = vld [vmem:[#allocation2 + $0x110] sm:$0xff]
          %v4203 = vld [vmem:[#allocation2 + $0x118] sm:$0xff]
          %v4204 = vld [vmem:[#allocation2 + $0x120] sm:$0xff]
          %v4205 = vld [vmem:[#allocation2 + $0x128] sm:$0xff]
          %v4206 = vld [vmem:[#allocation2 + $0x130] sm:$0xff]
          %v4207 = vld [vmem:[#allocation2 + $0x138] sm:$0xff]
          %v4208 = vld [vmem:[#allocation2 + $0x140] sm:$0xff]
          %v4209 = vld [vmem:[#allocation2 + $0x148] sm:$0xff]
          %v4210 = vld [vmem:[#allocation2 + $0x150] sm:$0xff]
          %v4211 = vld [vmem:[#allocation2 + $0x158] sm:$0xff]
          %v4212 = vld [vmem:[#allocation2 + $0x160] sm:$0xff]
          %v4213 = vld [vmem:[#allocation2 + $0x168] sm:$0xff]
          %v4214 = vld [vmem:[#allocation2 + $0x170] sm:$0xff]
          %v4215 = vld [vmem:[#allocation2 + $0x178] sm:$0xff]
          %v4216 = vld [vmem:[#allocation2 + $0x180] sm:$0xff]
          %v4217 = vld [vmem:[#allocation2 + $0x188] sm:$0xff]
          %v4218 = vld [vmem:[#allocation2 + $0x190] sm:$0xff]
          %v4219 = vld [vmem:[#allocation2 + $0x198] sm:$0xff]
          %v4220 = vld [vmem:[#allocation2 + $0x1a0] sm:$0xff]
          %v4221 = vld [vmem:[#allocation2 + $0x1a8] sm:$0xff]
          %v4222 = vld [vmem:[#allocation2 + $0x1b0] sm:$0xff]
          %v4223 = vld [vmem:[#allocation2 + $0x1b8] sm:$0xff]
          %v4224 = vld [vmem:[#allocation2 + $0x1c0] sm:$0xff]
          %v4225 = vld [vmem:[#allocation2 + $0x1c8] sm:$0xff]
          %v4226 = vld [vmem:[#allocation2 + $0x1d0] sm:$0xff]
          %v4227 = vld [vmem:[#allocation2 + $0x1d8] sm:$0xff]
          %v4228 = vld [vmem:[#allocation2 + $0x1e0] sm:$0xff]
          %v4229 = vld [vmem:[#allocation2 + $0x1e8] sm:$0xff]
          %v4230 = vld [vmem:[#allocation2 + $0x1f0] sm:$0xff]
          %v4231 = vld [vmem:[#allocation2 + $0x1f8] sm:$0xff]
          %4232 = vst [vmem:[%s692] sm:$0xff] %v4168
          %4233 = vst [vmem:[%s692 + $0x8] sm:$0xff] %v4169
          %4234 = vst [vmem:[%s692 + $0x10] sm:$0xff] %v4170
          %4235 = vst [vmem:[%s692 + $0x18] sm:$0xff] %v4171
          %4236 = vst [vmem:[%s692 + $0x20] sm:$0xff] %v4172
          %4237 = vst [vmem:[%s692 + $0x28] sm:$0xff] %v4173
          %4238 = vst [vmem:[%s692 + $0x30] sm:$0xff] %v4174
          %4239 = vst [vmem:[%s692 + $0x38] sm:$0xff] %v4175
          %4240 = vst [vmem:[%s692 + $0x40] sm:$0xff] %v4176
          %4241 = vst [vmem:[%s692 + $0x48] sm:$0xff] %v4177
          %4242 = vst [vmem:[%s692 + $0x50] sm:$0xff] %v4178
          %4243 = vst [vmem:[%s692 + $0x58] sm:$0xff] %v4179
          %4244 = vst [vmem:[%s692 + $0x60] sm:$0xff] %v4180
          %4245 = vst [vmem:[%s692 + $0x68] sm:$0xff] %v4181
          %4246 = vst [vmem:[%s692 + $0x70] sm:$0xff] %v4182
          %4247 = vst [vmem:[%s692 + $0x78] sm:$0xff] %v4183
          %4248 = vst [vmem:[%s692 + $0x80] sm:$0xff] %v4184
          %4249 = vst [vmem:[%s692 + $0x88] sm:$0xff] %v4185
          %4250 = vst [vmem:[%s692 + $0x90] sm:$0xff] %v4186
          %4251 = vst [vmem:[%s692 + $0x98] sm:$0xff] %v4187
          %4252 = vst [vmem:[%s692 + $0xa0] sm:$0xff] %v4188
          %4253 = vst [vmem:[%s692 + $0xa8] sm:$0xff] %v4189
          %4254 = vst [vmem:[%s692 + $0xb0] sm:$0xff] %v4190
          %4255 = vst [vmem:[%s692 + $0xb8] sm:$0xff] %v4191
          %4256 = vst [vmem:[%s692 + $0xc0] sm:$0xff] %v4192
          %4257 = vst [vmem:[%s692 + $0xc8] sm:$0xff] %v4193
          %4258 = vst [vmem:[%s692 + $0xd0] sm:$0xff] %v4194
          %4259 = vst [vmem:[%s692 + $0xd8] sm:$0xff] %v4195
          %4260 = vst [vmem:[%s692 + $0xe0] sm:$0xff] %v4196
          %4261 = vst [vmem:[%s692 + $0xe8] sm:$0xff] %v4197
          %4262 = vst [vmem:[%s692 + $0xf0] sm:$0xff] %v4198
          %4263 = vst [vmem:[%s692 + $0xf8] sm:$0xff] %v4199
          %4264 = vst [vmem:[%s692 + $0x100] sm:$0xff] %v4200
          %4265 = vst [vmem:[%s692 + $0x108] sm:$0xff] %v4201
          %4266 = vst [vmem:[%s692 + $0x110] sm:$0xff] %v4202
          %4267 = vst [vmem:[%s692 + $0x118] sm:$0xff] %v4203
          %4268 = vst [vmem:[%s692 + $0x120] sm:$0xff] %v4204
          %4269 = vst [vmem:[%s692 + $0x128] sm:$0xff] %v4205
          %4270 = vst [vmem:[%s692 + $0x130] sm:$0xff] %v4206
          %4271 = vst [vmem:[%s692 + $0x138] sm:$0xff] %v4207
          %4272 = vst [vmem:[%s692 + $0x140] sm:$0xff] %v4208
          %4273 = vst [vmem:[%s692 + $0x148] sm:$0xff] %v4209
          %4274 = vst [vmem:[%s692 + $0x150] sm:$0xff] %v4210
          %4275 = vst [vmem:[%s692 + $0x158] sm:$0xff] %v4211
          %4276 = vst [vmem:[%s692 + $0x160] sm:$0xff] %v4212
          %4277 = vst [vmem:[%s692 + $0x168] sm:$0xff] %v4213
          %4278 = vst [vmem:[%s692 + $0x170] sm:$0xff] %v4214
          %4279 = vst [vmem:[%s692 + $0x178] sm:$0xff] %v4215
          %4280 = vst [vmem:[%s692 + $0x180] sm:$0xff] %v4216
          %4281 = vst [vmem:[%s692 + $0x188] sm:$0xff] %v4217
          %4282 = vst [vmem:[%s692 + $0x190] sm:$0xff] %v4218
          %4283 = vst [vmem:[%s692 + $0x198] sm:$0xff] %v4219
          %4284 = vst [vmem:[%s692 + $0x1a0] sm:$0xff] %v4220
          %4285 = vst [vmem:[%s692 + $0x1a8] sm:$0xff] %v4221
          %4286 = vst [vmem:[%s692 + $0x1b0] sm:$0xff] %v4222
          %4287 = vst [vmem:[%s692 + $0x1b8] sm:$0xff] %v4223
          %4288 = vst [vmem:[%s692 + $0x1c0] sm:$0xff] %v4224
          %4289 = vst [vmem:[%s692 + $0x1c8] sm:$0xff] %v4225
          %4290 = vst [vmem:[%s692 + $0x1d0] sm:$0xff] %v4226
          %4291 = vst [vmem:[%s692 + $0x1d8] sm:$0xff] %v4227
          %4292 = vst [vmem:[%s692 + $0x1e0] sm:$0xff] %v4228
          %4293 = vst [vmem:[%s692 + $0x1e8] sm:$0xff] %v4229
          %4294 = vst [vmem:[%s692 + $0x1f0] sm:$0xff] %v4230
          %4295 = vst [vmem:[%s692 + $0x1f8] sm:$0xff] %v4231
        $region59: #{_gcn_forward.3} parent=46 // pred_fallthru
          _
        %s4296 = smul.u32 64, %s17
        %p4297 = scmp.lt.s32.totalorder %s4296, 191
        %s4298 = scalar_select %p4297, %s4296, 191
        %s4299 = smul.addr %s4298, 8
        %s4300 = scalar_lea.vmem %s2, %s4299
        // Predicated region
        $region60: #{_gcn_forward.3} parent=46 // pred_check
          %p4301 = pneg %p92
        $region61: #{_gcn_forward.3} parent=46 // pred_check_branch
          %4303 = sbr.rel (%p4301) target = $region63
        $region62: #{_gcn_forward.3} parent=46 // pred_region
          %s4304 = smul.u32 64, %s17
        $region63: #{_gcn_forward.3} parent=46 // pred_fallthru
          _
      $region47: #{_gcn_forward.3} parent=5 // pred_fallthru
        _
      %p4305 = scmp.le.s32.totalorder 2, %s8
      // Predicated region
      $region64: #{_gcn_forward.3} parent=5 // pred_check
        %p4306 = pneg %p4305
      $region65: #{_gcn_forward.3} parent=5 // pred_check_branch
        %4308 = sbr.rel (%p4306) target = $region67
      $region66: #{_gcn_forward.3} parent=5 // pred_region
        %s4309 = ssub.s32 %s8, 2
        // Predicated region
        $region68: #{_gcn_forward.3} parent=66 // pred_check
          %p4310 = pneg %p98
        $region69: #{_gcn_forward.3} parent=66 // pred_check_branch
          %4312 = sbr.rel (%p4310) target = $region71
        $region70: #{_gcn_forward.3} parent=66 // pred_region
          %s4313 = smul.u32 64, %s19
          %p4314 = scmp.lt.s32.totalorder %s4313, 191
          %s4315 = scalar_select %p4314, %s4313, 191
          %s4316 = smul.addr %s4315, 8
          %s4317 = scalar_lea.vmem %s2, %s4316
        $region71: #{_gcn_forward.3} parent=66 // pred_fallthru
          _
      $region67: #{_gcn_forward.3} parent=5 // pred_fallthru
        _
    $region6: #{_gcn_forward.3} parent=1 // loop_footer
      %s12 = sadd.s32 1, %s8
    $region7: #{_gcn_forward.3} parent=1 // loop_footer_branch
      %7 = sbr.rel target = $region3
    $region8: #{_gcn_forward.3} parent=1 // loop_exit
      _

</llo_original>
